<compile_context>
chip_gen: v5e
topology: v5e:2x2
jax: 0.10.0
libtpu: 0.0.40
codegen_flags: <defaults>
</compile_context>

<pallas_src>
import numpy as np
import jax
import jax.numpy as jnp
from jax import lax
from jax.experimental import pallas as pl
from jax.experimental.pallas import tpu as pltpu


# --------------------------------------------------------------------------
# Parameter setup glue: lower each Conv2d to an equivalent dense matmul,
# then fuse adjacent affine layers offline (exact algebra, done once).
# --------------------------------------------------------------------------
def conv_as_matrix(w, b, cin, h, win, stride=1, pad=1, groups=1):
    """w: (Cout, Cin/groups, kH, kW) torch-layout numpy weight."""
    cout, cing, kh, kw = w.shape
    ho = (h + 2 * pad - kh) // stride + 1
    wo = (win + 2 * pad - kw) // stride + 1
    m = np.zeros((cin * h * win, cout * ho * wo), dtype=np.float32)
    cout_per_g = cout // groups
    for co in range(cout):
        g = co // cout_per_g
        for y in range(ho):
            for x in range(wo):
                col = (co * ho + y) * wo + x
                for cil in range(cing):
                    ci = g * cing + cil
                    for ky in range(kh):
                        hy = y * stride + ky - pad
                        if hy < 0 or hy >= h:
                            continue
                        for kx in range(kw):
                            wx = x * stride + kx - pad
                            if wx < 0 or wx >= win:
                                continue
                            row = (ci * h + hy) * win + wx
                            m[row, col] = w[co, cil, ky, kx]
    bias = np.repeat(b.astype(np.float32), ho * wo).reshape(1, -1)
    return m, bias, ho, wo


def init_params(h=16, w=16):
    rng = np.random.default_rng(0)

    def u(*shape):
        return rng.uniform(-0.3, 0.3, size=shape).astype(np.float32)

    # torch Conv2d weight layout: (Cout, Cin/groups, kH, kW)
    w1, c1 = u(6, 3, 3, 3), u(6)          # first_layer
    wdw, cdw = u(6, 1, 3, 3), u(6)        # depthwise_layer (groups=6)
    wpw, cpw = u(2, 6, 1, 1), u(2)        # pointwise_layer
    wmid, cmid = u(2, 2, 3, 3), u(2)      # middle_layer (stride 2)
    wl1, cl1 = u(1, 2, 3, 3), u(1)        # last_layer1  (stride 2)
    wl2, cl2 = u(1, 1, 3, 3), u(1)        # last_layer2  (stride 2)
    wlin, clin = u(2, 4), u(2)            # Linear_1

    m1, b1, hh, ww = conv_as_matrix(w1, c1, 3, h, w, stride=1, pad=1)
    mdw, bdw, hh, ww = conv_as_matrix(wdw, cdw, 6, hh, ww, stride=1, pad=1, groups=6)
    mpw, bpw, hh, ww = conv_as_matrix(wpw, cpw, 6, hh, ww, stride=1, pad=0)
    mmid, bmid, hh, ww = conv_as_matrix(wmid, cmid, 2, hh, ww, stride=2, pad=1)
    ml1, bl1, hh, ww = conv_as_matrix(wl1, cl1, 2, hh, ww, stride=2, pad=1)
    ml2, bl2, hh, ww = conv_as_matrix(wl2, cl2, 1, hh, ww, stride=2, pad=1)
    assert hh * ww == 4, "spatial size must reduce to 4 for Linear_1"

    # --- exact offline fusion of adjacent affine layers (f32 numpy) ---------
    # depthwise + pointwise (no nonlinearity between them)
    m_dp = mdw @ mpw                               # (1536, 512)
    b_dp = bdw @ mpw + bpw                         # (1, 512)
    # middle + last1 + last2 + Linear_1 (all affine, no activations between)
    wlin_t = np.ascontiguousarray(wlin.T)          # (4, 2)
    w_tail = mmid @ ml1 @ ml2 @ wlin_t             # (512, 2)
    b_tail = ((bmid @ ml1 + bl1) @ ml2 + bl2) @ wlin_t + clin.reshape(1, -1)

    params = dict(
        a1=jnp.full((1, 1), 0.25, jnp.float32),    # nn.PReLU() default init
        a2=jnp.full((1, 1), 0.25, jnp.float32),
        # weights in bf16 (memory-bound kernel), biases stay f32 (tiny)
        m1=jnp.asarray(m1, dtype=jnp.bfloat16),        # (768, 1536)
        b1=jnp.asarray(b1, dtype=jnp.float32),         # (1, 1536)
        m_dp=jnp.asarray(m_dp, dtype=jnp.bfloat16),    # (1536, 512)
        b_dp=jnp.asarray(b_dp, dtype=jnp.float32),     # (1, 512)
        w_tail=jnp.asarray(w_tail, dtype=jnp.bfloat16),  # (512, 2)
        b_tail=jnp.asarray(b_tail, dtype=jnp.float32),   # (1, 2)
    )
    raw = dict(w1=w1, c1=c1, wdw=wdw, cdw=cdw, wpw=wpw, cpw=cpw,
               wmid=wmid, cmid=cmid, wl1=wl1, cl1=cl1, wl2=wl2, cl2=cl2,
               wlin=wlin, clin=clin)
    return params, raw


# --------------------------------------------------------------------------
# The Pallas kernel: fused forward pass (3 matmuls + 2 PReLUs) on MXU/VPU.
# --------------------------------------------------------------------------
def _mura_kernel(x_ref, a1_ref, a2_ref,
                 m1_ref, b1_ref, mdp_ref, bdp_ref, wt_ref, bt_ref, out_ref):
    def bdot(a, w_ref):
        # bf16 x bf16 on the MXU, accumulate in f32
        return jnp.dot(a.astype(jnp.bfloat16), w_ref[...],
                       preferred_element_type=jnp.float32)

    a1 = a1_ref[0, 0]
    a2 = a2_ref[0, 0]

    h = bdot(x_ref[...], m1_ref) + b1_ref[...]       # first_layer
    h = jnp.where(h > 0, h, a1 * h)                  # prelu1
    h = bdot(h, mdp_ref) + bdp_ref[...]              # depthwise + pointwise (fused)
    h = jnp.where(h > 0, h, a2 * h)                  # prelu2
    out_ref[...] = bdot(h, wt_ref) + bt_ref[...]     # middle+last1+last2+Linear_1 (fused)


def mura_net_forward(x, params, *, tb=None):
    n = x.shape[0]
    feat = int(np.prod(x.shape[1:]))                 # 3*16*16 = 768
    x_flat = x.reshape(n, feat).astype(jnp.float32)  # NCHW row-major flatten

    # Batch tile: 256 rows fills the v6e/v7x MXU; tiny batches just round up
    # to a sublane multiple and run a single tile.
    if tb is None:
        tb = 256 if n >= 256 else max(8, -(-n // 8) * 8)
    n_pad = -(-n // tb) * tb
    if n_pad != n:
        x_flat = jnp.pad(x_flat, ((0, n_pad - n), (0, 0)))

    vmem = pltpu.MemorySpace.VMEM
    smem = pltpu.MemorySpace.SMEM

    def wspec(arr):
        # constant block index -> weight is DMA'd once and stays VMEM-resident
        return pl.BlockSpec(arr.shape, lambda i: (0, 0), memory_space=vmem)

    in_specs = [
        pl.BlockSpec((tb, feat), lambda i: (i, 0), memory_space=vmem),       # x tile
        pl.BlockSpec((1, 1), lambda i: (0, 0), memory_space=smem),           # a1
        pl.BlockSpec((1, 1), lambda i: (0, 0), memory_space=smem),           # a2
        wspec(params['m1']), wspec(params['b1']),
        wspec(params['m_dp']), wspec(params['b_dp']),
        wspec(params['w_tail']), wspec(params['b_tail']),
    ]
    out_spec = pl.BlockSpec((tb, 2), lambda i: (i, 0), memory_space=vmem)

    out = pl.pallas_call(
        _mura_kernel,
        out_shape=jax.ShapeDtypeStruct((n_pad, 2), jnp.float32),
        grid=(n_pad // tb,),
        in_specs=in_specs,
        out_specs=out_spec,
        compiler_params=pltpu.CompilerParams(
            dimension_semantics=("parallel",),        # megacore / v7x 2-TC sharding
            vmem_limit_bytes=24 * 1024 * 1024),
    )(x_flat, params['a1'], params['a2'],
      params['m1'], params['b1'], params['m_dp'], params['b_dp'],
      params['w_tail'], params['b_tail'])
    return out[:n]


# --------------------------------------------------------------------------
# References for correctness checks.
# --------------------------------------------------------------------------
def fused_reference(x_flat, params):
    """Pure-JAX reference using exactly the fused bf16 matrices (matches kernel math)."""
    def d(a, w):
        return jnp.dot(a.astype(jnp.bfloat16), w, preferred_element_type=jnp.float32)
    a1 = params['a1'][0, 0]
    a2 = params['a2'][0, 0]
    h = d(x_flat, params['m1']) + params['b1']
    h = jnp.where(h > 0, h, a1 * h)
    h = d(h, params['m_dp']) + params['b_dp']
    h = jnp.where(h > 0, h, a2 * h)
    return d(h, params['w_tail']) + params['b_tail']


def reference_forward(x, raw):
    """f32 lax.conv reference of the original PyTorch graph."""
    def conv(h, w, b, stride=1, pad=1, groups=1):
        y = lax.conv_general_dilated(
            h, jnp.asarray(w), window_strides=(stride, stride),
            padding=[(pad, pad), (pad, pad)],
            dimension_numbers=('NCHW', 'OIHW', 'NCHW'),
            feature_group_count=groups,
            precision=lax.Precision.HIGHEST)
        return y + jnp.asarray(b).reshape(1, -1, 1, 1)

    def prelu(h, a=0.25):
        return jnp.maximum(h, 0.0) + a * jnp.minimum(h, 0.0)

    h = prelu(conv(x, raw['w1'], raw['c1']))
    h = conv(h, raw['wdw'], raw['cdw'], groups=6)
    h = prelu(conv(h, raw['wpw'], raw['cpw'], pad=0))
    h = conv(h, raw['wmid'], raw['cmid'], stride=2)
    h = conv(h, raw['wl1'], raw['cl1'], stride=2)
    h = conv(h, raw['wl2'], raw['cl2'], stride=2)
    h = h.reshape(-1, 4)
    return jnp.dot(h, jnp.asarray(raw['wlin']).T,
                   precision=lax.Precision.HIGHEST) + jnp.asarray(raw['clin'])


if __name__ == "__main__":
    N, C, H, W = 2, 3, 16, 16          # Linear_1(4, 2) implies 16x16 input
    key = jax.random.PRNGKey(0)
    x = jax.random.normal(key, (N, C, H, W), dtype=jnp.float32)

    params, raw = init_params(H, W)

    out = jax.block_until_ready(mura_net_forward(x, params))
    assert out.shape == (N, 2), out.shape

    # (1) Kernel matches its own fused bf16 math (tight).
    fused = jax.block_until_ready(fused_reference(x.reshape(N, -1), params))
    assert jnp.allclose(out, fused, rtol=1e-3, atol=1e-3), (out, fused)

    # (2) Kernel matches the original f32 conv graph (looser: bf16 weights).
    ref = jax.block_until_ready(reference_forward(x, raw))
    assert jnp.allclose(out, ref, rtol=5e-2, atol=5e-2), (out, ref)

    print("KERNEL_OK")
</pallas_src>

<mosaic_0001>
module attributes {stable_mosaic.version = 11 : i64} {
  func.func @_mura_kernel(%arg0: i32, %arg1: memref<8x768xf32, #tpu.memory_space<vmem>>, %arg2: memref<1x1xf32, #tpu.memory_space<smem>>, %arg3: memref<1x1xf32, #tpu.memory_space<smem>>, %arg4: memref<768x1536xbf16, #tpu.memory_space<vmem>>, %arg5: memref<1x1536xf32, #tpu.memory_space<vmem>>, %arg6: memref<1536x512xbf16, #tpu.memory_space<vmem>>, %arg7: memref<1x512xf32, #tpu.memory_space<vmem>>, %arg8: memref<512x2xbf16, #tpu.memory_space<vmem>>, %arg9: memref<1x2xf32, #tpu.memory_space<vmem>>, %arg10: memref<8x2xf32, #tpu.memory_space<vmem>>) attributes {dimension_semantics = [#tpu.dimension_semantics<parallel>], iteration_bounds = array<i64: 1>, scalar_prefetch = 0 : i64, scratch_operands = 0 : i64, tpu.core_type = #tpu.core_type<tc>, window_params = [{transform_indices = @transform_0, window_bounds = array<i64: 8, 768>}, {transform_indices = @transform_1, window_bounds = array<i64: 1, 1>}, {transform_indices = @transform_2, window_bounds = array<i64: 1, 1>}, {pipeline_mode = #tpu.pipeline_mode<synchronous>, transform_indices = @transform_3, window_bounds = array<i64: 768, 1536>}, {pipeline_mode = #tpu.pipeline_mode<synchronous>, transform_indices = @transform_4, window_bounds = array<i64: 1, 1536>}, {pipeline_mode = #tpu.pipeline_mode<synchronous>, transform_indices = @transform_5, window_bounds = array<i64: 1536, 512>}, {pipeline_mode = #tpu.pipeline_mode<synchronous>, transform_indices = @transform_6, window_bounds = array<i64: 1, 512>}, {pipeline_mode = #tpu.pipeline_mode<synchronous>, transform_indices = @transform_7, window_bounds = array<i64: 512, 2>}, {pipeline_mode = #tpu.pipeline_mode<synchronous>, transform_indices = @transform_8, window_bounds = array<i64: 1, 2>}, {transform_indices = @transform_9, window_bounds = array<i64: 8, 2>}]} {
    %c0 = arith.constant 0 : index
    %c0_0 = arith.constant 0 : index
    %0 = memref.load %arg2[%c0, %c0_0] : memref<1x1xf32, #tpu.memory_space<smem>>
    %c0_1 = arith.constant 0 : index
    %c0_2 = arith.constant 0 : index
    %1 = memref.load %arg3[%c0_1, %c0_2] : memref<1x1xf32, #tpu.memory_space<smem>>
    %c0_3 = arith.constant 0 : index
    %c0_4 = arith.constant 0 : index
    %2 = vector.load %arg1[%c0_3, %c0_4] : memref<8x768xf32, #tpu.memory_space<vmem>>, vector<8x768xf32>
    %3 = arith.truncf %2 : vector<8x768xf32> to vector<8x768xbf16>
    %c0_5 = arith.constant 0 : index
    %c0_6 = arith.constant 0 : index
    %4 = vector.load %arg4[%c0_5, %c0_6] : memref<768x1536xbf16, #tpu.memory_space<vmem>>, vector<768x1536xbf16>
    %cst = arith.constant dense<0.000000e+00> : vector<8x1536xf32>
    %5 = tpu.matmul %3, %4, %cst {dimension_numbers = #tpu.dot_dimension_numbers<[1], [0], [0], [1], [0, 0, 1, 1], [], []>} : vector<8x768xbf16>, vector<768x1536xbf16>, vector<8x1536xf32> -> vector<8x1536xf32>
    %c0_7 = arith.constant 0 : index
    %c0_8 = arith.constant 0 : index
    %6 = vector.load %arg5[%c0_7, %c0_8] : memref<1x1536xf32, #tpu.memory_space<vmem>>, vector<1x1536xf32>
    %7 = vector.broadcast %6 : vector<1x1536xf32> to vector<8x1536xf32>
    %8 = arith.addf %5, %7 : vector<8x1536xf32>
    %cst_9 = arith.constant 0.000000e+00 : f32
    %9 = vector.broadcast %cst_9 : f32 to vector<8x1536xf32>
    %10 = arith.cmpf ogt, %8, %9 : vector<8x1536xf32>
    %11 = vector.broadcast %0 : f32 to vector<8x1536xf32>
    %12 = arith.mulf %11, %8 : vector<8x1536xf32>
    %13 = arith.select %10, %8, %12 : vector<8x1536xi1>, vector<8x1536xf32>
    %14 = arith.truncf %13 : vector<8x1536xf32> to vector<8x1536xbf16>
    %c0_10 = arith.constant 0 : index
    %c0_11 = arith.constant 0 : index
    %15 = vector.load %arg6[%c0_10, %c0_11] : memref<1536x512xbf16, #tpu.memory_space<vmem>>, vector<1536x512xbf16>
    %cst_12 = arith.constant dense<0.000000e+00> : vector<8x512xf32>
    %16 = tpu.matmul %14, %15, %cst_12 {dimension_numbers = #tpu.dot_dimension_numbers<[1], [0], [0], [1], [0, 0, 1, 1], [], []>} : vector<8x1536xbf16>, vector<1536x512xbf16>, vector<8x512xf32> -> vector<8x512xf32>
    %c0_13 = arith.constant 0 : index
    %c0_14 = arith.constant 0 : index
    %17 = vector.load %arg7[%c0_13, %c0_14] : memref<1x512xf32, #tpu.memory_space<vmem>>, vector<1x512xf32>
    %18 = vector.broadcast %17 : vector<1x512xf32> to vector<8x512xf32>
    %19 = arith.addf %16, %18 : vector<8x512xf32>
    %cst_15 = arith.constant 0.000000e+00 : f32
    %20 = vector.broadcast %cst_15 : f32 to vector<8x512xf32>
    %21 = arith.cmpf ogt, %19, %20 : vector<8x512xf32>
    %22 = vector.broadcast %1 : f32 to vector<8x512xf32>
    %23 = arith.mulf %22, %19 : vector<8x512xf32>
    %24 = arith.select %21, %19, %23 : vector<8x512xi1>, vector<8x512xf32>
    %25 = arith.truncf %24 : vector<8x512xf32> to vector<8x512xbf16>
    %c0_16 = arith.constant 0 : index
    %c0_17 = arith.constant 0 : index
    %26 = vector.load %arg8[%c0_16, %c0_17] : memref<512x2xbf16, #tpu.memory_space<vmem>>, vector<512x2xbf16>
    %cst_18 = arith.constant dense<0.000000e+00> : vector<8x2xf32>
    %27 = tpu.matmul %25, %26, %cst_18 {dimension_numbers = #tpu.dot_dimension_numbers<[1], [0], [0], [1], [0, 0, 1, 1], [], []>} : vector<8x512xbf16>, vector<512x2xbf16>, vector<8x2xf32> -> vector<8x2xf32>
    %c0_19 = arith.constant 0 : index
    %c0_20 = arith.constant 0 : index
    %28 = vector.load %arg9[%c0_19, %c0_20] : memref<1x2xf32, #tpu.memory_space<vmem>>, vector<1x2xf32>
    %29 = vector.broadcast %28 : vector<1x2xf32> to vector<8x2xf32>
    %30 = arith.addf %27, %29 : vector<8x2xf32>
    %c0_21 = arith.constant 0 : index
    %c0_22 = arith.constant 0 : index
    %31 = vector.load %arg10[%c0_21, %c0_22] : memref<8x2xf32, #tpu.memory_space<vmem>>, vector<8x2xf32>
    tpu.vector_store %arg10[%c0_21, %c0_22], %30 {strides = array<i32>} : memref<8x2xf32, #tpu.memory_space<vmem>>, vector<8x2xf32>,
    return
  }
  func.func @transform_0(%arg0: i32) -> (i32, i32) {
    %c0_i32 = arith.constant 0 : i32
    %c0_i32_0 = arith.constant 0 : i32
    return %arg0, %c0_i32 : i32, i32
  }
  func.func @transform_1(%arg0: i32) -> (i32, i32) {
    %c0_i32 = arith.constant 0 : i32
    %c0_i32_0 = arith.constant 0 : i32
    %c0_i32_1 = arith.constant 0 : i32
    return %c0_i32, %c0_i32_0 : i32, i32
  }
  func.func @transform_2(%arg0: i32) -> (i32, i32) {
    %c0_i32 = arith.constant 0 : i32
    %c0_i32_0 = arith.constant 0 : i32
    %c0_i32_1 = arith.constant 0 : i32
    return %c0_i32, %c0_i32_0 : i32, i32
  }
  func.func @transform_3(%arg0: i32) -> (i32, i32) {
    %c0_i32 = arith.constant 0 : i32
    %c0_i32_0 = arith.constant 0 : i32
    %c0_i32_1 = arith.constant 0 : i32
    return %c0_i32, %c0_i32_0 : i32, i32
  }
  func.func @transform_4(%arg0: i32) -> (i32, i32) {
    %c0_i32 = arith.constant 0 : i32
    %c0_i32_0 = arith.constant 0 : i32
    %c0_i32_1 = arith.constant 0 : i32
    return %c0_i32, %c0_i32_0 : i32, i32
  }
  func.func @transform_5(%arg0: i32) -> (i32, i32) {
    %c0_i32 = arith.constant 0 : i32
    %c0_i32_0 = arith.constant 0 : i32
    %c0_i32_1 = arith.constant 0 : i32
    return %c0_i32, %c0_i32_0 : i32, i32
  }
  func.func @transform_6(%arg0: i32) -> (i32, i32) {
    %c0_i32 = arith.constant 0 : i32
    %c0_i32_0 = arith.constant 0 : i32
    %c0_i32_1 = arith.constant 0 : i32
    return %c0_i32, %c0_i32_0 : i32, i32
  }
  func.func @transform_7(%arg0: i32) -> (i32, i32) {
    %c0_i32 = arith.constant 0 : i32
    %c0_i32_0 = arith.constant 0 : i32
    %c0_i32_1 = arith.constant 0 : i32
    return %c0_i32, %c0_i32_0 : i32, i32
  }
  func.func @transform_8(%arg0: i32) -> (i32, i32) {
    %c0_i32 = arith.constant 0 : i32
    %c0_i32_0 = arith.constant 0 : i32
    %c0_i32_1 = arith.constant 0 : i32
    return %c0_i32, %c0_i32_0 : i32, i32
  }
  func.func @transform_9(%arg0: i32) -> (i32, i32) {
    %c0_i32 = arith.constant 0 : i32
    %c0_i32_0 = arith.constant 0 : i32
    return %arg0, %c0_i32 : i32, i32
  }
}

</mosaic_0001>

<llo_original>
// kernel: tpu_custom_call.1
$region0: #{tpu_custom_call.1}
  #allocation0 [shape = 'u32[]', space=smem, size = 0x4, offset = 0x4, fixed_abs, tag = 'smem constant byte address 0x4 - core index']
  #allocation1 [shape = 'u32[72,128]{1,0:T(1,128)}', space=vmem, size = 0x9000, scoped, tag = 'internal scratch']
  #allocation2 [shape = 'f32[1,1]{1,0:T(1,128)S(6)}', space=smem, size = 0x200, scoped, tag = 'scoped memory for tpu_custom_call.1']
  #allocation3 [shape = 'f32[1,1]{1,0:T(1,128)S(6)}', space=smem, size = 0x200, scoped, tag = 'scoped memory for tpu_custom_call.1']
  %s0 = inlined_call_operand.hbm [shape: f32[8,768], index: 0, kind: input, shape index: {}]
  %s1 = inlined_call_operand.<no memory space> [shape: f32[1,1], index: 1, kind: input, shape index: {}]
  %s2 = inlined_call_operand.<no memory space> [shape: f32[1,1], index: 2, kind: input, shape index: {}]
  %s3 = inlined_call_operand.hbm [shape: bf16[768,1536], index: 3, kind: input, shape index: {}]
  %s4 = inlined_call_operand.hbm [shape: f32[1,1536], index: 4, kind: input, shape index: {}]
  %s5 = inlined_call_operand.hbm [shape: bf16[1536,512], index: 5, kind: input, shape index: {}]
  %s6 = inlined_call_operand.hbm [shape: f32[1,512], index: 6, kind: input, shape index: {}]
  %s7 = inlined_call_operand.vmem [shape: bf16[512,2], index: 7, kind: input, shape index: {}]
  %s8 = inlined_call_operand.hbm [shape: f32[1,2], index: 8, kind: input, shape index: {}]
  %s9 = inlined_call_operand.vmem [shape: f32[8,2], index: 9, kind: output, shape index: {}]
  %s10 = sld [smem:[#allocation0]]
  $region70: #{tpu_custom_call.1} parent=0
    _
  %s12 = ssub.s32 1, %s10
  %s13 = scalar_select 0, %s12, %s10
  %14 = sst [smem:[#allocation2]] %s1
  %15 = sst [smem:[#allocation3]] %s2
  $region1: #{tpu_custom_call.1} parent=0
    #allocation4 [shape = 'u8[24576]{0}', space=vmem, size = 0x6000, scoped, tag = 'input window, operand 0, single buffered']
    #allocation5 [shape = 's32[1]{0}', space=sflag, size = 0x4, scoped, tag = 'scoped memory for tpu_custom_call.1']
    #allocation6 [shape = 'u8[2359296]{0}', space=vmem, size = 0x240000, scoped, tag = 'input window, operand 3, single buffered']
    #allocation7 [shape = 's32[1]{0}', space=sflag, size = 0x4, scoped, tag = 'scoped memory for tpu_custom_call.1']
    #allocation8 [shape = 'u8[6144]{0}', space=vmem, size = 0x1800, scoped, tag = 'input window, operand 4, single buffered']
    #allocation9 [shape = 'u8[1572864]{0}', space=vmem, size = 0x180000, scoped, tag = 'input window, operand 5, single buffered']
    #allocation10 [shape = 's32[1]{0}', space=sflag, size = 0x4, scoped, tag = 'scoped memory for tpu_custom_call.1']
    #allocation11 [shape = 'u8[2048]{0}', space=vmem, size = 0x800, scoped, tag = 'input window, operand 6, single buffered']
    #allocation12 [shape = 'u8[512]{0}', space=vmem, size = 0x400, scoped, tag = 'input window, operand 8, single buffered']
    #allocation13 [shape = 's32[1]{0}', space=sflag, size = 0x4, scoped, tag = 'scoped memory for tpu_custom_call.1']
    %16 = vsyncpa [#allocation5], 0
    %17 = vsyncpa [#allocation7], 0
    %18 = vsyncpa [#allocation10], 0
    %19 = vsyncpa [#allocation13], 0
    // Predicated region
    $region2: #{tpu_custom_call.1} parent=1 // pred_check
      _
    $region3: #{tpu_custom_call.1} parent=1 // pred_check_branch
      %21 = sbr.rel (0) target = $region5
    $region4: #{tpu_custom_call.1} parent=1 // pred_region
      %23 = vsyncadd [#allocation5], 0
      %s25 = sshll.u32 %s0, 4
      %s26 = int_to_ptr.hbm [resolvable:$true] %s25
      %s27 = sshll.u32 [#allocation4], 4
      %s28 = int_to_ptr.vmem [resolvable:$true] %s27
      %30 = dma.hbm_to_vmem [thread:$0]  %s26, 768, %s28, [#allocation5]
    $region5: #{tpu_custom_call.1} parent=1 // pred_fallthru
      _
    // Predicated region
    $region6: #{tpu_custom_call.1} parent=1 // pred_check
      _
    $region7: #{tpu_custom_call.1} parent=1 // pred_check_branch
      %32 = sbr.rel (0) target = $region9
    $region8: #{tpu_custom_call.1} parent=1 // pred_region
      _
    $region9: #{tpu_custom_call.1} parent=1 // pred_fallthru
      _
    // Predicated region
    $region10: #{tpu_custom_call.1} parent=1 // pred_check
      _
    $region11: #{tpu_custom_call.1} parent=1 // pred_check_branch
      %34 = sbr.rel (0) target = $region13
    $region12: #{tpu_custom_call.1} parent=1 // pred_region
      _
    $region13: #{tpu_custom_call.1} parent=1 // pred_fallthru
      _
    // Predicated region
    $region14: #{tpu_custom_call.1} parent=1 // pred_check
      _
    $region15: #{tpu_custom_call.1} parent=1 // pred_check_branch
      %36 = sbr.rel (0) target = $region17
    $region16: #{tpu_custom_call.1} parent=1 // pred_region
      %38 = vsyncadd [#allocation7], 0
      %s39 = sshll.u32 %s3, 4
      %s40 = int_to_ptr.hbm [resolvable:$true] %s39
      %s41 = sshll.u32 [#allocation6], 4
      %s42 = int_to_ptr.vmem [resolvable:$true] %s41
      %47 = dma.hbm_to_vmem [thread:$0]  %s40, 73728, %s42, [#allocation7], 768, 768, 48
    $region17: #{tpu_custom_call.1} parent=1 // pred_fallthru
      _
    // Predicated region
    $region18: #{tpu_custom_call.1} parent=1 // pred_check
      _
    $region19: #{tpu_custom_call.1} parent=1 // pred_check_branch
      %49 = sbr.rel (0) target = $region21
    $region20: #{tpu_custom_call.1} parent=1 // pred_region
      %51 = vsyncadd [#allocation7], 0
      %s53 = sshll.u32 %s4, 4
      %s54 = int_to_ptr.hbm [resolvable:$true] %s53
      %s55 = sshll.u32 [#allocation8], 4
      %s56 = int_to_ptr.vmem [resolvable:$true] %s55
      %58 = dma.hbm_to_vmem [thread:$0]  %s54, 192, %s56, [#allocation7]
    $region21: #{tpu_custom_call.1} parent=1 // pred_fallthru
      _
    // Predicated region
    $region22: #{tpu_custom_call.1} parent=1 // pred_check
      _
    $region23: #{tpu_custom_call.1} parent=1 // pred_check_branch
      %60 = sbr.rel (0) target = $region25
    $region24: #{tpu_custom_call.1} parent=1 // pred_region
      %62 = vsyncadd [#allocation10], 0
      %s63 = sshll.u32 %s5, 4
      %s64 = int_to_ptr.hbm [resolvable:$true] %s63
      %s65 = sshll.u32 [#allocation9], 4
      %s66 = int_to_ptr.vmem [resolvable:$true] %s65
      %71 = dma.hbm_to_vmem [thread:$0]  %s64, 49152, %s66, [#allocation10], 256, 256, 16
    $region25: #{tpu_custom_call.1} parent=1 // pred_fallthru
      _
    // Predicated region
    $region26: #{tpu_custom_call.1} parent=1 // pred_check
      _
    $region27: #{tpu_custom_call.1} parent=1 // pred_check_branch
      %73 = sbr.rel (0) target = $region29
    $region28: #{tpu_custom_call.1} parent=1 // pred_region
      %75 = vsyncadd [#allocation10], 0
      %s77 = sshll.u32 %s6, 4
      %s78 = int_to_ptr.hbm [resolvable:$true] %s77
      %s79 = sshll.u32 [#allocation11], 4
      %s80 = int_to_ptr.vmem [resolvable:$true] %s79
      %82 = dma.hbm_to_vmem [thread:$0]  %s78, 64, %s80, [#allocation10]
    $region29: #{tpu_custom_call.1} parent=1 // pred_fallthru
      _
    // Predicated region
    $region30: #{tpu_custom_call.1} parent=1 // pred_check
      _
    $region31: #{tpu_custom_call.1} parent=1 // pred_check_branch
      %84 = sbr.rel (0) target = $region33
    $region32: #{tpu_custom_call.1} parent=1 // pred_region
      _
    $region33: #{tpu_custom_call.1} parent=1 // pred_fallthru
      _
    // Predicated region
    $region34: #{tpu_custom_call.1} parent=1 // pred_check
      _
    $region35: #{tpu_custom_call.1} parent=1 // pred_check_branch
      %86 = sbr.rel (0) target = $region37
    $region36: #{tpu_custom_call.1} parent=1 // pred_region
      %88 = vsyncadd [#allocation13], 0
      %s90 = sshll.u32 %s8, 4
      %s91 = int_to_ptr.hbm [resolvable:$true] %s90
      %s92 = sshll.u32 [#allocation12], 4
      %s93 = int_to_ptr.vmem [resolvable:$true] %s92
      %95 = dma.hbm_to_vmem [thread:$0]  %s91, 16, %s93, [#allocation13]
    $region37: #{tpu_custom_call.1} parent=1 // pred_fallthru
      _
    // Predicated region
    $region38: #{tpu_custom_call.1} parent=1 // pred_check
      _
    $region39: #{tpu_custom_call.1} parent=1 // pred_check_branch
      %97 = sbr.rel (0) target = $region41
    $region40: #{tpu_custom_call.1} parent=1 // pred_region
      %99 = dma.done [#allocation5], 768
    $region41: #{tpu_custom_call.1} parent=1 // pred_fallthru
      _
    // Predicated region
    $region42: #{tpu_custom_call.1} parent=1 // pred_check
      _
    $region43: #{tpu_custom_call.1} parent=1 // pred_check_branch
      %101 = sbr.rel (0) target = $region45
    $region44: #{tpu_custom_call.1} parent=1 // pred_region
      %103 = dma.done [#allocation7], 73728
    $region45: #{tpu_custom_call.1} parent=1 // pred_fallthru
      _
    // Predicated region
    $region46: #{tpu_custom_call.1} parent=1 // pred_check
      _
    $region47: #{tpu_custom_call.1} parent=1 // pred_check_branch
      %105 = sbr.rel (0) target = $region49
    $region48: #{tpu_custom_call.1} parent=1 // pred_region
      %107 = dma.done [#allocation7], 192
    $region49: #{tpu_custom_call.1} parent=1 // pred_fallthru
      _
    // Predicated region
    $region50: #{tpu_custom_call.1} parent=1 // pred_check
      _
    $region51: #{tpu_custom_call.1} parent=1 // pred_check_branch
      %109 = sbr.rel (0) target = $region53
    $region52: #{tpu_custom_call.1} parent=1 // pred_region
      %111 = dma.done [#allocation10], 49152
    $region53: #{tpu_custom_call.1} parent=1 // pred_fallthru
      _
    // Predicated region
    $region54: #{tpu_custom_call.1} parent=1 // pred_check
      _
    $region55: #{tpu_custom_call.1} parent=1 // pred_check_branch
      %113 = sbr.rel (0) target = $region57
    $region56: #{tpu_custom_call.1} parent=1 // pred_region
      %115 = dma.done [#allocation10], 64
    $region57: #{tpu_custom_call.1} parent=1 // pred_fallthru
      _
    // Predicated region
    $region58: #{tpu_custom_call.1} parent=1 // pred_check
      _
    $region59: #{tpu_custom_call.1} parent=1 // pred_check_branch
      %117 = sbr.rel (0) target = $region61
    $region60: #{tpu_custom_call.1} parent=1 // pred_region
      %119 = dma.done [#allocation13], 16
    $region61: #{tpu_custom_call.1} parent=1 // pred_fallthru
      _
    %s120 = sld [smem:[#allocation2]]
    %s121 = sld [smem:[#allocation3]]
    %v122 = vld [vmem:[#allocation4] sm:$0xff]
    %v123 = vld [vmem:[#allocation4 + $0x8] sm:$0xff]
    %v124 = vld [vmem:[#allocation4 + $0x10] sm:$0xff]
    %v125 = vld [vmem:[#allocation4 + $0x18] sm:$0xff]
    %v126 = vld [vmem:[#allocation4 + $0x20] sm:$0xff]
    %v127 = vld [vmem:[#allocation4 + $0x28] sm:$0xff]
    %v128 = vpack.c.bf16 %v122, %v122
    %v129 = vpack.c.bf16 %v123, %v123
    %v130 = vpack.c.bf16 %v124, %v124
    %v131 = vpack.c.bf16 %v125, %v125
    %v132 = vpack.c.bf16 %v126, %v126
    %v133 = vpack.c.bf16 %v127, %v127
    %v134 = vld [vmem:[#allocation6] sm:$0xff]
    %v135 = vld [vmem:[#allocation6 + $0x8] sm:$0xff]
    %v136 = vld [vmem:[#allocation6 + $0x10] sm:$0xff]
    %v137 = vld [vmem:[#allocation6 + $0x18] sm:$0xff]
    %v138 = vld [vmem:[#allocation6 + $0x20] sm:$0xff]
    %v139 = vld [vmem:[#allocation6 + $0x28] sm:$0xff]
    %v140 = vld [vmem:[#allocation6 + $0x30] sm:$0xff]
    %v141 = vld [vmem:[#allocation6 + $0x38] sm:$0xff]
    %v142 = vld [vmem:[#allocation6 + $0x40] sm:$0xff]
    %v143 = vld [vmem:[#allocation6 + $0x48] sm:$0xff]
    %v144 = vld [vmem:[#allocation6 + $0x50] sm:$0xff]
    %v145 = vld [vmem:[#allocation6 + $0x58] sm:$0xff]
    %v146 = vld [vmem:[#allocation6 + $0x60] sm:$0xff]
    %v147 = vld [vmem:[#allocation6 + $0x68] sm:$0xff]
    %v148 = vld [vmem:[#allocation6 + $0x70] sm:$0xff]
    %v149 = vld [vmem:[#allocation6 + $0x78] sm:$0xff]
    %v150 = vld [vmem:[#allocation6 + $0x80] sm:$0xff]
    %v151 = vld [vmem:[#allocation6 + $0x88] sm:$0xff]
    %v152 = vld [vmem:[#allocation6 + $0x90] sm:$0xff]
    %v153 = vld [vmem:[#allocation6 + $0x98] sm:$0xff]
    %v154 = vld [vmem:[#allocation6 + $0xa0] sm:$0xff]
    %v155 = vld [vmem:[#allocation6 + $0xa8] sm:$0xff]
    %v156 = vld [vmem:[#allocation6 + $0xb0] sm:$0xff]
    %v157 = vld [vmem:[#allocation6 + $0xb8] sm:$0xff]
    %v158 = vld [vmem:[#allocation6 + $0xc0] sm:$0xff]
    %v159 = vld [vmem:[#allocation6 + $0xc8] sm:$0xff]
    %v160 = vld [vmem:[#allocation6 + $0xd0] sm:$0xff]
    %v161 = vld [vmem:[#allocation6 + $0xd8] sm:$0xff]
    %v162 = vld [vmem:[#allocation6 + $0xe0] sm:$0xff]
    %v163 = vld [vmem:[#allocation6 + $0xe8] sm:$0xff]
    %v164 = vld [vmem:[#allocation6 + $0xf0] sm:$0xff]
    %v165 = vld [vmem:[#allocation6 + $0xf8] sm:$0xff]
    %v166 = vld [vmem:[#allocation6 + $0x100] sm:$0xff]
    %v167 = vld [vmem:[#allocation6 + $0x108] sm:$0xff]
    %v168 = vld [vmem:[#allocation6 + $0x110] sm:$0xff]
    %v169 = vld [vmem:[#allocation6 + $0x118] sm:$0xff]
    %v170 = vld [vmem:[#allocation6 + $0x120] sm:$0xff]
    %v171 = vld [vmem:[#allocation6 + $0x128] sm:$0xff]
    %v172 = vld [vmem:[#allocation6 + $0x130] sm:$0xff]
    %v173 = vld [vmem:[#allocation6 + $0x138] sm:$0xff]
    %v174 = vld [vmem:[#allocation6 + $0x140] sm:$0xff]
    %v175 = vld [vmem:[#allocation6 + $0x148] sm:$0xff]
    %v176 = vld [vmem:[#allocation6 + $0x150] sm:$0xff]
    %v177 = vld [vmem:[#allocation6 + $0x158] sm:$0xff]
    %v178 = vld [vmem:[#allocation6 + $0x160] sm:$0xff]
    %v179 = vld [vmem:[#allocation6 + $0x168] sm:$0xff]
    %v180 = vld [vmem:[#allocation6 + $0x170] sm:$0xff]
    %v181 = vld [vmem:[#allocation6 + $0x178] sm:$0xff]
    %v182 = vld [vmem:[#allocation6 + $0x180] sm:$0xff]
    %v183 = vld [vmem:[#allocation6 + $0x188] sm:$0xff]
    %v184 = vld [vmem:[#allocation6 + $0x190] sm:$0xff]
    %v185 = vld [vmem:[#allocation6 + $0x198] sm:$0xff]
    %v186 = vld [vmem:[#allocation6 + $0x1a0] sm:$0xff]
    %v187 = vld [vmem:[#allocation6 + $0x1a8] sm:$0xff]
    %v188 = vld [vmem:[#allocation6 + $0x1b0] sm:$0xff]
    %v189 = vld [vmem:[#allocation6 + $0x1b8] sm:$0xff]
    %v190 = vld [vmem:[#allocation6 + $0x1c0] sm:$0xff]
    %v191 = vld [vmem:[#allocation6 + $0x1c8] sm:$0xff]
    %v192 = vld [vmem:[#allocation6 + $0x1d0] sm:$0xff]
    %v193 = vld [vmem:[#allocation6 + $0x1d8] sm:$0xff]
    %v194 = vld [vmem:[#allocation6 + $0x1e0] sm:$0xff]
    %v195 = vld [vmem:[#allocation6 + $0x1e8] sm:$0xff]
    %v196 = vld [vmem:[#allocation6 + $0x1f0] sm:$0xff]
    %v197 = vld [vmem:[#allocation6 + $0x1f8] sm:$0xff]
    %v198 = vld [vmem:[#allocation6 + $0x200] sm:$0xff]
    %v199 = vld [vmem:[#allocation6 + $0x208] sm:$0xff]
    %v200 = vld [vmem:[#allocation6 + $0x210] sm:$0xff]
    %v201 = vld [vmem:[#allocation6 + $0x218] sm:$0xff]
    %v202 = vld [vmem:[#allocation6 + $0x220] sm:$0xff]
    %v203 = vld [vmem:[#allocation6 + $0x228] sm:$0xff]
    %v204 = vld [vmem:[#allocation6 + $0x230] sm:$0xff]
    %v205 = vld [vmem:[#allocation6 + $0x238] sm:$0xff]
    %v206 = vld [vmem:[#allocation6 + $0x240] sm:$0xff]
    %v207 = vld [vmem:[#allocation6 + $0x248] sm:$0xff]
    %v208 = vld [vmem:[#allocation6 + $0x250] sm:$0xff]
    %v209 = vld [vmem:[#allocation6 + $0x258] sm:$0xff]
    %v210 = vld [vmem:[#allocation6 + $0x260] sm:$0xff]
    %v211 = vld [vmem:[#allocation6 + $0x268] sm:$0xff]
    %v212 = vld [vmem:[#allocation6 + $0x270] sm:$0xff]
    %v213 = vld [vmem:[#allocation6 + $0x278] sm:$0xff]
    %v214 = vld [vmem:[#allocation6 + $0x280] sm:$0xff]
    %v215 = vld [vmem:[#allocation6 + $0x288] sm:$0xff]
    %v216 = vld [vmem:[#allocation6 + $0x290] sm:$0xff]
    %v217 = vld [vmem:[#allocation6 + $0x298] sm:$0xff]
    %v218 = vld [vmem:[#allocation6 + $0x2a0] sm:$0xff]
    %v219 = vld [vmem:[#allocation6 + $0x2a8] sm:$0xff]
    %v220 = vld [vmem:[#allocation6 + $0x2b0] sm:$0xff]
    %v221 = vld [vmem:[#allocation6 + $0x2b8] sm:$0xff]
    %v222 = vld [vmem:[#allocation6 + $0x2c0] sm:$0xff]
    %v223 = vld [vmem:[#allocation6 + $0x2c8] sm:$0xff]
    %v224 = vld [vmem:[#allocation6 + $0x2d0] sm:$0xff]
    %v225 = vld [vmem:[#allocation6 + $0x2d8] sm:$0xff]
    %v226 = vld [vmem:[#allocation6 + $0x2e0] sm:$0xff]
    %v227 = vld [vmem:[#allocation6 + $0x2e8] sm:$0xff]
    %v228 = vld [vmem:[#allocation6 + $0x2f0] sm:$0xff]
    %v229 = vld [vmem:[#allocation6 + $0x2f8] sm:$0xff]
    %v230 = vld [vmem:[#allocation6 + $0x300] sm:$0xff]
    %v231 = vld [vmem:[#allocation6 + $0x308] sm:$0xff]
    %v232 = vld [vmem:[#allocation6 + $0x310] sm:$0xff]
    %v233 = vld [vmem:[#allocation6 + $0x318] sm:$0xff]
    %v234 = vld [vmem:[#allocation6 + $0x320] sm:$0xff]
    %v235 = vld [vmem:[#allocation6 + $0x328] sm:$0xff]
    %v236 = vld [vmem:[#allocation6 + $0x330] sm:$0xff]
    %v237 = vld [vmem:[#allocation6 + $0x338] sm:$0xff]
    %v238 = vld [vmem:[#allocation6 + $0x340] sm:$0xff]
    %v239 = vld [vmem:[#allocation6 + $0x348] sm:$0xff]
    %v240 = vld [vmem:[#allocation6 + $0x350] sm:$0xff]
    %v241 = vld [vmem:[#allocation6 + $0x358] sm:$0xff]
    %v242 = vld [vmem:[#allocation6 + $0x360] sm:$0xff]
    %v243 = vld [vmem:[#allocation6 + $0x368] sm:$0xff]
    %v244 = vld [vmem:[#allocation6 + $0x370] sm:$0xff]
    %v245 = vld [vmem:[#allocation6 + $0x378] sm:$0xff]
    %v246 = vld [vmem:[#allocation6 + $0x380] sm:$0xff]
    %v247 = vld [vmem:[#allocation6 + $0x388] sm:$0xff]
    %v248 = vld [vmem:[#allocation6 + $0x390] sm:$0xff]
    %v249 = vld [vmem:[#allocation6 + $0x398] sm:$0xff]
    %v250 = vld [vmem:[#allocation6 + $0x3a0] sm:$0xff]
    %v251 = vld [vmem:[#allocation6 + $0x3a8] sm:$0xff]
    %v252 = vld [vmem:[#allocation6 + $0x3b0] sm:$0xff]
    %v253 = vld [vmem:[#allocation6 + $0x3b8] sm:$0xff]
    %v254 = vld [vmem:[#allocation6 + $0x3c0] sm:$0xff]
    %v255 = vld [vmem:[#allocation6 + $0x3c8] sm:$0xff]
    %v256 = vld [vmem:[#allocation6 + $0x3d0] sm:$0xff]
    %v257 = vld [vmem:[#allocation6 + $0x3d8] sm:$0xff]
    %v258 = vld [vmem:[#allocation6 + $0x3e0] sm:$0xff]
    %v259 = vld [vmem:[#allocation6 + $0x3e8] sm:$0xff]
    %v260 = vld [vmem:[#allocation6 + $0x3f0] sm:$0xff]
    %v261 = vld [vmem:[#allocation6 + $0x3f8] sm:$0xff]
    %v262 = vld [vmem:[#allocation6 + $0x400] sm:$0xff]
    %v263 = vld [vmem:[#allocation6 + $0x408] sm:$0xff]
    %v264 = vld [vmem:[#allocation6 + $0x410] sm:$0xff]
    %v265 = vld [vmem:[#allocation6 + $0x418] sm:$0xff]
    %v266 = vld [vmem:[#allocation6 + $0x420] sm:$0xff]
    %v267 = vld [vmem:[#allocation6 + $0x428] sm:$0xff]
    %v268 = vld [vmem:[#allocation6 + $0x430] sm:$0xff]
    %v269 = vld [vmem:[#allocation6 + $0x438] sm:$0xff]
    %v270 = vld [vmem:[#allocation6 + $0x440] sm:$0xff]
    %v271 = vld [vmem:[#allocation6 + $0x448] sm:$0xff]
    %v272 = vld [vmem:[#allocation6 + $0x450] sm:$0xff]
    %v273 = vld [vmem:[#allocation6 + $0x458] sm:$0xff]
    %v274 = vld [vmem:[#allocation6 + $0x460] sm:$0xff]
    %v275 = vld [vmem:[#allocation6 + $0x468] sm:$0xff]
    %v276 = vld [vmem:[#allocation6 + $0x470] sm:$0xff]
    %v277 = vld [vmem:[#allocation6 + $0x478] sm:$0xff]
    %v278 = vld [vmem:[#allocation6 + $0x480] sm:$0xff]
    %v279 = vld [vmem:[#allocation6 + $0x488] sm:$0xff]
    %v280 = vld [vmem:[#allocation6 + $0x490] sm:$0xff]
    %v281 = vld [vmem:[#allocation6 + $0x498] sm:$0xff]
    %v282 = vld [vmem:[#allocation6 + $0x4a0] sm:$0xff]
    %v283 = vld [vmem:[#allocation6 + $0x4a8] sm:$0xff]
    %v284 = vld [vmem:[#allocation6 + $0x4b0] sm:$0xff]
    %v285 = vld [vmem:[#allocation6 + $0x4b8] sm:$0xff]
    %v286 = vld [vmem:[#allocation6 + $0x4c0] sm:$0xff]
    %v287 = vld [vmem:[#allocation6 + $0x4c8] sm:$0xff]
    %v288 = vld [vmem:[#allocation6 + $0x4d0] sm:$0xff]
    %v289 = vld [vmem:[#allocation6 + $0x4d8] sm:$0xff]
    %v290 = vld [vmem:[#allocation6 + $0x4e0] sm:$0xff]
    %v291 = vld [vmem:[#allocation6 + $0x4e8] sm:$0xff]
    %v292 = vld [vmem:[#allocation6 + $0x4f0] sm:$0xff]
    %v293 = vld [vmem:[#allocation6 + $0x4f8] sm:$0xff]
    %v294 = vld [vmem:[#allocation6 + $0x500] sm:$0xff]
    %v295 = vld [vmem:[#allocation6 + $0x508] sm:$0xff]
    %v296 = vld [vmem:[#allocation6 + $0x510] sm:$0xff]
    %v297 = vld [vmem:[#allocation6 + $0x518] sm:$0xff]
    %v298 = vld [vmem:[#allocation6 + $0x520] sm:$0xff]
    %v299 = vld [vmem:[#allocation6 + $0x528] sm:$0xff]
    %v300 = vld [vmem:[#allocation6 + $0x530] sm:$0xff]
    %v301 = vld [vmem:[#allocation6 + $0x538] sm:$0xff]
    %v302 = vld [vmem:[#allocation6 + $0x540] sm:$0xff]
    %v303 = vld [vmem:[#allocation6 + $0x548] sm:$0xff]
    %v304 = vld [vmem:[#allocation6 + $0x550] sm:$0xff]
    %v305 = vld [vmem:[#allocation6 + $0x558] sm:$0xff]
    %v306 = vld [vmem:[#allocation6 + $0x560] sm:$0xff]
    %v307 = vld [vmem:[#allocation6 + $0x568] sm:$0xff]
    %v308 = vld [vmem:[#allocation6 + $0x570] sm:$0xff]
    %v309 = vld [vmem:[#allocation6 + $0x578] sm:$0xff]
    %v310 = vld [vmem:[#allocation6 + $0x580] sm:$0xff]
    %v311 = vld [vmem:[#allocation6 + $0x588] sm:$0xff]
    %v312 = vld [vmem:[#allocation6 + $0x590] sm:$0xff]
    %v313 = vld [vmem:[#allocation6 + $0x598] sm:$0xff]
    %v314 = vld [vmem:[#allocation6 + $0x5a0] sm:$0xff]
    %v315 = vld [vmem:[#allocation6 + $0x5a8] sm:$0xff]
    %v316 = vld [vmem:[#allocation6 + $0x5b0] sm:$0xff]
    %v317 = vld [vmem:[#allocation6 + $0x5b8] sm:$0xff]
    %v318 = vld [vmem:[#allocation6 + $0x5c0] sm:$0xff]
    %v319 = vld [vmem:[#allocation6 + $0x5c8] sm:$0xff]
    %v320 = vld [vmem:[#allocation6 + $0x5d0] sm:$0xff]
    %v321 = vld [vmem:[#allocation6 + $0x5d8] sm:$0xff]
    %v322 = vld [vmem:[#allocation6 + $0x5e0] sm:$0xff]
    %v323 = vld [vmem:[#allocation6 + $0x5e8] sm:$0xff]
    %v324 = vld [vmem:[#allocation6 + $0x5f0] sm:$0xff]
    %v325 = vld [vmem:[#allocation6 + $0x5f8] sm:$0xff]
    %v326 = vld [vmem:[#allocation6 + $0x600] sm:$0xff]
    %v327 = vld [vmem:[#allocation6 + $0x608] sm:$0xff]
    %v328 = vld [vmem:[#allocation6 + $0x610] sm:$0xff]
    %v329 = vld [vmem:[#allocation6 + $0x618] sm:$0xff]
    %v330 = vld [vmem:[#allocation6 + $0x620] sm:$0xff]
    %v331 = vld [vmem:[#allocation6 + $0x628] sm:$0xff]
    %v332 = vld [vmem:[#allocation6 + $0x630] sm:$0xff]
    %v333 = vld [vmem:[#allocation6 + $0x638] sm:$0xff]
    %v334 = vld [vmem:[#allocation6 + $0x640] sm:$0xff]
    %v335 = vld [vmem:[#allocation6 + $0x648] sm:$0xff]
    %v336 = vld [vmem:[#allocation6 + $0x650] sm:$0xff]
    %v337 = vld [vmem:[#allocation6 + $0x658] sm:$0xff]
    %v338 = vld [vmem:[#allocation6 + $0x660] sm:$0xff]
    %v339 = vld [vmem:[#allocation6 + $0x668] sm:$0xff]
    %v340 = vld [vmem:[#allocation6 + $0x670] sm:$0xff]
    %v341 = vld [vmem:[#allocation6 + $0x678] sm:$0xff]
    %v342 = vld [vmem:[#allocation6 + $0x680] sm:$0xff]
    %v343 = vld [vmem:[#allocation6 + $0x688] sm:$0xff]
    %v344 = vld [vmem:[#allocation6 + $0x690] sm:$0xff]
    %v345 = vld [vmem:[#allocation6 + $0x698] sm:$0xff]
    %v346 = vld [vmem:[#allocation6 + $0x6a0] sm:$0xff]
    %v347 = vld [vmem:[#allocation6 + $0x6a8] sm:$0xff]
    %v348 = vld [vmem:[#allocation6 + $0x6b0] sm:$0xff]
    %v349 = vld [vmem:[#allocation6 + $0x6b8] sm:$0xff]
    %v350 = vld [vmem:[#allocation6 + $0x6c0] sm:$0xff]
    %v351 = vld [vmem:[#allocation6 + $0x6c8] sm:$0xff]
    %v352 = vld [vmem:[#allocation6 + $0x6d0] sm:$0xff]
    %v353 = vld [vmem:[#allocation6 + $0x6d8] sm:$0xff]
    %v354 = vld [vmem:[#allocation6 + $0x6e0] sm:$0xff]
    %v355 = vld [vmem:[#allocation6 + $0x6e8] sm:$0xff]
    %v356 = vld [vmem:[#allocation6 + $0x6f0] sm:$0xff]
    %v357 = vld [vmem:[#allocation6 + $0x6f8] sm:$0xff]
    %v358 = vld [vmem:[#allocation6 + $0x700] sm:$0xff]
    %v359 = vld [vmem:[#allocation6 + $0x708] sm:$0xff]
    %v360 = vld [vmem:[#allocation6 + $0x710] sm:$0xff]
    %v361 = vld [vmem:[#allocation6 + $0x718] sm:$0xff]
    %v362 = vld [vmem:[#allocation6 + $0x720] sm:$0xff]
    %v363 = vld [vmem:[#allocation6 + $0x728] sm:$0xff]
    %v364 = vld [vmem:[#allocation6 + $0x730] sm:$0xff]
    %v365 = vld [vmem:[#allocation6 + $0x738] sm:$0xff]
    %v366 = vld [vmem:[#allocation6 + $0x740] sm:$0xff]
    %v367 = vld [vmem:[#allocation6 + $0x748] sm:$0xff]
    %v368 = vld [vmem:[#allocation6 + $0x750] sm:$0xff]
    %v369 = vld [vmem:[#allocation6 + $0x758] sm:$0xff]
    %v370 = vld [vmem:[#allocation6 + $0x760] sm:$0xff]
    %v371 = vld [vmem:[#allocation6 + $0x768] sm:$0xff]
    %v372 = vld [vmem:[#allocation6 + $0x770] sm:$0xff]
    %v373 = vld [vmem:[#allocation6 + $0x778] sm:$0xff]
    %v374 = vld [vmem:[#allocation6 + $0x780] sm:$0xff]
    %v375 = vld [vmem:[#allocation6 + $0x788] sm:$0xff]
    %v376 = vld [vmem:[#allocation6 + $0x790] sm:$0xff]
    %v377 = vld [vmem:[#allocation6 + $0x798] sm:$0xff]
    %v378 = vld [vmem:[#allocation6 + $0x7a0] sm:$0xff]
    %v379 = vld [vmem:[#allocation6 + $0x7a8] sm:$0xff]
    %v380 = vld [vmem:[#allocation6 + $0x7b0] sm:$0xff]
    %v381 = vld [vmem:[#allocation6 + $0x7b8] sm:$0xff]
    %v382 = vld [vmem:[#allocation6 + $0x7c0] sm:$0xff]
    %v383 = vld [vmem:[#allocation6 + $0x7c8] sm:$0xff]
    %v384 = vld [vmem:[#allocation6 + $0x7d0] sm:$0xff]
    %v385 = vld [vmem:[#allocation6 + $0x7d8] sm:$0xff]
    %v386 = vld [vmem:[#allocation6 + $0x7e0] sm:$0xff]
    %v387 = vld [vmem:[#allocation6 + $0x7e8] sm:$0xff]
    %v388 = vld [vmem:[#allocation6 + $0x7f0] sm:$0xff]
    %v389 = vld [vmem:[#allocation6 + $0x7f8] sm:$0xff]
    %v390 = vld [vmem:[#allocation6 + $0x800] sm:$0xff]
    %v391 = vld [vmem:[#allocation6 + $0x808] sm:$0xff]
    %v392 = vld [vmem:[#allocation6 + $0x810] sm:$0xff]
    %v393 = vld [vmem:[#allocation6 + $0x818] sm:$0xff]
    %v394 = vld [vmem:[#allocation6 + $0x820] sm:$0xff]
    %v395 = vld [vmem:[#allocation6 + $0x828] sm:$0xff]
    %v396 = vld [vmem:[#allocation6 + $0x830] sm:$0xff]
    %v397 = vld [vmem:[#allocation6 + $0x838] sm:$0xff]
    %v398 = vld [vmem:[#allocation6 + $0x840] sm:$0xff]
    %v399 = vld [vmem:[#allocation6 + $0x848] sm:$0xff]
    %v400 = vld [vmem:[#allocation6 + $0x850] sm:$0xff]
    %v401 = vld [vmem:[#allocation6 + $0x858] sm:$0xff]
    %v402 = vld [vmem:[#allocation6 + $0x860] sm:$0xff]
    %v403 = vld [vmem:[#allocation6 + $0x868] sm:$0xff]
    %v404 = vld [vmem:[#allocation6 + $0x870] sm:$0xff]
    %v405 = vld [vmem:[#allocation6 + $0x878] sm:$0xff]
    %v406 = vld [vmem:[#allocation6 + $0x880] sm:$0xff]
    %v407 = vld [vmem:[#allocation6 + $0x888] sm:$0xff]
    %v408 = vld [vmem:[#allocation6 + $0x890] sm:$0xff]
    %v409 = vld [vmem:[#allocation6 + $0x898] sm:$0xff]
    %v410 = vld [vmem:[#allocation6 + $0x8a0] sm:$0xff]
    %v411 = vld [vmem:[#allocation6 + $0x8a8] sm:$0xff]
    %v412 = vld [vmem:[#allocation6 + $0x8b0] sm:$0xff]
    %v413 = vld [vmem:[#allocation6 + $0x8b8] sm:$0xff]
    %v414 = vld [vmem:[#allocation6 + $0x8c0] sm:$0xff]
    %v415 = vld [vmem:[#allocation6 + $0x8c8] sm:$0xff]
    %v416 = vld [vmem:[#allocation6 + $0x8d0] sm:$0xff]
    %v417 = vld [vmem:[#allocation6 + $0x8d8] sm:$0xff]
    %v418 = vld [vmem:[#allocation6 + $0x8e0] sm:$0xff]
    %v419 = vld [vmem:[#allocation6 + $0x8e8] sm:$0xff]
    %v420 = vld [vmem:[#allocation6 + $0x8f0] sm:$0xff]
    %v421 = vld [vmem:[#allocation6 + $0x8f8] sm:$0xff]
    %v422 = vld [vmem:[#allocation6 + $0x900] sm:$0xff]
    %v423 = vld [vmem:[#allocation6 + $0x908] sm:$0xff]
    %v424 = vld [vmem:[#allocation6 + $0x910] sm:$0xff]
    %v425 = vld [vmem:[#allocation6 + $0x918] sm:$0xff]
    %v426 = vld [vmem:[#allocation6 + $0x920] sm:$0xff]
    %v427 = vld [vmem:[#allocation6 + $0x928] sm:$0xff]
    %v428 = vld [vmem:[#allocation6 + $0x930] sm:$0xff]
    %v429 = vld [vmem:[#allocation6 + $0x938] sm:$0xff]
    %v430 = vld [vmem:[#allocation6 + $0x940] sm:$0xff]
    %v431 = vld [vmem:[#allocation6 + $0x948] sm:$0xff]
    %v432 = vld [vmem:[#allocation6 + $0x950] sm:$0xff]
    %v433 = vld [vmem:[#allocation6 + $0x958] sm:$0xff]
    %v434 = vld [vmem:[#allocation6 + $0x960] sm:$0xff]
    %v435 = vld [vmem:[#allocation6 + $0x968] sm:$0xff]
    %v436 = vld [vmem:[#allocation6 + $0x970] sm:$0xff]
    %v437 = vld [vmem:[#allocation6 + $0x978] sm:$0xff]
    %v438 = vld [vmem:[#allocation6 + $0x980] sm:$0xff]
    %v439 = vld [vmem:[#allocation6 + $0x988] sm:$0xff]
    %v440 = vld [vmem:[#allocation6 + $0x990] sm:$0xff]
    %v441 = vld [vmem:[#allocation6 + $0x998] sm:$0xff]
    %v442 = vld [vmem:[#allocation6 + $0x9a0] sm:$0xff]
    %v443 = vld [vmem:[#allocation6 + $0x9a8] sm:$0xff]
    %v444 = vld [vmem:[#allocation6 + $0x9b0] sm:$0xff]
    %v445 = vld [vmem:[#allocation6 + $0x9b8] sm:$0xff]
    %v446 = vld [vmem:[#allocation6 + $0x9c0] sm:$0xff]
    %v447 = vld [vmem:[#allocation6 + $0x9c8] sm:$0xff]
    %v448 = vld [vmem:[#allocation6 + $0x9d0] sm:$0xff]
    %v449 = vld [vmem:[#allocation6 + $0x9d8] sm:$0xff]
    %v450 = vld [vmem:[#allocation6 + $0x9e0] sm:$0xff]
    %v451 = vld [vmem:[#allocation6 + $0x9e8] sm:$0xff]
    %v452 = vld [vmem:[#allocation6 + $0x9f0] sm:$0xff]
    %v453 = vld [vmem:[#allocation6 + $0x9f8] sm:$0xff]
    %v454 = vld [vmem:[#allocation6 + $0xa00] sm:$0xff]
    %v455 = vld [vmem:[#allocation6 + $0xa08] sm:$0xff]
    %v456 = vld [vmem:[#allocation6 + $0xa10] sm:$0xff]
    %v457 = vld [vmem:[#allocation6 + $0xa18] sm:$0xff]
    %v458 = vld [vmem:[#allocation6 + $0xa20] sm:$0xff]
    %v459 = vld [vmem:[#allocation6 + $0xa28] sm:$0xff]
    %v460 = vld [vmem:[#allocation6 + $0xa30] sm:$0xff]
    %v461 = vld [vmem:[#allocation6 + $0xa38] sm:$0xff]
    %v462 = vld [vmem:[#allocation6 + $0xa40] sm:$0xff]
    %v463 = vld [vmem:[#allocation6 + $0xa48] sm:$0xff]
    %v464 = vld [vmem:[#allocation6 + $0xa50] sm:$0xff]
    %v465 = vld [vmem:[#allocation6 + $0xa58] sm:$0xff]
    %v466 = vld [vmem:[#allocation6 + $0xa60] sm:$0xff]
    %v467 = vld [vmem:[#allocation6 + $0xa68] sm:$0xff]
    %v468 = vld [vmem:[#allocation6 + $0xa70] sm:$0xff]
    %v469 = vld [vmem:[#allocation6 + $0xa78] sm:$0xff]
    %v470 = vld [vmem:[#allocation6 + $0xa80] sm:$0xff]
    %v471 = vld [vmem:[#allocation6 + $0xa88] sm:$0xff]
    %v472 = vld [vmem:[#allocation6 + $0xa90] sm:$0xff]
    %v473 = vld [vmem:[#allocation6 + $0xa98] sm:$0xff]
    %v474 = vld [vmem:[#allocation6 + $0xaa0] sm:$0xff]
    %v475 = vld [vmem:[#allocation6 + $0xaa8] sm:$0xff]
    %v476 = vld [vmem:[#allocation6 + $0xab0] sm:$0xff]
    %v477 = vld [vmem:[#allocation6 + $0xab8] sm:$0xff]
    %v478 = vld [vmem:[#allocation6 + $0xac0] sm:$0xff]
    %v479 = vld [vmem:[#allocation6 + $0xac8] sm:$0xff]
    %v480 = vld [vmem:[#allocation6 + $0xad0] sm:$0xff]
    %v481 = vld [vmem:[#allocation6 + $0xad8] sm:$0xff]
    %v482 = vld [vmem:[#allocation6 + $0xae0] sm:$0xff]
    %v483 = vld [vmem:[#allocation6 + $0xae8] sm:$0xff]
    %v484 = vld [vmem:[#allocation6 + $0xaf0] sm:$0xff]
    %v485 = vld [vmem:[#allocation6 + $0xaf8] sm:$0xff]
    %v486 = vld [vmem:[#allocation6 + $0xb00] sm:$0xff]
    %v487 = vld [vmem:[#allocation6 + $0xb08] sm:$0xff]
    %v488 = vld [vmem:[#allocation6 + $0xb10] sm:$0xff]
    %v489 = vld [vmem:[#allocation6 + $0xb18] sm:$0xff]
    %v490 = vld [vmem:[#allocation6 + $0xb20] sm:$0xff]
    %v491 = vld [vmem:[#allocation6 + $0xb28] sm:$0xff]
    %v492 = vld [vmem:[#allocation6 + $0xb30] sm:$0xff]
    %v493 = vld [vmem:[#allocation6 + $0xb38] sm:$0xff]
    %v494 = vld [vmem:[#allocation6 + $0xb40] sm:$0xff]
    %v495 = vld [vmem:[#allocation6 + $0xb48] sm:$0xff]
    %v496 = vld [vmem:[#allocation6 + $0xb50] sm:$0xff]
    %v497 = vld [vmem:[#allocation6 + $0xb58] sm:$0xff]
    %v498 = vld [vmem:[#allocation6 + $0xb60] sm:$0xff]
    %v499 = vld [vmem:[#allocation6 + $0xb68] sm:$0xff]
    %v500 = vld [vmem:[#allocation6 + $0xb70] sm:$0xff]
    %v501 = vld [vmem:[#allocation6 + $0xb78] sm:$0xff]
    %v502 = vld [vmem:[#allocation6 + $0xb80] sm:$0xff]
    %v503 = vld [vmem:[#allocation6 + $0xb88] sm:$0xff]
    %v504 = vld [vmem:[#allocation6 + $0xb90] sm:$0xff]
    %v505 = vld [vmem:[#allocation6 + $0xb98] sm:$0xff]
    %v506 = vld [vmem:[#allocation6 + $0xba0] sm:$0xff]
    %v507 = vld [vmem:[#allocation6 + $0xba8] sm:$0xff]
    %v508 = vld [vmem:[#allocation6 + $0xbb0] sm:$0xff]
    %v509 = vld [vmem:[#allocation6 + $0xbb8] sm:$0xff]
    %v510 = vld [vmem:[#allocation6 + $0xbc0] sm:$0xff]
    %v511 = vld [vmem:[#allocation6 + $0xbc8] sm:$0xff]
    %v512 = vld [vmem:[#allocation6 + $0xbd0] sm:$0xff]
    %v513 = vld [vmem:[#allocation6 + $0xbd8] sm:$0xff]
    %v514 = vld [vmem:[#allocation6 + $0xbe0] sm:$0xff]
    %v515 = vld [vmem:[#allocation6 + $0xbe8] sm:$0xff]
    %v516 = vld [vmem:[#allocation6 + $0xbf0] sm:$0xff]
    %v517 = vld [vmem:[#allocation6 + $0xbf8] sm:$0xff]
    %v518 = vld [vmem:[#allocation6 + $0xc00] sm:$0xff]
    %v519 = vld [vmem:[#allocation6 + $0xc08] sm:$0xff]
    %v520 = vld [vmem:[#allocation6 + $0xc10] sm:$0xff]
    %v521 = vld [vmem:[#allocation6 + $0xc18] sm:$0xff]
    %v522 = vld [vmem:[#allocation6 + $0xc20] sm:$0xff]
    %v523 = vld [vmem:[#allocation6 + $0xc28] sm:$0xff]
    %v524 = vld [vmem:[#allocation6 + $0xc30] sm:$0xff]
    %v525 = vld [vmem:[#allocation6 + $0xc38] sm:$0xff]
    %v526 = vld [vmem:[#allocation6 + $0xc40] sm:$0xff]
    %v527 = vld [vmem:[#allocation6 + $0xc48] sm:$0xff]
    %v528 = vld [vmem:[#allocation6 + $0xc50] sm:$0xff]
    %v529 = vld [vmem:[#allocation6 + $0xc58] sm:$0xff]
    %v530 = vld [vmem:[#allocation6 + $0xc60] sm:$0xff]
    %v531 = vld [vmem:[#allocation6 + $0xc68] sm:$0xff]
    %v532 = vld [vmem:[#allocation6 + $0xc70] sm:$0xff]
    %v533 = vld [vmem:[#allocation6 + $0xc78] sm:$0xff]
    %v534 = vld [vmem:[#allocation6 + $0xc80] sm:$0xff]
    %v535 = vld [vmem:[#allocation6 + $0xc88] sm:$0xff]
    %v536 = vld [vmem:[#allocation6 + $0xc90] sm:$0xff]
    %v537 = vld [vmem:[#allocation6 + $0xc98] sm:$0xff]
    %v538 = vld [vmem:[#allocation6 + $0xca0] sm:$0xff]
    %v539 = vld [vmem:[#allocation6 + $0xca8] sm:$0xff]
    %v540 = vld [vmem:[#allocation6 + $0xcb0] sm:$0xff]
    %v541 = vld [vmem:[#allocation6 + $0xcb8] sm:$0xff]
    %v542 = vld [vmem:[#allocation6 + $0xcc0] sm:$0xff]
    %v543 = vld [vmem:[#allocation6 + $0xcc8] sm:$0xff]
    %v544 = vld [vmem:[#allocation6 + $0xcd0] sm:$0xff]
    %v545 = vld [vmem:[#allocation6 + $0xcd8] sm:$0xff]
    %v546 = vld [vmem:[#allocation6 + $0xce0] sm:$0xff]
    %v547 = vld [vmem:[#allocation6 + $0xce8] sm:$0xff]
    %v548 = vld [vmem:[#allocation6 + $0xcf0] sm:$0xff]
    %v549 = vld [vmem:[#allocation6 + $0xcf8] sm:$0xff]
    %v550 = vld [vmem:[#allocation6 + $0xd00] sm:$0xff]
    %v551 = vld [vmem:[#allocation6 + $0xd08] sm:$0xff]
    %v552 = vld [vmem:[#allocation6 + $0xd10] sm:$0xff]
    %v553 = vld [vmem:[#allocation6 + $0xd18] sm:$0xff]
    %v554 = vld [vmem:[#allocation6 + $0xd20] sm:$0xff]
    %v555 = vld [vmem:[#allocation6 + $0xd28] sm:$0xff]
    %v556 = vld [vmem:[#allocation6 + $0xd30] sm:$0xff]
    %v557 = vld [vmem:[#allocation6 + $0xd38] sm:$0xff]
    %v558 = vld [vmem:[#allocation6 + $0xd40] sm:$0xff]
    %v559 = vld [vmem:[#allocation6 + $0xd48] sm:$0xff]
    %v560 = vld [vmem:[#allocation6 + $0xd50] sm:$0xff]
    %v561 = vld [vmem:[#allocation6 + $0xd58] sm:$0xff]
    %v562 = vld [vmem:[#allocation6 + $0xd60] sm:$0xff]
    %v563 = vld [vmem:[#allocation6 + $0xd68] sm:$0xff]
    %v564 = vld [vmem:[#allocation6 + $0xd70] sm:$0xff]
    %v565 = vld [vmem:[#allocation6 + $0xd78] sm:$0xff]
    %v566 = vld [vmem:[#allocation6 + $0xd80] sm:$0xff]
    %v567 = vld [vmem:[#allocation6 + $0xd88] sm:$0xff]
    %v568 = vld [vmem:[#allocation6 + $0xd90] sm:$0xff]
    %v569 = vld [vmem:[#allocation6 + $0xd98] sm:$0xff]
    %v570 = vld [vmem:[#allocation6 + $0xda0] sm:$0xff]
    %v571 = vld [vmem:[#allocation6 + $0xda8] sm:$0xff]
    %v572 = vld [vmem:[#allocation6 + $0xdb0] sm:$0xff]
    %v573 = vld [vmem:[#allocation6 + $0xdb8] sm:$0xff]
    %v574 = vld [vmem:[#allocation6 + $0xdc0] sm:$0xff]
    %v575 = vld [vmem:[#allocation6 + $0xdc8] sm:$0xff]
    %v576 = vld [vmem:[#allocation6 + $0xdd0] sm:$0xff]
    %v577 = vld [vmem:[#allocation6 + $0xdd8] sm:$0xff]
    %v578 = vld [vmem:[#allocation6 + $0xde0] sm:$0xff]
    %v579 = vld [vmem:[#allocation6 + $0xde8] sm:$0xff]
    %v580 = vld [vmem:[#allocation6 + $0xdf0] sm:$0xff]
    %v581 = vld [vmem:[#allocation6 + $0xdf8] sm:$0xff]
    %v582 = vld [vmem:[#allocation6 + $0xe00] sm:$0xff]
    %v583 = vld [vmem:[#allocation6 + $0xe08] sm:$0xff]
    %v584 = vld [vmem:[#allocation6 + $0xe10] sm:$0xff]
    %v585 = vld [vmem:[#allocation6 + $0xe18] sm:$0xff]
    %v586 = vld [vmem:[#allocation6 + $0xe20] sm:$0xff]
    %v587 = vld [vmem:[#allocation6 + $0xe28] sm:$0xff]
    %v588 = vld [vmem:[#allocation6 + $0xe30] sm:$0xff]
    %v589 = vld [vmem:[#allocation6 + $0xe38] sm:$0xff]
    %v590 = vld [vmem:[#allocation6 + $0xe40] sm:$0xff]
    %v591 = vld [vmem:[#allocation6 + $0xe48] sm:$0xff]
    %v592 = vld [vmem:[#allocation6 + $0xe50] sm:$0xff]
    %v593 = vld [vmem:[#allocation6 + $0xe58] sm:$0xff]
    %v594 = vld [vmem:[#allocation6 + $0xe60] sm:$0xff]
    %v595 = vld [vmem:[#allocation6 + $0xe68] sm:$0xff]
    %v596 = vld [vmem:[#allocation6 + $0xe70] sm:$0xff]
    %v597 = vld [vmem:[#allocation6 + $0xe78] sm:$0xff]
    %v598 = vld [vmem:[#allocation6 + $0xe80] sm:$0xff]
    %v599 = vld [vmem:[#allocation6 + $0xe88] sm:$0xff]
    %v600 = vld [vmem:[#allocation6 + $0xe90] sm:$0xff]
    %v601 = vld [vmem:[#allocation6 + $0xe98] sm:$0xff]
    %v602 = vld [vmem:[#allocation6 + $0xea0] sm:$0xff]
    %v603 = vld [vmem:[#allocation6 + $0xea8] sm:$0xff]
    %v604 = vld [vmem:[#allocation6 + $0xeb0] sm:$0xff]
    %v605 = vld [vmem:[#allocation6 + $0xeb8] sm:$0xff]
    %v606 = vld [vmem:[#allocation6 + $0xec0] sm:$0xff]
    %v607 = vld [vmem:[#allocation6 + $0xec8] sm:$0xff]
    %v608 = vld [vmem:[#allocation6 + $0xed0] sm:$0xff]
    %v609 = vld [vmem:[#allocation6 + $0xed8] sm:$0xff]
    %v610 = vld [vmem:[#allocation6 + $0xee0] sm:$0xff]
    %v611 = vld [vmem:[#allocation6 + $0xee8] sm:$0xff]
    %v612 = vld [vmem:[#allocation6 + $0xef0] sm:$0xff]
    %v613 = vld [vmem:[#allocation6 + $0xef8] sm:$0xff]
    %v614 = vld [vmem:[#allocation6 + $0xf00] sm:$0xff]
    %v615 = vld [vmem:[#allocation6 + $0xf08] sm:$0xff]
    %v616 = vld [vmem:[#allocation6 + $0xf10] sm:$0xff]
    %v617 = vld [vmem:[#allocation6 + $0xf18] sm:$0xff]
    %v618 = vld [vmem:[#allocation6 + $0xf20] sm:$0xff]
    %v619 = vld [vmem:[#allocation6 + $0xf28] sm:$0xff]
    %v620 = vld [vmem:[#allocation6 + $0xf30] sm:$0xff]
    %v621 = vld [vmem:[#allocation6 + $0xf38] sm:$0xff]
    %v622 = vld [vmem:[#allocation6 + $0xf40] sm:$0xff]
    %v623 = vld [vmem:[#allocation6 + $0xf48] sm:$0xff]
    %v624 = vld [vmem:[#allocation6 + $0xf50] sm:$0xff]
    %v625 = vld [vmem:[#allocation6 + $0xf58] sm:$0xff]
    %v626 = vld [vmem:[#allocation6 + $0xf60] sm:$0xff]
    %v627 = vld [vmem:[#allocation6 + $0xf68] sm:$0xff]
    %v628 = vld [vmem:[#allocation6 + $0xf70] sm:$0xff]
    %v629 = vld [vmem:[#allocation6 + $0xf78] sm:$0xff]
    %v630 = vld [vmem:[#allocation6 + $0xf80] sm:$0xff]
    %v631 = vld [vmem:[#allocation6 + $0xf88] sm:$0xff]
    %v632 = vld [vmem:[#allocation6 + $0xf90] sm:$0xff]
    %v633 = vld [vmem:[#allocation6 + $0xf98] sm:$0xff]
    %v634 = vld [vmem:[#allocation6 + $0xfa0] sm:$0xff]
    %v635 = vld [vmem:[#allocation6 + $0xfa8] sm:$0xff]
    %v636 = vld [vmem:[#allocation6 + $0xfb0] sm:$0xff]
    %v637 = vld [vmem:[#allocation6 + $0xfb8] sm:$0xff]
    %v638 = vld [vmem:[#allocation6 + $0xfc0] sm:$0xff]
    %v639 = vld [vmem:[#allocation6 + $0xfc8] sm:$0xff]
    %v640 = vld [vmem:[#allocation6 + $0xfd0] sm:$0xff]
    %v641 = vld [vmem:[#allocation6 + $0xfd8] sm:$0xff]
    %v642 = vld [vmem:[#allocation6 + $0xfe0] sm:$0xff]
    %v643 = vld [vmem:[#allocation6 + $0xfe8] sm:$0xff]
    %v644 = vld [vmem:[#allocation6 + $0xff0] sm:$0xff]
    %v645 = vld [vmem:[#allocation6 + $0xff8] sm:$0xff]
    %v646 = vld [vmem:[#allocation6 + $0x1000] sm:$0xff]
    %v647 = vld [vmem:[#allocation6 + $0x1008] sm:$0xff]
    %v648 = vld [vmem:[#allocation6 + $0x1010] sm:$0xff]
    %v649 = vld [vmem:[#allocation6 + $0x1018] sm:$0xff]
    %v650 = vld [vmem:[#allocation6 + $0x1020] sm:$0xff]
    %v651 = vld [vmem:[#allocation6 + $0x1028] sm:$0xff]
    %v652 = vld [vmem:[#allocation6 + $0x1030] sm:$0xff]
    %v653 = vld [vmem:[#allocation6 + $0x1038] sm:$0xff]
    %v654 = vld [vmem:[#allocation6 + $0x1040] sm:$0xff]
    %v655 = vld [vmem:[#allocation6 + $0x1048] sm:$0xff]
    %v656 = vld [vmem:[#allocation6 + $0x1050] sm:$0xff]
    %v657 = vld [vmem:[#allocation6 + $0x1058] sm:$0xff]
    %v658 = vld [vmem:[#allocation6 + $0x1060] sm:$0xff]
    %v659 = vld [vmem:[#allocation6 + $0x1068] sm:$0xff]
    %v660 = vld [vmem:[#allocation6 + $0x1070] sm:$0xff]
    %v661 = vld [vmem:[#allocation6 + $0x1078] sm:$0xff]
    %v662 = vld [vmem:[#allocation6 + $0x1080] sm:$0xff]
    %v663 = vld [vmem:[#allocation6 + $0x1088] sm:$0xff]
    %v664 = vld [vmem:[#allocation6 + $0x1090] sm:$0xff]
    %v665 = vld [vmem:[#allocation6 + $0x1098] sm:$0xff]
    %v666 = vld [vmem:[#allocation6 + $0x10a0] sm:$0xff]
    %v667 = vld [vmem:[#allocation6 + $0x10a8] sm:$0xff]
    %v668 = vld [vmem:[#allocation6 + $0x10b0] sm:$0xff]
    %v669 = vld [vmem:[#allocation6 + $0x10b8] sm:$0xff]
    %v670 = vld [vmem:[#allocation6 + $0x10c0] sm:$0xff]
    %v671 = vld [vmem:[#allocation6 + $0x10c8] sm:$0xff]
    %v672 = vld [vmem:[#allocation6 + $0x10d0] sm:$0xff]
    %v673 = vld [vmem:[#allocation6 + $0x10d8] sm:$0xff]
    %v674 = vld [vmem:[#allocation6 + $0x10e0] sm:$0xff]
    %v675 = vld [vmem:[#allocation6 + $0x10e8] sm:$0xff]
    %v676 = vld [vmem:[#allocation6 + $0x10f0] sm:$0xff]
    %v677 = vld [vmem:[#allocation6 + $0x10f8] sm:$0xff]
    %v678 = vld [vmem:[#allocation6 + $0x1100] sm:$0xff]
    %v679 = vld [vmem:[#allocation6 + $0x1108] sm:$0xff]
    %v680 = vld [vmem:[#allocation6 + $0x1110] sm:$0xff]
    %v681 = vld [vmem:[#allocation6 + $0x1118] sm:$0xff]
    %v682 = vld [vmem:[#allocation6 + $0x1120] sm:$0xff]
    %v683 = vld [vmem:[#allocation6 + $0x1128] sm:$0xff]
    %v684 = vld [vmem:[#allocation6 + $0x1130] sm:$0xff]
    %v685 = vld [vmem:[#allocation6 + $0x1138] sm:$0xff]
    %v686 = vld [vmem:[#allocation6 + $0x1140] sm:$0xff]
    %v687 = vld [vmem:[#allocation6 + $0x1148] sm:$0xff]
    %v688 = vld [vmem:[#allocation6 + $0x1150] sm:$0xff]
    %v689 = vld [vmem:[#allocation6 + $0x1158] sm:$0xff]
    %v690 = vld [vmem:[#allocation6 + $0x1160] sm:$0xff]
    %v691 = vld [vmem:[#allocation6 + $0x1168] sm:$0xff]
    %v692 = vld [vmem:[#allocation6 + $0x1170] sm:$0xff]
    %v693 = vld [vmem:[#allocation6 + $0x1178] sm:$0xff]
    %v694 = vld [vmem:[#allocation6 + $0x1180] sm:$0xff]
    %v695 = vld [vmem:[#allocation6 + $0x1188] sm:$0xff]
    %v696 = vld [vmem:[#allocation6 + $0x1190] sm:$0xff]
    %v697 = vld [vmem:[#allocation6 + $0x1198] sm:$0xff]
    %v698 = vld [vmem:[#allocation6 + $0x11a0] sm:$0xff]
    %v699 = vld [vmem:[#allocation6 + $0x11a8] sm:$0xff]
    %v700 = vld [vmem:[#allocation6 + $0x11b0] sm:$0xff]
    %v701 = vld [vmem:[#allocation6 + $0x11b8] sm:$0xff]
    %v702 = vld [vmem:[#allocation6 + $0x11c0] sm:$0xff]
    %v703 = vld [vmem:[#allocation6 + $0x11c8] sm:$0xff]
    %v704 = vld [vmem:[#allocation6 + $0x11d0] sm:$0xff]
    %v705 = vld [vmem:[#allocation6 + $0x11d8] sm:$0xff]
    %v706 = vld [vmem:[#allocation6 + $0x11e0] sm:$0xff]
    %v707 = vld [vmem:[#allocation6 + $0x11e8] sm:$0xff]
    %v708 = vld [vmem:[#allocation6 + $0x11f0] sm:$0xff]
    %v709 = vld [vmem:[#allocation6 + $0x11f8] sm:$0xff]
    %v710 = vld [vmem:[#allocation8] sm:$0xff]
    %v711 = vld [vmem:[#allocation8 + $0x8] sm:$0xf]
    %v714 = vperm.slane %v710, 0
    %v715 = vperm.slane %v710, 1
    %v716 = vperm.slane %v710, 2
    %v717 = vperm.slane %v710, 3
    %v718 = vperm.slane %v710, 4
    %v719 = vperm.slane %v710, 5
    %v720 = vperm.slane %v710, 6
    %v721 = vperm.slane %v710, 7
    %v722 = vperm.slane %v711, 0
    %v723 = vperm.slane %v711, 1
    %v724 = vperm.slane %v711, 2
    %v725 = vperm.slane %v711, 3
    %v1314 = vunpack.c.l.b16 %v134
    %v1315 = vunpack.c.h.b16 %v134
    %v1316 = vunpack.c.l.b16 %v135
    %v1317 = vunpack.c.h.b16 %v135
    %v1318 = vunpack.c.l.b16 %v136
    %v1319 = vunpack.c.h.b16 %v136
    %v1320 = vunpack.c.l.b16 %v137
    %v1321 = vunpack.c.h.b16 %v137
    %v1322 = vunpack.c.l.b16 %v138
    %v1323 = vunpack.c.h.b16 %v138
    %v1324 = vunpack.c.l.b16 %v139
    %v1325 = vunpack.c.h.b16 %v139
    %v1326 = vunpack.c.l.b16 %v140
    %v1327 = vunpack.c.h.b16 %v140
    %v1328 = vunpack.c.l.b16 %v141
    %v1329 = vunpack.c.h.b16 %v141
    %v1330 = vunpack.c.l.b16 %v142
    %v1331 = vunpack.c.h.b16 %v142
    %v1332 = vunpack.c.l.b16 %v143
    %v1333 = vunpack.c.h.b16 %v143
    %v1334 = vunpack.c.l.b16 %v144
    %v1335 = vunpack.c.h.b16 %v144
    %v1336 = vunpack.c.l.b16 %v145
    %v1337 = vunpack.c.h.b16 %v145
    %v1338 = vunpack.c.l.b16 %v146
    %v1339 = vunpack.c.h.b16 %v146
    %v1340 = vunpack.c.l.b16 %v147
    %v1341 = vunpack.c.h.b16 %v147
    %v1342 = vunpack.c.l.b16 %v148
    %v1343 = vunpack.c.h.b16 %v148
    %v1344 = vunpack.c.l.b16 %v149
    %v1345 = vunpack.c.h.b16 %v149
    %v1346 = vunpack.c.l.b16 %v150
    %v1347 = vunpack.c.h.b16 %v150
    %v1348 = vunpack.c.l.b16 %v151
    %v1349 = vunpack.c.h.b16 %v151
    %v1350 = vunpack.c.l.b16 %v152
    %v1351 = vunpack.c.h.b16 %v152
    %v1352 = vunpack.c.l.b16 %v153
    %v1353 = vunpack.c.h.b16 %v153
    %v1354 = vunpack.c.l.b16 %v154
    %v1355 = vunpack.c.h.b16 %v154
    %v1356 = vunpack.c.l.b16 %v155
    %v1357 = vunpack.c.h.b16 %v155
    %v1358 = vunpack.c.l.b16 %v156
    %v1359 = vunpack.c.h.b16 %v156
    %v1360 = vunpack.c.l.b16 %v157
    %v1361 = vunpack.c.h.b16 %v157
    %v1362 = vunpack.c.l.b16 %v158
    %v1363 = vunpack.c.h.b16 %v158
    %v1364 = vunpack.c.l.b16 %v159
    %v1365 = vunpack.c.h.b16 %v159
    %v1366 = vunpack.c.l.b16 %v160
    %v1367 = vunpack.c.h.b16 %v160
    %v1368 = vunpack.c.l.b16 %v161
    %v1369 = vunpack.c.h.b16 %v161
    %v1370 = vunpack.c.l.b16 %v162
    %v1371 = vunpack.c.h.b16 %v162
    %v1372 = vunpack.c.l.b16 %v163
    %v1373 = vunpack.c.h.b16 %v163
    %v1374 = vunpack.c.l.b16 %v164
    %v1375 = vunpack.c.h.b16 %v164
    %v1376 = vunpack.c.l.b16 %v165
    %v1377 = vunpack.c.h.b16 %v165
    %v1378 = vunpack.c.l.b16 %v166
    %v1379 = vunpack.c.h.b16 %v166
    %v1380 = vunpack.c.l.b16 %v167
    %v1381 = vunpack.c.h.b16 %v167
    %v1382 = vunpack.c.l.b16 %v168
    %v1383 = vunpack.c.h.b16 %v168
    %v1384 = vunpack.c.l.b16 %v169
    %v1385 = vunpack.c.h.b16 %v169
    %v1386 = vunpack.c.l.b16 %v170
    %v1387 = vunpack.c.h.b16 %v170
    %v1388 = vunpack.c.l.b16 %v171
    %v1389 = vunpack.c.h.b16 %v171
    %v1390 = vunpack.c.l.b16 %v172
    %v1391 = vunpack.c.h.b16 %v172
    %v1392 = vunpack.c.l.b16 %v173
    %v1393 = vunpack.c.h.b16 %v173
    %v1394 = vunpack.c.l.b16 %v174
    %v1395 = vunpack.c.h.b16 %v174
    %v1396 = vunpack.c.l.b16 %v175
    %v1397 = vunpack.c.h.b16 %v175
    %v1398 = vunpack.c.l.b16 %v176
    %v1399 = vunpack.c.h.b16 %v176
    %v1400 = vunpack.c.l.b16 %v177
    %v1401 = vunpack.c.h.b16 %v177
    %v1402 = vunpack.c.l.b16 %v178
    %v1403 = vunpack.c.h.b16 %v178
    %v1404 = vunpack.c.l.b16 %v179
    %v1405 = vunpack.c.h.b16 %v179
    %v1406 = vunpack.c.l.b16 %v180
    %v1407 = vunpack.c.h.b16 %v180
    %v1408 = vunpack.c.l.b16 %v181
    %v1409 = vunpack.c.h.b16 %v181
    %v1410 = vunpack.c.l.b16 %v182
    %v1411 = vunpack.c.h.b16 %v182
    %v1412 = vunpack.c.l.b16 %v183
    %v1413 = vunpack.c.h.b16 %v183
    %v1414 = vunpack.c.l.b16 %v184
    %v1415 = vunpack.c.h.b16 %v184
    %v1416 = vunpack.c.l.b16 %v185
    %v1417 = vunpack.c.h.b16 %v185
    %v1418 = vunpack.c.l.b16 %v186
    %v1419 = vunpack.c.h.b16 %v186
    %v1420 = vunpack.c.l.b16 %v187
    %v1421 = vunpack.c.h.b16 %v187
    %v1422 = vunpack.c.l.b16 %v188
    %v1423 = vunpack.c.h.b16 %v188
    %v1424 = vunpack.c.l.b16 %v189
    %v1425 = vunpack.c.h.b16 %v189
    %v1426 = vunpack.c.l.b16 %v190
    %v1427 = vunpack.c.h.b16 %v190
    %v1428 = vunpack.c.l.b16 %v191
    %v1429 = vunpack.c.h.b16 %v191
    %v1430 = vunpack.c.l.b16 %v192
    %v1431 = vunpack.c.h.b16 %v192
    %v1432 = vunpack.c.l.b16 %v193
    %v1433 = vunpack.c.h.b16 %v193
    %v1434 = vunpack.c.l.b16 %v194
    %v1435 = vunpack.c.h.b16 %v194
    %v1436 = vunpack.c.l.b16 %v195
    %v1437 = vunpack.c.h.b16 %v195
    %v1438 = vunpack.c.l.b16 %v196
    %v1439 = vunpack.c.h.b16 %v196
    %v1440 = vunpack.c.l.b16 %v197
    %v1441 = vunpack.c.h.b16 %v197
    %v1442 = vunpack.c.l.b16 %v198
    %v1443 = vunpack.c.h.b16 %v198
    %v1444 = vunpack.c.l.b16 %v199
    %v1445 = vunpack.c.h.b16 %v199
    %v1446 = vunpack.c.l.b16 %v200
    %v1447 = vunpack.c.h.b16 %v200
    %v1448 = vunpack.c.l.b16 %v201
    %v1449 = vunpack.c.h.b16 %v201
    %v1450 = vunpack.c.l.b16 %v202
    %v1451 = vunpack.c.h.b16 %v202
    %v1452 = vunpack.c.l.b16 %v203
    %v1453 = vunpack.c.h.b16 %v203
    %v1454 = vunpack.c.l.b16 %v204
    %v1455 = vunpack.c.h.b16 %v204
    %v1456 = vunpack.c.l.b16 %v205
    %v1457 = vunpack.c.h.b16 %v205
    %v1458 = vunpack.c.l.b16 %v206
    %v1459 = vunpack.c.h.b16 %v206
    %v1460 = vunpack.c.l.b16 %v207
    %v1461 = vunpack.c.h.b16 %v207
    %v1462 = vunpack.c.l.b16 %v208
    %v1463 = vunpack.c.h.b16 %v208
    %v1464 = vunpack.c.l.b16 %v209
    %v1465 = vunpack.c.h.b16 %v209
    %v1466 = vunpack.c.l.b16 %v210
    %v1467 = vunpack.c.h.b16 %v210
    %v1468 = vunpack.c.l.b16 %v211
    %v1469 = vunpack.c.h.b16 %v211
    %v1470 = vunpack.c.l.b16 %v212
    %v1471 = vunpack.c.h.b16 %v212
    %v1472 = vunpack.c.l.b16 %v213
    %v1473 = vunpack.c.h.b16 %v213
    %v1474 = vunpack.c.l.b16 %v214
    %v1475 = vunpack.c.h.b16 %v214
    %v1476 = vunpack.c.l.b16 %v215
    %v1477 = vunpack.c.h.b16 %v215
    %v1478 = vunpack.c.l.b16 %v216
    %v1479 = vunpack.c.h.b16 %v216
    %v1480 = vunpack.c.l.b16 %v217
    %v1481 = vunpack.c.h.b16 %v217
    %v1482 = vunpack.c.l.b16 %v218
    %v1483 = vunpack.c.h.b16 %v218
    %v1484 = vunpack.c.l.b16 %v219
    %v1485 = vunpack.c.h.b16 %v219
    %v1486 = vunpack.c.l.b16 %v220
    %v1487 = vunpack.c.h.b16 %v220
    %v1488 = vunpack.c.l.b16 %v221
    %v1489 = vunpack.c.h.b16 %v221
    %v1490 = vunpack.c.l.b16 %v222
    %v1491 = vunpack.c.h.b16 %v222
    %v1492 = vunpack.c.l.b16 %v223
    %v1493 = vunpack.c.h.b16 %v223
    %v1494 = vunpack.c.l.b16 %v224
    %v1495 = vunpack.c.h.b16 %v224
    %v1496 = vunpack.c.l.b16 %v225
    %v1497 = vunpack.c.h.b16 %v225
    %v1498 = vunpack.c.l.b16 %v226
    %v1499 = vunpack.c.h.b16 %v226
    %v1500 = vunpack.c.l.b16 %v227
    %v1501 = vunpack.c.h.b16 %v227
    %v1502 = vunpack.c.l.b16 %v228
    %v1503 = vunpack.c.h.b16 %v228
    %v1504 = vunpack.c.l.b16 %v229
    %v1505 = vunpack.c.h.b16 %v229
    %v1506 = vunpack.c.l.b16 %v230
    %v1507 = vunpack.c.h.b16 %v230
    %v1508 = vunpack.c.l.b16 %v231
    %v1509 = vunpack.c.h.b16 %v231
    %v1510 = vunpack.c.l.b16 %v232
    %v1511 = vunpack.c.h.b16 %v232
    %v1512 = vunpack.c.l.b16 %v233
    %v1513 = vunpack.c.h.b16 %v233
    %v1514 = vunpack.c.l.b16 %v234
    %v1515 = vunpack.c.h.b16 %v234
    %v1516 = vunpack.c.l.b16 %v235
    %v1517 = vunpack.c.h.b16 %v235
    %v1518 = vunpack.c.l.b16 %v236
    %v1519 = vunpack.c.h.b16 %v236
    %v1520 = vunpack.c.l.b16 %v237
    %v1521 = vunpack.c.h.b16 %v237
    %v1522 = vunpack.c.l.b16 %v238
    %v1523 = vunpack.c.h.b16 %v238
    %v1524 = vunpack.c.l.b16 %v239
    %v1525 = vunpack.c.h.b16 %v239
    %v1526 = vunpack.c.l.b16 %v240
    %v1527 = vunpack.c.h.b16 %v240
    %v1528 = vunpack.c.l.b16 %v241
    %v1529 = vunpack.c.h.b16 %v241
    %v1530 = vunpack.c.l.b16 %v242
    %v1531 = vunpack.c.h.b16 %v242
    %v1532 = vunpack.c.l.b16 %v243
    %v1533 = vunpack.c.h.b16 %v243
    %v1534 = vunpack.c.l.b16 %v244
    %v1535 = vunpack.c.h.b16 %v244
    %v1536 = vunpack.c.l.b16 %v245
    %v1537 = vunpack.c.h.b16 %v245
    %v1538 = vunpack.c.l.b16 %v246
    %v1539 = vunpack.c.h.b16 %v246
    %v1540 = vunpack.c.l.b16 %v247
    %v1541 = vunpack.c.h.b16 %v247
    %v1542 = vunpack.c.l.b16 %v248
    %v1543 = vunpack.c.h.b16 %v248
    %v1544 = vunpack.c.l.b16 %v249
    %v1545 = vunpack.c.h.b16 %v249
    %v1546 = vunpack.c.l.b16 %v250
    %v1547 = vunpack.c.h.b16 %v250
    %v1548 = vunpack.c.l.b16 %v251
    %v1549 = vunpack.c.h.b16 %v251
    %v1550 = vunpack.c.l.b16 %v252
    %v1551 = vunpack.c.h.b16 %v252
    %v1552 = vunpack.c.l.b16 %v253
    %v1553 = vunpack.c.h.b16 %v253
    %v1554 = vunpack.c.l.b16 %v254
    %v1555 = vunpack.c.h.b16 %v254
    %v1556 = vunpack.c.l.b16 %v255
    %v1557 = vunpack.c.h.b16 %v255
    %v1558 = vunpack.c.l.b16 %v256
    %v1559 = vunpack.c.h.b16 %v256
    %v1560 = vunpack.c.l.b16 %v257
    %v1561 = vunpack.c.h.b16 %v257
    %v1562 = vunpack.c.l.b16 %v258
    %v1563 = vunpack.c.h.b16 %v258
    %v1564 = vunpack.c.l.b16 %v259
    %v1565 = vunpack.c.h.b16 %v259
    %v1566 = vunpack.c.l.b16 %v260
    %v1567 = vunpack.c.h.b16 %v260
    %v1568 = vunpack.c.l.b16 %v261
    %v1569 = vunpack.c.h.b16 %v261
    %v1570 = vunpack.c.l.b16 %v262
    %v1571 = vunpack.c.h.b16 %v262
    %v1572 = vunpack.c.l.b16 %v263
    %v1573 = vunpack.c.h.b16 %v263
    %v1574 = vunpack.c.l.b16 %v264
    %v1575 = vunpack.c.h.b16 %v264
    %v1576 = vunpack.c.l.b16 %v265
    %v1577 = vunpack.c.h.b16 %v265
    %v1578 = vunpack.c.l.b16 %v266
    %v1579 = vunpack.c.h.b16 %v266
    %v1580 = vunpack.c.l.b16 %v267
    %v1581 = vunpack.c.h.b16 %v267
    %v1582 = vunpack.c.l.b16 %v268
    %v1583 = vunpack.c.h.b16 %v268
    %v1584 = vunpack.c.l.b16 %v269
    %v1585 = vunpack.c.h.b16 %v269
    %v1586 = vunpack.c.l.b16 %v270
    %v1587 = vunpack.c.h.b16 %v270
    %v1588 = vunpack.c.l.b16 %v271
    %v1589 = vunpack.c.h.b16 %v271
    %v1590 = vunpack.c.l.b16 %v272
    %v1591 = vunpack.c.h.b16 %v272
    %v1592 = vunpack.c.l.b16 %v273
    %v1593 = vunpack.c.h.b16 %v273
    %v1594 = vunpack.c.l.b16 %v274
    %v1595 = vunpack.c.h.b16 %v274
    %v1596 = vunpack.c.l.b16 %v275
    %v1597 = vunpack.c.h.b16 %v275
    %v1598 = vunpack.c.l.b16 %v276
    %v1599 = vunpack.c.h.b16 %v276
    %v1600 = vunpack.c.l.b16 %v277
    %v1601 = vunpack.c.h.b16 %v277
    %v1602 = vunpack.c.l.b16 %v278
    %v1603 = vunpack.c.h.b16 %v278
    %v1604 = vunpack.c.l.b16 %v279
    %v1605 = vunpack.c.h.b16 %v279
    %v1606 = vunpack.c.l.b16 %v280
    %v1607 = vunpack.c.h.b16 %v280
    %v1608 = vunpack.c.l.b16 %v281
    %v1609 = vunpack.c.h.b16 %v281
    %v1610 = vunpack.c.l.b16 %v282
    %v1611 = vunpack.c.h.b16 %v282
    %v1612 = vunpack.c.l.b16 %v283
    %v1613 = vunpack.c.h.b16 %v283
    %v1614 = vunpack.c.l.b16 %v284
    %v1615 = vunpack.c.h.b16 %v284
    %v1616 = vunpack.c.l.b16 %v285
    %v1617 = vunpack.c.h.b16 %v285
    %v1618 = vunpack.c.l.b16 %v286
    %v1619 = vunpack.c.h.b16 %v286
    %v1620 = vunpack.c.l.b16 %v287
    %v1621 = vunpack.c.h.b16 %v287
    %v1622 = vunpack.c.l.b16 %v288
    %v1623 = vunpack.c.h.b16 %v288
    %v1624 = vunpack.c.l.b16 %v289
    %v1625 = vunpack.c.h.b16 %v289
    %v1626 = vunpack.c.l.b16 %v290
    %v1627 = vunpack.c.h.b16 %v290
    %v1628 = vunpack.c.l.b16 %v291
    %v1629 = vunpack.c.h.b16 %v291
    %v1630 = vunpack.c.l.b16 %v292
    %v1631 = vunpack.c.h.b16 %v292
    %v1632 = vunpack.c.l.b16 %v293
    %v1633 = vunpack.c.h.b16 %v293
    %v1634 = vunpack.c.l.b16 %v294
    %v1635 = vunpack.c.h.b16 %v294
    %v1636 = vunpack.c.l.b16 %v295
    %v1637 = vunpack.c.h.b16 %v295
    %v1638 = vunpack.c.l.b16 %v296
    %v1639 = vunpack.c.h.b16 %v296
    %v1640 = vunpack.c.l.b16 %v297
    %v1641 = vunpack.c.h.b16 %v297
    %v1642 = vunpack.c.l.b16 %v298
    %v1643 = vunpack.c.h.b16 %v298
    %v1644 = vunpack.c.l.b16 %v299
    %v1645 = vunpack.c.h.b16 %v299
    %v1646 = vunpack.c.l.b16 %v300
    %v1647 = vunpack.c.h.b16 %v300
    %v1648 = vunpack.c.l.b16 %v301
    %v1649 = vunpack.c.h.b16 %v301
    %v1650 = vunpack.c.l.b16 %v302
    %v1651 = vunpack.c.h.b16 %v302
    %v1652 = vunpack.c.l.b16 %v303
    %v1653 = vunpack.c.h.b16 %v303
    %v1654 = vunpack.c.l.b16 %v304
    %v1655 = vunpack.c.h.b16 %v304
    %v1656 = vunpack.c.l.b16 %v305
    %v1657 = vunpack.c.h.b16 %v305
    %v1658 = vunpack.c.l.b16 %v306
    %v1659 = vunpack.c.h.b16 %v306
    %v1660 = vunpack.c.l.b16 %v307
    %v1661 = vunpack.c.h.b16 %v307
    %v1662 = vunpack.c.l.b16 %v308
    %v1663 = vunpack.c.h.b16 %v308
    %v1664 = vunpack.c.l.b16 %v309
    %v1665 = vunpack.c.h.b16 %v309
    %v1666 = vunpack.c.l.b16 %v310
    %v1667 = vunpack.c.h.b16 %v310
    %v1668 = vunpack.c.l.b16 %v311
    %v1669 = vunpack.c.h.b16 %v311
    %v1670 = vunpack.c.l.b16 %v312
    %v1671 = vunpack.c.h.b16 %v312
    %v1672 = vunpack.c.l.b16 %v313
    %v1673 = vunpack.c.h.b16 %v313
    %v1674 = vunpack.c.l.b16 %v314
    %v1675 = vunpack.c.h.b16 %v314
    %v1676 = vunpack.c.l.b16 %v315
    %v1677 = vunpack.c.h.b16 %v315
    %v1678 = vunpack.c.l.b16 %v316
    %v1679 = vunpack.c.h.b16 %v316
    %v1680 = vunpack.c.l.b16 %v317
    %v1681 = vunpack.c.h.b16 %v317
    %v1682 = vunpack.c.l.b16 %v318
    %v1683 = vunpack.c.h.b16 %v318
    %v1684 = vunpack.c.l.b16 %v319
    %v1685 = vunpack.c.h.b16 %v319
    %v1686 = vunpack.c.l.b16 %v320
    %v1687 = vunpack.c.h.b16 %v320
    %v1688 = vunpack.c.l.b16 %v321
    %v1689 = vunpack.c.h.b16 %v321
    %v1690 = vunpack.c.l.b16 %v322
    %v1691 = vunpack.c.h.b16 %v322
    %v1692 = vunpack.c.l.b16 %v323
    %v1693 = vunpack.c.h.b16 %v323
    %v1694 = vunpack.c.l.b16 %v324
    %v1695 = vunpack.c.h.b16 %v324
    %v1696 = vunpack.c.l.b16 %v325
    %v1697 = vunpack.c.h.b16 %v325
    %v1698 = vunpack.c.l.b16 %v326
    %v1699 = vunpack.c.h.b16 %v326
    %v1700 = vunpack.c.l.b16 %v327
    %v1701 = vunpack.c.h.b16 %v327
    %v1702 = vunpack.c.l.b16 %v328
    %v1703 = vunpack.c.h.b16 %v328
    %v1704 = vunpack.c.l.b16 %v329
    %v1705 = vunpack.c.h.b16 %v329
    %v1706 = vunpack.c.l.b16 %v330
    %v1707 = vunpack.c.h.b16 %v330
    %v1708 = vunpack.c.l.b16 %v331
    %v1709 = vunpack.c.h.b16 %v331
    %v1710 = vunpack.c.l.b16 %v332
    %v1711 = vunpack.c.h.b16 %v332
    %v1712 = vunpack.c.l.b16 %v333
    %v1713 = vunpack.c.h.b16 %v333
    %v1714 = vunpack.c.l.b16 %v334
    %v1715 = vunpack.c.h.b16 %v334
    %v1716 = vunpack.c.l.b16 %v335
    %v1717 = vunpack.c.h.b16 %v335
    %v1718 = vunpack.c.l.b16 %v336
    %v1719 = vunpack.c.h.b16 %v336
    %v1720 = vunpack.c.l.b16 %v337
    %v1721 = vunpack.c.h.b16 %v337
    %v1722 = vunpack.c.l.b16 %v338
    %v1723 = vunpack.c.h.b16 %v338
    %v1724 = vunpack.c.l.b16 %v339
    %v1725 = vunpack.c.h.b16 %v339
    %v1726 = vunpack.c.l.b16 %v340
    %v1727 = vunpack.c.h.b16 %v340
    %v1728 = vunpack.c.l.b16 %v341
    %v1729 = vunpack.c.h.b16 %v341
    %v1730 = vunpack.c.l.b16 %v342
    %v1731 = vunpack.c.h.b16 %v342
    %v1732 = vunpack.c.l.b16 %v343
    %v1733 = vunpack.c.h.b16 %v343
    %v1734 = vunpack.c.l.b16 %v344
    %v1735 = vunpack.c.h.b16 %v344
    %v1736 = vunpack.c.l.b16 %v345
    %v1737 = vunpack.c.h.b16 %v345
    %v1738 = vunpack.c.l.b16 %v346
    %v1739 = vunpack.c.h.b16 %v346
    %v1740 = vunpack.c.l.b16 %v347
    %v1741 = vunpack.c.h.b16 %v347
    %v1742 = vunpack.c.l.b16 %v348
    %v1743 = vunpack.c.h.b16 %v348
    %v1744 = vunpack.c.l.b16 %v349
    %v1745 = vunpack.c.h.b16 %v349
    %v1746 = vunpack.c.l.b16 %v350
    %v1747 = vunpack.c.h.b16 %v350
    %v1748 = vunpack.c.l.b16 %v351
    %v1749 = vunpack.c.h.b16 %v351
    %v1750 = vunpack.c.l.b16 %v352
    %v1751 = vunpack.c.h.b16 %v352
    %v1752 = vunpack.c.l.b16 %v353
    %v1753 = vunpack.c.h.b16 %v353
    %v1754 = vunpack.c.l.b16 %v354
    %v1755 = vunpack.c.h.b16 %v354
    %v1756 = vunpack.c.l.b16 %v355
    %v1757 = vunpack.c.h.b16 %v355
    %v1758 = vunpack.c.l.b16 %v356
    %v1759 = vunpack.c.h.b16 %v356
    %v1760 = vunpack.c.l.b16 %v357
    %v1761 = vunpack.c.h.b16 %v357
    %v1762 = vunpack.c.l.b16 %v358
    %v1763 = vunpack.c.h.b16 %v358
    %v1764 = vunpack.c.l.b16 %v359
    %v1765 = vunpack.c.h.b16 %v359
    %v1766 = vunpack.c.l.b16 %v360
    %v1767 = vunpack.c.h.b16 %v360
    %v1768 = vunpack.c.l.b16 %v361
    %v1769 = vunpack.c.h.b16 %v361
    %v1770 = vunpack.c.l.b16 %v362
    %v1771 = vunpack.c.h.b16 %v362
    %v1772 = vunpack.c.l.b16 %v363
    %v1773 = vunpack.c.h.b16 %v363
    %v1774 = vunpack.c.l.b16 %v364
    %v1775 = vunpack.c.h.b16 %v364
    %v1776 = vunpack.c.l.b16 %v365
    %v1777 = vunpack.c.h.b16 %v365
    %v1778 = vunpack.c.l.b16 %v366
    %v1779 = vunpack.c.h.b16 %v366
    %v1780 = vunpack.c.l.b16 %v367
    %v1781 = vunpack.c.h.b16 %v367
    %v1782 = vunpack.c.l.b16 %v368
    %v1783 = vunpack.c.h.b16 %v368
    %v1784 = vunpack.c.l.b16 %v369
    %v1785 = vunpack.c.h.b16 %v369
    %v1786 = vunpack.c.l.b16 %v370
    %v1787 = vunpack.c.h.b16 %v370
    %v1788 = vunpack.c.l.b16 %v371
    %v1789 = vunpack.c.h.b16 %v371
    %v1790 = vunpack.c.l.b16 %v372
    %v1791 = vunpack.c.h.b16 %v372
    %v1792 = vunpack.c.l.b16 %v373
    %v1793 = vunpack.c.h.b16 %v373
    %v1794 = vunpack.c.l.b16 %v374
    %v1795 = vunpack.c.h.b16 %v374
    %v1796 = vunpack.c.l.b16 %v375
    %v1797 = vunpack.c.h.b16 %v375
    %v1798 = vunpack.c.l.b16 %v376
    %v1799 = vunpack.c.h.b16 %v376
    %v1800 = vunpack.c.l.b16 %v377
    %v1801 = vunpack.c.h.b16 %v377
    %v1802 = vunpack.c.l.b16 %v378
    %v1803 = vunpack.c.h.b16 %v378
    %v1804 = vunpack.c.l.b16 %v379
    %v1805 = vunpack.c.h.b16 %v379
    %v1806 = vunpack.c.l.b16 %v380
    %v1807 = vunpack.c.h.b16 %v380
    %v1808 = vunpack.c.l.b16 %v381
    %v1809 = vunpack.c.h.b16 %v381
    %v1810 = vunpack.c.l.b16 %v382
    %v1811 = vunpack.c.h.b16 %v382
    %v1812 = vunpack.c.l.b16 %v383
    %v1813 = vunpack.c.h.b16 %v383
    %v1814 = vunpack.c.l.b16 %v384
    %v1815 = vunpack.c.h.b16 %v384
    %v1816 = vunpack.c.l.b16 %v385
    %v1817 = vunpack.c.h.b16 %v385
    %v1818 = vunpack.c.l.b16 %v386
    %v1819 = vunpack.c.h.b16 %v386
    %v1820 = vunpack.c.l.b16 %v387
    %v1821 = vunpack.c.h.b16 %v387
    %v1822 = vunpack.c.l.b16 %v388
    %v1823 = vunpack.c.h.b16 %v388
    %v1824 = vunpack.c.l.b16 %v389
    %v1825 = vunpack.c.h.b16 %v389
    %v1826 = vunpack.c.l.b16 %v390
    %v1827 = vunpack.c.h.b16 %v390
    %v1828 = vunpack.c.l.b16 %v391
    %v1829 = vunpack.c.h.b16 %v391
    %v1830 = vunpack.c.l.b16 %v392
    %v1831 = vunpack.c.h.b16 %v392
    %v1832 = vunpack.c.l.b16 %v393
    %v1833 = vunpack.c.h.b16 %v393
    %v1834 = vunpack.c.l.b16 %v394
    %v1835 = vunpack.c.h.b16 %v394
    %v1836 = vunpack.c.l.b16 %v395
    %v1837 = vunpack.c.h.b16 %v395
    %v1838 = vunpack.c.l.b16 %v396
    %v1839 = vunpack.c.h.b16 %v396
    %v1840 = vunpack.c.l.b16 %v397
    %v1841 = vunpack.c.h.b16 %v397
    %v1842 = vunpack.c.l.b16 %v398
    %v1843 = vunpack.c.h.b16 %v398
    %v1844 = vunpack.c.l.b16 %v399
    %v1845 = vunpack.c.h.b16 %v399
    %v1846 = vunpack.c.l.b16 %v400
    %v1847 = vunpack.c.h.b16 %v400
    %v1848 = vunpack.c.l.b16 %v401
    %v1849 = vunpack.c.h.b16 %v401
    %v1850 = vunpack.c.l.b16 %v402
    %v1851 = vunpack.c.h.b16 %v402
    %v1852 = vunpack.c.l.b16 %v403
    %v1853 = vunpack.c.h.b16 %v403
    %v1854 = vunpack.c.l.b16 %v404
    %v1855 = vunpack.c.h.b16 %v404
    %v1856 = vunpack.c.l.b16 %v405
    %v1857 = vunpack.c.h.b16 %v405
    %v1858 = vunpack.c.l.b16 %v406
    %v1859 = vunpack.c.h.b16 %v406
    %v1860 = vunpack.c.l.b16 %v407
    %v1861 = vunpack.c.h.b16 %v407
    %v1862 = vunpack.c.l.b16 %v408
    %v1863 = vunpack.c.h.b16 %v408
    %v1864 = vunpack.c.l.b16 %v409
    %v1865 = vunpack.c.h.b16 %v409
    %v1866 = vunpack.c.l.b16 %v410
    %v1867 = vunpack.c.h.b16 %v410
    %v1868 = vunpack.c.l.b16 %v411
    %v1869 = vunpack.c.h.b16 %v411
    %v1870 = vunpack.c.l.b16 %v412
    %v1871 = vunpack.c.h.b16 %v412
    %v1872 = vunpack.c.l.b16 %v413
    %v1873 = vunpack.c.h.b16 %v413
    %v1874 = vunpack.c.l.b16 %v414
    %v1875 = vunpack.c.h.b16 %v414
    %v1876 = vunpack.c.l.b16 %v415
    %v1877 = vunpack.c.h.b16 %v415
    %v1878 = vunpack.c.l.b16 %v416
    %v1879 = vunpack.c.h.b16 %v416
    %v1880 = vunpack.c.l.b16 %v417
    %v1881 = vunpack.c.h.b16 %v417
    %v1882 = vunpack.c.l.b16 %v418
    %v1883 = vunpack.c.h.b16 %v418
    %v1884 = vunpack.c.l.b16 %v419
    %v1885 = vunpack.c.h.b16 %v419
    %v1886 = vunpack.c.l.b16 %v420
    %v1887 = vunpack.c.h.b16 %v420
    %v1888 = vunpack.c.l.b16 %v421
    %v1889 = vunpack.c.h.b16 %v421
    %v1890 = vunpack.c.l.b16 %v422
    %v1891 = vunpack.c.h.b16 %v422
    %v1892 = vunpack.c.l.b16 %v423
    %v1893 = vunpack.c.h.b16 %v423
    %v1894 = vunpack.c.l.b16 %v424
    %v1895 = vunpack.c.h.b16 %v424
    %v1896 = vunpack.c.l.b16 %v425
    %v1897 = vunpack.c.h.b16 %v425
    %v1898 = vunpack.c.l.b16 %v426
    %v1899 = vunpack.c.h.b16 %v426
    %v1900 = vunpack.c.l.b16 %v427
    %v1901 = vunpack.c.h.b16 %v427
    %v1902 = vunpack.c.l.b16 %v428
    %v1903 = vunpack.c.h.b16 %v428
    %v1904 = vunpack.c.l.b16 %v429
    %v1905 = vunpack.c.h.b16 %v429
    %v1906 = vunpack.c.l.b16 %v430
    %v1907 = vunpack.c.h.b16 %v430
    %v1908 = vunpack.c.l.b16 %v431
    %v1909 = vunpack.c.h.b16 %v431
    %v1910 = vunpack.c.l.b16 %v432
    %v1911 = vunpack.c.h.b16 %v432
    %v1912 = vunpack.c.l.b16 %v433
    %v1913 = vunpack.c.h.b16 %v433
    %v1914 = vunpack.c.l.b16 %v434
    %v1915 = vunpack.c.h.b16 %v434
    %v1916 = vunpack.c.l.b16 %v435
    %v1917 = vunpack.c.h.b16 %v435
    %v1918 = vunpack.c.l.b16 %v436
    %v1919 = vunpack.c.h.b16 %v436
    %v1920 = vunpack.c.l.b16 %v437
    %v1921 = vunpack.c.h.b16 %v437
    %v1922 = vunpack.c.l.b16 %v438
    %v1923 = vunpack.c.h.b16 %v438
    %v1924 = vunpack.c.l.b16 %v439
    %v1925 = vunpack.c.h.b16 %v439
    %v1926 = vunpack.c.l.b16 %v440
    %v1927 = vunpack.c.h.b16 %v440
    %v1928 = vunpack.c.l.b16 %v441
    %v1929 = vunpack.c.h.b16 %v441
    %v1930 = vunpack.c.l.b16 %v442
    %v1931 = vunpack.c.h.b16 %v442
    %v1932 = vunpack.c.l.b16 %v443
    %v1933 = vunpack.c.h.b16 %v443
    %v1934 = vunpack.c.l.b16 %v444
    %v1935 = vunpack.c.h.b16 %v444
    %v1936 = vunpack.c.l.b16 %v445
    %v1937 = vunpack.c.h.b16 %v445
    %v1938 = vunpack.c.l.b16 %v446
    %v1939 = vunpack.c.h.b16 %v446
    %v1940 = vunpack.c.l.b16 %v447
    %v1941 = vunpack.c.h.b16 %v447
    %v1942 = vunpack.c.l.b16 %v448
    %v1943 = vunpack.c.h.b16 %v448
    %v1944 = vunpack.c.l.b16 %v449
    %v1945 = vunpack.c.h.b16 %v449
    %v1946 = vunpack.c.l.b16 %v450
    %v1947 = vunpack.c.h.b16 %v450
    %v1948 = vunpack.c.l.b16 %v451
    %v1949 = vunpack.c.h.b16 %v451
    %v1950 = vunpack.c.l.b16 %v452
    %v1951 = vunpack.c.h.b16 %v452
    %v1952 = vunpack.c.l.b16 %v453
    %v1953 = vunpack.c.h.b16 %v453
    %v1954 = vunpack.c.l.b16 %v454
    %v1955 = vunpack.c.h.b16 %v454
    %v1956 = vunpack.c.l.b16 %v455
    %v1957 = vunpack.c.h.b16 %v455
    %v1958 = vunpack.c.l.b16 %v456
    %v1959 = vunpack.c.h.b16 %v456
    %v1960 = vunpack.c.l.b16 %v457
    %v1961 = vunpack.c.h.b16 %v457
    %v1962 = vunpack.c.l.b16 %v458
    %v1963 = vunpack.c.h.b16 %v458
    %v1964 = vunpack.c.l.b16 %v459
    %v1965 = vunpack.c.h.b16 %v459
    %v1966 = vunpack.c.l.b16 %v460
    %v1967 = vunpack.c.h.b16 %v460
    %v1968 = vunpack.c.l.b16 %v461
    %v1969 = vunpack.c.h.b16 %v461
    %v1970 = vunpack.c.l.b16 %v462
    %v1971 = vunpack.c.h.b16 %v462
    %v1972 = vunpack.c.l.b16 %v463
    %v1973 = vunpack.c.h.b16 %v463
    %v1974 = vunpack.c.l.b16 %v464
    %v1975 = vunpack.c.h.b16 %v464
    %v1976 = vunpack.c.l.b16 %v465
    %v1977 = vunpack.c.h.b16 %v465
    %v1978 = vunpack.c.l.b16 %v466
    %v1979 = vunpack.c.h.b16 %v466
    %v1980 = vunpack.c.l.b16 %v467
    %v1981 = vunpack.c.h.b16 %v467
    %v1982 = vunpack.c.l.b16 %v468
    %v1983 = vunpack.c.h.b16 %v468
    %v1984 = vunpack.c.l.b16 %v469
    %v1985 = vunpack.c.h.b16 %v469
    %v1986 = vunpack.c.l.b16 %v470
    %v1987 = vunpack.c.h.b16 %v470
    %v1988 = vunpack.c.l.b16 %v471
    %v1989 = vunpack.c.h.b16 %v471
    %v1990 = vunpack.c.l.b16 %v472
    %v1991 = vunpack.c.h.b16 %v472
    %v1992 = vunpack.c.l.b16 %v473
    %v1993 = vunpack.c.h.b16 %v473
    %v1994 = vunpack.c.l.b16 %v474
    %v1995 = vunpack.c.h.b16 %v474
    %v1996 = vunpack.c.l.b16 %v475
    %v1997 = vunpack.c.h.b16 %v475
    %v1998 = vunpack.c.l.b16 %v476
    %v1999 = vunpack.c.h.b16 %v476
    %v2000 = vunpack.c.l.b16 %v477
    %v2001 = vunpack.c.h.b16 %v477
    %v2002 = vunpack.c.l.b16 %v478
    %v2003 = vunpack.c.h.b16 %v478
    %v2004 = vunpack.c.l.b16 %v479
    %v2005 = vunpack.c.h.b16 %v479
    %v2006 = vunpack.c.l.b16 %v480
    %v2007 = vunpack.c.h.b16 %v480
    %v2008 = vunpack.c.l.b16 %v481
    %v2009 = vunpack.c.h.b16 %v481
    %v2010 = vunpack.c.l.b16 %v482
    %v2011 = vunpack.c.h.b16 %v482
    %v2012 = vunpack.c.l.b16 %v483
    %v2013 = vunpack.c.h.b16 %v483
    %v2014 = vunpack.c.l.b16 %v484
    %v2015 = vunpack.c.h.b16 %v484
    %v2016 = vunpack.c.l.b16 %v485
    %v2017 = vunpack.c.h.b16 %v485
    %v2018 = vunpack.c.l.b16 %v486
    %v2019 = vunpack.c.h.b16 %v486
    %v2020 = vunpack.c.l.b16 %v487
    %v2021 = vunpack.c.h.b16 %v487
    %v2022 = vunpack.c.l.b16 %v488
    %v2023 = vunpack.c.h.b16 %v488
    %v2024 = vunpack.c.l.b16 %v489
    %v2025 = vunpack.c.h.b16 %v489
    %v2026 = vunpack.c.l.b16 %v490
    %v2027 = vunpack.c.h.b16 %v490
    %v2028 = vunpack.c.l.b16 %v491
    %v2029 = vunpack.c.h.b16 %v491
    %v2030 = vunpack.c.l.b16 %v492
    %v2031 = vunpack.c.h.b16 %v492
    %v2032 = vunpack.c.l.b16 %v493
    %v2033 = vunpack.c.h.b16 %v493
    %v2034 = vunpack.c.l.b16 %v494
    %v2035 = vunpack.c.h.b16 %v494
    %v2036 = vunpack.c.l.b16 %v495
    %v2037 = vunpack.c.h.b16 %v495
    %v2038 = vunpack.c.l.b16 %v496
    %v2039 = vunpack.c.h.b16 %v496
    %v2040 = vunpack.c.l.b16 %v497
    %v2041 = vunpack.c.h.b16 %v497
    %v2042 = vunpack.c.l.b16 %v498
    %v2043 = vunpack.c.h.b16 %v498
    %v2044 = vunpack.c.l.b16 %v499
    %v2045 = vunpack.c.h.b16 %v499
    %v2046 = vunpack.c.l.b16 %v500
    %v2047 = vunpack.c.h.b16 %v500
    %v2048 = vunpack.c.l.b16 %v501
    %v2049 = vunpack.c.h.b16 %v501
    %v2050 = vunpack.c.l.b16 %v502
    %v2051 = vunpack.c.h.b16 %v502
    %v2052 = vunpack.c.l.b16 %v503
    %v2053 = vunpack.c.h.b16 %v503
    %v2054 = vunpack.c.l.b16 %v504
    %v2055 = vunpack.c.h.b16 %v504
    %v2056 = vunpack.c.l.b16 %v505
    %v2057 = vunpack.c.h.b16 %v505
    %v2058 = vunpack.c.l.b16 %v506
    %v2059 = vunpack.c.h.b16 %v506
    %v2060 = vunpack.c.l.b16 %v507
    %v2061 = vunpack.c.h.b16 %v507
    %v2062 = vunpack.c.l.b16 %v508
    %v2063 = vunpack.c.h.b16 %v508
    %v2064 = vunpack.c.l.b16 %v509
    %v2065 = vunpack.c.h.b16 %v509
    %v2066 = vunpack.c.l.b16 %v510
    %v2067 = vunpack.c.h.b16 %v510
    %v2068 = vunpack.c.l.b16 %v511
    %v2069 = vunpack.c.h.b16 %v511
    %v2070 = vunpack.c.l.b16 %v512
    %v2071 = vunpack.c.h.b16 %v512
    %v2072 = vunpack.c.l.b16 %v513
    %v2073 = vunpack.c.h.b16 %v513
    %v2074 = vunpack.c.l.b16 %v514
    %v2075 = vunpack.c.h.b16 %v514
    %v2076 = vunpack.c.l.b16 %v515
    %v2077 = vunpack.c.h.b16 %v515
    %v2078 = vunpack.c.l.b16 %v516
    %v2079 = vunpack.c.h.b16 %v516
    %v2080 = vunpack.c.l.b16 %v517
    %v2081 = vunpack.c.h.b16 %v517
    %v2082 = vunpack.c.l.b16 %v518
    %v2083 = vunpack.c.h.b16 %v518
    %v2084 = vunpack.c.l.b16 %v519
    %v2085 = vunpack.c.h.b16 %v519
    %v2086 = vunpack.c.l.b16 %v520
    %v2087 = vunpack.c.h.b16 %v520
    %v2088 = vunpack.c.l.b16 %v521
    %v2089 = vunpack.c.h.b16 %v521
    %v2090 = vunpack.c.l.b16 %v522
    %v2091 = vunpack.c.h.b16 %v522
    %v2092 = vunpack.c.l.b16 %v523
    %v2093 = vunpack.c.h.b16 %v523
    %v2094 = vunpack.c.l.b16 %v524
    %v2095 = vunpack.c.h.b16 %v524
    %v2096 = vunpack.c.l.b16 %v525
    %v2097 = vunpack.c.h.b16 %v525
    %v2098 = vunpack.c.l.b16 %v526
    %v2099 = vunpack.c.h.b16 %v526
    %v2100 = vunpack.c.l.b16 %v527
    %v2101 = vunpack.c.h.b16 %v527
    %v2102 = vunpack.c.l.b16 %v528
    %v2103 = vunpack.c.h.b16 %v528
    %v2104 = vunpack.c.l.b16 %v529
    %v2105 = vunpack.c.h.b16 %v529
    %v2106 = vunpack.c.l.b16 %v530
    %v2107 = vunpack.c.h.b16 %v530
    %v2108 = vunpack.c.l.b16 %v531
    %v2109 = vunpack.c.h.b16 %v531
    %v2110 = vunpack.c.l.b16 %v532
    %v2111 = vunpack.c.h.b16 %v532
    %v2112 = vunpack.c.l.b16 %v533
    %v2113 = vunpack.c.h.b16 %v533
    %v2114 = vunpack.c.l.b16 %v534
    %v2115 = vunpack.c.h.b16 %v534
    %v2116 = vunpack.c.l.b16 %v535
    %v2117 = vunpack.c.h.b16 %v535
    %v2118 = vunpack.c.l.b16 %v536
    %v2119 = vunpack.c.h.b16 %v536
    %v2120 = vunpack.c.l.b16 %v537
    %v2121 = vunpack.c.h.b16 %v537
    %v2122 = vunpack.c.l.b16 %v538
    %v2123 = vunpack.c.h.b16 %v538
    %v2124 = vunpack.c.l.b16 %v539
    %v2125 = vunpack.c.h.b16 %v539
    %v2126 = vunpack.c.l.b16 %v540
    %v2127 = vunpack.c.h.b16 %v540
    %v2128 = vunpack.c.l.b16 %v541
    %v2129 = vunpack.c.h.b16 %v541
    %v2130 = vunpack.c.l.b16 %v542
    %v2131 = vunpack.c.h.b16 %v542
    %v2132 = vunpack.c.l.b16 %v543
    %v2133 = vunpack.c.h.b16 %v543
    %v2134 = vunpack.c.l.b16 %v544
    %v2135 = vunpack.c.h.b16 %v544
    %v2136 = vunpack.c.l.b16 %v545
    %v2137 = vunpack.c.h.b16 %v545
    %v2138 = vunpack.c.l.b16 %v546
    %v2139 = vunpack.c.h.b16 %v546
    %v2140 = vunpack.c.l.b16 %v547
    %v2141 = vunpack.c.h.b16 %v547
    %v2142 = vunpack.c.l.b16 %v548
    %v2143 = vunpack.c.h.b16 %v548
    %v2144 = vunpack.c.l.b16 %v549
    %v2145 = vunpack.c.h.b16 %v549
    %v2146 = vunpack.c.l.b16 %v550
    %v2147 = vunpack.c.h.b16 %v550
    %v2148 = vunpack.c.l.b16 %v551
    %v2149 = vunpack.c.h.b16 %v551
    %v2150 = vunpack.c.l.b16 %v552
    %v2151 = vunpack.c.h.b16 %v552
    %v2152 = vunpack.c.l.b16 %v553
    %v2153 = vunpack.c.h.b16 %v553
    %v2154 = vunpack.c.l.b16 %v554
    %v2155 = vunpack.c.h.b16 %v554
    %v2156 = vunpack.c.l.b16 %v555
    %v2157 = vunpack.c.h.b16 %v555
    %v2158 = vunpack.c.l.b16 %v556
    %v2159 = vunpack.c.h.b16 %v556
    %v2160 = vunpack.c.l.b16 %v557
    %v2161 = vunpack.c.h.b16 %v557
    %v2162 = vunpack.c.l.b16 %v558
    %v2163 = vunpack.c.h.b16 %v558
    %v2164 = vunpack.c.l.b16 %v559
    %v2165 = vunpack.c.h.b16 %v559
    %v2166 = vunpack.c.l.b16 %v560
    %v2167 = vunpack.c.h.b16 %v560
    %v2168 = vunpack.c.l.b16 %v561
    %v2169 = vunpack.c.h.b16 %v561
    %v2170 = vunpack.c.l.b16 %v562
    %v2171 = vunpack.c.h.b16 %v562
    %v2172 = vunpack.c.l.b16 %v563
    %v2173 = vunpack.c.h.b16 %v563
    %v2174 = vunpack.c.l.b16 %v564
    %v2175 = vunpack.c.h.b16 %v564
    %v2176 = vunpack.c.l.b16 %v565
    %v2177 = vunpack.c.h.b16 %v565
    %v2178 = vunpack.c.l.b16 %v566
    %v2179 = vunpack.c.h.b16 %v566
    %v2180 = vunpack.c.l.b16 %v567
    %v2181 = vunpack.c.h.b16 %v567
    %v2182 = vunpack.c.l.b16 %v568
    %v2183 = vunpack.c.h.b16 %v568
    %v2184 = vunpack.c.l.b16 %v569
    %v2185 = vunpack.c.h.b16 %v569
    %v2186 = vunpack.c.l.b16 %v570
    %v2187 = vunpack.c.h.b16 %v570
    %v2188 = vunpack.c.l.b16 %v571
    %v2189 = vunpack.c.h.b16 %v571
    %v2190 = vunpack.c.l.b16 %v572
    %v2191 = vunpack.c.h.b16 %v572
    %v2192 = vunpack.c.l.b16 %v573
    %v2193 = vunpack.c.h.b16 %v573
    %v2194 = vunpack.c.l.b16 %v574
    %v2195 = vunpack.c.h.b16 %v574
    %v2196 = vunpack.c.l.b16 %v575
    %v2197 = vunpack.c.h.b16 %v575
    %v2198 = vunpack.c.l.b16 %v576
    %v2199 = vunpack.c.h.b16 %v576
    %v2200 = vunpack.c.l.b16 %v577
    %v2201 = vunpack.c.h.b16 %v577
    %v2202 = vunpack.c.l.b16 %v578
    %v2203 = vunpack.c.h.b16 %v578
    %v2204 = vunpack.c.l.b16 %v579
    %v2205 = vunpack.c.h.b16 %v579
    %v2206 = vunpack.c.l.b16 %v580
    %v2207 = vunpack.c.h.b16 %v580
    %v2208 = vunpack.c.l.b16 %v581
    %v2209 = vunpack.c.h.b16 %v581
    %v2210 = vunpack.c.l.b16 %v582
    %v2211 = vunpack.c.h.b16 %v582
    %v2212 = vunpack.c.l.b16 %v583
    %v2213 = vunpack.c.h.b16 %v583
    %v2214 = vunpack.c.l.b16 %v584
    %v2215 = vunpack.c.h.b16 %v584
    %v2216 = vunpack.c.l.b16 %v585
    %v2217 = vunpack.c.h.b16 %v585
    %v2218 = vunpack.c.l.b16 %v586
    %v2219 = vunpack.c.h.b16 %v586
    %v2220 = vunpack.c.l.b16 %v587
    %v2221 = vunpack.c.h.b16 %v587
    %v2222 = vunpack.c.l.b16 %v588
    %v2223 = vunpack.c.h.b16 %v588
    %v2224 = vunpack.c.l.b16 %v589
    %v2225 = vunpack.c.h.b16 %v589
    %v2226 = vunpack.c.l.b16 %v590
    %v2227 = vunpack.c.h.b16 %v590
    %v2228 = vunpack.c.l.b16 %v591
    %v2229 = vunpack.c.h.b16 %v591
    %v2230 = vunpack.c.l.b16 %v592
    %v2231 = vunpack.c.h.b16 %v592
    %v2232 = vunpack.c.l.b16 %v593
    %v2233 = vunpack.c.h.b16 %v593
    %v2234 = vunpack.c.l.b16 %v594
    %v2235 = vunpack.c.h.b16 %v594
    %v2236 = vunpack.c.l.b16 %v595
    %v2237 = vunpack.c.h.b16 %v595
    %v2238 = vunpack.c.l.b16 %v596
    %v2239 = vunpack.c.h.b16 %v596
    %v2240 = vunpack.c.l.b16 %v597
    %v2241 = vunpack.c.h.b16 %v597
    %v2242 = vunpack.c.l.b16 %v598
    %v2243 = vunpack.c.h.b16 %v598
    %v2244 = vunpack.c.l.b16 %v599
    %v2245 = vunpack.c.h.b16 %v599
    %v2246 = vunpack.c.l.b16 %v600
    %v2247 = vunpack.c.h.b16 %v600
    %v2248 = vunpack.c.l.b16 %v601
    %v2249 = vunpack.c.h.b16 %v601
    %v2250 = vunpack.c.l.b16 %v602
    %v2251 = vunpack.c.h.b16 %v602
    %v2252 = vunpack.c.l.b16 %v603
    %v2253 = vunpack.c.h.b16 %v603
    %v2254 = vunpack.c.l.b16 %v604
    %v2255 = vunpack.c.h.b16 %v604
    %v2256 = vunpack.c.l.b16 %v605
    %v2257 = vunpack.c.h.b16 %v605
    %v2258 = vunpack.c.l.b16 %v606
    %v2259 = vunpack.c.h.b16 %v606
    %v2260 = vunpack.c.l.b16 %v607
    %v2261 = vunpack.c.h.b16 %v607
    %v2262 = vunpack.c.l.b16 %v608
    %v2263 = vunpack.c.h.b16 %v608
    %v2264 = vunpack.c.l.b16 %v609
    %v2265 = vunpack.c.h.b16 %v609
    %v2266 = vunpack.c.l.b16 %v610
    %v2267 = vunpack.c.h.b16 %v610
    %v2268 = vunpack.c.l.b16 %v611
    %v2269 = vunpack.c.h.b16 %v611
    %v2270 = vunpack.c.l.b16 %v612
    %v2271 = vunpack.c.h.b16 %v612
    %v2272 = vunpack.c.l.b16 %v613
    %v2273 = vunpack.c.h.b16 %v613
    %v2274 = vunpack.c.l.b16 %v614
    %v2275 = vunpack.c.h.b16 %v614
    %v2276 = vunpack.c.l.b16 %v615
    %v2277 = vunpack.c.h.b16 %v615
    %v2278 = vunpack.c.l.b16 %v616
    %v2279 = vunpack.c.h.b16 %v616
    %v2280 = vunpack.c.l.b16 %v617
    %v2281 = vunpack.c.h.b16 %v617
    %v2282 = vunpack.c.l.b16 %v618
    %v2283 = vunpack.c.h.b16 %v618
    %v2284 = vunpack.c.l.b16 %v619
    %v2285 = vunpack.c.h.b16 %v619
    %v2286 = vunpack.c.l.b16 %v620
    %v2287 = vunpack.c.h.b16 %v620
    %v2288 = vunpack.c.l.b16 %v621
    %v2289 = vunpack.c.h.b16 %v621
    %v2290 = vunpack.c.l.b16 %v622
    %v2291 = vunpack.c.h.b16 %v622
    %v2292 = vunpack.c.l.b16 %v623
    %v2293 = vunpack.c.h.b16 %v623
    %v2294 = vunpack.c.l.b16 %v624
    %v2295 = vunpack.c.h.b16 %v624
    %v2296 = vunpack.c.l.b16 %v625
    %v2297 = vunpack.c.h.b16 %v625
    %v2298 = vunpack.c.l.b16 %v626
    %v2299 = vunpack.c.h.b16 %v626
    %v2300 = vunpack.c.l.b16 %v627
    %v2301 = vunpack.c.h.b16 %v627
    %v2302 = vunpack.c.l.b16 %v628
    %v2303 = vunpack.c.h.b16 %v628
    %v2304 = vunpack.c.l.b16 %v629
    %v2305 = vunpack.c.h.b16 %v629
    %v2306 = vunpack.c.l.b16 %v630
    %v2307 = vunpack.c.h.b16 %v630
    %v2308 = vunpack.c.l.b16 %v631
    %v2309 = vunpack.c.h.b16 %v631
    %v2310 = vunpack.c.l.b16 %v632
    %v2311 = vunpack.c.h.b16 %v632
    %v2312 = vunpack.c.l.b16 %v633
    %v2313 = vunpack.c.h.b16 %v633
    %v2314 = vunpack.c.l.b16 %v634
    %v2315 = vunpack.c.h.b16 %v634
    %v2316 = vunpack.c.l.b16 %v635
    %v2317 = vunpack.c.h.b16 %v635
    %v2318 = vunpack.c.l.b16 %v636
    %v2319 = vunpack.c.h.b16 %v636
    %v2320 = vunpack.c.l.b16 %v637
    %v2321 = vunpack.c.h.b16 %v637
    %v2322 = vunpack.c.l.b16 %v638
    %v2323 = vunpack.c.h.b16 %v638
    %v2324 = vunpack.c.l.b16 %v639
    %v2325 = vunpack.c.h.b16 %v639
    %v2326 = vunpack.c.l.b16 %v640
    %v2327 = vunpack.c.h.b16 %v640
    %v2328 = vunpack.c.l.b16 %v641
    %v2329 = vunpack.c.h.b16 %v641
    %v2330 = vunpack.c.l.b16 %v642
    %v2331 = vunpack.c.h.b16 %v642
    %v2332 = vunpack.c.l.b16 %v643
    %v2333 = vunpack.c.h.b16 %v643
    %v2334 = vunpack.c.l.b16 %v644
    %v2335 = vunpack.c.h.b16 %v644
    %v2336 = vunpack.c.l.b16 %v645
    %v2337 = vunpack.c.h.b16 %v645
    %v2338 = vunpack.c.l.b16 %v646
    %v2339 = vunpack.c.h.b16 %v646
    %v2340 = vunpack.c.l.b16 %v647
    %v2341 = vunpack.c.h.b16 %v647
    %v2342 = vunpack.c.l.b16 %v648
    %v2343 = vunpack.c.h.b16 %v648
    %v2344 = vunpack.c.l.b16 %v649
    %v2345 = vunpack.c.h.b16 %v649
    %v2346 = vunpack.c.l.b16 %v650
    %v2347 = vunpack.c.h.b16 %v650
    %v2348 = vunpack.c.l.b16 %v651
    %v2349 = vunpack.c.h.b16 %v651
    %v2350 = vunpack.c.l.b16 %v652
    %v2351 = vunpack.c.h.b16 %v652
    %v2352 = vunpack.c.l.b16 %v653
    %v2353 = vunpack.c.h.b16 %v653
    %v2354 = vunpack.c.l.b16 %v654
    %v2355 = vunpack.c.h.b16 %v654
    %v2356 = vunpack.c.l.b16 %v655
    %v2357 = vunpack.c.h.b16 %v655
    %v2358 = vunpack.c.l.b16 %v656
    %v2359 = vunpack.c.h.b16 %v656
    %v2360 = vunpack.c.l.b16 %v657
    %v2361 = vunpack.c.h.b16 %v657
    %v2362 = vunpack.c.l.b16 %v658
    %v2363 = vunpack.c.h.b16 %v658
    %v2364 = vunpack.c.l.b16 %v659
    %v2365 = vunpack.c.h.b16 %v659
    %v2366 = vunpack.c.l.b16 %v660
    %v2367 = vunpack.c.h.b16 %v660
    %v2368 = vunpack.c.l.b16 %v661
    %v2369 = vunpack.c.h.b16 %v661
    %v2370 = vunpack.c.l.b16 %v662
    %v2371 = vunpack.c.h.b16 %v662
    %v2372 = vunpack.c.l.b16 %v663
    %v2373 = vunpack.c.h.b16 %v663
    %v2374 = vunpack.c.l.b16 %v664
    %v2375 = vunpack.c.h.b16 %v664
    %v2376 = vunpack.c.l.b16 %v665
    %v2377 = vunpack.c.h.b16 %v665
    %v2378 = vunpack.c.l.b16 %v666
    %v2379 = vunpack.c.h.b16 %v666
    %v2380 = vunpack.c.l.b16 %v667
    %v2381 = vunpack.c.h.b16 %v667
    %v2382 = vunpack.c.l.b16 %v668
    %v2383 = vunpack.c.h.b16 %v668
    %v2384 = vunpack.c.l.b16 %v669
    %v2385 = vunpack.c.h.b16 %v669
    %v2386 = vunpack.c.l.b16 %v670
    %v2387 = vunpack.c.h.b16 %v670
    %v2388 = vunpack.c.l.b16 %v671
    %v2389 = vunpack.c.h.b16 %v671
    %v2390 = vunpack.c.l.b16 %v672
    %v2391 = vunpack.c.h.b16 %v672
    %v2392 = vunpack.c.l.b16 %v673
    %v2393 = vunpack.c.h.b16 %v673
    %v2394 = vunpack.c.l.b16 %v674
    %v2395 = vunpack.c.h.b16 %v674
    %v2396 = vunpack.c.l.b16 %v675
    %v2397 = vunpack.c.h.b16 %v675
    %v2398 = vunpack.c.l.b16 %v676
    %v2399 = vunpack.c.h.b16 %v676
    %v2400 = vunpack.c.l.b16 %v677
    %v2401 = vunpack.c.h.b16 %v677
    %v2402 = vunpack.c.l.b16 %v678
    %v2403 = vunpack.c.h.b16 %v678
    %v2404 = vunpack.c.l.b16 %v679
    %v2405 = vunpack.c.h.b16 %v679
    %v2406 = vunpack.c.l.b16 %v680
    %v2407 = vunpack.c.h.b16 %v680
    %v2408 = vunpack.c.l.b16 %v681
    %v2409 = vunpack.c.h.b16 %v681
    %v2410 = vunpack.c.l.b16 %v682
    %v2411 = vunpack.c.h.b16 %v682
    %v2412 = vunpack.c.l.b16 %v683
    %v2413 = vunpack.c.h.b16 %v683
    %v2414 = vunpack.c.l.b16 %v684
    %v2415 = vunpack.c.h.b16 %v684
    %v2416 = vunpack.c.l.b16 %v685
    %v2417 = vunpack.c.h.b16 %v685
    %v2418 = vunpack.c.l.b16 %v686
    %v2419 = vunpack.c.h.b16 %v686
    %v2420 = vunpack.c.l.b16 %v687
    %v2421 = vunpack.c.h.b16 %v687
    %v2422 = vunpack.c.l.b16 %v688
    %v2423 = vunpack.c.h.b16 %v688
    %v2424 = vunpack.c.l.b16 %v689
    %v2425 = vunpack.c.h.b16 %v689
    %v2426 = vunpack.c.l.b16 %v690
    %v2427 = vunpack.c.h.b16 %v690
    %v2428 = vunpack.c.l.b16 %v691
    %v2429 = vunpack.c.h.b16 %v691
    %v2430 = vunpack.c.l.b16 %v692
    %v2431 = vunpack.c.h.b16 %v692
    %v2432 = vunpack.c.l.b16 %v693
    %v2433 = vunpack.c.h.b16 %v693
    %v2434 = vunpack.c.l.b16 %v694
    %v2435 = vunpack.c.h.b16 %v694
    %v2436 = vunpack.c.l.b16 %v695
    %v2437 = vunpack.c.h.b16 %v695
    %v2438 = vunpack.c.l.b16 %v696
    %v2439 = vunpack.c.h.b16 %v696
    %v2440 = vunpack.c.l.b16 %v697
    %v2441 = vunpack.c.h.b16 %v697
    %v2442 = vunpack.c.l.b16 %v698
    %v2443 = vunpack.c.h.b16 %v698
    %v2444 = vunpack.c.l.b16 %v699
    %v2445 = vunpack.c.h.b16 %v699
    %v2446 = vunpack.c.l.b16 %v700
    %v2447 = vunpack.c.h.b16 %v700
    %v2448 = vunpack.c.l.b16 %v701
    %v2449 = vunpack.c.h.b16 %v701
    %v2450 = vunpack.c.l.b16 %v702
    %v2451 = vunpack.c.h.b16 %v702
    %v2452 = vunpack.c.l.b16 %v703
    %v2453 = vunpack.c.h.b16 %v703
    %v2454 = vunpack.c.l.b16 %v704
    %v2455 = vunpack.c.h.b16 %v704
    %v2456 = vunpack.c.l.b16 %v705
    %v2457 = vunpack.c.h.b16 %v705
    %v2458 = vunpack.c.l.b16 %v706
    %v2459 = vunpack.c.h.b16 %v706
    %v2460 = vunpack.c.l.b16 %v707
    %v2461 = vunpack.c.h.b16 %v707
    %v2462 = vunpack.c.l.b16 %v708
    %v2463 = vunpack.c.h.b16 %v708
    %v2464 = vunpack.c.l.b16 %v709
    %v2465 = vunpack.c.h.b16 %v709
    %v2466 = vpack.c.b16 %v1326, %v1314
    %v2467 = vpack.c.b16 %v1327, %v1315
    %v2468 = vpack.c.b16 %v1328, %v1316
    %v2469 = vpack.c.b16 %v1329, %v1317
    %v2470 = vpack.c.b16 %v1330, %v1318
    %v2471 = vpack.c.b16 %v1331, %v1319
    %v2472 = vpack.c.b16 %v1332, %v1320
    %v2473 = vpack.c.b16 %v1333, %v1321
    %v2474 = vpack.c.b16 %v1334, %v1322
    %v2475 = vpack.c.b16 %v1335, %v1323
    %v2476 = vpack.c.b16 %v1336, %v1324
    %v2477 = vpack.c.b16 %v1337, %v1325
    %v2478 = vpack.c.b16 %v1350, %v1338
    %v2479 = vpack.c.b16 %v1351, %v1339
    %v2480 = vpack.c.b16 %v1352, %v1340
    %v2481 = vpack.c.b16 %v1353, %v1341
    %v2482 = vpack.c.b16 %v1354, %v1342
    %v2483 = vpack.c.b16 %v1355, %v1343
    %v2484 = vpack.c.b16 %v1356, %v1344
    %v2485 = vpack.c.b16 %v1357, %v1345
    %v2486 = vpack.c.b16 %v1358, %v1346
    %v2487 = vpack.c.b16 %v1359, %v1347
    %v2488 = vpack.c.b16 %v1360, %v1348
    %v2489 = vpack.c.b16 %v1361, %v1349
    %v2490 = vpack.c.b16 %v1374, %v1362
    %v2491 = vpack.c.b16 %v1375, %v1363
    %v2492 = vpack.c.b16 %v1376, %v1364
    %v2493 = vpack.c.b16 %v1377, %v1365
    %v2494 = vpack.c.b16 %v1378, %v1366
    %v2495 = vpack.c.b16 %v1379, %v1367
    %v2496 = vpack.c.b16 %v1380, %v1368
    %v2497 = vpack.c.b16 %v1381, %v1369
    %v2498 = vpack.c.b16 %v1382, %v1370
    %v2499 = vpack.c.b16 %v1383, %v1371
    %v2500 = vpack.c.b16 %v1384, %v1372
    %v2501 = vpack.c.b16 %v1385, %v1373
    %v2502 = vpack.c.b16 %v1398, %v1386
    %v2503 = vpack.c.b16 %v1399, %v1387
    %v2504 = vpack.c.b16 %v1400, %v1388
    %v2505 = vpack.c.b16 %v1401, %v1389
    %v2506 = vpack.c.b16 %v1402, %v1390
    %v2507 = vpack.c.b16 %v1403, %v1391
    %v2508 = vpack.c.b16 %v1404, %v1392
    %v2509 = vpack.c.b16 %v1405, %v1393
    %v2510 = vpack.c.b16 %v1406, %v1394
    %v2511 = vpack.c.b16 %v1407, %v1395
    %v2512 = vpack.c.b16 %v1408, %v1396
    %v2513 = vpack.c.b16 %v1409, %v1397
    %v2514 = vpack.c.b16 %v1422, %v1410
    %v2515 = vpack.c.b16 %v1423, %v1411
    %v2516 = vpack.c.b16 %v1424, %v1412
    %v2517 = vpack.c.b16 %v1425, %v1413
    %v2518 = vpack.c.b16 %v1426, %v1414
    %v2519 = vpack.c.b16 %v1427, %v1415
    %v2520 = vpack.c.b16 %v1428, %v1416
    %v2521 = vpack.c.b16 %v1429, %v1417
    %v2522 = vpack.c.b16 %v1430, %v1418
    %v2523 = vpack.c.b16 %v1431, %v1419
    %v2524 = vpack.c.b16 %v1432, %v1420
    %v2525 = vpack.c.b16 %v1433, %v1421
    %v2526 = vpack.c.b16 %v1446, %v1434
    %v2527 = vpack.c.b16 %v1447, %v1435
    %v2528 = vpack.c.b16 %v1448, %v1436
    %v2529 = vpack.c.b16 %v1449, %v1437
    %v2530 = vpack.c.b16 %v1450, %v1438
    %v2531 = vpack.c.b16 %v1451, %v1439
    %v2532 = vpack.c.b16 %v1452, %v1440
    %v2533 = vpack.c.b16 %v1453, %v1441
    %v2534 = vpack.c.b16 %v1454, %v1442
    %v2535 = vpack.c.b16 %v1455, %v1443
    %v2536 = vpack.c.b16 %v1456, %v1444
    %v2537 = vpack.c.b16 %v1457, %v1445
    %v2538 = vpack.c.b16 %v1470, %v1458
    %v2539 = vpack.c.b16 %v1471, %v1459
    %v2540 = vpack.c.b16 %v1472, %v1460
    %v2541 = vpack.c.b16 %v1473, %v1461
    %v2542 = vpack.c.b16 %v1474, %v1462
    %v2543 = vpack.c.b16 %v1475, %v1463
    %v2544 = vpack.c.b16 %v1476, %v1464
    %v2545 = vpack.c.b16 %v1477, %v1465
    %v2546 = vpack.c.b16 %v1478, %v1466
    %v2547 = vpack.c.b16 %v1479, %v1467
    %v2548 = vpack.c.b16 %v1480, %v1468
    %v2549 = vpack.c.b16 %v1481, %v1469
    %v2550 = vpack.c.b16 %v1494, %v1482
    %v2551 = vpack.c.b16 %v1495, %v1483
    %v2552 = vpack.c.b16 %v1496, %v1484
    %v2553 = vpack.c.b16 %v1497, %v1485
    %v2554 = vpack.c.b16 %v1498, %v1486
    %v2555 = vpack.c.b16 %v1499, %v1487
    %v2556 = vpack.c.b16 %v1500, %v1488
    %v2557 = vpack.c.b16 %v1501, %v1489
    %v2558 = vpack.c.b16 %v1502, %v1490
    %v2559 = vpack.c.b16 %v1503, %v1491
    %v2560 = vpack.c.b16 %v1504, %v1492
    %v2561 = vpack.c.b16 %v1505, %v1493
    %v2562 = vpack.c.b16 %v1518, %v1506
    %v2563 = vpack.c.b16 %v1519, %v1507
    %v2564 = vpack.c.b16 %v1520, %v1508
    %v2565 = vpack.c.b16 %v1521, %v1509
    %v2566 = vpack.c.b16 %v1522, %v1510
    %v2567 = vpack.c.b16 %v1523, %v1511
    %v2568 = vpack.c.b16 %v1524, %v1512
    %v2569 = vpack.c.b16 %v1525, %v1513
    %v2570 = vpack.c.b16 %v1526, %v1514
    %v2571 = vpack.c.b16 %v1527, %v1515
    %v2572 = vpack.c.b16 %v1528, %v1516
    %v2573 = vpack.c.b16 %v1529, %v1517
    %v2574 = vpack.c.b16 %v1542, %v1530
    %v2575 = vpack.c.b16 %v1543, %v1531
    %v2576 = vpack.c.b16 %v1544, %v1532
    %v2577 = vpack.c.b16 %v1545, %v1533
    %v2578 = vpack.c.b16 %v1546, %v1534
    %v2579 = vpack.c.b16 %v1547, %v1535
    %v2580 = vpack.c.b16 %v1548, %v1536
    %v2581 = vpack.c.b16 %v1549, %v1537
    %v2582 = vpack.c.b16 %v1550, %v1538
    %v2583 = vpack.c.b16 %v1551, %v1539
    %v2584 = vpack.c.b16 %v1552, %v1540
    %v2585 = vpack.c.b16 %v1553, %v1541
    %v2586 = vpack.c.b16 %v1566, %v1554
    %v2587 = vpack.c.b16 %v1567, %v1555
    %v2588 = vpack.c.b16 %v1568, %v1556
    %v2589 = vpack.c.b16 %v1569, %v1557
    %v2590 = vpack.c.b16 %v1570, %v1558
    %v2591 = vpack.c.b16 %v1571, %v1559
    %v2592 = vpack.c.b16 %v1572, %v1560
    %v2593 = vpack.c.b16 %v1573, %v1561
    %v2594 = vpack.c.b16 %v1574, %v1562
    %v2595 = vpack.c.b16 %v1575, %v1563
    %v2596 = vpack.c.b16 %v1576, %v1564
    %v2597 = vpack.c.b16 %v1577, %v1565
    %v2598 = vpack.c.b16 %v1590, %v1578
    %v2599 = vpack.c.b16 %v1591, %v1579
    %v2600 = vpack.c.b16 %v1592, %v1580
    %v2601 = vpack.c.b16 %v1593, %v1581
    %v2602 = vpack.c.b16 %v1594, %v1582
    %v2603 = vpack.c.b16 %v1595, %v1583
    %v2604 = vpack.c.b16 %v1596, %v1584
    %v2605 = vpack.c.b16 %v1597, %v1585
    %v2606 = vpack.c.b16 %v1598, %v1586
    %v2607 = vpack.c.b16 %v1599, %v1587
    %v2608 = vpack.c.b16 %v1600, %v1588
    %v2609 = vpack.c.b16 %v1601, %v1589
    %v2610 = vpack.c.b16 %v1614, %v1602
    %v2611 = vpack.c.b16 %v1615, %v1603
    %v2612 = vpack.c.b16 %v1616, %v1604
    %v2613 = vpack.c.b16 %v1617, %v1605
    %v2614 = vpack.c.b16 %v1618, %v1606
    %v2615 = vpack.c.b16 %v1619, %v1607
    %v2616 = vpack.c.b16 %v1620, %v1608
    %v2617 = vpack.c.b16 %v1621, %v1609
    %v2618 = vpack.c.b16 %v1622, %v1610
    %v2619 = vpack.c.b16 %v1623, %v1611
    %v2620 = vpack.c.b16 %v1624, %v1612
    %v2621 = vpack.c.b16 %v1625, %v1613
    %v2622 = vpack.c.b16 %v1638, %v1626
    %v2623 = vpack.c.b16 %v1639, %v1627
    %v2624 = vpack.c.b16 %v1640, %v1628
    %v2625 = vpack.c.b16 %v1641, %v1629
    %v2626 = vpack.c.b16 %v1642, %v1630
    %v2627 = vpack.c.b16 %v1643, %v1631
    %v2628 = vpack.c.b16 %v1644, %v1632
    %v2629 = vpack.c.b16 %v1645, %v1633
    %v2630 = vpack.c.b16 %v1646, %v1634
    %v2631 = vpack.c.b16 %v1647, %v1635
    %v2632 = vpack.c.b16 %v1648, %v1636
    %v2633 = vpack.c.b16 %v1649, %v1637
    %v2634 = vpack.c.b16 %v1662, %v1650
    %v2635 = vpack.c.b16 %v1663, %v1651
    %v2636 = vpack.c.b16 %v1664, %v1652
    %v2637 = vpack.c.b16 %v1665, %v1653
    %v2638 = vpack.c.b16 %v1666, %v1654
    %v2639 = vpack.c.b16 %v1667, %v1655
    %v2640 = vpack.c.b16 %v1668, %v1656
    %v2641 = vpack.c.b16 %v1669, %v1657
    %v2642 = vpack.c.b16 %v1670, %v1658
    %v2643 = vpack.c.b16 %v1671, %v1659
    %v2644 = vpack.c.b16 %v1672, %v1660
    %v2645 = vpack.c.b16 %v1673, %v1661
    %v2646 = vpack.c.b16 %v1686, %v1674
    %v2647 = vpack.c.b16 %v1687, %v1675
    %v2648 = vpack.c.b16 %v1688, %v1676
    %v2649 = vpack.c.b16 %v1689, %v1677
    %v2650 = vpack.c.b16 %v1690, %v1678
    %v2651 = vpack.c.b16 %v1691, %v1679
    %v2652 = vpack.c.b16 %v1692, %v1680
    %v2653 = vpack.c.b16 %v1693, %v1681
    %v2654 = vpack.c.b16 %v1694, %v1682
    %v2655 = vpack.c.b16 %v1695, %v1683
    %v2656 = vpack.c.b16 %v1696, %v1684
    %v2657 = vpack.c.b16 %v1697, %v1685
    %v2658 = vpack.c.b16 %v1710, %v1698
    %v2659 = vpack.c.b16 %v1711, %v1699
    %v2660 = vpack.c.b16 %v1712, %v1700
    %v2661 = vpack.c.b16 %v1713, %v1701
    %v2662 = vpack.c.b16 %v1714, %v1702
    %v2663 = vpack.c.b16 %v1715, %v1703
    %v2664 = vpack.c.b16 %v1716, %v1704
    %v2665 = vpack.c.b16 %v1717, %v1705
    %v2666 = vpack.c.b16 %v1718, %v1706
    %v2667 = vpack.c.b16 %v1719, %v1707
    %v2668 = vpack.c.b16 %v1720, %v1708
    %v2669 = vpack.c.b16 %v1721, %v1709
    %v2670 = vpack.c.b16 %v1734, %v1722
    %v2671 = vpack.c.b16 %v1735, %v1723
    %v2672 = vpack.c.b16 %v1736, %v1724
    %v2673 = vpack.c.b16 %v1737, %v1725
    %v2674 = vpack.c.b16 %v1738, %v1726
    %v2675 = vpack.c.b16 %v1739, %v1727
    %v2676 = vpack.c.b16 %v1740, %v1728
    %v2677 = vpack.c.b16 %v1741, %v1729
    %v2678 = vpack.c.b16 %v1742, %v1730
    %v2679 = vpack.c.b16 %v1743, %v1731
    %v2680 = vpack.c.b16 %v1744, %v1732
    %v2681 = vpack.c.b16 %v1745, %v1733
    %v2682 = vpack.c.b16 %v1758, %v1746
    %v2683 = vpack.c.b16 %v1759, %v1747
    %v2684 = vpack.c.b16 %v1760, %v1748
    %v2685 = vpack.c.b16 %v1761, %v1749
    %v2686 = vpack.c.b16 %v1762, %v1750
    %v2687 = vpack.c.b16 %v1763, %v1751
    %v2688 = vpack.c.b16 %v1764, %v1752
    %v2689 = vpack.c.b16 %v1765, %v1753
    %v2690 = vpack.c.b16 %v1766, %v1754
    %v2691 = vpack.c.b16 %v1767, %v1755
    %v2692 = vpack.c.b16 %v1768, %v1756
    %v2693 = vpack.c.b16 %v1769, %v1757
    %v2694 = vpack.c.b16 %v1782, %v1770
    %v2695 = vpack.c.b16 %v1783, %v1771
    %v2696 = vpack.c.b16 %v1784, %v1772
    %v2697 = vpack.c.b16 %v1785, %v1773
    %v2698 = vpack.c.b16 %v1786, %v1774
    %v2699 = vpack.c.b16 %v1787, %v1775
    %v2700 = vpack.c.b16 %v1788, %v1776
    %v2701 = vpack.c.b16 %v1789, %v1777
    %v2702 = vpack.c.b16 %v1790, %v1778
    %v2703 = vpack.c.b16 %v1791, %v1779
    %v2704 = vpack.c.b16 %v1792, %v1780
    %v2705 = vpack.c.b16 %v1793, %v1781
    %v2706 = vpack.c.b16 %v1806, %v1794
    %v2707 = vpack.c.b16 %v1807, %v1795
    %v2708 = vpack.c.b16 %v1808, %v1796
    %v2709 = vpack.c.b16 %v1809, %v1797
    %v2710 = vpack.c.b16 %v1810, %v1798
    %v2711 = vpack.c.b16 %v1811, %v1799
    %v2712 = vpack.c.b16 %v1812, %v1800
    %v2713 = vpack.c.b16 %v1813, %v1801
    %v2714 = vpack.c.b16 %v1814, %v1802
    %v2715 = vpack.c.b16 %v1815, %v1803
    %v2716 = vpack.c.b16 %v1816, %v1804
    %v2717 = vpack.c.b16 %v1817, %v1805
    %v2718 = vpack.c.b16 %v1830, %v1818
    %v2719 = vpack.c.b16 %v1831, %v1819
    %v2720 = vpack.c.b16 %v1832, %v1820
    %v2721 = vpack.c.b16 %v1833, %v1821
    %v2722 = vpack.c.b16 %v1834, %v1822
    %v2723 = vpack.c.b16 %v1835, %v1823
    %v2724 = vpack.c.b16 %v1836, %v1824
    %v2725 = vpack.c.b16 %v1837, %v1825
    %v2726 = vpack.c.b16 %v1838, %v1826
    %v2727 = vpack.c.b16 %v1839, %v1827
    %v2728 = vpack.c.b16 %v1840, %v1828
    %v2729 = vpack.c.b16 %v1841, %v1829
    %v2730 = vpack.c.b16 %v1854, %v1842
    %v2731 = vpack.c.b16 %v1855, %v1843
    %v2732 = vpack.c.b16 %v1856, %v1844
    %v2733 = vpack.c.b16 %v1857, %v1845
    %v2734 = vpack.c.b16 %v1858, %v1846
    %v2735 = vpack.c.b16 %v1859, %v1847
    %v2736 = vpack.c.b16 %v1860, %v1848
    %v2737 = vpack.c.b16 %v1861, %v1849
    %v2738 = vpack.c.b16 %v1862, %v1850
    %v2739 = vpack.c.b16 %v1863, %v1851
    %v2740 = vpack.c.b16 %v1864, %v1852
    %v2741 = vpack.c.b16 %v1865, %v1853
    %v2742 = vpack.c.b16 %v1878, %v1866
    %v2743 = vpack.c.b16 %v1879, %v1867
    %v2744 = vpack.c.b16 %v1880, %v1868
    %v2745 = vpack.c.b16 %v1881, %v1869
    %v2746 = vpack.c.b16 %v1882, %v1870
    %v2747 = vpack.c.b16 %v1883, %v1871
    %v2748 = vpack.c.b16 %v1884, %v1872
    %v2749 = vpack.c.b16 %v1885, %v1873
    %v2750 = vpack.c.b16 %v1886, %v1874
    %v2751 = vpack.c.b16 %v1887, %v1875
    %v2752 = vpack.c.b16 %v1888, %v1876
    %v2753 = vpack.c.b16 %v1889, %v1877
    %v2754 = vpack.c.b16 %v1902, %v1890
    %v2755 = vpack.c.b16 %v1903, %v1891
    %v2756 = vpack.c.b16 %v1904, %v1892
    %v2757 = vpack.c.b16 %v1905, %v1893
    %v2758 = vpack.c.b16 %v1906, %v1894
    %v2759 = vpack.c.b16 %v1907, %v1895
    %v2760 = vpack.c.b16 %v1908, %v1896
    %v2761 = vpack.c.b16 %v1909, %v1897
    %v2762 = vpack.c.b16 %v1910, %v1898
    %v2763 = vpack.c.b16 %v1911, %v1899
    %v2764 = vpack.c.b16 %v1912, %v1900
    %v2765 = vpack.c.b16 %v1913, %v1901
    %v2766 = vpack.c.b16 %v1926, %v1914
    %v2767 = vpack.c.b16 %v1927, %v1915
    %v2768 = vpack.c.b16 %v1928, %v1916
    %v2769 = vpack.c.b16 %v1929, %v1917
    %v2770 = vpack.c.b16 %v1930, %v1918
    %v2771 = vpack.c.b16 %v1931, %v1919
    %v2772 = vpack.c.b16 %v1932, %v1920
    %v2773 = vpack.c.b16 %v1933, %v1921
    %v2774 = vpack.c.b16 %v1934, %v1922
    %v2775 = vpack.c.b16 %v1935, %v1923
    %v2776 = vpack.c.b16 %v1936, %v1924
    %v2777 = vpack.c.b16 %v1937, %v1925
    %v2778 = vpack.c.b16 %v1950, %v1938
    %v2779 = vpack.c.b16 %v1951, %v1939
    %v2780 = vpack.c.b16 %v1952, %v1940
    %v2781 = vpack.c.b16 %v1953, %v1941
    %v2782 = vpack.c.b16 %v1954, %v1942
    %v2783 = vpack.c.b16 %v1955, %v1943
    %v2784 = vpack.c.b16 %v1956, %v1944
    %v2785 = vpack.c.b16 %v1957, %v1945
    %v2786 = vpack.c.b16 %v1958, %v1946
    %v2787 = vpack.c.b16 %v1959, %v1947
    %v2788 = vpack.c.b16 %v1960, %v1948
    %v2789 = vpack.c.b16 %v1961, %v1949
    %v2790 = vpack.c.b16 %v1974, %v1962
    %v2791 = vpack.c.b16 %v1975, %v1963
    %v2792 = vpack.c.b16 %v1976, %v1964
    %v2793 = vpack.c.b16 %v1977, %v1965
    %v2794 = vpack.c.b16 %v1978, %v1966
    %v2795 = vpack.c.b16 %v1979, %v1967
    %v2796 = vpack.c.b16 %v1980, %v1968
    %v2797 = vpack.c.b16 %v1981, %v1969
    %v2798 = vpack.c.b16 %v1982, %v1970
    %v2799 = vpack.c.b16 %v1983, %v1971
    %v2800 = vpack.c.b16 %v1984, %v1972
    %v2801 = vpack.c.b16 %v1985, %v1973
    %v2802 = vpack.c.b16 %v1998, %v1986
    %v2803 = vpack.c.b16 %v1999, %v1987
    %v2804 = vpack.c.b16 %v2000, %v1988
    %v2805 = vpack.c.b16 %v2001, %v1989
    %v2806 = vpack.c.b16 %v2002, %v1990
    %v2807 = vpack.c.b16 %v2003, %v1991
    %v2808 = vpack.c.b16 %v2004, %v1992
    %v2809 = vpack.c.b16 %v2005, %v1993
    %v2810 = vpack.c.b16 %v2006, %v1994
    %v2811 = vpack.c.b16 %v2007, %v1995
    %v2812 = vpack.c.b16 %v2008, %v1996
    %v2813 = vpack.c.b16 %v2009, %v1997
    %v2814 = vpack.c.b16 %v2022, %v2010
    %v2815 = vpack.c.b16 %v2023, %v2011
    %v2816 = vpack.c.b16 %v2024, %v2012
    %v2817 = vpack.c.b16 %v2025, %v2013
    %v2818 = vpack.c.b16 %v2026, %v2014
    %v2819 = vpack.c.b16 %v2027, %v2015
    %v2820 = vpack.c.b16 %v2028, %v2016
    %v2821 = vpack.c.b16 %v2029, %v2017
    %v2822 = vpack.c.b16 %v2030, %v2018
    %v2823 = vpack.c.b16 %v2031, %v2019
    %v2824 = vpack.c.b16 %v2032, %v2020
    %v2825 = vpack.c.b16 %v2033, %v2021
    %v2826 = vpack.c.b16 %v2046, %v2034
    %v2827 = vpack.c.b16 %v2047, %v2035
    %v2828 = vpack.c.b16 %v2048, %v2036
    %v2829 = vpack.c.b16 %v2049, %v2037
    %v2830 = vpack.c.b16 %v2050, %v2038
    %v2831 = vpack.c.b16 %v2051, %v2039
    %v2832 = vpack.c.b16 %v2052, %v2040
    %v2833 = vpack.c.b16 %v2053, %v2041
    %v2834 = vpack.c.b16 %v2054, %v2042
    %v2835 = vpack.c.b16 %v2055, %v2043
    %v2836 = vpack.c.b16 %v2056, %v2044
    %v2837 = vpack.c.b16 %v2057, %v2045
    %v2838 = vpack.c.b16 %v2070, %v2058
    %v2839 = vpack.c.b16 %v2071, %v2059
    %v2840 = vpack.c.b16 %v2072, %v2060
    %v2841 = vpack.c.b16 %v2073, %v2061
    %v2842 = vpack.c.b16 %v2074, %v2062
    %v2843 = vpack.c.b16 %v2075, %v2063
    %v2844 = vpack.c.b16 %v2076, %v2064
    %v2845 = vpack.c.b16 %v2077, %v2065
    %v2846 = vpack.c.b16 %v2078, %v2066
    %v2847 = vpack.c.b16 %v2079, %v2067
    %v2848 = vpack.c.b16 %v2080, %v2068
    %v2849 = vpack.c.b16 %v2081, %v2069
    %v2850 = vpack.c.b16 %v2094, %v2082
    %v2851 = vpack.c.b16 %v2095, %v2083
    %v2852 = vpack.c.b16 %v2096, %v2084
    %v2853 = vpack.c.b16 %v2097, %v2085
    %v2854 = vpack.c.b16 %v2098, %v2086
    %v2855 = vpack.c.b16 %v2099, %v2087
    %v2856 = vpack.c.b16 %v2100, %v2088
    %v2857 = vpack.c.b16 %v2101, %v2089
    %v2858 = vpack.c.b16 %v2102, %v2090
    %v2859 = vpack.c.b16 %v2103, %v2091
    %v2860 = vpack.c.b16 %v2104, %v2092
    %v2861 = vpack.c.b16 %v2105, %v2093
    %v2862 = vpack.c.b16 %v2118, %v2106
    %v2863 = vpack.c.b16 %v2119, %v2107
    %v2864 = vpack.c.b16 %v2120, %v2108
    %v2865 = vpack.c.b16 %v2121, %v2109
    %v2866 = vpack.c.b16 %v2122, %v2110
    %v2867 = vpack.c.b16 %v2123, %v2111
    %v2868 = vpack.c.b16 %v2124, %v2112
    %v2869 = vpack.c.b16 %v2125, %v2113
    %v2870 = vpack.c.b16 %v2126, %v2114
    %v2871 = vpack.c.b16 %v2127, %v2115
    %v2872 = vpack.c.b16 %v2128, %v2116
    %v2873 = vpack.c.b16 %v2129, %v2117
    %v2874 = vpack.c.b16 %v2142, %v2130
    %v2875 = vpack.c.b16 %v2143, %v2131
    %v2876 = vpack.c.b16 %v2144, %v2132
    %v2877 = vpack.c.b16 %v2145, %v2133
    %v2878 = vpack.c.b16 %v2146, %v2134
    %v2879 = vpack.c.b16 %v2147, %v2135
    %v2880 = vpack.c.b16 %v2148, %v2136
    %v2881 = vpack.c.b16 %v2149, %v2137
    %v2882 = vpack.c.b16 %v2150, %v2138
    %v2883 = vpack.c.b16 %v2151, %v2139
    %v2884 = vpack.c.b16 %v2152, %v2140
    %v2885 = vpack.c.b16 %v2153, %v2141
    %v2886 = vpack.c.b16 %v2166, %v2154
    %v2887 = vpack.c.b16 %v2167, %v2155
    %v2888 = vpack.c.b16 %v2168, %v2156
    %v2889 = vpack.c.b16 %v2169, %v2157
    %v2890 = vpack.c.b16 %v2170, %v2158
    %v2891 = vpack.c.b16 %v2171, %v2159
    %v2892 = vpack.c.b16 %v2172, %v2160
    %v2893 = vpack.c.b16 %v2173, %v2161
    %v2894 = vpack.c.b16 %v2174, %v2162
    %v2895 = vpack.c.b16 %v2175, %v2163
    %v2896 = vpack.c.b16 %v2176, %v2164
    %v2897 = vpack.c.b16 %v2177, %v2165
    %v2898 = vpack.c.b16 %v2190, %v2178
    %v2899 = vpack.c.b16 %v2191, %v2179
    %v2900 = vpack.c.b16 %v2192, %v2180
    %v2901 = vpack.c.b16 %v2193, %v2181
    %v2902 = vpack.c.b16 %v2194, %v2182
    %v2903 = vpack.c.b16 %v2195, %v2183
    %v2904 = vpack.c.b16 %v2196, %v2184
    %v2905 = vpack.c.b16 %v2197, %v2185
    %v2906 = vpack.c.b16 %v2198, %v2186
    %v2907 = vpack.c.b16 %v2199, %v2187
    %v2908 = vpack.c.b16 %v2200, %v2188
    %v2909 = vpack.c.b16 %v2201, %v2189
    %v2910 = vpack.c.b16 %v2214, %v2202
    %v2911 = vpack.c.b16 %v2215, %v2203
    %v2912 = vpack.c.b16 %v2216, %v2204
    %v2913 = vpack.c.b16 %v2217, %v2205
    %v2914 = vpack.c.b16 %v2218, %v2206
    %v2915 = vpack.c.b16 %v2219, %v2207
    %v2916 = vpack.c.b16 %v2220, %v2208
    %v2917 = vpack.c.b16 %v2221, %v2209
    %v2918 = vpack.c.b16 %v2222, %v2210
    %v2919 = vpack.c.b16 %v2223, %v2211
    %v2920 = vpack.c.b16 %v2224, %v2212
    %v2921 = vpack.c.b16 %v2225, %v2213
    %v2922 = vpack.c.b16 %v2238, %v2226
    %v2923 = vpack.c.b16 %v2239, %v2227
    %v2924 = vpack.c.b16 %v2240, %v2228
    %v2925 = vpack.c.b16 %v2241, %v2229
    %v2926 = vpack.c.b16 %v2242, %v2230
    %v2927 = vpack.c.b16 %v2243, %v2231
    %v2928 = vpack.c.b16 %v2244, %v2232
    %v2929 = vpack.c.b16 %v2245, %v2233
    %v2930 = vpack.c.b16 %v2246, %v2234
    %v2931 = vpack.c.b16 %v2247, %v2235
    %v2932 = vpack.c.b16 %v2248, %v2236
    %v2933 = vpack.c.b16 %v2249, %v2237
    %v2934 = vpack.c.b16 %v2262, %v2250
    %v2935 = vpack.c.b16 %v2263, %v2251
    %v2936 = vpack.c.b16 %v2264, %v2252
    %v2937 = vpack.c.b16 %v2265, %v2253
    %v2938 = vpack.c.b16 %v2266, %v2254
    %v2939 = vpack.c.b16 %v2267, %v2255
    %v2940 = vpack.c.b16 %v2268, %v2256
    %v2941 = vpack.c.b16 %v2269, %v2257
    %v2942 = vpack.c.b16 %v2270, %v2258
    %v2943 = vpack.c.b16 %v2271, %v2259
    %v2944 = vpack.c.b16 %v2272, %v2260
    %v2945 = vpack.c.b16 %v2273, %v2261
    %v2946 = vpack.c.b16 %v2286, %v2274
    %v2947 = vpack.c.b16 %v2287, %v2275
    %v2948 = vpack.c.b16 %v2288, %v2276
    %v2949 = vpack.c.b16 %v2289, %v2277
    %v2950 = vpack.c.b16 %v2290, %v2278
    %v2951 = vpack.c.b16 %v2291, %v2279
    %v2952 = vpack.c.b16 %v2292, %v2280
    %v2953 = vpack.c.b16 %v2293, %v2281
    %v2954 = vpack.c.b16 %v2294, %v2282
    %v2955 = vpack.c.b16 %v2295, %v2283
    %v2956 = vpack.c.b16 %v2296, %v2284
    %v2957 = vpack.c.b16 %v2297, %v2285
    %v2958 = vpack.c.b16 %v2310, %v2298
    %v2959 = vpack.c.b16 %v2311, %v2299
    %v2960 = vpack.c.b16 %v2312, %v2300
    %v2961 = vpack.c.b16 %v2313, %v2301
    %v2962 = vpack.c.b16 %v2314, %v2302
    %v2963 = vpack.c.b16 %v2315, %v2303
    %v2964 = vpack.c.b16 %v2316, %v2304
    %v2965 = vpack.c.b16 %v2317, %v2305
    %v2966 = vpack.c.b16 %v2318, %v2306
    %v2967 = vpack.c.b16 %v2319, %v2307
    %v2968 = vpack.c.b16 %v2320, %v2308
    %v2969 = vpack.c.b16 %v2321, %v2309
    %v2970 = vpack.c.b16 %v2334, %v2322
    %v2971 = vpack.c.b16 %v2335, %v2323
    %v2972 = vpack.c.b16 %v2336, %v2324
    %v2973 = vpack.c.b16 %v2337, %v2325
    %v2974 = vpack.c.b16 %v2338, %v2326
    %v2975 = vpack.c.b16 %v2339, %v2327
    %v2976 = vpack.c.b16 %v2340, %v2328
    %v2977 = vpack.c.b16 %v2341, %v2329
    %v2978 = vpack.c.b16 %v2342, %v2330
    %v2979 = vpack.c.b16 %v2343, %v2331
    %v2980 = vpack.c.b16 %v2344, %v2332
    %v2981 = vpack.c.b16 %v2345, %v2333
    %v2982 = vpack.c.b16 %v2358, %v2346
    %v2983 = vpack.c.b16 %v2359, %v2347
    %v2984 = vpack.c.b16 %v2360, %v2348
    %v2985 = vpack.c.b16 %v2361, %v2349
    %v2986 = vpack.c.b16 %v2362, %v2350
    %v2987 = vpack.c.b16 %v2363, %v2351
    %v2988 = vpack.c.b16 %v2364, %v2352
    %v2989 = vpack.c.b16 %v2365, %v2353
    %v2990 = vpack.c.b16 %v2366, %v2354
    %v2991 = vpack.c.b16 %v2367, %v2355
    %v2992 = vpack.c.b16 %v2368, %v2356
    %v2993 = vpack.c.b16 %v2369, %v2357
    %v2994 = vpack.c.b16 %v2382, %v2370
    %v2995 = vpack.c.b16 %v2383, %v2371
    %v2996 = vpack.c.b16 %v2384, %v2372
    %v2997 = vpack.c.b16 %v2385, %v2373
    %v2998 = vpack.c.b16 %v2386, %v2374
    %v2999 = vpack.c.b16 %v2387, %v2375
    %v3000 = vpack.c.b16 %v2388, %v2376
    %v3001 = vpack.c.b16 %v2389, %v2377
    %v3002 = vpack.c.b16 %v2390, %v2378
    %v3003 = vpack.c.b16 %v2391, %v2379
    %v3004 = vpack.c.b16 %v2392, %v2380
    %v3005 = vpack.c.b16 %v2393, %v2381
    %v3006 = vpack.c.b16 %v2406, %v2394
    %v3007 = vpack.c.b16 %v2407, %v2395
    %v3008 = vpack.c.b16 %v2408, %v2396
    %v3009 = vpack.c.b16 %v2409, %v2397
    %v3010 = vpack.c.b16 %v2410, %v2398
    %v3011 = vpack.c.b16 %v2411, %v2399
    %v3012 = vpack.c.b16 %v2412, %v2400
    %v3013 = vpack.c.b16 %v2413, %v2401
    %v3014 = vpack.c.b16 %v2414, %v2402
    %v3015 = vpack.c.b16 %v2415, %v2403
    %v3016 = vpack.c.b16 %v2416, %v2404
    %v3017 = vpack.c.b16 %v2417, %v2405
    %v3018 = vpack.c.b16 %v2430, %v2418
    %v3019 = vpack.c.b16 %v2431, %v2419
    %v3020 = vpack.c.b16 %v2432, %v2420
    %v3021 = vpack.c.b16 %v2433, %v2421
    %v3022 = vpack.c.b16 %v2434, %v2422
    %v3023 = vpack.c.b16 %v2435, %v2423
    %v3024 = vpack.c.b16 %v2436, %v2424
    %v3025 = vpack.c.b16 %v2437, %v2425
    %v3026 = vpack.c.b16 %v2438, %v2426
    %v3027 = vpack.c.b16 %v2439, %v2427
    %v3028 = vpack.c.b16 %v2440, %v2428
    %v3029 = vpack.c.b16 %v2441, %v2429
    %v3030 = vpack.c.b16 %v2454, %v2442
    %v3031 = vpack.c.b16 %v2455, %v2443
    %v3032 = vpack.c.b16 %v2456, %v2444
    %v3033 = vpack.c.b16 %v2457, %v2445
    %v3034 = vpack.c.b16 %v2458, %v2446
    %v3035 = vpack.c.b16 %v2459, %v2447
    %v3036 = vpack.c.b16 %v2460, %v2448
    %v3037 = vpack.c.b16 %v2461, %v2449
    %v3038 = vpack.c.b16 %v2462, %v2450
    %v3039 = vpack.c.b16 %v2463, %v2451
    %v3040 = vpack.c.b16 %v2464, %v2452
    %v3041 = vpack.c.b16 %v2465, %v2453
    %3618 = vmatpush.bf16.msra.mxu0 %v2550
    %3619 = vmatpush.bf16.msra.mxu0 %v2538
    %3620 = vmatpush.bf16.msra.mxu0 %v2526
    %3621 = vmatpush.bf16.msra.mxu0 %v2514
    %3622 = vmatpush.bf16.msra.mxu0 %v2502
    %3623 = vmatpush.bf16.msra.mxu0 %v2490
    %3624 = vmatpush.bf16.msra.mxu0 %v2478
    %3625 = vmatpush.bf16.msra.mxu0 %v2466
    %3626 = vmatmul.bf16.gmra.mxu0 %v128
    %v3627 = vpop.f32.mrf.mxu0
    %v3628 = vadd.f32 %v714, %v3627
    %v3629 = vpop.f32.mrf.mxu0
    %3630 = vdwg.mxu0
    %3631 = vmatpush.bf16.msra.mxu0 %v2646
    %3632 = vmatpush.bf16.msra.mxu0 %v2634
    %3633 = vmatpush.bf16.msra.mxu0 %v2622
    %3634 = vmatpush.bf16.msra.mxu0 %v2610
    %3635 = vmatpush.bf16.msra.mxu0 %v2598
    %3636 = vmatpush.bf16.msra.mxu0 %v2586
    %3637 = vmatpush.bf16.msra.mxu0 %v2574
    %3638 = vmatpush.bf16.msra.mxu0 %v2562
    %3639 = vmatmul.bf16.gmra.mxu0 %v129
    %v3640 = vpop.f32.mrf.mxu0
    %v3641 = vadd.f32 %v3628, %v3640
    %v3642 = vpop.f32.mrf.mxu0
    %3643 = vdwg.mxu0
    %3644 = vmatpush.bf16.msra.mxu0 %v2742
    %3645 = vmatpush.bf16.msra.mxu0 %v2730
    %3646 = vmatpush.bf16.msra.mxu0 %v2718
    %3647 = vmatpush.bf16.msra.mxu0 %v2706
    %3648 = vmatpush.bf16.msra.mxu0 %v2694
    %3649 = vmatpush.bf16.msra.mxu0 %v2682
    %3650 = vmatpush.bf16.msra.mxu0 %v2670
    %3651 = vmatpush.bf16.msra.mxu0 %v2658
    %3652 = vmatmul.bf16.gmra.mxu0 %v130
    %v3653 = vpop.f32.mrf.mxu0
    %v3654 = vadd.f32 %v3641, %v3653
    %v3655 = vpop.f32.mrf.mxu0
    %3656 = vdwg.mxu0
    %3657 = vmatpush.bf16.msra.mxu0 %v2838
    %3658 = vmatpush.bf16.msra.mxu0 %v2826
    %3659 = vmatpush.bf16.msra.mxu0 %v2814
    %3660 = vmatpush.bf16.msra.mxu0 %v2802
    %3661 = vmatpush.bf16.msra.mxu0 %v2790
    %3662 = vmatpush.bf16.msra.mxu0 %v2778
    %3663 = vmatpush.bf16.msra.mxu0 %v2766
    %3664 = vmatpush.bf16.msra.mxu0 %v2754
    %3665 = vmatmul.bf16.gmra.mxu0 %v131
    %v3666 = vpop.f32.mrf.mxu0
    %v3667 = vadd.f32 %v3654, %v3666
    %v3668 = vpop.f32.mrf.mxu0
    %3669 = vdwg.mxu0
    %3670 = vmatpush.bf16.msra.mxu0 %v2934
    %3671 = vmatpush.bf16.msra.mxu0 %v2922
    %3672 = vmatpush.bf16.msra.mxu0 %v2910
    %3673 = vmatpush.bf16.msra.mxu0 %v2898
    %3674 = vmatpush.bf16.msra.mxu0 %v2886
    %3675 = vmatpush.bf16.msra.mxu0 %v2874
    %3676 = vmatpush.bf16.msra.mxu0 %v2862
    %3677 = vmatpush.bf16.msra.mxu0 %v2850
    %3678 = vmatmul.bf16.gmra.mxu0 %v132
    %v3679 = vpop.f32.mrf.mxu0
    %v3680 = vadd.f32 %v3667, %v3679
    %v3681 = vpop.f32.mrf.mxu0
    %3682 = vdwg.mxu0
    %3683 = vmatpush.bf16.msra.mxu0 %v3030
    %3684 = vmatpush.bf16.msra.mxu0 %v3018
    %3685 = vmatpush.bf16.msra.mxu0 %v3006
    %3686 = vmatpush.bf16.msra.mxu0 %v2994
    %3687 = vmatpush.bf16.msra.mxu0 %v2982
    %3688 = vmatpush.bf16.msra.mxu0 %v2970
    %3689 = vmatpush.bf16.msra.mxu0 %v2958
    %3690 = vmatpush.bf16.msra.mxu0 %v2946
    %3691 = vmatmul.bf16.gmra.mxu0 %v133
    %v3692 = vpop.f32.mrf.mxu0
    %v3693 = vadd.f32 %v3680, %v3692
    %v3694 = vpop.f32.mrf.mxu0
    %3695 = vdwg.mxu0
    %3696 = vmatpush.bf16.msra.mxu0 %v2551
    %3697 = vmatpush.bf16.msra.mxu0 %v2539
    %3698 = vmatpush.bf16.msra.mxu0 %v2527
    %3699 = vmatpush.bf16.msra.mxu0 %v2515
    %3700 = vmatpush.bf16.msra.mxu0 %v2503
    %3701 = vmatpush.bf16.msra.mxu0 %v2491
    %3702 = vmatpush.bf16.msra.mxu0 %v2479
    %3703 = vmatpush.bf16.msra.mxu0 %v2467
    %3704 = vmatmul.bf16.gmra.mxu0 %v128
    %v3705 = vpop.f32.mrf.mxu0
    %v3706 = vadd.f32 %v715, %v3705
    %v3707 = vpop.f32.mrf.mxu0
    %3708 = vdwg.mxu0
    %3709 = vmatpush.bf16.msra.mxu0 %v2647
    %3710 = vmatpush.bf16.msra.mxu0 %v2635
    %3711 = vmatpush.bf16.msra.mxu0 %v2623
    %3712 = vmatpush.bf16.msra.mxu0 %v2611
    %3713 = vmatpush.bf16.msra.mxu0 %v2599
    %3714 = vmatpush.bf16.msra.mxu0 %v2587
    %3715 = vmatpush.bf16.msra.mxu0 %v2575
    %3716 = vmatpush.bf16.msra.mxu0 %v2563
    %3717 = vmatmul.bf16.gmra.mxu0 %v129
    %v3718 = vpop.f32.mrf.mxu0
    %v3719 = vadd.f32 %v3706, %v3718
    %v3720 = vpop.f32.mrf.mxu0
    %3721 = vdwg.mxu0
    %3722 = vmatpush.bf16.msra.mxu0 %v2743
    %3723 = vmatpush.bf16.msra.mxu0 %v2731
    %3724 = vmatpush.bf16.msra.mxu0 %v2719
    %3725 = vmatpush.bf16.msra.mxu0 %v2707
    %3726 = vmatpush.bf16.msra.mxu0 %v2695
    %3727 = vmatpush.bf16.msra.mxu0 %v2683
    %3728 = vmatpush.bf16.msra.mxu0 %v2671
    %3729 = vmatpush.bf16.msra.mxu0 %v2659
    %3730 = vmatmul.bf16.gmra.mxu0 %v130
    %v3731 = vpop.f32.mrf.mxu0
    %v3732 = vadd.f32 %v3719, %v3731
    %v3733 = vpop.f32.mrf.mxu0
    %3734 = vdwg.mxu0
    %3735 = vmatpush.bf16.msra.mxu0 %v2839
    %3736 = vmatpush.bf16.msra.mxu0 %v2827
    %3737 = vmatpush.bf16.msra.mxu0 %v2815
    %3738 = vmatpush.bf16.msra.mxu0 %v2803
    %3739 = vmatpush.bf16.msra.mxu0 %v2791
    %3740 = vmatpush.bf16.msra.mxu0 %v2779
    %3741 = vmatpush.bf16.msra.mxu0 %v2767
    %3742 = vmatpush.bf16.msra.mxu0 %v2755
    %3743 = vmatmul.bf16.gmra.mxu0 %v131
    %v3744 = vpop.f32.mrf.mxu0
    %v3745 = vadd.f32 %v3732, %v3744
    %v3746 = vpop.f32.mrf.mxu0
    %3747 = vdwg.mxu0
    %3748 = vmatpush.bf16.msra.mxu0 %v2935
    %3749 = vmatpush.bf16.msra.mxu0 %v2923
    %3750 = vmatpush.bf16.msra.mxu0 %v2911
    %3751 = vmatpush.bf16.msra.mxu0 %v2899
    %3752 = vmatpush.bf16.msra.mxu0 %v2887
    %3753 = vmatpush.bf16.msra.mxu0 %v2875
    %3754 = vmatpush.bf16.msra.mxu0 %v2863
    %3755 = vmatpush.bf16.msra.mxu0 %v2851
    %3756 = vmatmul.bf16.gmra.mxu0 %v132
    %v3757 = vpop.f32.mrf.mxu0
    %v3758 = vadd.f32 %v3745, %v3757
    %v3759 = vpop.f32.mrf.mxu0
    %3760 = vdwg.mxu0
    %3761 = vmatpush.bf16.msra.mxu0 %v3031
    %3762 = vmatpush.bf16.msra.mxu0 %v3019
    %3763 = vmatpush.bf16.msra.mxu0 %v3007
    %3764 = vmatpush.bf16.msra.mxu0 %v2995
    %3765 = vmatpush.bf16.msra.mxu0 %v2983
    %3766 = vmatpush.bf16.msra.mxu0 %v2971
    %3767 = vmatpush.bf16.msra.mxu0 %v2959
    %3768 = vmatpush.bf16.msra.mxu0 %v2947
    %3769 = vmatmul.bf16.gmra.mxu0 %v133
    %v3770 = vpop.f32.mrf.mxu0
    %v3771 = vadd.f32 %v3758, %v3770
    %v3772 = vpop.f32.mrf.mxu0
    %3773 = vdwg.mxu0
    %3774 = vmatpush.bf16.msra.mxu0 %v2552
    %3775 = vmatpush.bf16.msra.mxu0 %v2540
    %3776 = vmatpush.bf16.msra.mxu0 %v2528
    %3777 = vmatpush.bf16.msra.mxu0 %v2516
    %3778 = vmatpush.bf16.msra.mxu0 %v2504
    %3779 = vmatpush.bf16.msra.mxu0 %v2492
    %3780 = vmatpush.bf16.msra.mxu0 %v2480
    %3781 = vmatpush.bf16.msra.mxu0 %v2468
    %3782 = vmatmul.bf16.gmra.mxu0 %v128
    %v3783 = vpop.f32.mrf.mxu0
    %v3784 = vadd.f32 %v716, %v3783
    %v3785 = vpop.f32.mrf.mxu0
    %3786 = vdwg.mxu0
    %3787 = vmatpush.bf16.msra.mxu0 %v2648
    %3788 = vmatpush.bf16.msra.mxu0 %v2636
    %3789 = vmatpush.bf16.msra.mxu0 %v2624
    %3790 = vmatpush.bf16.msra.mxu0 %v2612
    %3791 = vmatpush.bf16.msra.mxu0 %v2600
    %3792 = vmatpush.bf16.msra.mxu0 %v2588
    %3793 = vmatpush.bf16.msra.mxu0 %v2576
    %3794 = vmatpush.bf16.msra.mxu0 %v2564
    %3795 = vmatmul.bf16.gmra.mxu0 %v129
    %v3796 = vpop.f32.mrf.mxu0
    %v3797 = vadd.f32 %v3784, %v3796
    %v3798 = vpop.f32.mrf.mxu0
    %3799 = vdwg.mxu0
    %3800 = vmatpush.bf16.msra.mxu0 %v2744
    %3801 = vmatpush.bf16.msra.mxu0 %v2732
    %3802 = vmatpush.bf16.msra.mxu0 %v2720
    %3803 = vmatpush.bf16.msra.mxu0 %v2708
    %3804 = vmatpush.bf16.msra.mxu0 %v2696
    %3805 = vmatpush.bf16.msra.mxu0 %v2684
    %3806 = vmatpush.bf16.msra.mxu0 %v2672
    %3807 = vmatpush.bf16.msra.mxu0 %v2660
    %3808 = vmatmul.bf16.gmra.mxu0 %v130
    %v3809 = vpop.f32.mrf.mxu0
    %v3810 = vadd.f32 %v3797, %v3809
    %v3811 = vpop.f32.mrf.mxu0
    %3812 = vdwg.mxu0
    %3813 = vmatpush.bf16.msra.mxu0 %v2840
    %3814 = vmatpush.bf16.msra.mxu0 %v2828
    %3815 = vmatpush.bf16.msra.mxu0 %v2816
    %3816 = vmatpush.bf16.msra.mxu0 %v2804
    %3817 = vmatpush.bf16.msra.mxu0 %v2792
    %3818 = vmatpush.bf16.msra.mxu0 %v2780
    %3819 = vmatpush.bf16.msra.mxu0 %v2768
    %3820 = vmatpush.bf16.msra.mxu0 %v2756
    %3821 = vmatmul.bf16.gmra.mxu0 %v131
    %v3822 = vpop.f32.mrf.mxu0
    %v3823 = vadd.f32 %v3810, %v3822
    %v3824 = vpop.f32.mrf.mxu0
    %3825 = vdwg.mxu0
    %3826 = vmatpush.bf16.msra.mxu0 %v2936
    %3827 = vmatpush.bf16.msra.mxu0 %v2924
    %3828 = vmatpush.bf16.msra.mxu0 %v2912
    %3829 = vmatpush.bf16.msra.mxu0 %v2900
    %3830 = vmatpush.bf16.msra.mxu0 %v2888
    %3831 = vmatpush.bf16.msra.mxu0 %v2876
    %3832 = vmatpush.bf16.msra.mxu0 %v2864
    %3833 = vmatpush.bf16.msra.mxu0 %v2852
    %3834 = vmatmul.bf16.gmra.mxu0 %v132
    %v3835 = vpop.f32.mrf.mxu0
    %v3836 = vadd.f32 %v3823, %v3835
    %v3837 = vpop.f32.mrf.mxu0
    %3838 = vdwg.mxu0
    %3839 = vmatpush.bf16.msra.mxu0 %v3032
    %3840 = vmatpush.bf16.msra.mxu0 %v3020
    %3841 = vmatpush.bf16.msra.mxu0 %v3008
    %3842 = vmatpush.bf16.msra.mxu0 %v2996
    %3843 = vmatpush.bf16.msra.mxu0 %v2984
    %3844 = vmatpush.bf16.msra.mxu0 %v2972
    %3845 = vmatpush.bf16.msra.mxu0 %v2960
    %3846 = vmatpush.bf16.msra.mxu0 %v2948
    %3847 = vmatmul.bf16.gmra.mxu0 %v133
    %v3848 = vpop.f32.mrf.mxu0
    %v3849 = vadd.f32 %v3836, %v3848
    %v3850 = vpop.f32.mrf.mxu0
    %3851 = vdwg.mxu0
    %3852 = vmatpush.bf16.msra.mxu0 %v2553
    %3853 = vmatpush.bf16.msra.mxu0 %v2541
    %3854 = vmatpush.bf16.msra.mxu0 %v2529
    %3855 = vmatpush.bf16.msra.mxu0 %v2517
    %3856 = vmatpush.bf16.msra.mxu0 %v2505
    %3857 = vmatpush.bf16.msra.mxu0 %v2493
    %3858 = vmatpush.bf16.msra.mxu0 %v2481
    %3859 = vmatpush.bf16.msra.mxu0 %v2469
    %3860 = vmatmul.bf16.gmra.mxu0 %v128
    %v3861 = vpop.f32.mrf.mxu0
    %v3862 = vadd.f32 %v717, %v3861
    %v3863 = vpop.f32.mrf.mxu0
    %3864 = vdwg.mxu0
    %3865 = vmatpush.bf16.msra.mxu0 %v2649
    %3866 = vmatpush.bf16.msra.mxu0 %v2637
    %3867 = vmatpush.bf16.msra.mxu0 %v2625
    %3868 = vmatpush.bf16.msra.mxu0 %v2613
    %3869 = vmatpush.bf16.msra.mxu0 %v2601
    %3870 = vmatpush.bf16.msra.mxu0 %v2589
    %3871 = vmatpush.bf16.msra.mxu0 %v2577
    %3872 = vmatpush.bf16.msra.mxu0 %v2565
    %3873 = vmatmul.bf16.gmra.mxu0 %v129
    %v3874 = vpop.f32.mrf.mxu0
    %v3875 = vadd.f32 %v3862, %v3874
    %v3876 = vpop.f32.mrf.mxu0
    %3877 = vdwg.mxu0
    %3878 = vmatpush.bf16.msra.mxu0 %v2745
    %3879 = vmatpush.bf16.msra.mxu0 %v2733
    %3880 = vmatpush.bf16.msra.mxu0 %v2721
    %3881 = vmatpush.bf16.msra.mxu0 %v2709
    %3882 = vmatpush.bf16.msra.mxu0 %v2697
    %3883 = vmatpush.bf16.msra.mxu0 %v2685
    %3884 = vmatpush.bf16.msra.mxu0 %v2673
    %3885 = vmatpush.bf16.msra.mxu0 %v2661
    %3886 = vmatmul.bf16.gmra.mxu0 %v130
    %v3887 = vpop.f32.mrf.mxu0
    %v3888 = vadd.f32 %v3875, %v3887
    %v3889 = vpop.f32.mrf.mxu0
    %3890 = vdwg.mxu0
    %3891 = vmatpush.bf16.msra.mxu0 %v2841
    %3892 = vmatpush.bf16.msra.mxu0 %v2829
    %3893 = vmatpush.bf16.msra.mxu0 %v2817
    %3894 = vmatpush.bf16.msra.mxu0 %v2805
    %3895 = vmatpush.bf16.msra.mxu0 %v2793
    %3896 = vmatpush.bf16.msra.mxu0 %v2781
    %3897 = vmatpush.bf16.msra.mxu0 %v2769
    %3898 = vmatpush.bf16.msra.mxu0 %v2757
    %3899 = vmatmul.bf16.gmra.mxu0 %v131
    %v3900 = vpop.f32.mrf.mxu0
    %v3901 = vadd.f32 %v3888, %v3900
    %v3902 = vpop.f32.mrf.mxu0
    %3903 = vdwg.mxu0
    %3904 = vmatpush.bf16.msra.mxu0 %v2937
    %3905 = vmatpush.bf16.msra.mxu0 %v2925
    %3906 = vmatpush.bf16.msra.mxu0 %v2913
    %3907 = vmatpush.bf16.msra.mxu0 %v2901
    %3908 = vmatpush.bf16.msra.mxu0 %v2889
    %3909 = vmatpush.bf16.msra.mxu0 %v2877
    %3910 = vmatpush.bf16.msra.mxu0 %v2865
    %3911 = vmatpush.bf16.msra.mxu0 %v2853
    %3912 = vmatmul.bf16.gmra.mxu0 %v132
    %v3913 = vpop.f32.mrf.mxu0
    %v3914 = vadd.f32 %v3901, %v3913
    %v3915 = vpop.f32.mrf.mxu0
    %3916 = vdwg.mxu0
    %3917 = vmatpush.bf16.msra.mxu0 %v3033
    %3918 = vmatpush.bf16.msra.mxu0 %v3021
    %3919 = vmatpush.bf16.msra.mxu0 %v3009
    %3920 = vmatpush.bf16.msra.mxu0 %v2997
    %3921 = vmatpush.bf16.msra.mxu0 %v2985
    %3922 = vmatpush.bf16.msra.mxu0 %v2973
    %3923 = vmatpush.bf16.msra.mxu0 %v2961
    %3924 = vmatpush.bf16.msra.mxu0 %v2949
    %3925 = vmatmul.bf16.gmra.mxu0 %v133
    %v3926 = vpop.f32.mrf.mxu0
    %v3927 = vadd.f32 %v3914, %v3926
    %v3928 = vpop.f32.mrf.mxu0
    %3929 = vdwg.mxu0
    %3930 = vmatpush.bf16.msra.mxu0 %v2554
    %3931 = vmatpush.bf16.msra.mxu0 %v2542
    %3932 = vmatpush.bf16.msra.mxu0 %v2530
    %3933 = vmatpush.bf16.msra.mxu0 %v2518
    %3934 = vmatpush.bf16.msra.mxu0 %v2506
    %3935 = vmatpush.bf16.msra.mxu0 %v2494
    %3936 = vmatpush.bf16.msra.mxu0 %v2482
    %3937 = vmatpush.bf16.msra.mxu0 %v2470
    %3938 = vmatmul.bf16.gmra.mxu0 %v128
    %v3939 = vpop.f32.mrf.mxu0
    %v3940 = vadd.f32 %v718, %v3939
    %v3941 = vpop.f32.mrf.mxu0
    %3942 = vdwg.mxu0
    %3943 = vmatpush.bf16.msra.mxu0 %v2650
    %3944 = vmatpush.bf16.msra.mxu0 %v2638
    %3945 = vmatpush.bf16.msra.mxu0 %v2626
    %3946 = vmatpush.bf16.msra.mxu0 %v2614
    %3947 = vmatpush.bf16.msra.mxu0 %v2602
    %3948 = vmatpush.bf16.msra.mxu0 %v2590
    %3949 = vmatpush.bf16.msra.mxu0 %v2578
    %3950 = vmatpush.bf16.msra.mxu0 %v2566
    %3951 = vmatmul.bf16.gmra.mxu0 %v129
    %v3952 = vpop.f32.mrf.mxu0
    %v3953 = vadd.f32 %v3940, %v3952
    %v3954 = vpop.f32.mrf.mxu0
    %3955 = vdwg.mxu0
    %3956 = vmatpush.bf16.msra.mxu0 %v2746
    %3957 = vmatpush.bf16.msra.mxu0 %v2734
    %3958 = vmatpush.bf16.msra.mxu0 %v2722
    %3959 = vmatpush.bf16.msra.mxu0 %v2710
    %3960 = vmatpush.bf16.msra.mxu0 %v2698
    %3961 = vmatpush.bf16.msra.mxu0 %v2686
    %3962 = vmatpush.bf16.msra.mxu0 %v2674
    %3963 = vmatpush.bf16.msra.mxu0 %v2662
    %3964 = vmatmul.bf16.gmra.mxu0 %v130
    %v3965 = vpop.f32.mrf.mxu0
    %v3966 = vadd.f32 %v3953, %v3965
    %v3967 = vpop.f32.mrf.mxu0
    %3968 = vdwg.mxu0
    %3969 = vmatpush.bf16.msra.mxu0 %v2842
    %3970 = vmatpush.bf16.msra.mxu0 %v2830
    %3971 = vmatpush.bf16.msra.mxu0 %v2818
    %3972 = vmatpush.bf16.msra.mxu0 %v2806
    %3973 = vmatpush.bf16.msra.mxu0 %v2794
    %3974 = vmatpush.bf16.msra.mxu0 %v2782
    %3975 = vmatpush.bf16.msra.mxu0 %v2770
    %3976 = vmatpush.bf16.msra.mxu0 %v2758
    %3977 = vmatmul.bf16.gmra.mxu0 %v131
    %v3978 = vpop.f32.mrf.mxu0
    %v3979 = vadd.f32 %v3966, %v3978
    %v3980 = vpop.f32.mrf.mxu0
    %3981 = vdwg.mxu0
    %3982 = vmatpush.bf16.msra.mxu0 %v2938
    %3983 = vmatpush.bf16.msra.mxu0 %v2926
    %3984 = vmatpush.bf16.msra.mxu0 %v2914
    %3985 = vmatpush.bf16.msra.mxu0 %v2902
    %3986 = vmatpush.bf16.msra.mxu0 %v2890
    %3987 = vmatpush.bf16.msra.mxu0 %v2878
    %3988 = vmatpush.bf16.msra.mxu0 %v2866
    %3989 = vmatpush.bf16.msra.mxu0 %v2854
    %3990 = vmatmul.bf16.gmra.mxu0 %v132
    %v3991 = vpop.f32.mrf.mxu0
    %v3992 = vadd.f32 %v3979, %v3991
    %v3993 = vpop.f32.mrf.mxu0
    %3994 = vdwg.mxu0
    %3995 = vmatpush.bf16.msra.mxu0 %v3034
    %3996 = vmatpush.bf16.msra.mxu0 %v3022
    %3997 = vmatpush.bf16.msra.mxu0 %v3010
    %3998 = vmatpush.bf16.msra.mxu0 %v2998
    %3999 = vmatpush.bf16.msra.mxu0 %v2986
    %4000 = vmatpush.bf16.msra.mxu0 %v2974
    %4001 = vmatpush.bf16.msra.mxu0 %v2962
    %4002 = vmatpush.bf16.msra.mxu0 %v2950
    %4003 = vmatmul.bf16.gmra.mxu0 %v133
    %v4004 = vpop.f32.mrf.mxu0
    %v4005 = vadd.f32 %v3992, %v4004
    %v4006 = vpop.f32.mrf.mxu0
    %4007 = vdwg.mxu0
    %4008 = vmatpush.bf16.msra.mxu0 %v2555
    %4009 = vmatpush.bf16.msra.mxu0 %v2543
    %4010 = vmatpush.bf16.msra.mxu0 %v2531
    %4011 = vmatpush.bf16.msra.mxu0 %v2519
    %4012 = vmatpush.bf16.msra.mxu0 %v2507
    %4013 = vmatpush.bf16.msra.mxu0 %v2495
    %4014 = vmatpush.bf16.msra.mxu0 %v2483
    %4015 = vmatpush.bf16.msra.mxu0 %v2471
    %4016 = vmatmul.bf16.gmra.mxu0 %v128
    %v4017 = vpop.f32.mrf.mxu0
    %v4018 = vadd.f32 %v719, %v4017
    %v4019 = vpop.f32.mrf.mxu0
    %4020 = vdwg.mxu0
    %4021 = vmatpush.bf16.msra.mxu0 %v2651
    %4022 = vmatpush.bf16.msra.mxu0 %v2639
    %4023 = vmatpush.bf16.msra.mxu0 %v2627
    %4024 = vmatpush.bf16.msra.mxu0 %v2615
    %4025 = vmatpush.bf16.msra.mxu0 %v2603
    %4026 = vmatpush.bf16.msra.mxu0 %v2591
    %4027 = vmatpush.bf16.msra.mxu0 %v2579
    %4028 = vmatpush.bf16.msra.mxu0 %v2567
    %4029 = vmatmul.bf16.gmra.mxu0 %v129
    %v4030 = vpop.f32.mrf.mxu0
    %v4031 = vadd.f32 %v4018, %v4030
    %v4032 = vpop.f32.mrf.mxu0
    %4033 = vdwg.mxu0
    %4034 = vmatpush.bf16.msra.mxu0 %v2747
    %4035 = vmatpush.bf16.msra.mxu0 %v2735
    %4036 = vmatpush.bf16.msra.mxu0 %v2723
    %4037 = vmatpush.bf16.msra.mxu0 %v2711
    %4038 = vmatpush.bf16.msra.mxu0 %v2699
    %4039 = vmatpush.bf16.msra.mxu0 %v2687
    %4040 = vmatpush.bf16.msra.mxu0 %v2675
    %4041 = vmatpush.bf16.msra.mxu0 %v2663
    %4042 = vmatmul.bf16.gmra.mxu0 %v130
    %v4043 = vpop.f32.mrf.mxu0
    %v4044 = vadd.f32 %v4031, %v4043
    %v4045 = vpop.f32.mrf.mxu0
    %4046 = vdwg.mxu0
    %4047 = vmatpush.bf16.msra.mxu0 %v2843
    %4048 = vmatpush.bf16.msra.mxu0 %v2831
    %4049 = vmatpush.bf16.msra.mxu0 %v2819
    %4050 = vmatpush.bf16.msra.mxu0 %v2807
    %4051 = vmatpush.bf16.msra.mxu0 %v2795
    %4052 = vmatpush.bf16.msra.mxu0 %v2783
    %4053 = vmatpush.bf16.msra.mxu0 %v2771
    %4054 = vmatpush.bf16.msra.mxu0 %v2759
    %4055 = vmatmul.bf16.gmra.mxu0 %v131
    %v4056 = vpop.f32.mrf.mxu0
    %v4057 = vadd.f32 %v4044, %v4056
    %v4058 = vpop.f32.mrf.mxu0
    %4059 = vdwg.mxu0
    %4060 = vmatpush.bf16.msra.mxu0 %v2939
    %4061 = vmatpush.bf16.msra.mxu0 %v2927
    %4062 = vmatpush.bf16.msra.mxu0 %v2915
    %4063 = vmatpush.bf16.msra.mxu0 %v2903
    %4064 = vmatpush.bf16.msra.mxu0 %v2891
    %4065 = vmatpush.bf16.msra.mxu0 %v2879
    %4066 = vmatpush.bf16.msra.mxu0 %v2867
    %4067 = vmatpush.bf16.msra.mxu0 %v2855
    %4068 = vmatmul.bf16.gmra.mxu0 %v132
    %v4069 = vpop.f32.mrf.mxu0
    %v4070 = vadd.f32 %v4057, %v4069
    %v4071 = vpop.f32.mrf.mxu0
    %4072 = vdwg.mxu0
    %4073 = vmatpush.bf16.msra.mxu0 %v3035
    %4074 = vmatpush.bf16.msra.mxu0 %v3023
    %4075 = vmatpush.bf16.msra.mxu0 %v3011
    %4076 = vmatpush.bf16.msra.mxu0 %v2999
    %4077 = vmatpush.bf16.msra.mxu0 %v2987
    %4078 = vmatpush.bf16.msra.mxu0 %v2975
    %4079 = vmatpush.bf16.msra.mxu0 %v2963
    %4080 = vmatpush.bf16.msra.mxu0 %v2951
    %4081 = vmatmul.bf16.gmra.mxu0 %v133
    %v4082 = vpop.f32.mrf.mxu0
    %v4083 = vadd.f32 %v4070, %v4082
    %v4084 = vpop.f32.mrf.mxu0
    %4085 = vdwg.mxu0
    %4086 = vmatpush.bf16.msra.mxu0 %v2556
    %4087 = vmatpush.bf16.msra.mxu0 %v2544
    %4088 = vmatpush.bf16.msra.mxu0 %v2532
    %4089 = vmatpush.bf16.msra.mxu0 %v2520
    %4090 = vmatpush.bf16.msra.mxu0 %v2508
    %4091 = vmatpush.bf16.msra.mxu0 %v2496
    %4092 = vmatpush.bf16.msra.mxu0 %v2484
    %4093 = vmatpush.bf16.msra.mxu0 %v2472
    %4094 = vmatmul.bf16.gmra.mxu0 %v128
    %v4095 = vpop.f32.mrf.mxu0
    %v4096 = vadd.f32 %v720, %v4095
    %v4097 = vpop.f32.mrf.mxu0
    %4098 = vdwg.mxu0
    %4099 = vmatpush.bf16.msra.mxu0 %v2652
    %4100 = vmatpush.bf16.msra.mxu0 %v2640
    %4101 = vmatpush.bf16.msra.mxu0 %v2628
    %4102 = vmatpush.bf16.msra.mxu0 %v2616
    %4103 = vmatpush.bf16.msra.mxu0 %v2604
    %4104 = vmatpush.bf16.msra.mxu0 %v2592
    %4105 = vmatpush.bf16.msra.mxu0 %v2580
    %4106 = vmatpush.bf16.msra.mxu0 %v2568
    %4107 = vmatmul.bf16.gmra.mxu0 %v129
    %v4108 = vpop.f32.mrf.mxu0
    %v4109 = vadd.f32 %v4096, %v4108
    %v4110 = vpop.f32.mrf.mxu0
    %4111 = vdwg.mxu0
    %4112 = vmatpush.bf16.msra.mxu0 %v2748
    %4113 = vmatpush.bf16.msra.mxu0 %v2736
    %4114 = vmatpush.bf16.msra.mxu0 %v2724
    %4115 = vmatpush.bf16.msra.mxu0 %v2712
    %4116 = vmatpush.bf16.msra.mxu0 %v2700
    %4117 = vmatpush.bf16.msra.mxu0 %v2688
    %4118 = vmatpush.bf16.msra.mxu0 %v2676
    %4119 = vmatpush.bf16.msra.mxu0 %v2664
    %4120 = vmatmul.bf16.gmra.mxu0 %v130
    %v4121 = vpop.f32.mrf.mxu0
    %v4122 = vadd.f32 %v4109, %v4121
    %v4123 = vpop.f32.mrf.mxu0
    %4124 = vdwg.mxu0
    %4125 = vmatpush.bf16.msra.mxu0 %v2844
    %4126 = vmatpush.bf16.msra.mxu0 %v2832
    %4127 = vmatpush.bf16.msra.mxu0 %v2820
    %4128 = vmatpush.bf16.msra.mxu0 %v2808
    %4129 = vmatpush.bf16.msra.mxu0 %v2796
    %4130 = vmatpush.bf16.msra.mxu0 %v2784
    %4131 = vmatpush.bf16.msra.mxu0 %v2772
    %4132 = vmatpush.bf16.msra.mxu0 %v2760
    %4133 = vmatmul.bf16.gmra.mxu0 %v131
    %v4134 = vpop.f32.mrf.mxu0
    %v4135 = vadd.f32 %v4122, %v4134
    %v4136 = vpop.f32.mrf.mxu0
    %4137 = vdwg.mxu0
    %4138 = vmatpush.bf16.msra.mxu0 %v2940
    %4139 = vmatpush.bf16.msra.mxu0 %v2928
    %4140 = vmatpush.bf16.msra.mxu0 %v2916
    %4141 = vmatpush.bf16.msra.mxu0 %v2904
    %4142 = vmatpush.bf16.msra.mxu0 %v2892
    %4143 = vmatpush.bf16.msra.mxu0 %v2880
    %4144 = vmatpush.bf16.msra.mxu0 %v2868
    %4145 = vmatpush.bf16.msra.mxu0 %v2856
    %4146 = vmatmul.bf16.gmra.mxu0 %v132
    %v4147 = vpop.f32.mrf.mxu0
    %v4148 = vadd.f32 %v4135, %v4147
    %v4149 = vpop.f32.mrf.mxu0
    %4150 = vdwg.mxu0
    %4151 = vmatpush.bf16.msra.mxu0 %v3036
    %4152 = vmatpush.bf16.msra.mxu0 %v3024
    %4153 = vmatpush.bf16.msra.mxu0 %v3012
    %4154 = vmatpush.bf16.msra.mxu0 %v3000
    %4155 = vmatpush.bf16.msra.mxu0 %v2988
    %4156 = vmatpush.bf16.msra.mxu0 %v2976
    %4157 = vmatpush.bf16.msra.mxu0 %v2964
    %4158 = vmatpush.bf16.msra.mxu0 %v2952
    %4159 = vmatmul.bf16.gmra.mxu0 %v133
    %v4160 = vpop.f32.mrf.mxu0
    %v4161 = vadd.f32 %v4148, %v4160
    %v4162 = vpop.f32.mrf.mxu0
    %4163 = vdwg.mxu0
    %4164 = vmatpush.bf16.msra.mxu0 %v2557
    %4165 = vmatpush.bf16.msra.mxu0 %v2545
    %4166 = vmatpush.bf16.msra.mxu0 %v2533
    %4167 = vmatpush.bf16.msra.mxu0 %v2521
    %4168 = vmatpush.bf16.msra.mxu0 %v2509
    %4169 = vmatpush.bf16.msra.mxu0 %v2497
    %4170 = vmatpush.bf16.msra.mxu0 %v2485
    %4171 = vmatpush.bf16.msra.mxu0 %v2473
    %4172 = vmatmul.bf16.gmra.mxu0 %v128
    %v4173 = vpop.f32.mrf.mxu0
    %v4174 = vadd.f32 %v721, %v4173
    %v4175 = vpop.f32.mrf.mxu0
    %4176 = vdwg.mxu0
    %4177 = vmatpush.bf16.msra.mxu0 %v2653
    %4178 = vmatpush.bf16.msra.mxu0 %v2641
    %4179 = vmatpush.bf16.msra.mxu0 %v2629
    %4180 = vmatpush.bf16.msra.mxu0 %v2617
    %4181 = vmatpush.bf16.msra.mxu0 %v2605
    %4182 = vmatpush.bf16.msra.mxu0 %v2593
    %4183 = vmatpush.bf16.msra.mxu0 %v2581
    %4184 = vmatpush.bf16.msra.mxu0 %v2569
    %4185 = vmatmul.bf16.gmra.mxu0 %v129
    %v4186 = vpop.f32.mrf.mxu0
    %v4187 = vadd.f32 %v4174, %v4186
    %v4188 = vpop.f32.mrf.mxu0
    %4189 = vdwg.mxu0
    %4190 = vmatpush.bf16.msra.mxu0 %v2749
    %4191 = vmatpush.bf16.msra.mxu0 %v2737
    %4192 = vmatpush.bf16.msra.mxu0 %v2725
    %4193 = vmatpush.bf16.msra.mxu0 %v2713
    %4194 = vmatpush.bf16.msra.mxu0 %v2701
    %4195 = vmatpush.bf16.msra.mxu0 %v2689
    %4196 = vmatpush.bf16.msra.mxu0 %v2677
    %4197 = vmatpush.bf16.msra.mxu0 %v2665
    %4198 = vmatmul.bf16.gmra.mxu0 %v130
    %v4199 = vpop.f32.mrf.mxu0
    %v4200 = vadd.f32 %v4187, %v4199
    %v4201 = vpop.f32.mrf.mxu0
    %4202 = vdwg.mxu0
    %4203 = vmatpush.bf16.msra.mxu0 %v2845
    %4204 = vmatpush.bf16.msra.mxu0 %v2833
    %4205 = vmatpush.bf16.msra.mxu0 %v2821
    %4206 = vmatpush.bf16.msra.mxu0 %v2809
    %4207 = vmatpush.bf16.msra.mxu0 %v2797
    %4208 = vmatpush.bf16.msra.mxu0 %v2785
    %4209 = vmatpush.bf16.msra.mxu0 %v2773
    %4210 = vmatpush.bf16.msra.mxu0 %v2761
    %4211 = vmatmul.bf16.gmra.mxu0 %v131
    %v4212 = vpop.f32.mrf.mxu0
    %v4213 = vadd.f32 %v4200, %v4212
    %v4214 = vpop.f32.mrf.mxu0
    %4215 = vdwg.mxu0
    %4216 = vmatpush.bf16.msra.mxu0 %v2941
    %4217 = vmatpush.bf16.msra.mxu0 %v2929
    %4218 = vmatpush.bf16.msra.mxu0 %v2917
    %4219 = vmatpush.bf16.msra.mxu0 %v2905
    %4220 = vmatpush.bf16.msra.mxu0 %v2893
    %4221 = vmatpush.bf16.msra.mxu0 %v2881
    %4222 = vmatpush.bf16.msra.mxu0 %v2869
    %4223 = vmatpush.bf16.msra.mxu0 %v2857
    %4224 = vmatmul.bf16.gmra.mxu0 %v132
    %v4225 = vpop.f32.mrf.mxu0
    %v4226 = vadd.f32 %v4213, %v4225
    %v4227 = vpop.f32.mrf.mxu0
    %4228 = vdwg.mxu0
    %4229 = vmatpush.bf16.msra.mxu0 %v3037
    %4230 = vmatpush.bf16.msra.mxu0 %v3025
    %4231 = vmatpush.bf16.msra.mxu0 %v3013
    %4232 = vmatpush.bf16.msra.mxu0 %v3001
    %4233 = vmatpush.bf16.msra.mxu0 %v2989
    %4234 = vmatpush.bf16.msra.mxu0 %v2977
    %4235 = vmatpush.bf16.msra.mxu0 %v2965
    %4236 = vmatpush.bf16.msra.mxu0 %v2953
    %4237 = vmatmul.bf16.gmra.mxu0 %v133
    %v4238 = vpop.f32.mrf.mxu0
    %v4239 = vadd.f32 %v4226, %v4238
    %v4240 = vpop.f32.mrf.mxu0
    %4241 = vdwg.mxu0
    %4242 = vmatpush.bf16.msra.mxu0 %v2558
    %4243 = vmatpush.bf16.msra.mxu0 %v2546
    %4244 = vmatpush.bf16.msra.mxu0 %v2534
    %4245 = vmatpush.bf16.msra.mxu0 %v2522
    %4246 = vmatpush.bf16.msra.mxu0 %v2510
    %4247 = vmatpush.bf16.msra.mxu0 %v2498
    %4248 = vmatpush.bf16.msra.mxu0 %v2486
    %4249 = vmatpush.bf16.msra.mxu0 %v2474
    %4250 = vmatmul.bf16.gmra.mxu0 %v128
    %v4251 = vpop.f32.mrf.mxu0
    %v4252 = vadd.f32 %v722, %v4251
    %v4253 = vpop.f32.mrf.mxu0
    %4254 = vdwg.mxu0
    %4255 = vmatpush.bf16.msra.mxu0 %v2654
    %4256 = vmatpush.bf16.msra.mxu0 %v2642
    %4257 = vmatpush.bf16.msra.mxu0 %v2630
    %4258 = vmatpush.bf16.msra.mxu0 %v2618
    %4259 = vmatpush.bf16.msra.mxu0 %v2606
    %4260 = vmatpush.bf16.msra.mxu0 %v2594
    %4261 = vmatpush.bf16.msra.mxu0 %v2582
    %4262 = vmatpush.bf16.msra.mxu0 %v2570
    %4263 = vmatmul.bf16.gmra.mxu0 %v129
    %v4264 = vpop.f32.mrf.mxu0
    %v4265 = vadd.f32 %v4252, %v4264
    %v4266 = vpop.f32.mrf.mxu0
    %4267 = vdwg.mxu0
    %4268 = vmatpush.bf16.msra.mxu0 %v2750
    %4269 = vmatpush.bf16.msra.mxu0 %v2738
    %4270 = vmatpush.bf16.msra.mxu0 %v2726
    %4271 = vmatpush.bf16.msra.mxu0 %v2714
    %4272 = vmatpush.bf16.msra.mxu0 %v2702
    %4273 = vmatpush.bf16.msra.mxu0 %v2690
    %4274 = vmatpush.bf16.msra.mxu0 %v2678
    %4275 = vmatpush.bf16.msra.mxu0 %v2666
    %4276 = vmatmul.bf16.gmra.mxu0 %v130
    %v4277 = vpop.f32.mrf.mxu0
    %v4278 = vadd.f32 %v4265, %v4277
    %v4279 = vpop.f32.mrf.mxu0
    %4280 = vdwg.mxu0
    %4281 = vmatpush.bf16.msra.mxu0 %v2846
    %4282 = vmatpush.bf16.msra.mxu0 %v2834
    %4283 = vmatpush.bf16.msra.mxu0 %v2822
    %4284 = vmatpush.bf16.msra.mxu0 %v2810
    %4285 = vmatpush.bf16.msra.mxu0 %v2798
    %4286 = vmatpush.bf16.msra.mxu0 %v2786
    %4287 = vmatpush.bf16.msra.mxu0 %v2774
    %4288 = vmatpush.bf16.msra.mxu0 %v2762
    %4289 = vmatmul.bf16.gmra.mxu0 %v131
    %v4290 = vpop.f32.mrf.mxu0
    %v4291 = vadd.f32 %v4278, %v4290
    %v4292 = vpop.f32.mrf.mxu0
    %4293 = vdwg.mxu0
    %4294 = vmatpush.bf16.msra.mxu0 %v2942
    %4295 = vmatpush.bf16.msra.mxu0 %v2930
    %4296 = vmatpush.bf16.msra.mxu0 %v2918
    %4297 = vmatpush.bf16.msra.mxu0 %v2906
    %4298 = vmatpush.bf16.msra.mxu0 %v2894
    %4299 = vmatpush.bf16.msra.mxu0 %v2882
    %4300 = vmatpush.bf16.msra.mxu0 %v2870
    %4301 = vmatpush.bf16.msra.mxu0 %v2858
    %4302 = vmatmul.bf16.gmra.mxu0 %v132
    %v4303 = vpop.f32.mrf.mxu0
    %v4304 = vadd.f32 %v4291, %v4303
    %v4305 = vpop.f32.mrf.mxu0
    %4306 = vdwg.mxu0
    %4307 = vmatpush.bf16.msra.mxu0 %v3038
    %4308 = vmatpush.bf16.msra.mxu0 %v3026
    %4309 = vmatpush.bf16.msra.mxu0 %v3014
    %4310 = vmatpush.bf16.msra.mxu0 %v3002
    %4311 = vmatpush.bf16.msra.mxu0 %v2990
    %4312 = vmatpush.bf16.msra.mxu0 %v2978
    %4313 = vmatpush.bf16.msra.mxu0 %v2966
    %4314 = vmatpush.bf16.msra.mxu0 %v2954
    %4315 = vmatmul.bf16.gmra.mxu0 %v133
    %v4316 = vpop.f32.mrf.mxu0
    %v4317 = vadd.f32 %v4304, %v4316
    %v4318 = vpop.f32.mrf.mxu0
    %4319 = vdwg.mxu0
    %4320 = vmatpush.bf16.msra.mxu0 %v2559
    %4321 = vmatpush.bf16.msra.mxu0 %v2547
    %4322 = vmatpush.bf16.msra.mxu0 %v2535
    %4323 = vmatpush.bf16.msra.mxu0 %v2523
    %4324 = vmatpush.bf16.msra.mxu0 %v2511
    %4325 = vmatpush.bf16.msra.mxu0 %v2499
    %4326 = vmatpush.bf16.msra.mxu0 %v2487
    %4327 = vmatpush.bf16.msra.mxu0 %v2475
    %4328 = vmatmul.bf16.gmra.mxu0 %v128
    %v4329 = vpop.f32.mrf.mxu0
    %v4330 = vadd.f32 %v723, %v4329
    %v4331 = vpop.f32.mrf.mxu0
    %4332 = vdwg.mxu0
    %4333 = vmatpush.bf16.msra.mxu0 %v2655
    %4334 = vmatpush.bf16.msra.mxu0 %v2643
    %4335 = vmatpush.bf16.msra.mxu0 %v2631
    %4336 = vmatpush.bf16.msra.mxu0 %v2619
    %4337 = vmatpush.bf16.msra.mxu0 %v2607
    %4338 = vmatpush.bf16.msra.mxu0 %v2595
    %4339 = vmatpush.bf16.msra.mxu0 %v2583
    %4340 = vmatpush.bf16.msra.mxu0 %v2571
    %4341 = vmatmul.bf16.gmra.mxu0 %v129
    %v4342 = vpop.f32.mrf.mxu0
    %v4343 = vadd.f32 %v4330, %v4342
    %v4344 = vpop.f32.mrf.mxu0
    %4345 = vdwg.mxu0
    %4346 = vmatpush.bf16.msra.mxu0 %v2751
    %4347 = vmatpush.bf16.msra.mxu0 %v2739
    %4348 = vmatpush.bf16.msra.mxu0 %v2727
    %4349 = vmatpush.bf16.msra.mxu0 %v2715
    %4350 = vmatpush.bf16.msra.mxu0 %v2703
    %4351 = vmatpush.bf16.msra.mxu0 %v2691
    %4352 = vmatpush.bf16.msra.mxu0 %v2679
    %4353 = vmatpush.bf16.msra.mxu0 %v2667
    %4354 = vmatmul.bf16.gmra.mxu0 %v130
    %v4355 = vpop.f32.mrf.mxu0
    %v4356 = vadd.f32 %v4343, %v4355
    %v4357 = vpop.f32.mrf.mxu0
    %4358 = vdwg.mxu0
    %4359 = vmatpush.bf16.msra.mxu0 %v2847
    %4360 = vmatpush.bf16.msra.mxu0 %v2835
    %4361 = vmatpush.bf16.msra.mxu0 %v2823
    %4362 = vmatpush.bf16.msra.mxu0 %v2811
    %4363 = vmatpush.bf16.msra.mxu0 %v2799
    %4364 = vmatpush.bf16.msra.mxu0 %v2787
    %4365 = vmatpush.bf16.msra.mxu0 %v2775
    %4366 = vmatpush.bf16.msra.mxu0 %v2763
    %4367 = vmatmul.bf16.gmra.mxu0 %v131
    %v4368 = vpop.f32.mrf.mxu0
    %v4369 = vadd.f32 %v4356, %v4368
    %v4370 = vpop.f32.mrf.mxu0
    %4371 = vdwg.mxu0
    %4372 = vmatpush.bf16.msra.mxu0 %v2943
    %4373 = vmatpush.bf16.msra.mxu0 %v2931
    %4374 = vmatpush.bf16.msra.mxu0 %v2919
    %4375 = vmatpush.bf16.msra.mxu0 %v2907
    %4376 = vmatpush.bf16.msra.mxu0 %v2895
    %4377 = vmatpush.bf16.msra.mxu0 %v2883
    %4378 = vmatpush.bf16.msra.mxu0 %v2871
    %4379 = vmatpush.bf16.msra.mxu0 %v2859
    %4380 = vmatmul.bf16.gmra.mxu0 %v132
    %v4381 = vpop.f32.mrf.mxu0
    %v4382 = vadd.f32 %v4369, %v4381
    %v4383 = vpop.f32.mrf.mxu0
    %4384 = vdwg.mxu0
    %4385 = vmatpush.bf16.msra.mxu0 %v3039
    %4386 = vmatpush.bf16.msra.mxu0 %v3027
    %4387 = vmatpush.bf16.msra.mxu0 %v3015
    %4388 = vmatpush.bf16.msra.mxu0 %v3003
    %4389 = vmatpush.bf16.msra.mxu0 %v2991
    %4390 = vmatpush.bf16.msra.mxu0 %v2979
    %4391 = vmatpush.bf16.msra.mxu0 %v2967
    %4392 = vmatpush.bf16.msra.mxu0 %v2955
    %4393 = vmatmul.bf16.gmra.mxu0 %v133
    %v4394 = vpop.f32.mrf.mxu0
    %v4395 = vadd.f32 %v4382, %v4394
    %v4396 = vpop.f32.mrf.mxu0
    %4397 = vdwg.mxu0
    %4398 = vmatpush.bf16.msra.mxu0 %v2560
    %4399 = vmatpush.bf16.msra.mxu0 %v2548
    %4400 = vmatpush.bf16.msra.mxu0 %v2536
    %4401 = vmatpush.bf16.msra.mxu0 %v2524
    %4402 = vmatpush.bf16.msra.mxu0 %v2512
    %4403 = vmatpush.bf16.msra.mxu0 %v2500
    %4404 = vmatpush.bf16.msra.mxu0 %v2488
    %4405 = vmatpush.bf16.msra.mxu0 %v2476
    %4406 = vmatmul.bf16.gmra.mxu0 %v128
    %v4407 = vpop.f32.mrf.mxu0
    %v4408 = vadd.f32 %v724, %v4407
    %v4409 = vpop.f32.mrf.mxu0
    %4410 = vdwg.mxu0
    %4411 = vmatpush.bf16.msra.mxu0 %v2656
    %4412 = vmatpush.bf16.msra.mxu0 %v2644
    %4413 = vmatpush.bf16.msra.mxu0 %v2632
    %4414 = vmatpush.bf16.msra.mxu0 %v2620
    %4415 = vmatpush.bf16.msra.mxu0 %v2608
    %4416 = vmatpush.bf16.msra.mxu0 %v2596
    %4417 = vmatpush.bf16.msra.mxu0 %v2584
    %4418 = vmatpush.bf16.msra.mxu0 %v2572
    %4419 = vmatmul.bf16.gmra.mxu0 %v129
    %v4420 = vpop.f32.mrf.mxu0
    %v4421 = vadd.f32 %v4408, %v4420
    %v4422 = vpop.f32.mrf.mxu0
    %4423 = vdwg.mxu0
    %4424 = vmatpush.bf16.msra.mxu0 %v2752
    %4425 = vmatpush.bf16.msra.mxu0 %v2740
    %4426 = vmatpush.bf16.msra.mxu0 %v2728
    %4427 = vmatpush.bf16.msra.mxu0 %v2716
    %4428 = vmatpush.bf16.msra.mxu0 %v2704
    %4429 = vmatpush.bf16.msra.mxu0 %v2692
    %4430 = vmatpush.bf16.msra.mxu0 %v2680
    %4431 = vmatpush.bf16.msra.mxu0 %v2668
    %4432 = vmatmul.bf16.gmra.mxu0 %v130
    %v4433 = vpop.f32.mrf.mxu0
    %v4434 = vadd.f32 %v4421, %v4433
    %v4435 = vpop.f32.mrf.mxu0
    %4436 = vdwg.mxu0
    %4437 = vmatpush.bf16.msra.mxu0 %v2848
    %4438 = vmatpush.bf16.msra.mxu0 %v2836
    %4439 = vmatpush.bf16.msra.mxu0 %v2824
    %4440 = vmatpush.bf16.msra.mxu0 %v2812
    %4441 = vmatpush.bf16.msra.mxu0 %v2800
    %4442 = vmatpush.bf16.msra.mxu0 %v2788
    %4443 = vmatpush.bf16.msra.mxu0 %v2776
    %4444 = vmatpush.bf16.msra.mxu0 %v2764
    %4445 = vmatmul.bf16.gmra.mxu0 %v131
    %v4446 = vpop.f32.mrf.mxu0
    %v4447 = vadd.f32 %v4434, %v4446
    %v4448 = vpop.f32.mrf.mxu0
    %4449 = vdwg.mxu0
    %4450 = vmatpush.bf16.msra.mxu0 %v2944
    %4451 = vmatpush.bf16.msra.mxu0 %v2932
    %4452 = vmatpush.bf16.msra.mxu0 %v2920
    %4453 = vmatpush.bf16.msra.mxu0 %v2908
    %4454 = vmatpush.bf16.msra.mxu0 %v2896
    %4455 = vmatpush.bf16.msra.mxu0 %v2884
    %4456 = vmatpush.bf16.msra.mxu0 %v2872
    %4457 = vmatpush.bf16.msra.mxu0 %v2860
    %4458 = vmatmul.bf16.gmra.mxu0 %v132
    %v4459 = vpop.f32.mrf.mxu0
    %v4460 = vadd.f32 %v4447, %v4459
    %v4461 = vpop.f32.mrf.mxu0
    %4462 = vdwg.mxu0
    %4463 = vmatpush.bf16.msra.mxu0 %v3040
    %4464 = vmatpush.bf16.msra.mxu0 %v3028
    %4465 = vmatpush.bf16.msra.mxu0 %v3016
    %4466 = vmatpush.bf16.msra.mxu0 %v3004
    %4467 = vmatpush.bf16.msra.mxu0 %v2992
    %4468 = vmatpush.bf16.msra.mxu0 %v2980
    %4469 = vmatpush.bf16.msra.mxu0 %v2968
    %4470 = vmatpush.bf16.msra.mxu0 %v2956
    %4471 = vmatmul.bf16.gmra.mxu0 %v133
    %v4472 = vpop.f32.mrf.mxu0
    %v4473 = vadd.f32 %v4460, %v4472
    %v4474 = vpop.f32.mrf.mxu0
    %4475 = vdwg.mxu0
    %4476 = vmatpush.bf16.msra.mxu0 %v2561
    %4477 = vmatpush.bf16.msra.mxu0 %v2549
    %4478 = vmatpush.bf16.msra.mxu0 %v2537
    %4479 = vmatpush.bf16.msra.mxu0 %v2525
    %4480 = vmatpush.bf16.msra.mxu0 %v2513
    %4481 = vmatpush.bf16.msra.mxu0 %v2501
    %4482 = vmatpush.bf16.msra.mxu0 %v2489
    %4483 = vmatpush.bf16.msra.mxu0 %v2477
    %4484 = vmatmul.bf16.gmra.mxu0 %v128
    %v4485 = vpop.f32.mrf.mxu0
    %v4486 = vadd.f32 %v725, %v4485
    %v4487 = vpop.f32.mrf.mxu0
    %4488 = vdwg.mxu0
    %4489 = vmatpush.bf16.msra.mxu0 %v2657
    %4490 = vmatpush.bf16.msra.mxu0 %v2645
    %4491 = vmatpush.bf16.msra.mxu0 %v2633
    %4492 = vmatpush.bf16.msra.mxu0 %v2621
    %4493 = vmatpush.bf16.msra.mxu0 %v2609
    %4494 = vmatpush.bf16.msra.mxu0 %v2597
    %4495 = vmatpush.bf16.msra.mxu0 %v2585
    %4496 = vmatpush.bf16.msra.mxu0 %v2573
    %4497 = vmatmul.bf16.gmra.mxu0 %v129
    %v4498 = vpop.f32.mrf.mxu0
    %v4499 = vadd.f32 %v4486, %v4498
    %v4500 = vpop.f32.mrf.mxu0
    %4501 = vdwg.mxu0
    %4502 = vmatpush.bf16.msra.mxu0 %v2753
    %4503 = vmatpush.bf16.msra.mxu0 %v2741
    %4504 = vmatpush.bf16.msra.mxu0 %v2729
    %4505 = vmatpush.bf16.msra.mxu0 %v2717
    %4506 = vmatpush.bf16.msra.mxu0 %v2705
    %4507 = vmatpush.bf16.msra.mxu0 %v2693
    %4508 = vmatpush.bf16.msra.mxu0 %v2681
    %4509 = vmatpush.bf16.msra.mxu0 %v2669
    %4510 = vmatmul.bf16.gmra.mxu0 %v130
    %v4511 = vpop.f32.mrf.mxu0
    %v4512 = vadd.f32 %v4499, %v4511
    %v4513 = vpop.f32.mrf.mxu0
    %4514 = vdwg.mxu0
    %4515 = vmatpush.bf16.msra.mxu0 %v2849
    %4516 = vmatpush.bf16.msra.mxu0 %v2837
    %4517 = vmatpush.bf16.msra.mxu0 %v2825
    %4518 = vmatpush.bf16.msra.mxu0 %v2813
    %4519 = vmatpush.bf16.msra.mxu0 %v2801
    %4520 = vmatpush.bf16.msra.mxu0 %v2789
    %4521 = vmatpush.bf16.msra.mxu0 %v2777
    %4522 = vmatpush.bf16.msra.mxu0 %v2765
    %4523 = vmatmul.bf16.gmra.mxu0 %v131
    %v4524 = vpop.f32.mrf.mxu0
    %v4525 = vadd.f32 %v4512, %v4524
    %v4526 = vpop.f32.mrf.mxu0
    %4527 = vdwg.mxu0
    %4528 = vmatpush.bf16.msra.mxu0 %v2945
    %4529 = vmatpush.bf16.msra.mxu0 %v2933
    %4530 = vmatpush.bf16.msra.mxu0 %v2921
    %4531 = vmatpush.bf16.msra.mxu0 %v2909
    %4532 = vmatpush.bf16.msra.mxu0 %v2897
    %4533 = vmatpush.bf16.msra.mxu0 %v2885
    %4534 = vmatpush.bf16.msra.mxu0 %v2873
    %4535 = vmatpush.bf16.msra.mxu0 %v2861
    %4536 = vmatmul.bf16.gmra.mxu0 %v132
    %v4537 = vpop.f32.mrf.mxu0
    %v4538 = vadd.f32 %v4525, %v4537
    %v4539 = vpop.f32.mrf.mxu0
    %4540 = vdwg.mxu0
    %4541 = vmatpush.bf16.msra.mxu0 %v3041
    %4542 = vmatpush.bf16.msra.mxu0 %v3029
    %4543 = vmatpush.bf16.msra.mxu0 %v3017
    %4544 = vmatpush.bf16.msra.mxu0 %v3005
    %4545 = vmatpush.bf16.msra.mxu0 %v2993
    %4546 = vmatpush.bf16.msra.mxu0 %v2981
    %4547 = vmatpush.bf16.msra.mxu0 %v2969
    %4548 = vmatpush.bf16.msra.mxu0 %v2957
    %4549 = vmatmul.bf16.gmra.mxu0 %v133
    %v4550 = vpop.f32.mrf.mxu0
    %v4551 = vadd.f32 %v4538, %v4550
    %v4552 = vpop.f32.mrf.mxu0
    %4553 = vdwg.mxu0
    %vm4554 = vcmp.gt.f32.partialorder %v3693, 0.0
    %vm4555 = vcmp.gt.f32.partialorder %v3771, 0.0
    %vm4556 = vcmp.gt.f32.partialorder %v3849, 0.0
    %vm4557 = vcmp.gt.f32.partialorder %v3927, 0.0
    %vm4558 = vcmp.gt.f32.partialorder %v4005, 0.0
    %vm4559 = vcmp.gt.f32.partialorder %v4083, 0.0
    %vm4560 = vcmp.gt.f32.partialorder %v4161, 0.0
    %vm4561 = vcmp.gt.f32.partialorder %v4239, 0.0
    %vm4562 = vcmp.gt.f32.partialorder %v4317, 0.0
    %vm4563 = vcmp.gt.f32.partialorder %v4395, 0.0
    %vm4564 = vcmp.gt.f32.partialorder %v4473, 0.0
    %vm4565 = vcmp.gt.f32.partialorder %v4551, 0.0
    %v4566 = vstv %s120
    %v4567 = vmul.f32 %v4566, %v3693
    %v4568 = vmul.f32 %v4566, %v3771
    %v4569 = vmul.f32 %v4566, %v3849
    %v4570 = vmul.f32 %v4566, %v3927
    %v4571 = vmul.f32 %v4566, %v4005
    %v4572 = vmul.f32 %v4566, %v4083
    %v4573 = vmul.f32 %v4566, %v4161
    %v4574 = vmul.f32 %v4566, %v4239
    %v4575 = vmul.f32 %v4566, %v4317
    %v4576 = vmul.f32 %v4566, %v4395
    %v4577 = vmul.f32 %v4566, %v4473
    %v4578 = vmul.f32 %v4566, %v4551
    %v4579 = vsel %vm4554, %v3693, %v4567
    %v4580 = vsel %vm4555, %v3771, %v4568
    %v4581 = vsel %vm4556, %v3849, %v4569
    %v4582 = vsel %vm4557, %v3927, %v4570
    %v4583 = vsel %vm4558, %v4005, %v4571
    %v4584 = vsel %vm4559, %v4083, %v4572
    %v4585 = vsel %vm4560, %v4161, %v4573
    %v4586 = vsel %vm4561, %v4239, %v4574
    %v4587 = vsel %vm4562, %v4317, %v4575
    %v4588 = vsel %vm4563, %v4395, %v4576
    %v4589 = vsel %vm4564, %v4473, %v4577
    %v4590 = vsel %vm4565, %v4551, %v4578
    %v4591 = vpack.c.bf16 %v4579, %v4579
    %v4592 = vpack.c.bf16 %v4580, %v4580
    %v4593 = vpack.c.bf16 %v4581, %v4581
    %v4594 = vpack.c.bf16 %v4582, %v4582
    %v4595 = vpack.c.bf16 %v4583, %v4583
    %v4596 = vpack.c.bf16 %v4584, %v4584
    %v4597 = vpack.c.bf16 %v4585, %v4585
    %v4598 = vpack.c.bf16 %v4586, %v4586
    %v4599 = vpack.c.bf16 %v4587, %v4587
    %v4600 = vpack.c.bf16 %v4588, %v4588
    %v4601 = vpack.c.bf16 %v4589, %v4589
    %v4602 = vpack.c.bf16 %v4590, %v4590
    %v4603 = vld [vmem:[#allocation9] sm:$0xff]
    %v4604 = vld [vmem:[#allocation9 + $0x8] sm:$0xff]
    %v4605 = vld [vmem:[#allocation9 + $0x10] sm:$0xff]
    %v4606 = vld [vmem:[#allocation9 + $0x18] sm:$0xff]
    %v4607 = vld [vmem:[#allocation9 + $0x20] sm:$0xff]
    %v4608 = vld [vmem:[#allocation9 + $0x28] sm:$0xff]
    %v4609 = vld [vmem:[#allocation9 + $0x30] sm:$0xff]
    %v4610 = vld [vmem:[#allocation9 + $0x38] sm:$0xff]
    %v4611 = vld [vmem:[#allocation9 + $0x40] sm:$0xff]
    %v4612 = vld [vmem:[#allocation9 + $0x48] sm:$0xff]
    %v4613 = vld [vmem:[#allocation9 + $0x50] sm:$0xff]
    %v4614 = vld [vmem:[#allocation9 + $0x58] sm:$0xff]
    %v4615 = vld [vmem:[#allocation9 + $0x60] sm:$0xff]
    %v4616 = vld [vmem:[#allocation9 + $0x68] sm:$0xff]
    %v4617 = vld [vmem:[#allocation9 + $0x70] sm:$0xff]
    %v4618 = vld [vmem:[#allocation9 + $0x78] sm:$0xff]
    %v4619 = vld [vmem:[#allocation9 + $0x80] sm:$0xff]
    %v4620 = vld [vmem:[#allocation9 + $0x88] sm:$0xff]
    %v4621 = vld [vmem:[#allocation9 + $0x90] sm:$0xff]
    %v4622 = vld [vmem:[#allocation9 + $0x98] sm:$0xff]
    %v4623 = vld [vmem:[#allocation9 + $0xa0] sm:$0xff]
    %v4624 = vld [vmem:[#allocation9 + $0xa8] sm:$0xff]
    %v4625 = vld [vmem:[#allocation9 + $0xb0] sm:$0xff]
    %v4626 = vld [vmem:[#allocation9 + $0xb8] sm:$0xff]
    %v4627 = vld [vmem:[#allocation9 + $0xc0] sm:$0xff]
    %v4628 = vld [vmem:[#allocation9 + $0xc8] sm:$0xff]
    %v4629 = vld [vmem:[#allocation9 + $0xd0] sm:$0xff]
    %v4630 = vld [vmem:[#allocation9 + $0xd8] sm:$0xff]
    %v4631 = vld [vmem:[#allocation9 + $0xe0] sm:$0xff]
    %v4632 = vld [vmem:[#allocation9 + $0xe8] sm:$0xff]
    %v4633 = vld [vmem:[#allocation9 + $0xf0] sm:$0xff]
    %v4634 = vld [vmem:[#allocation9 + $0xf8] sm:$0xff]
    %v4635 = vld [vmem:[#allocation9 + $0x100] sm:$0xff]
    %v4636 = vld [vmem:[#allocation9 + $0x108] sm:$0xff]
    %v4637 = vld [vmem:[#allocation9 + $0x110] sm:$0xff]
    %v4638 = vld [vmem:[#allocation9 + $0x118] sm:$0xff]
    %v4639 = vld [vmem:[#allocation9 + $0x120] sm:$0xff]
    %v4640 = vld [vmem:[#allocation9 + $0x128] sm:$0xff]
    %v4641 = vld [vmem:[#allocation9 + $0x130] sm:$0xff]
    %v4642 = vld [vmem:[#allocation9 + $0x138] sm:$0xff]
    %v4643 = vld [vmem:[#allocation9 + $0x140] sm:$0xff]
    %v4644 = vld [vmem:[#allocation9 + $0x148] sm:$0xff]
    %v4645 = vld [vmem:[#allocation9 + $0x150] sm:$0xff]
    %v4646 = vld [vmem:[#allocation9 + $0x158] sm:$0xff]
    %v4647 = vld [vmem:[#allocation9 + $0x160] sm:$0xff]
    %v4648 = vld [vmem:[#allocation9 + $0x168] sm:$0xff]
    %v4649 = vld [vmem:[#allocation9 + $0x170] sm:$0xff]
    %v4650 = vld [vmem:[#allocation9 + $0x178] sm:$0xff]
    %v4651 = vld [vmem:[#allocation9 + $0x180] sm:$0xff]
    %v4652 = vld [vmem:[#allocation9 + $0x188] sm:$0xff]
    %v4653 = vld [vmem:[#allocation9 + $0x190] sm:$0xff]
    %v4654 = vld [vmem:[#allocation9 + $0x198] sm:$0xff]
    %v4655 = vld [vmem:[#allocation9 + $0x1a0] sm:$0xff]
    %v4656 = vld [vmem:[#allocation9 + $0x1a8] sm:$0xff]
    %v4657 = vld [vmem:[#allocation9 + $0x1b0] sm:$0xff]
    %v4658 = vld [vmem:[#allocation9 + $0x1b8] sm:$0xff]
    %v4659 = vld [vmem:[#allocation9 + $0x1c0] sm:$0xff]
    %v4660 = vld [vmem:[#allocation9 + $0x1c8] sm:$0xff]
    %v4661 = vld [vmem:[#allocation9 + $0x1d0] sm:$0xff]
    %v4662 = vld [vmem:[#allocation9 + $0x1d8] sm:$0xff]
    %v4663 = vld [vmem:[#allocation9 + $0x1e0] sm:$0xff]
    %v4664 = vld [vmem:[#allocation9 + $0x1e8] sm:$0xff]
    %v4665 = vld [vmem:[#allocation9 + $0x1f0] sm:$0xff]
    %v4666 = vld [vmem:[#allocation9 + $0x1f8] sm:$0xff]
    %v4667 = vld [vmem:[#allocation9 + $0x200] sm:$0xff]
    %v4668 = vld [vmem:[#allocation9 + $0x208] sm:$0xff]
    %v4669 = vld [vmem:[#allocation9 + $0x210] sm:$0xff]
    %v4670 = vld [vmem:[#allocation9 + $0x218] sm:$0xff]
    %v4671 = vld [vmem:[#allocation9 + $0x220] sm:$0xff]
    %v4672 = vld [vmem:[#allocation9 + $0x228] sm:$0xff]
    %v4673 = vld [vmem:[#allocation9 + $0x230] sm:$0xff]
    %v4674 = vld [vmem:[#allocation9 + $0x238] sm:$0xff]
    %v4675 = vld [vmem:[#allocation9 + $0x240] sm:$0xff]
    %v4676 = vld [vmem:[#allocation9 + $0x248] sm:$0xff]
    %v4677 = vld [vmem:[#allocation9 + $0x250] sm:$0xff]
    %v4678 = vld [vmem:[#allocation9 + $0x258] sm:$0xff]
    %v4679 = vld [vmem:[#allocation9 + $0x260] sm:$0xff]
    %v4680 = vld [vmem:[#allocation9 + $0x268] sm:$0xff]
    %v4681 = vld [vmem:[#allocation9 + $0x270] sm:$0xff]
    %v4682 = vld [vmem:[#allocation9 + $0x278] sm:$0xff]
    %v4683 = vld [vmem:[#allocation9 + $0x280] sm:$0xff]
    %v4684 = vld [vmem:[#allocation9 + $0x288] sm:$0xff]
    %v4685 = vld [vmem:[#allocation9 + $0x290] sm:$0xff]
    %v4686 = vld [vmem:[#allocation9 + $0x298] sm:$0xff]
    %v4687 = vld [vmem:[#allocation9 + $0x2a0] sm:$0xff]
    %v4688 = vld [vmem:[#allocation9 + $0x2a8] sm:$0xff]
    %v4689 = vld [vmem:[#allocation9 + $0x2b0] sm:$0xff]
    %v4690 = vld [vmem:[#allocation9 + $0x2b8] sm:$0xff]
    %v4691 = vld [vmem:[#allocation9 + $0x2c0] sm:$0xff]
    %v4692 = vld [vmem:[#allocation9 + $0x2c8] sm:$0xff]
    %v4693 = vld [vmem:[#allocation9 + $0x2d0] sm:$0xff]
    %v4694 = vld [vmem:[#allocation9 + $0x2d8] sm:$0xff]
    %v4695 = vld [vmem:[#allocation9 + $0x2e0] sm:$0xff]
    %v4696 = vld [vmem:[#allocation9 + $0x2e8] sm:$0xff]
    %v4697 = vld [vmem:[#allocation9 + $0x2f0] sm:$0xff]
    %v4698 = vld [vmem:[#allocation9 + $0x2f8] sm:$0xff]
    %v4699 = vld [vmem:[#allocation9 + $0x300] sm:$0xff]
    %v4700 = vld [vmem:[#allocation9 + $0x308] sm:$0xff]
    %v4701 = vld [vmem:[#allocation9 + $0x310] sm:$0xff]
    %v4702 = vld [vmem:[#allocation9 + $0x318] sm:$0xff]
    %v4703 = vld [vmem:[#allocation9 + $0x320] sm:$0xff]
    %v4704 = vld [vmem:[#allocation9 + $0x328] sm:$0xff]
    %v4705 = vld [vmem:[#allocation9 + $0x330] sm:$0xff]
    %v4706 = vld [vmem:[#allocation9 + $0x338] sm:$0xff]
    %v4707 = vld [vmem:[#allocation9 + $0x340] sm:$0xff]
    %v4708 = vld [vmem:[#allocation9 + $0x348] sm:$0xff]
    %v4709 = vld [vmem:[#allocation9 + $0x350] sm:$0xff]
    %v4710 = vld [vmem:[#allocation9 + $0x358] sm:$0xff]
    %v4711 = vld [vmem:[#allocation9 + $0x360] sm:$0xff]
    %v4712 = vld [vmem:[#allocation9 + $0x368] sm:$0xff]
    %v4713 = vld [vmem:[#allocation9 + $0x370] sm:$0xff]
    %v4714 = vld [vmem:[#allocation9 + $0x378] sm:$0xff]
    %v4715 = vld [vmem:[#allocation9 + $0x380] sm:$0xff]
    %v4716 = vld [vmem:[#allocation9 + $0x388] sm:$0xff]
    %v4717 = vld [vmem:[#allocation9 + $0x390] sm:$0xff]
    %v4718 = vld [vmem:[#allocation9 + $0x398] sm:$0xff]
    %v4719 = vld [vmem:[#allocation9 + $0x3a0] sm:$0xff]
    %v4720 = vld [vmem:[#allocation9 + $0x3a8] sm:$0xff]
    %v4721 = vld [vmem:[#allocation9 + $0x3b0] sm:$0xff]
    %v4722 = vld [vmem:[#allocation9 + $0x3b8] sm:$0xff]
    %v4723 = vld [vmem:[#allocation9 + $0x3c0] sm:$0xff]
    %v4724 = vld [vmem:[#allocation9 + $0x3c8] sm:$0xff]
    %v4725 = vld [vmem:[#allocation9 + $0x3d0] sm:$0xff]
    %v4726 = vld [vmem:[#allocation9 + $0x3d8] sm:$0xff]
    %v4727 = vld [vmem:[#allocation9 + $0x3e0] sm:$0xff]
    %v4728 = vld [vmem:[#allocation9 + $0x3e8] sm:$0xff]
    %v4729 = vld [vmem:[#allocation9 + $0x3f0] sm:$0xff]
    %v4730 = vld [vmem:[#allocation9 + $0x3f8] sm:$0xff]
    %v4731 = vld [vmem:[#allocation9 + $0x400] sm:$0xff]
    %v4732 = vld [vmem:[#allocation9 + $0x408] sm:$0xff]
    %v4733 = vld [vmem:[#allocation9 + $0x410] sm:$0xff]
    %v4734 = vld [vmem:[#allocation9 + $0x418] sm:$0xff]
    %v4735 = vld [vmem:[#allocation9 + $0x420] sm:$0xff]
    %v4736 = vld [vmem:[#allocation9 + $0x428] sm:$0xff]
    %v4737 = vld [vmem:[#allocation9 + $0x430] sm:$0xff]
    %v4738 = vld [vmem:[#allocation9 + $0x438] sm:$0xff]
    %v4739 = vld [vmem:[#allocation9 + $0x440] sm:$0xff]
    %v4740 = vld [vmem:[#allocation9 + $0x448] sm:$0xff]
    %v4741 = vld [vmem:[#allocation9 + $0x450] sm:$0xff]
    %v4742 = vld [vmem:[#allocation9 + $0x458] sm:$0xff]
    %v4743 = vld [vmem:[#allocation9 + $0x460] sm:$0xff]
    %v4744 = vld [vmem:[#allocation9 + $0x468] sm:$0xff]
    %v4745 = vld [vmem:[#allocation9 + $0x470] sm:$0xff]
    %v4746 = vld [vmem:[#allocation9 + $0x478] sm:$0xff]
    %v4747 = vld [vmem:[#allocation9 + $0x480] sm:$0xff]
    %v4748 = vld [vmem:[#allocation9 + $0x488] sm:$0xff]
    %v4749 = vld [vmem:[#allocation9 + $0x490] sm:$0xff]
    %v4750 = vld [vmem:[#allocation9 + $0x498] sm:$0xff]
    %v4751 = vld [vmem:[#allocation9 + $0x4a0] sm:$0xff]
    %v4752 = vld [vmem:[#allocation9 + $0x4a8] sm:$0xff]
    %v4753 = vld [vmem:[#allocation9 + $0x4b0] sm:$0xff]
    %v4754 = vld [vmem:[#allocation9 + $0x4b8] sm:$0xff]
    %v4755 = vld [vmem:[#allocation9 + $0x4c0] sm:$0xff]
    %v4756 = vld [vmem:[#allocation9 + $0x4c8] sm:$0xff]
    %v4757 = vld [vmem:[#allocation9 + $0x4d0] sm:$0xff]
    %v4758 = vld [vmem:[#allocation9 + $0x4d8] sm:$0xff]
    %v4759 = vld [vmem:[#allocation9 + $0x4e0] sm:$0xff]
    %v4760 = vld [vmem:[#allocation9 + $0x4e8] sm:$0xff]
    %v4761 = vld [vmem:[#allocation9 + $0x4f0] sm:$0xff]
    %v4762 = vld [vmem:[#allocation9 + $0x4f8] sm:$0xff]
    %v4763 = vld [vmem:[#allocation9 + $0x500] sm:$0xff]
    %v4764 = vld [vmem:[#allocation9 + $0x508] sm:$0xff]
    %v4765 = vld [vmem:[#allocation9 + $0x510] sm:$0xff]
    %v4766 = vld [vmem:[#allocation9 + $0x518] sm:$0xff]
    %v4767 = vld [vmem:[#allocation9 + $0x520] sm:$0xff]
    %v4768 = vld [vmem:[#allocation9 + $0x528] sm:$0xff]
    %v4769 = vld [vmem:[#allocation9 + $0x530] sm:$0xff]
    %v4770 = vld [vmem:[#allocation9 + $0x538] sm:$0xff]
    %v4771 = vld [vmem:[#allocation9 + $0x540] sm:$0xff]
    %v4772 = vld [vmem:[#allocation9 + $0x548] sm:$0xff]
    %v4773 = vld [vmem:[#allocation9 + $0x550] sm:$0xff]
    %v4774 = vld [vmem:[#allocation9 + $0x558] sm:$0xff]
    %v4775 = vld [vmem:[#allocation9 + $0x560] sm:$0xff]
    %v4776 = vld [vmem:[#allocation9 + $0x568] sm:$0xff]
    %v4777 = vld [vmem:[#allocation9 + $0x570] sm:$0xff]
    %v4778 = vld [vmem:[#allocation9 + $0x578] sm:$0xff]
    %v4779 = vld [vmem:[#allocation9 + $0x580] sm:$0xff]
    %v4780 = vld [vmem:[#allocation9 + $0x588] sm:$0xff]
    %v4781 = vld [vmem:[#allocation9 + $0x590] sm:$0xff]
    %v4782 = vld [vmem:[#allocation9 + $0x598] sm:$0xff]
    %v4783 = vld [vmem:[#allocation9 + $0x5a0] sm:$0xff]
    %v4784 = vld [vmem:[#allocation9 + $0x5a8] sm:$0xff]
    %v4785 = vld [vmem:[#allocation9 + $0x5b0] sm:$0xff]
    %v4786 = vld [vmem:[#allocation9 + $0x5b8] sm:$0xff]
    %v4787 = vld [vmem:[#allocation9 + $0x5c0] sm:$0xff]
    %v4788 = vld [vmem:[#allocation9 + $0x5c8] sm:$0xff]
    %v4789 = vld [vmem:[#allocation9 + $0x5d0] sm:$0xff]
    %v4790 = vld [vmem:[#allocation9 + $0x5d8] sm:$0xff]
    %v4791 = vld [vmem:[#allocation9 + $0x5e0] sm:$0xff]
    %v4792 = vld [vmem:[#allocation9 + $0x5e8] sm:$0xff]
    %v4793 = vld [vmem:[#allocation9 + $0x5f0] sm:$0xff]
    %v4794 = vld [vmem:[#allocation9 + $0x5f8] sm:$0xff]
    %v4795 = vld [vmem:[#allocation9 + $0x600] sm:$0xff]
    %v4796 = vld [vmem:[#allocation9 + $0x608] sm:$0xff]
    %v4797 = vld [vmem:[#allocation9 + $0x610] sm:$0xff]
    %v4798 = vld [vmem:[#allocation9 + $0x618] sm:$0xff]
    %v4799 = vld [vmem:[#allocation9 + $0x620] sm:$0xff]
    %v4800 = vld [vmem:[#allocation9 + $0x628] sm:$0xff]
    %v4801 = vld [vmem:[#allocation9 + $0x630] sm:$0xff]
    %v4802 = vld [vmem:[#allocation9 + $0x638] sm:$0xff]
    %v4803 = vld [vmem:[#allocation9 + $0x640] sm:$0xff]
    %v4804 = vld [vmem:[#allocation9 + $0x648] sm:$0xff]
    %v4805 = vld [vmem:[#allocation9 + $0x650] sm:$0xff]
    %v4806 = vld [vmem:[#allocation9 + $0x658] sm:$0xff]
    %v4807 = vld [vmem:[#allocation9 + $0x660] sm:$0xff]
    %v4808 = vld [vmem:[#allocation9 + $0x668] sm:$0xff]
    %v4809 = vld [vmem:[#allocation9 + $0x670] sm:$0xff]
    %v4810 = vld [vmem:[#allocation9 + $0x678] sm:$0xff]
    %v4811 = vld [vmem:[#allocation9 + $0x680] sm:$0xff]
    %v4812 = vld [vmem:[#allocation9 + $0x688] sm:$0xff]
    %v4813 = vld [vmem:[#allocation9 + $0x690] sm:$0xff]
    %v4814 = vld [vmem:[#allocation9 + $0x698] sm:$0xff]
    %v4815 = vld [vmem:[#allocation9 + $0x6a0] sm:$0xff]
    %v4816 = vld [vmem:[#allocation9 + $0x6a8] sm:$0xff]
    %v4817 = vld [vmem:[#allocation9 + $0x6b0] sm:$0xff]
    %v4818 = vld [vmem:[#allocation9 + $0x6b8] sm:$0xff]
    %v4819 = vld [vmem:[#allocation9 + $0x6c0] sm:$0xff]
    %v4820 = vld [vmem:[#allocation9 + $0x6c8] sm:$0xff]
    %v4821 = vld [vmem:[#allocation9 + $0x6d0] sm:$0xff]
    %v4822 = vld [vmem:[#allocation9 + $0x6d8] sm:$0xff]
    %v4823 = vld [vmem:[#allocation9 + $0x6e0] sm:$0xff]
    %v4824 = vld [vmem:[#allocation9 + $0x6e8] sm:$0xff]
    %v4825 = vld [vmem:[#allocation9 + $0x6f0] sm:$0xff]
    %v4826 = vld [vmem:[#allocation9 + $0x6f8] sm:$0xff]
    %v4827 = vld [vmem:[#allocation9 + $0x700] sm:$0xff]
    %v4828 = vld [vmem:[#allocation9 + $0x708] sm:$0xff]
    %v4829 = vld [vmem:[#allocation9 + $0x710] sm:$0xff]
    %v4830 = vld [vmem:[#allocation9 + $0x718] sm:$0xff]
    %v4831 = vld [vmem:[#allocation9 + $0x720] sm:$0xff]
    %v4832 = vld [vmem:[#allocation9 + $0x728] sm:$0xff]
    %v4833 = vld [vmem:[#allocation9 + $0x730] sm:$0xff]
    %v4834 = vld [vmem:[#allocation9 + $0x738] sm:$0xff]
    %v4835 = vld [vmem:[#allocation9 + $0x740] sm:$0xff]
    %v4836 = vld [vmem:[#allocation9 + $0x748] sm:$0xff]
    %v4837 = vld [vmem:[#allocation9 + $0x750] sm:$0xff]
    %v4838 = vld [vmem:[#allocation9 + $0x758] sm:$0xff]
    %v4839 = vld [vmem:[#allocation9 + $0x760] sm:$0xff]
    %v4840 = vld [vmem:[#allocation9 + $0x768] sm:$0xff]
    %v4841 = vld [vmem:[#allocation9 + $0x770] sm:$0xff]
    %v4842 = vld [vmem:[#allocation9 + $0x778] sm:$0xff]
    %v4843 = vld [vmem:[#allocation9 + $0x780] sm:$0xff]
    %v4844 = vld [vmem:[#allocation9 + $0x788] sm:$0xff]
    %v4845 = vld [vmem:[#allocation9 + $0x790] sm:$0xff]
    %v4846 = vld [vmem:[#allocation9 + $0x798] sm:$0xff]
    %v4847 = vld [vmem:[#allocation9 + $0x7a0] sm:$0xff]
    %v4848 = vld [vmem:[#allocation9 + $0x7a8] sm:$0xff]
    %v4849 = vld [vmem:[#allocation9 + $0x7b0] sm:$0xff]
    %v4850 = vld [vmem:[#allocation9 + $0x7b8] sm:$0xff]
    %v4851 = vld [vmem:[#allocation9 + $0x7c0] sm:$0xff]
    %v4852 = vld [vmem:[#allocation9 + $0x7c8] sm:$0xff]
    %v4853 = vld [vmem:[#allocation9 + $0x7d0] sm:$0xff]
    %v4854 = vld [vmem:[#allocation9 + $0x7d8] sm:$0xff]
    %v4855 = vld [vmem:[#allocation9 + $0x7e0] sm:$0xff]
    %v4856 = vld [vmem:[#allocation9 + $0x7e8] sm:$0xff]
    %v4857 = vld [vmem:[#allocation9 + $0x7f0] sm:$0xff]
    %v4858 = vld [vmem:[#allocation9 + $0x7f8] sm:$0xff]
    %v4859 = vld [vmem:[#allocation9 + $0x800] sm:$0xff]
    %v4860 = vld [vmem:[#allocation9 + $0x808] sm:$0xff]
    %v4861 = vld [vmem:[#allocation9 + $0x810] sm:$0xff]
    %v4862 = vld [vmem:[#allocation9 + $0x818] sm:$0xff]
    %v4863 = vld [vmem:[#allocation9 + $0x820] sm:$0xff]
    %v4864 = vld [vmem:[#allocation9 + $0x828] sm:$0xff]
    %v4865 = vld [vmem:[#allocation9 + $0x830] sm:$0xff]
    %v4866 = vld [vmem:[#allocation9 + $0x838] sm:$0xff]
    %v4867 = vld [vmem:[#allocation9 + $0x840] sm:$0xff]
    %v4868 = vld [vmem:[#allocation9 + $0x848] sm:$0xff]
    %v4869 = vld [vmem:[#allocation9 + $0x850] sm:$0xff]
    %v4870 = vld [vmem:[#allocation9 + $0x858] sm:$0xff]
    %v4871 = vld [vmem:[#allocation9 + $0x860] sm:$0xff]
    %v4872 = vld [vmem:[#allocation9 + $0x868] sm:$0xff]
    %v4873 = vld [vmem:[#allocation9 + $0x870] sm:$0xff]
    %v4874 = vld [vmem:[#allocation9 + $0x878] sm:$0xff]
    %v4875 = vld [vmem:[#allocation9 + $0x880] sm:$0xff]
    %v4876 = vld [vmem:[#allocation9 + $0x888] sm:$0xff]
    %v4877 = vld [vmem:[#allocation9 + $0x890] sm:$0xff]
    %v4878 = vld [vmem:[#allocation9 + $0x898] sm:$0xff]
    %v4879 = vld [vmem:[#allocation9 + $0x8a0] sm:$0xff]
    %v4880 = vld [vmem:[#allocation9 + $0x8a8] sm:$0xff]
    %v4881 = vld [vmem:[#allocation9 + $0x8b0] sm:$0xff]
    %v4882 = vld [vmem:[#allocation9 + $0x8b8] sm:$0xff]
    %v4883 = vld [vmem:[#allocation9 + $0x8c0] sm:$0xff]
    %v4884 = vld [vmem:[#allocation9 + $0x8c8] sm:$0xff]
    %v4885 = vld [vmem:[#allocation9 + $0x8d0] sm:$0xff]
    %v4886 = vld [vmem:[#allocation9 + $0x8d8] sm:$0xff]
    %v4887 = vld [vmem:[#allocation9 + $0x8e0] sm:$0xff]
    %v4888 = vld [vmem:[#allocation9 + $0x8e8] sm:$0xff]
    %v4889 = vld [vmem:[#allocation9 + $0x8f0] sm:$0xff]
    %v4890 = vld [vmem:[#allocation9 + $0x8f8] sm:$0xff]
    %v4891 = vld [vmem:[#allocation9 + $0x900] sm:$0xff]
    %v4892 = vld [vmem:[#allocation9 + $0x908] sm:$0xff]
    %v4893 = vld [vmem:[#allocation9 + $0x910] sm:$0xff]
    %v4894 = vld [vmem:[#allocation9 + $0x918] sm:$0xff]
    %v4895 = vld [vmem:[#allocation9 + $0x920] sm:$0xff]
    %v4896 = vld [vmem:[#allocation9 + $0x928] sm:$0xff]
    %v4897 = vld [vmem:[#allocation9 + $0x930] sm:$0xff]
    %v4898 = vld [vmem:[#allocation9 + $0x938] sm:$0xff]
    %v4899 = vld [vmem:[#allocation9 + $0x940] sm:$0xff]
    %v4900 = vld [vmem:[#allocation9 + $0x948] sm:$0xff]
    %v4901 = vld [vmem:[#allocation9 + $0x950] sm:$0xff]
    %v4902 = vld [vmem:[#allocation9 + $0x958] sm:$0xff]
    %v4903 = vld [vmem:[#allocation9 + $0x960] sm:$0xff]
    %v4904 = vld [vmem:[#allocation9 + $0x968] sm:$0xff]
    %v4905 = vld [vmem:[#allocation9 + $0x970] sm:$0xff]
    %v4906 = vld [vmem:[#allocation9 + $0x978] sm:$0xff]
    %v4907 = vld [vmem:[#allocation9 + $0x980] sm:$0xff]
    %v4908 = vld [vmem:[#allocation9 + $0x988] sm:$0xff]
    %v4909 = vld [vmem:[#allocation9 + $0x990] sm:$0xff]
    %v4910 = vld [vmem:[#allocation9 + $0x998] sm:$0xff]
    %v4911 = vld [vmem:[#allocation9 + $0x9a0] sm:$0xff]
    %v4912 = vld [vmem:[#allocation9 + $0x9a8] sm:$0xff]
    %v4913 = vld [vmem:[#allocation9 + $0x9b0] sm:$0xff]
    %v4914 = vld [vmem:[#allocation9 + $0x9b8] sm:$0xff]
    %v4915 = vld [vmem:[#allocation9 + $0x9c0] sm:$0xff]
    %v4916 = vld [vmem:[#allocation9 + $0x9c8] sm:$0xff]
    %v4917 = vld [vmem:[#allocation9 + $0x9d0] sm:$0xff]
    %v4918 = vld [vmem:[#allocation9 + $0x9d8] sm:$0xff]
    %v4919 = vld [vmem:[#allocation9 + $0x9e0] sm:$0xff]
    %v4920 = vld [vmem:[#allocation9 + $0x9e8] sm:$0xff]
    %v4921 = vld [vmem:[#allocation9 + $0x9f0] sm:$0xff]
    %v4922 = vld [vmem:[#allocation9 + $0x9f8] sm:$0xff]
    %v4923 = vld [vmem:[#allocation9 + $0xa00] sm:$0xff]
    %v4924 = vld [vmem:[#allocation9 + $0xa08] sm:$0xff]
    %v4925 = vld [vmem:[#allocation9 + $0xa10] sm:$0xff]
    %v4926 = vld [vmem:[#allocation9 + $0xa18] sm:$0xff]
    %v4927 = vld [vmem:[#allocation9 + $0xa20] sm:$0xff]
    %v4928 = vld [vmem:[#allocation9 + $0xa28] sm:$0xff]
    %v4929 = vld [vmem:[#allocation9 + $0xa30] sm:$0xff]
    %v4930 = vld [vmem:[#allocation9 + $0xa38] sm:$0xff]
    %v4931 = vld [vmem:[#allocation9 + $0xa40] sm:$0xff]
    %v4932 = vld [vmem:[#allocation9 + $0xa48] sm:$0xff]
    %v4933 = vld [vmem:[#allocation9 + $0xa50] sm:$0xff]
    %v4934 = vld [vmem:[#allocation9 + $0xa58] sm:$0xff]
    %v4935 = vld [vmem:[#allocation9 + $0xa60] sm:$0xff]
    %v4936 = vld [vmem:[#allocation9 + $0xa68] sm:$0xff]
    %v4937 = vld [vmem:[#allocation9 + $0xa70] sm:$0xff]
    %v4938 = vld [vmem:[#allocation9 + $0xa78] sm:$0xff]
    %v4939 = vld [vmem:[#allocation9 + $0xa80] sm:$0xff]
    %v4940 = vld [vmem:[#allocation9 + $0xa88] sm:$0xff]
    %v4941 = vld [vmem:[#allocation9 + $0xa90] sm:$0xff]
    %v4942 = vld [vmem:[#allocation9 + $0xa98] sm:$0xff]
    %v4943 = vld [vmem:[#allocation9 + $0xaa0] sm:$0xff]
    %v4944 = vld [vmem:[#allocation9 + $0xaa8] sm:$0xff]
    %v4945 = vld [vmem:[#allocation9 + $0xab0] sm:$0xff]
    %v4946 = vld [vmem:[#allocation9 + $0xab8] sm:$0xff]
    %v4947 = vld [vmem:[#allocation9 + $0xac0] sm:$0xff]
    %v4948 = vld [vmem:[#allocation9 + $0xac8] sm:$0xff]
    %v4949 = vld [vmem:[#allocation9 + $0xad0] sm:$0xff]
    %v4950 = vld [vmem:[#allocation9 + $0xad8] sm:$0xff]
    %v4951 = vld [vmem:[#allocation9 + $0xae0] sm:$0xff]
    %v4952 = vld [vmem:[#allocation9 + $0xae8] sm:$0xff]
    %v4953 = vld [vmem:[#allocation9 + $0xaf0] sm:$0xff]
    %v4954 = vld [vmem:[#allocation9 + $0xaf8] sm:$0xff]
    %v4955 = vld [vmem:[#allocation9 + $0xb00] sm:$0xff]
    %v4956 = vld [vmem:[#allocation9 + $0xb08] sm:$0xff]
    %v4957 = vld [vmem:[#allocation9 + $0xb10] sm:$0xff]
    %v4958 = vld [vmem:[#allocation9 + $0xb18] sm:$0xff]
    %v4959 = vld [vmem:[#allocation9 + $0xb20] sm:$0xff]
    %v4960 = vld [vmem:[#allocation9 + $0xb28] sm:$0xff]
    %v4961 = vld [vmem:[#allocation9 + $0xb30] sm:$0xff]
    %v4962 = vld [vmem:[#allocation9 + $0xb38] sm:$0xff]
    %v4963 = vld [vmem:[#allocation9 + $0xb40] sm:$0xff]
    %v4964 = vld [vmem:[#allocation9 + $0xb48] sm:$0xff]
    %v4965 = vld [vmem:[#allocation9 + $0xb50] sm:$0xff]
    %v4966 = vld [vmem:[#allocation9 + $0xb58] sm:$0xff]
    %v4967 = vld [vmem:[#allocation9 + $0xb60] sm:$0xff]
    %v4968 = vld [vmem:[#allocation9 + $0xb68] sm:$0xff]
    %v4969 = vld [vmem:[#allocation9 + $0xb70] sm:$0xff]
    %v4970 = vld [vmem:[#allocation9 + $0xb78] sm:$0xff]
    %v4971 = vld [vmem:[#allocation9 + $0xb80] sm:$0xff]
    %v4972 = vld [vmem:[#allocation9 + $0xb88] sm:$0xff]
    %v4973 = vld [vmem:[#allocation9 + $0xb90] sm:$0xff]
    %v4974 = vld [vmem:[#allocation9 + $0xb98] sm:$0xff]
    %v4975 = vld [vmem:[#allocation9 + $0xba0] sm:$0xff]
    %v4976 = vld [vmem:[#allocation9 + $0xba8] sm:$0xff]
    %v4977 = vld [vmem:[#allocation9 + $0xbb0] sm:$0xff]
    %v4978 = vld [vmem:[#allocation9 + $0xbb8] sm:$0xff]
    %v4979 = vld [vmem:[#allocation9 + $0xbc0] sm:$0xff]
    %v4980 = vld [vmem:[#allocation9 + $0xbc8] sm:$0xff]
    %v4981 = vld [vmem:[#allocation9 + $0xbd0] sm:$0xff]
    %v4982 = vld [vmem:[#allocation9 + $0xbd8] sm:$0xff]
    %v4983 = vld [vmem:[#allocation9 + $0xbe0] sm:$0xff]
    %v4984 = vld [vmem:[#allocation9 + $0xbe8] sm:$0xff]
    %v4985 = vld [vmem:[#allocation9 + $0xbf0] sm:$0xff]
    %v4986 = vld [vmem:[#allocation9 + $0xbf8] sm:$0xff]
    %v4987 = vld [vmem:[#allocation11] sm:$0xf]
    %v4989 = vperm.slane %v4987, 0
    %v4990 = vperm.slane %v4987, 1
    %v4991 = vperm.slane %v4987, 2
    %v4992 = vperm.slane %v4987, 3
    %v5381 = vunpack.c.l.b16 %v4603
    %v5382 = vunpack.c.h.b16 %v4603
    %v5383 = vunpack.c.l.b16 %v4604
    %v5384 = vunpack.c.h.b16 %v4604
    %v5385 = vunpack.c.l.b16 %v4605
    %v5386 = vunpack.c.h.b16 %v4605
    %v5387 = vunpack.c.l.b16 %v4606
    %v5388 = vunpack.c.h.b16 %v4606
    %v5389 = vunpack.c.l.b16 %v4607
    %v5390 = vunpack.c.h.b16 %v4607
    %v5391 = vunpack.c.l.b16 %v4608
    %v5392 = vunpack.c.h.b16 %v4608
    %v5393 = vunpack.c.l.b16 %v4609
    %v5394 = vunpack.c.h.b16 %v4609
    %v5395 = vunpack.c.l.b16 %v4610
    %v5396 = vunpack.c.h.b16 %v4610
    %v5397 = vunpack.c.l.b16 %v4611
    %v5398 = vunpack.c.h.b16 %v4611
    %v5399 = vunpack.c.l.b16 %v4612
    %v5400 = vunpack.c.h.b16 %v4612
    %v5401 = vunpack.c.l.b16 %v4613
    %v5402 = vunpack.c.h.b16 %v4613
    %v5403 = vunpack.c.l.b16 %v4614
    %v5404 = vunpack.c.h.b16 %v4614
    %v5405 = vunpack.c.l.b16 %v4615
    %v5406 = vunpack.c.h.b16 %v4615
    %v5407 = vunpack.c.l.b16 %v4616
    %v5408 = vunpack.c.h.b16 %v4616
    %v5409 = vunpack.c.l.b16 %v4617
    %v5410 = vunpack.c.h.b16 %v4617
    %v5411 = vunpack.c.l.b16 %v4618
    %v5412 = vunpack.c.h.b16 %v4618
    %v5413 = vunpack.c.l.b16 %v4619
    %v5414 = vunpack.c.h.b16 %v4619
    %v5415 = vunpack.c.l.b16 %v4620
    %v5416 = vunpack.c.h.b16 %v4620
    %v5417 = vunpack.c.l.b16 %v4621
    %v5418 = vunpack.c.h.b16 %v4621
    %v5419 = vunpack.c.l.b16 %v4622
    %v5420 = vunpack.c.h.b16 %v4622
    %v5421 = vunpack.c.l.b16 %v4623
    %v5422 = vunpack.c.h.b16 %v4623
    %v5423 = vunpack.c.l.b16 %v4624
    %v5424 = vunpack.c.h.b16 %v4624
    %v5425 = vunpack.c.l.b16 %v4625
    %v5426 = vunpack.c.h.b16 %v4625
    %v5427 = vunpack.c.l.b16 %v4626
    %v5428 = vunpack.c.h.b16 %v4626
    %v5429 = vunpack.c.l.b16 %v4627
    %v5430 = vunpack.c.h.b16 %v4627
    %v5431 = vunpack.c.l.b16 %v4628
    %v5432 = vunpack.c.h.b16 %v4628
    %v5433 = vunpack.c.l.b16 %v4629
    %v5434 = vunpack.c.h.b16 %v4629
    %v5435 = vunpack.c.l.b16 %v4630
    %v5436 = vunpack.c.h.b16 %v4630
    %v5437 = vunpack.c.l.b16 %v4631
    %v5438 = vunpack.c.h.b16 %v4631
    %v5439 = vunpack.c.l.b16 %v4632
    %v5440 = vunpack.c.h.b16 %v4632
    %v5441 = vunpack.c.l.b16 %v4633
    %v5442 = vunpack.c.h.b16 %v4633
    %v5443 = vunpack.c.l.b16 %v4634
    %v5444 = vunpack.c.h.b16 %v4634
    %v5445 = vunpack.c.l.b16 %v4635
    %v5446 = vunpack.c.h.b16 %v4635
    %v5447 = vunpack.c.l.b16 %v4636
    %v5448 = vunpack.c.h.b16 %v4636
    %v5449 = vunpack.c.l.b16 %v4637
    %v5450 = vunpack.c.h.b16 %v4637
    %v5451 = vunpack.c.l.b16 %v4638
    %v5452 = vunpack.c.h.b16 %v4638
    %v5453 = vunpack.c.l.b16 %v4639
    %v5454 = vunpack.c.h.b16 %v4639
    %v5455 = vunpack.c.l.b16 %v4640
    %v5456 = vunpack.c.h.b16 %v4640
    %v5457 = vunpack.c.l.b16 %v4641
    %v5458 = vunpack.c.h.b16 %v4641
    %v5459 = vunpack.c.l.b16 %v4642
    %v5460 = vunpack.c.h.b16 %v4642
    %v5461 = vunpack.c.l.b16 %v4643
    %v5462 = vunpack.c.h.b16 %v4643
    %v5463 = vunpack.c.l.b16 %v4644
    %v5464 = vunpack.c.h.b16 %v4644
    %v5465 = vunpack.c.l.b16 %v4645
    %v5466 = vunpack.c.h.b16 %v4645
    %v5467 = vunpack.c.l.b16 %v4646
    %v5468 = vunpack.c.h.b16 %v4646
    %v5469 = vunpack.c.l.b16 %v4647
    %v5470 = vunpack.c.h.b16 %v4647
    %v5471 = vunpack.c.l.b16 %v4648
    %v5472 = vunpack.c.h.b16 %v4648
    %v5473 = vunpack.c.l.b16 %v4649
    %v5474 = vunpack.c.h.b16 %v4649
    %v5475 = vunpack.c.l.b16 %v4650
    %v5476 = vunpack.c.h.b16 %v4650
    %v5477 = vunpack.c.l.b16 %v4651
    %v5478 = vunpack.c.h.b16 %v4651
    %v5479 = vunpack.c.l.b16 %v4652
    %v5480 = vunpack.c.h.b16 %v4652
    %v5481 = vunpack.c.l.b16 %v4653
    %v5482 = vunpack.c.h.b16 %v4653
    %v5483 = vunpack.c.l.b16 %v4654
    %v5484 = vunpack.c.h.b16 %v4654
    %v5485 = vunpack.c.l.b16 %v4655
    %v5486 = vunpack.c.h.b16 %v4655
    %v5487 = vunpack.c.l.b16 %v4656
    %v5488 = vunpack.c.h.b16 %v4656
    %v5489 = vunpack.c.l.b16 %v4657
    %v5490 = vunpack.c.h.b16 %v4657
    %v5491 = vunpack.c.l.b16 %v4658
    %v5492 = vunpack.c.h.b16 %v4658
    %v5493 = vunpack.c.l.b16 %v4659
    %v5494 = vunpack.c.h.b16 %v4659
    %v5495 = vunpack.c.l.b16 %v4660
    %v5496 = vunpack.c.h.b16 %v4660
    %v5497 = vunpack.c.l.b16 %v4661
    %v5498 = vunpack.c.h.b16 %v4661
    %v5499 = vunpack.c.l.b16 %v4662
    %v5500 = vunpack.c.h.b16 %v4662
    %v5501 = vunpack.c.l.b16 %v4663
    %v5502 = vunpack.c.h.b16 %v4663
    %v5503 = vunpack.c.l.b16 %v4664
    %v5504 = vunpack.c.h.b16 %v4664
    %v5505 = vunpack.c.l.b16 %v4665
    %v5506 = vunpack.c.h.b16 %v4665
    %v5507 = vunpack.c.l.b16 %v4666
    %v5508 = vunpack.c.h.b16 %v4666
    %v5509 = vunpack.c.l.b16 %v4667
    %v5510 = vunpack.c.h.b16 %v4667
    %v5511 = vunpack.c.l.b16 %v4668
    %v5512 = vunpack.c.h.b16 %v4668
    %v5513 = vunpack.c.l.b16 %v4669
    %v5514 = vunpack.c.h.b16 %v4669
    %v5515 = vunpack.c.l.b16 %v4670
    %v5516 = vunpack.c.h.b16 %v4670
    %v5517 = vunpack.c.l.b16 %v4671
    %v5518 = vunpack.c.h.b16 %v4671
    %v5519 = vunpack.c.l.b16 %v4672
    %v5520 = vunpack.c.h.b16 %v4672
    %v5521 = vunpack.c.l.b16 %v4673
    %v5522 = vunpack.c.h.b16 %v4673
    %v5523 = vunpack.c.l.b16 %v4674
    %v5524 = vunpack.c.h.b16 %v4674
    %v5525 = vunpack.c.l.b16 %v4675
    %v5526 = vunpack.c.h.b16 %v4675
    %v5527 = vunpack.c.l.b16 %v4676
    %v5528 = vunpack.c.h.b16 %v4676
    %v5529 = vunpack.c.l.b16 %v4677
    %v5530 = vunpack.c.h.b16 %v4677
    %v5531 = vunpack.c.l.b16 %v4678
    %v5532 = vunpack.c.h.b16 %v4678
    %v5533 = vunpack.c.l.b16 %v4679
    %v5534 = vunpack.c.h.b16 %v4679
    %v5535 = vunpack.c.l.b16 %v4680
    %v5536 = vunpack.c.h.b16 %v4680
    %v5537 = vunpack.c.l.b16 %v4681
    %v5538 = vunpack.c.h.b16 %v4681
    %v5539 = vunpack.c.l.b16 %v4682
    %v5540 = vunpack.c.h.b16 %v4682
    %v5541 = vunpack.c.l.b16 %v4683
    %v5542 = vunpack.c.h.b16 %v4683
    %v5543 = vunpack.c.l.b16 %v4684
    %v5544 = vunpack.c.h.b16 %v4684
    %v5545 = vunpack.c.l.b16 %v4685
    %v5546 = vunpack.c.h.b16 %v4685
    %v5547 = vunpack.c.l.b16 %v4686
    %v5548 = vunpack.c.h.b16 %v4686
    %v5549 = vunpack.c.l.b16 %v4687
    %v5550 = vunpack.c.h.b16 %v4687
    %v5551 = vunpack.c.l.b16 %v4688
    %v5552 = vunpack.c.h.b16 %v4688
    %v5553 = vunpack.c.l.b16 %v4689
    %v5554 = vunpack.c.h.b16 %v4689
    %v5555 = vunpack.c.l.b16 %v4690
    %v5556 = vunpack.c.h.b16 %v4690
    %v5557 = vunpack.c.l.b16 %v4691
    %v5558 = vunpack.c.h.b16 %v4691
    %v5559 = vunpack.c.l.b16 %v4692
    %v5560 = vunpack.c.h.b16 %v4692
    %v5561 = vunpack.c.l.b16 %v4693
    %v5562 = vunpack.c.h.b16 %v4693
    %v5563 = vunpack.c.l.b16 %v4694
    %v5564 = vunpack.c.h.b16 %v4694
    %v5565 = vunpack.c.l.b16 %v4695
    %v5566 = vunpack.c.h.b16 %v4695
    %v5567 = vunpack.c.l.b16 %v4696
    %v5568 = vunpack.c.h.b16 %v4696
    %v5569 = vunpack.c.l.b16 %v4697
    %v5570 = vunpack.c.h.b16 %v4697
    %v5571 = vunpack.c.l.b16 %v4698
    %v5572 = vunpack.c.h.b16 %v4698
    %v5573 = vunpack.c.l.b16 %v4699
    %v5574 = vunpack.c.h.b16 %v4699
    %v5575 = vunpack.c.l.b16 %v4700
    %v5576 = vunpack.c.h.b16 %v4700
    %v5577 = vunpack.c.l.b16 %v4701
    %v5578 = vunpack.c.h.b16 %v4701
    %v5579 = vunpack.c.l.b16 %v4702
    %v5580 = vunpack.c.h.b16 %v4702
    %v5581 = vunpack.c.l.b16 %v4703
    %v5582 = vunpack.c.h.b16 %v4703
    %v5583 = vunpack.c.l.b16 %v4704
    %v5584 = vunpack.c.h.b16 %v4704
    %v5585 = vunpack.c.l.b16 %v4705
    %v5586 = vunpack.c.h.b16 %v4705
    %v5587 = vunpack.c.l.b16 %v4706
    %v5588 = vunpack.c.h.b16 %v4706
    %v5589 = vunpack.c.l.b16 %v4707
    %v5590 = vunpack.c.h.b16 %v4707
    %v5591 = vunpack.c.l.b16 %v4708
    %v5592 = vunpack.c.h.b16 %v4708
    %v5593 = vunpack.c.l.b16 %v4709
    %v5594 = vunpack.c.h.b16 %v4709
    %v5595 = vunpack.c.l.b16 %v4710
    %v5596 = vunpack.c.h.b16 %v4710
    %v5597 = vunpack.c.l.b16 %v4711
    %v5598 = vunpack.c.h.b16 %v4711
    %v5599 = vunpack.c.l.b16 %v4712
    %v5600 = vunpack.c.h.b16 %v4712
    %v5601 = vunpack.c.l.b16 %v4713
    %v5602 = vunpack.c.h.b16 %v4713
    %v5603 = vunpack.c.l.b16 %v4714
    %v5604 = vunpack.c.h.b16 %v4714
    %v5605 = vunpack.c.l.b16 %v4715
    %v5606 = vunpack.c.h.b16 %v4715
    %v5607 = vunpack.c.l.b16 %v4716
    %v5608 = vunpack.c.h.b16 %v4716
    %v5609 = vunpack.c.l.b16 %v4717
    %v5610 = vunpack.c.h.b16 %v4717
    %v5611 = vunpack.c.l.b16 %v4718
    %v5612 = vunpack.c.h.b16 %v4718
    %v5613 = vunpack.c.l.b16 %v4719
    %v5614 = vunpack.c.h.b16 %v4719
    %v5615 = vunpack.c.l.b16 %v4720
    %v5616 = vunpack.c.h.b16 %v4720
    %v5617 = vunpack.c.l.b16 %v4721
    %v5618 = vunpack.c.h.b16 %v4721
    %v5619 = vunpack.c.l.b16 %v4722
    %v5620 = vunpack.c.h.b16 %v4722
    %v5621 = vunpack.c.l.b16 %v4723
    %v5622 = vunpack.c.h.b16 %v4723
    %v5623 = vunpack.c.l.b16 %v4724
    %v5624 = vunpack.c.h.b16 %v4724
    %v5625 = vunpack.c.l.b16 %v4725
    %v5626 = vunpack.c.h.b16 %v4725
    %v5627 = vunpack.c.l.b16 %v4726
    %v5628 = vunpack.c.h.b16 %v4726
    %v5629 = vunpack.c.l.b16 %v4727
    %v5630 = vunpack.c.h.b16 %v4727
    %v5631 = vunpack.c.l.b16 %v4728
    %v5632 = vunpack.c.h.b16 %v4728
    %v5633 = vunpack.c.l.b16 %v4729
    %v5634 = vunpack.c.h.b16 %v4729
    %v5635 = vunpack.c.l.b16 %v4730
    %v5636 = vunpack.c.h.b16 %v4730
    %v5637 = vunpack.c.l.b16 %v4731
    %v5638 = vunpack.c.h.b16 %v4731
    %v5639 = vunpack.c.l.b16 %v4732
    %v5640 = vunpack.c.h.b16 %v4732
    %v5641 = vunpack.c.l.b16 %v4733
    %v5642 = vunpack.c.h.b16 %v4733
    %v5643 = vunpack.c.l.b16 %v4734
    %v5644 = vunpack.c.h.b16 %v4734
    %v5645 = vunpack.c.l.b16 %v4735
    %v5646 = vunpack.c.h.b16 %v4735
    %v5647 = vunpack.c.l.b16 %v4736
    %v5648 = vunpack.c.h.b16 %v4736
    %v5649 = vunpack.c.l.b16 %v4737
    %v5650 = vunpack.c.h.b16 %v4737
    %v5651 = vunpack.c.l.b16 %v4738
    %v5652 = vunpack.c.h.b16 %v4738
    %v5653 = vunpack.c.l.b16 %v4739
    %v5654 = vunpack.c.h.b16 %v4739
    %v5655 = vunpack.c.l.b16 %v4740
    %v5656 = vunpack.c.h.b16 %v4740
    %v5657 = vunpack.c.l.b16 %v4741
    %v5658 = vunpack.c.h.b16 %v4741
    %v5659 = vunpack.c.l.b16 %v4742
    %v5660 = vunpack.c.h.b16 %v4742
    %v5661 = vunpack.c.l.b16 %v4743
    %v5662 = vunpack.c.h.b16 %v4743
    %v5663 = vunpack.c.l.b16 %v4744
    %v5664 = vunpack.c.h.b16 %v4744
    %v5665 = vunpack.c.l.b16 %v4745
    %v5666 = vunpack.c.h.b16 %v4745
    %v5667 = vunpack.c.l.b16 %v4746
    %v5668 = vunpack.c.h.b16 %v4746
    %v5669 = vunpack.c.l.b16 %v4747
    %v5670 = vunpack.c.h.b16 %v4747
    %v5671 = vunpack.c.l.b16 %v4748
    %v5672 = vunpack.c.h.b16 %v4748
    %v5673 = vunpack.c.l.b16 %v4749
    %v5674 = vunpack.c.h.b16 %v4749
    %v5675 = vunpack.c.l.b16 %v4750
    %v5676 = vunpack.c.h.b16 %v4750
    %v5677 = vunpack.c.l.b16 %v4751
    %v5678 = vunpack.c.h.b16 %v4751
    %v5679 = vunpack.c.l.b16 %v4752
    %v5680 = vunpack.c.h.b16 %v4752
    %v5681 = vunpack.c.l.b16 %v4753
    %v5682 = vunpack.c.h.b16 %v4753
    %v5683 = vunpack.c.l.b16 %v4754
    %v5684 = vunpack.c.h.b16 %v4754
    %v5685 = vunpack.c.l.b16 %v4755
    %v5686 = vunpack.c.h.b16 %v4755
    %v5687 = vunpack.c.l.b16 %v4756
    %v5688 = vunpack.c.h.b16 %v4756
    %v5689 = vunpack.c.l.b16 %v4757
    %v5690 = vunpack.c.h.b16 %v4757
    %v5691 = vunpack.c.l.b16 %v4758
    %v5692 = vunpack.c.h.b16 %v4758
    %v5693 = vunpack.c.l.b16 %v4759
    %v5694 = vunpack.c.h.b16 %v4759
    %v5695 = vunpack.c.l.b16 %v4760
    %v5696 = vunpack.c.h.b16 %v4760
    %v5697 = vunpack.c.l.b16 %v4761
    %v5698 = vunpack.c.h.b16 %v4761
    %v5699 = vunpack.c.l.b16 %v4762
    %v5700 = vunpack.c.h.b16 %v4762
    %v5701 = vunpack.c.l.b16 %v4763
    %v5702 = vunpack.c.h.b16 %v4763
    %v5703 = vunpack.c.l.b16 %v4764
    %v5704 = vunpack.c.h.b16 %v4764
    %v5705 = vunpack.c.l.b16 %v4765
    %v5706 = vunpack.c.h.b16 %v4765
    %v5707 = vunpack.c.l.b16 %v4766
    %v5708 = vunpack.c.h.b16 %v4766
    %v5709 = vunpack.c.l.b16 %v4767
    %v5710 = vunpack.c.h.b16 %v4767
    %v5711 = vunpack.c.l.b16 %v4768
    %v5712 = vunpack.c.h.b16 %v4768
    %v5713 = vunpack.c.l.b16 %v4769
    %v5714 = vunpack.c.h.b16 %v4769
    %v5715 = vunpack.c.l.b16 %v4770
    %v5716 = vunpack.c.h.b16 %v4770
    %v5717 = vunpack.c.l.b16 %v4771
    %v5718 = vunpack.c.h.b16 %v4771
    %v5719 = vunpack.c.l.b16 %v4772
    %v5720 = vunpack.c.h.b16 %v4772
    %v5721 = vunpack.c.l.b16 %v4773
    %v5722 = vunpack.c.h.b16 %v4773
    %v5723 = vunpack.c.l.b16 %v4774
    %v5724 = vunpack.c.h.b16 %v4774
    %v5725 = vunpack.c.l.b16 %v4775
    %v5726 = vunpack.c.h.b16 %v4775
    %v5727 = vunpack.c.l.b16 %v4776
    %v5728 = vunpack.c.h.b16 %v4776
    %v5729 = vunpack.c.l.b16 %v4777
    %v5730 = vunpack.c.h.b16 %v4777
    %v5731 = vunpack.c.l.b16 %v4778
    %v5732 = vunpack.c.h.b16 %v4778
    %v5733 = vunpack.c.l.b16 %v4779
    %v5734 = vunpack.c.h.b16 %v4779
    %v5735 = vunpack.c.l.b16 %v4780
    %v5736 = vunpack.c.h.b16 %v4780
    %v5737 = vunpack.c.l.b16 %v4781
    %v5738 = vunpack.c.h.b16 %v4781
    %v5739 = vunpack.c.l.b16 %v4782
    %v5740 = vunpack.c.h.b16 %v4782
    %v5741 = vunpack.c.l.b16 %v4783
    %v5742 = vunpack.c.h.b16 %v4783
    %v5743 = vunpack.c.l.b16 %v4784
    %v5744 = vunpack.c.h.b16 %v4784
    %v5745 = vunpack.c.l.b16 %v4785
    %v5746 = vunpack.c.h.b16 %v4785
    %v5747 = vunpack.c.l.b16 %v4786
    %v5748 = vunpack.c.h.b16 %v4786
    %v5749 = vunpack.c.l.b16 %v4787
    %v5750 = vunpack.c.h.b16 %v4787
    %v5751 = vunpack.c.l.b16 %v4788
    %v5752 = vunpack.c.h.b16 %v4788
    %v5753 = vunpack.c.l.b16 %v4789
    %v5754 = vunpack.c.h.b16 %v4789
    %v5755 = vunpack.c.l.b16 %v4790
    %v5756 = vunpack.c.h.b16 %v4790
    %v5757 = vunpack.c.l.b16 %v4791
    %v5758 = vunpack.c.h.b16 %v4791
    %v5759 = vunpack.c.l.b16 %v4792
    %v5760 = vunpack.c.h.b16 %v4792
    %v5761 = vunpack.c.l.b16 %v4793
    %v5762 = vunpack.c.h.b16 %v4793
    %v5763 = vunpack.c.l.b16 %v4794
    %v5764 = vunpack.c.h.b16 %v4794
    %v5765 = vunpack.c.l.b16 %v4795
    %v5766 = vunpack.c.h.b16 %v4795
    %v5767 = vunpack.c.l.b16 %v4796
    %v5768 = vunpack.c.h.b16 %v4796
    %v5769 = vunpack.c.l.b16 %v4797
    %v5770 = vunpack.c.h.b16 %v4797
    %v5771 = vunpack.c.l.b16 %v4798
    %v5772 = vunpack.c.h.b16 %v4798
    %v5773 = vunpack.c.l.b16 %v4799
    %v5774 = vunpack.c.h.b16 %v4799
    %v5775 = vunpack.c.l.b16 %v4800
    %v5776 = vunpack.c.h.b16 %v4800
    %v5777 = vunpack.c.l.b16 %v4801
    %v5778 = vunpack.c.h.b16 %v4801
    %v5779 = vunpack.c.l.b16 %v4802
    %v5780 = vunpack.c.h.b16 %v4802
    %v5781 = vunpack.c.l.b16 %v4803
    %v5782 = vunpack.c.h.b16 %v4803
    %v5783 = vunpack.c.l.b16 %v4804
    %v5784 = vunpack.c.h.b16 %v4804
    %v5785 = vunpack.c.l.b16 %v4805
    %v5786 = vunpack.c.h.b16 %v4805
    %v5787 = vunpack.c.l.b16 %v4806
    %v5788 = vunpack.c.h.b16 %v4806
    %v5789 = vunpack.c.l.b16 %v4807
    %v5790 = vunpack.c.h.b16 %v4807
    %v5791 = vunpack.c.l.b16 %v4808
    %v5792 = vunpack.c.h.b16 %v4808
    %v5793 = vunpack.c.l.b16 %v4809
    %v5794 = vunpack.c.h.b16 %v4809
    %v5795 = vunpack.c.l.b16 %v4810
    %v5796 = vunpack.c.h.b16 %v4810
    %v5797 = vunpack.c.l.b16 %v4811
    %v5798 = vunpack.c.h.b16 %v4811
    %v5799 = vunpack.c.l.b16 %v4812
    %v5800 = vunpack.c.h.b16 %v4812
    %v5801 = vunpack.c.l.b16 %v4813
    %v5802 = vunpack.c.h.b16 %v4813
    %v5803 = vunpack.c.l.b16 %v4814
    %v5804 = vunpack.c.h.b16 %v4814
    %v5805 = vunpack.c.l.b16 %v4815
    %v5806 = vunpack.c.h.b16 %v4815
    %v5807 = vunpack.c.l.b16 %v4816
    %v5808 = vunpack.c.h.b16 %v4816
    %v5809 = vunpack.c.l.b16 %v4817
    %v5810 = vunpack.c.h.b16 %v4817
    %v5811 = vunpack.c.l.b16 %v4818
    %v5812 = vunpack.c.h.b16 %v4818
    %v5813 = vunpack.c.l.b16 %v4819
    %v5814 = vunpack.c.h.b16 %v4819
    %v5815 = vunpack.c.l.b16 %v4820
    %v5816 = vunpack.c.h.b16 %v4820
    %v5817 = vunpack.c.l.b16 %v4821
    %v5818 = vunpack.c.h.b16 %v4821
    %v5819 = vunpack.c.l.b16 %v4822
    %v5820 = vunpack.c.h.b16 %v4822
    %v5821 = vunpack.c.l.b16 %v4823
    %v5822 = vunpack.c.h.b16 %v4823
    %v5823 = vunpack.c.l.b16 %v4824
    %v5824 = vunpack.c.h.b16 %v4824
    %v5825 = vunpack.c.l.b16 %v4825
    %v5826 = vunpack.c.h.b16 %v4825
    %v5827 = vunpack.c.l.b16 %v4826
    %v5828 = vunpack.c.h.b16 %v4826
    %v5829 = vunpack.c.l.b16 %v4827
    %v5830 = vunpack.c.h.b16 %v4827
    %v5831 = vunpack.c.l.b16 %v4828
    %v5832 = vunpack.c.h.b16 %v4828
    %v5833 = vunpack.c.l.b16 %v4829
    %v5834 = vunpack.c.h.b16 %v4829
    %v5835 = vunpack.c.l.b16 %v4830
    %v5836 = vunpack.c.h.b16 %v4830
    %v5837 = vunpack.c.l.b16 %v4831
    %v5838 = vunpack.c.h.b16 %v4831
    %v5839 = vunpack.c.l.b16 %v4832
    %v5840 = vunpack.c.h.b16 %v4832
    %v5841 = vunpack.c.l.b16 %v4833
    %v5842 = vunpack.c.h.b16 %v4833
    %v5843 = vunpack.c.l.b16 %v4834
    %v5844 = vunpack.c.h.b16 %v4834
    %v5845 = vunpack.c.l.b16 %v4835
    %v5846 = vunpack.c.h.b16 %v4835
    %v5847 = vunpack.c.l.b16 %v4836
    %v5848 = vunpack.c.h.b16 %v4836
    %v5849 = vunpack.c.l.b16 %v4837
    %v5850 = vunpack.c.h.b16 %v4837
    %v5851 = vunpack.c.l.b16 %v4838
    %v5852 = vunpack.c.h.b16 %v4838
    %v5853 = vunpack.c.l.b16 %v4839
    %v5854 = vunpack.c.h.b16 %v4839
    %v5855 = vunpack.c.l.b16 %v4840
    %v5856 = vunpack.c.h.b16 %v4840
    %v5857 = vunpack.c.l.b16 %v4841
    %v5858 = vunpack.c.h.b16 %v4841
    %v5859 = vunpack.c.l.b16 %v4842
    %v5860 = vunpack.c.h.b16 %v4842
    %v5861 = vunpack.c.l.b16 %v4843
    %v5862 = vunpack.c.h.b16 %v4843
    %v5863 = vunpack.c.l.b16 %v4844
    %v5864 = vunpack.c.h.b16 %v4844
    %v5865 = vunpack.c.l.b16 %v4845
    %v5866 = vunpack.c.h.b16 %v4845
    %v5867 = vunpack.c.l.b16 %v4846
    %v5868 = vunpack.c.h.b16 %v4846
    %v5869 = vunpack.c.l.b16 %v4847
    %v5870 = vunpack.c.h.b16 %v4847
    %v5871 = vunpack.c.l.b16 %v4848
    %v5872 = vunpack.c.h.b16 %v4848
    %v5873 = vunpack.c.l.b16 %v4849
    %v5874 = vunpack.c.h.b16 %v4849
    %v5875 = vunpack.c.l.b16 %v4850
    %v5876 = vunpack.c.h.b16 %v4850
    %v5877 = vunpack.c.l.b16 %v4851
    %v5878 = vunpack.c.h.b16 %v4851
    %v5879 = vunpack.c.l.b16 %v4852
    %v5880 = vunpack.c.h.b16 %v4852
    %v5881 = vunpack.c.l.b16 %v4853
    %v5882 = vunpack.c.h.b16 %v4853
    %v5883 = vunpack.c.l.b16 %v4854
    %v5884 = vunpack.c.h.b16 %v4854
    %v5885 = vunpack.c.l.b16 %v4855
    %v5886 = vunpack.c.h.b16 %v4855
    %v5887 = vunpack.c.l.b16 %v4856
    %v5888 = vunpack.c.h.b16 %v4856
    %v5889 = vunpack.c.l.b16 %v4857
    %v5890 = vunpack.c.h.b16 %v4857
    %v5891 = vunpack.c.l.b16 %v4858
    %v5892 = vunpack.c.h.b16 %v4858
    %v5893 = vunpack.c.l.b16 %v4859
    %v5894 = vunpack.c.h.b16 %v4859
    %v5895 = vunpack.c.l.b16 %v4860
    %v5896 = vunpack.c.h.b16 %v4860
    %v5897 = vunpack.c.l.b16 %v4861
    %v5898 = vunpack.c.h.b16 %v4861
    %v5899 = vunpack.c.l.b16 %v4862
    %v5900 = vunpack.c.h.b16 %v4862
    %v5901 = vunpack.c.l.b16 %v4863
    %v5902 = vunpack.c.h.b16 %v4863
    %v5903 = vunpack.c.l.b16 %v4864
    %v5904 = vunpack.c.h.b16 %v4864
    %v5905 = vunpack.c.l.b16 %v4865
    %v5906 = vunpack.c.h.b16 %v4865
    %v5907 = vunpack.c.l.b16 %v4866
    %v5908 = vunpack.c.h.b16 %v4866
    %v5909 = vunpack.c.l.b16 %v4867
    %v5910 = vunpack.c.h.b16 %v4867
    %v5911 = vunpack.c.l.b16 %v4868
    %v5912 = vunpack.c.h.b16 %v4868
    %v5913 = vunpack.c.l.b16 %v4869
    %v5914 = vunpack.c.h.b16 %v4869
    %v5915 = vunpack.c.l.b16 %v4870
    %v5916 = vunpack.c.h.b16 %v4870
    %v5917 = vunpack.c.l.b16 %v4871
    %v5918 = vunpack.c.h.b16 %v4871
    %v5919 = vunpack.c.l.b16 %v4872
    %v5920 = vunpack.c.h.b16 %v4872
    %v5921 = vunpack.c.l.b16 %v4873
    %v5922 = vunpack.c.h.b16 %v4873
    %v5923 = vunpack.c.l.b16 %v4874
    %v5924 = vunpack.c.h.b16 %v4874
    %v5925 = vunpack.c.l.b16 %v4875
    %v5926 = vunpack.c.h.b16 %v4875
    %v5927 = vunpack.c.l.b16 %v4876
    %v5928 = vunpack.c.h.b16 %v4876
    %v5929 = vunpack.c.l.b16 %v4877
    %v5930 = vunpack.c.h.b16 %v4877
    %v5931 = vunpack.c.l.b16 %v4878
    %v5932 = vunpack.c.h.b16 %v4878
    %v5933 = vunpack.c.l.b16 %v4879
    %v5934 = vunpack.c.h.b16 %v4879
    %v5935 = vunpack.c.l.b16 %v4880
    %v5936 = vunpack.c.h.b16 %v4880
    %v5937 = vunpack.c.l.b16 %v4881
    %v5938 = vunpack.c.h.b16 %v4881
    %v5939 = vunpack.c.l.b16 %v4882
    %v5940 = vunpack.c.h.b16 %v4882
    %v5941 = vunpack.c.l.b16 %v4883
    %v5942 = vunpack.c.h.b16 %v4883
    %v5943 = vunpack.c.l.b16 %v4884
    %v5944 = vunpack.c.h.b16 %v4884
    %v5945 = vunpack.c.l.b16 %v4885
    %v5946 = vunpack.c.h.b16 %v4885
    %v5947 = vunpack.c.l.b16 %v4886
    %v5948 = vunpack.c.h.b16 %v4886
    %v5949 = vunpack.c.l.b16 %v4887
    %v5950 = vunpack.c.h.b16 %v4887
    %v5951 = vunpack.c.l.b16 %v4888
    %v5952 = vunpack.c.h.b16 %v4888
    %v5953 = vunpack.c.l.b16 %v4889
    %v5954 = vunpack.c.h.b16 %v4889
    %v5955 = vunpack.c.l.b16 %v4890
    %v5956 = vunpack.c.h.b16 %v4890
    %v5957 = vunpack.c.l.b16 %v4891
    %v5958 = vunpack.c.h.b16 %v4891
    %v5959 = vunpack.c.l.b16 %v4892
    %v5960 = vunpack.c.h.b16 %v4892
    %v5961 = vunpack.c.l.b16 %v4893
    %v5962 = vunpack.c.h.b16 %v4893
    %v5963 = vunpack.c.l.b16 %v4894
    %v5964 = vunpack.c.h.b16 %v4894
    %v5965 = vunpack.c.l.b16 %v4895
    %v5966 = vunpack.c.h.b16 %v4895
    %v5967 = vunpack.c.l.b16 %v4896
    %v5968 = vunpack.c.h.b16 %v4896
    %v5969 = vunpack.c.l.b16 %v4897
    %v5970 = vunpack.c.h.b16 %v4897
    %v5971 = vunpack.c.l.b16 %v4898
    %v5972 = vunpack.c.h.b16 %v4898
    %v5973 = vunpack.c.l.b16 %v4899
    %v5974 = vunpack.c.h.b16 %v4899
    %v5975 = vunpack.c.l.b16 %v4900
    %v5976 = vunpack.c.h.b16 %v4900
    %v5977 = vunpack.c.l.b16 %v4901
    %v5978 = vunpack.c.h.b16 %v4901
    %v5979 = vunpack.c.l.b16 %v4902
    %v5980 = vunpack.c.h.b16 %v4902
    %v5981 = vunpack.c.l.b16 %v4903
    %v5982 = vunpack.c.h.b16 %v4903
    %v5983 = vunpack.c.l.b16 %v4904
    %v5984 = vunpack.c.h.b16 %v4904
    %v5985 = vunpack.c.l.b16 %v4905
    %v5986 = vunpack.c.h.b16 %v4905
    %v5987 = vunpack.c.l.b16 %v4906
    %v5988 = vunpack.c.h.b16 %v4906
    %v5989 = vunpack.c.l.b16 %v4907
    %v5990 = vunpack.c.h.b16 %v4907
    %v5991 = vunpack.c.l.b16 %v4908
    %v5992 = vunpack.c.h.b16 %v4908
    %v5993 = vunpack.c.l.b16 %v4909
    %v5994 = vunpack.c.h.b16 %v4909
    %v5995 = vunpack.c.l.b16 %v4910
    %v5996 = vunpack.c.h.b16 %v4910
    %v5997 = vunpack.c.l.b16 %v4911
    %v5998 = vunpack.c.h.b16 %v4911
    %v5999 = vunpack.c.l.b16 %v4912
    %v6000 = vunpack.c.h.b16 %v4912
    %v6001 = vunpack.c.l.b16 %v4913
    %v6002 = vunpack.c.h.b16 %v4913
    %v6003 = vunpack.c.l.b16 %v4914
    %v6004 = vunpack.c.h.b16 %v4914
    %v6005 = vunpack.c.l.b16 %v4915
    %v6006 = vunpack.c.h.b16 %v4915
    %v6007 = vunpack.c.l.b16 %v4916
    %v6008 = vunpack.c.h.b16 %v4916
    %v6009 = vunpack.c.l.b16 %v4917
    %v6010 = vunpack.c.h.b16 %v4917
    %v6011 = vunpack.c.l.b16 %v4918
    %v6012 = vunpack.c.h.b16 %v4918
    %v6013 = vunpack.c.l.b16 %v4919
    %v6014 = vunpack.c.h.b16 %v4919
    %v6015 = vunpack.c.l.b16 %v4920
    %v6016 = vunpack.c.h.b16 %v4920
    %v6017 = vunpack.c.l.b16 %v4921
    %v6018 = vunpack.c.h.b16 %v4921
    %v6019 = vunpack.c.l.b16 %v4922
    %v6020 = vunpack.c.h.b16 %v4922
    %v6021 = vunpack.c.l.b16 %v4923
    %v6022 = vunpack.c.h.b16 %v4923
    %v6023 = vunpack.c.l.b16 %v4924
    %v6024 = vunpack.c.h.b16 %v4924
    %v6025 = vunpack.c.l.b16 %v4925
    %v6026 = vunpack.c.h.b16 %v4925
    %v6027 = vunpack.c.l.b16 %v4926
    %v6028 = vunpack.c.h.b16 %v4926
    %v6029 = vunpack.c.l.b16 %v4927
    %v6030 = vunpack.c.h.b16 %v4927
    %v6031 = vunpack.c.l.b16 %v4928
    %v6032 = vunpack.c.h.b16 %v4928
    %v6033 = vunpack.c.l.b16 %v4929
    %v6034 = vunpack.c.h.b16 %v4929
    %v6035 = vunpack.c.l.b16 %v4930
    %v6036 = vunpack.c.h.b16 %v4930
    %v6037 = vunpack.c.l.b16 %v4931
    %v6038 = vunpack.c.h.b16 %v4931
    %v6039 = vunpack.c.l.b16 %v4932
    %v6040 = vunpack.c.h.b16 %v4932
    %v6041 = vunpack.c.l.b16 %v4933
    %v6042 = vunpack.c.h.b16 %v4933
    %v6043 = vunpack.c.l.b16 %v4934
    %v6044 = vunpack.c.h.b16 %v4934
    %v6045 = vunpack.c.l.b16 %v4935
    %v6046 = vunpack.c.h.b16 %v4935
    %v6047 = vunpack.c.l.b16 %v4936
    %v6048 = vunpack.c.h.b16 %v4936
    %v6049 = vunpack.c.l.b16 %v4937
    %v6050 = vunpack.c.h.b16 %v4937
    %v6051 = vunpack.c.l.b16 %v4938
    %v6052 = vunpack.c.h.b16 %v4938
    %v6053 = vunpack.c.l.b16 %v4939
    %v6054 = vunpack.c.h.b16 %v4939
    %v6055 = vunpack.c.l.b16 %v4940
    %v6056 = vunpack.c.h.b16 %v4940
    %v6057 = vunpack.c.l.b16 %v4941
    %v6058 = vunpack.c.h.b16 %v4941
    %v6059 = vunpack.c.l.b16 %v4942
    %v6060 = vunpack.c.h.b16 %v4942
    %v6061 = vunpack.c.l.b16 %v4943
    %v6062 = vunpack.c.h.b16 %v4943
    %v6063 = vunpack.c.l.b16 %v4944
    %v6064 = vunpack.c.h.b16 %v4944
    %v6065 = vunpack.c.l.b16 %v4945
    %v6066 = vunpack.c.h.b16 %v4945
    %v6067 = vunpack.c.l.b16 %v4946
    %v6068 = vunpack.c.h.b16 %v4946
    %v6069 = vunpack.c.l.b16 %v4947
    %v6070 = vunpack.c.h.b16 %v4947
    %v6071 = vunpack.c.l.b16 %v4948
    %v6072 = vunpack.c.h.b16 %v4948
    %v6073 = vunpack.c.l.b16 %v4949
    %v6074 = vunpack.c.h.b16 %v4949
    %v6075 = vunpack.c.l.b16 %v4950
    %v6076 = vunpack.c.h.b16 %v4950
    %v6077 = vunpack.c.l.b16 %v4951
    %v6078 = vunpack.c.h.b16 %v4951
    %v6079 = vunpack.c.l.b16 %v4952
    %v6080 = vunpack.c.h.b16 %v4952
    %v6081 = vunpack.c.l.b16 %v4953
    %v6082 = vunpack.c.h.b16 %v4953
    %v6083 = vunpack.c.l.b16 %v4954
    %v6084 = vunpack.c.h.b16 %v4954
    %v6085 = vunpack.c.l.b16 %v4955
    %v6086 = vunpack.c.h.b16 %v4955
    %v6087 = vunpack.c.l.b16 %v4956
    %v6088 = vunpack.c.h.b16 %v4956
    %v6089 = vunpack.c.l.b16 %v4957
    %v6090 = vunpack.c.h.b16 %v4957
    %v6091 = vunpack.c.l.b16 %v4958
    %v6092 = vunpack.c.h.b16 %v4958
    %v6093 = vunpack.c.l.b16 %v4959
    %v6094 = vunpack.c.h.b16 %v4959
    %v6095 = vunpack.c.l.b16 %v4960
    %v6096 = vunpack.c.h.b16 %v4960
    %v6097 = vunpack.c.l.b16 %v4961
    %v6098 = vunpack.c.h.b16 %v4961
    %v6099 = vunpack.c.l.b16 %v4962
    %v6100 = vunpack.c.h.b16 %v4962
    %v6101 = vunpack.c.l.b16 %v4963
    %v6102 = vunpack.c.h.b16 %v4963
    %v6103 = vunpack.c.l.b16 %v4964
    %v6104 = vunpack.c.h.b16 %v4964
    %v6105 = vunpack.c.l.b16 %v4965
    %v6106 = vunpack.c.h.b16 %v4965
    %v6107 = vunpack.c.l.b16 %v4966
    %v6108 = vunpack.c.h.b16 %v4966
    %v6109 = vunpack.c.l.b16 %v4967
    %v6110 = vunpack.c.h.b16 %v4967
    %v6111 = vunpack.c.l.b16 %v4968
    %v6112 = vunpack.c.h.b16 %v4968
    %v6113 = vunpack.c.l.b16 %v4969
    %v6114 = vunpack.c.h.b16 %v4969
    %v6115 = vunpack.c.l.b16 %v4970
    %v6116 = vunpack.c.h.b16 %v4970
    %v6117 = vunpack.c.l.b16 %v4971
    %v6118 = vunpack.c.h.b16 %v4971
    %v6119 = vunpack.c.l.b16 %v4972
    %v6120 = vunpack.c.h.b16 %v4972
    %v6121 = vunpack.c.l.b16 %v4973
    %v6122 = vunpack.c.h.b16 %v4973
    %v6123 = vunpack.c.l.b16 %v4974
    %v6124 = vunpack.c.h.b16 %v4974
    %v6125 = vunpack.c.l.b16 %v4975
    %v6126 = vunpack.c.h.b16 %v4975
    %v6127 = vunpack.c.l.b16 %v4976
    %v6128 = vunpack.c.h.b16 %v4976
    %v6129 = vunpack.c.l.b16 %v4977
    %v6130 = vunpack.c.h.b16 %v4977
    %v6131 = vunpack.c.l.b16 %v4978
    %v6132 = vunpack.c.h.b16 %v4978
    %v6133 = vunpack.c.l.b16 %v4979
    %v6134 = vunpack.c.h.b16 %v4979
    %v6135 = vunpack.c.l.b16 %v4980
    %v6136 = vunpack.c.h.b16 %v4980
    %v6137 = vunpack.c.l.b16 %v4981
    %v6138 = vunpack.c.h.b16 %v4981
    %v6139 = vunpack.c.l.b16 %v4982
    %v6140 = vunpack.c.h.b16 %v4982
    %v6141 = vunpack.c.l.b16 %v4983
    %v6142 = vunpack.c.h.b16 %v4983
    %v6143 = vunpack.c.l.b16 %v4984
    %v6144 = vunpack.c.h.b16 %v4984
    %v6145 = vunpack.c.l.b16 %v4985
    %v6146 = vunpack.c.h.b16 %v4985
    %v6147 = vunpack.c.l.b16 %v4986
    %v6148 = vunpack.c.h.b16 %v4986
    %v6149 = vpack.c.b16 %v5385, %v5381
    %v6150 = vpack.c.b16 %v5386, %v5382
    %v6151 = vpack.c.b16 %v5387, %v5383
    %v6152 = vpack.c.b16 %v5388, %v5384
    %v6153 = vpack.c.b16 %v5393, %v5389
    %v6154 = vpack.c.b16 %v5394, %v5390
    %v6155 = vpack.c.b16 %v5395, %v5391
    %v6156 = vpack.c.b16 %v5396, %v5392
    %v6157 = vpack.c.b16 %v5401, %v5397
    %v6158 = vpack.c.b16 %v5402, %v5398
    %v6159 = vpack.c.b16 %v5403, %v5399
    %v6160 = vpack.c.b16 %v5404, %v5400
    %v6161 = vpack.c.b16 %v5409, %v5405
    %v6162 = vpack.c.b16 %v5410, %v5406
    %v6163 = vpack.c.b16 %v5411, %v5407
    %v6164 = vpack.c.b16 %v5412, %v5408
    %v6165 = vpack.c.b16 %v5417, %v5413
    %v6166 = vpack.c.b16 %v5418, %v5414
    %v6167 = vpack.c.b16 %v5419, %v5415
    %v6168 = vpack.c.b16 %v5420, %v5416
    %v6169 = vpack.c.b16 %v5425, %v5421
    %v6170 = vpack.c.b16 %v5426, %v5422
    %v6171 = vpack.c.b16 %v5427, %v5423
    %v6172 = vpack.c.b16 %v5428, %v5424
    %v6173 = vpack.c.b16 %v5433, %v5429
    %v6174 = vpack.c.b16 %v5434, %v5430
    %v6175 = vpack.c.b16 %v5435, %v5431
    %v6176 = vpack.c.b16 %v5436, %v5432
    %v6177 = vpack.c.b16 %v5441, %v5437
    %v6178 = vpack.c.b16 %v5442, %v5438
    %v6179 = vpack.c.b16 %v5443, %v5439
    %v6180 = vpack.c.b16 %v5444, %v5440
    %v6181 = vpack.c.b16 %v5449, %v5445
    %v6182 = vpack.c.b16 %v5450, %v5446
    %v6183 = vpack.c.b16 %v5451, %v5447
    %v6184 = vpack.c.b16 %v5452, %v5448
    %v6185 = vpack.c.b16 %v5457, %v5453
    %v6186 = vpack.c.b16 %v5458, %v5454
    %v6187 = vpack.c.b16 %v5459, %v5455
    %v6188 = vpack.c.b16 %v5460, %v5456
    %v6189 = vpack.c.b16 %v5465, %v5461
    %v6190 = vpack.c.b16 %v5466, %v5462
    %v6191 = vpack.c.b16 %v5467, %v5463
    %v6192 = vpack.c.b16 %v5468, %v5464
    %v6193 = vpack.c.b16 %v5473, %v5469
    %v6194 = vpack.c.b16 %v5474, %v5470
    %v6195 = vpack.c.b16 %v5475, %v5471
    %v6196 = vpack.c.b16 %v5476, %v5472
    %v6197 = vpack.c.b16 %v5481, %v5477
    %v6198 = vpack.c.b16 %v5482, %v5478
    %v6199 = vpack.c.b16 %v5483, %v5479
    %v6200 = vpack.c.b16 %v5484, %v5480
    %v6201 = vpack.c.b16 %v5489, %v5485
    %v6202 = vpack.c.b16 %v5490, %v5486
    %v6203 = vpack.c.b16 %v5491, %v5487
    %v6204 = vpack.c.b16 %v5492, %v5488
    %v6205 = vpack.c.b16 %v5497, %v5493
    %v6206 = vpack.c.b16 %v5498, %v5494
    %v6207 = vpack.c.b16 %v5499, %v5495
    %v6208 = vpack.c.b16 %v5500, %v5496
    %v6209 = vpack.c.b16 %v5505, %v5501
    %v6210 = vpack.c.b16 %v5506, %v5502
    %v6211 = vpack.c.b16 %v5507, %v5503
    %v6212 = vpack.c.b16 %v5508, %v5504
    %v6213 = vpack.c.b16 %v5513, %v5509
    %v6214 = vpack.c.b16 %v5514, %v5510
    %v6215 = vpack.c.b16 %v5515, %v5511
    %v6216 = vpack.c.b16 %v5516, %v5512
    %v6217 = vpack.c.b16 %v5521, %v5517
    %v6218 = vpack.c.b16 %v5522, %v5518
    %v6219 = vpack.c.b16 %v5523, %v5519
    %v6220 = vpack.c.b16 %v5524, %v5520
    %v6221 = vpack.c.b16 %v5529, %v5525
    %v6222 = vpack.c.b16 %v5530, %v5526
    %v6223 = vpack.c.b16 %v5531, %v5527
    %v6224 = vpack.c.b16 %v5532, %v5528
    %v6225 = vpack.c.b16 %v5537, %v5533
    %v6226 = vpack.c.b16 %v5538, %v5534
    %v6227 = vpack.c.b16 %v5539, %v5535
    %v6228 = vpack.c.b16 %v5540, %v5536
    %v6229 = vpack.c.b16 %v5545, %v5541
    %v6230 = vpack.c.b16 %v5546, %v5542
    %v6231 = vpack.c.b16 %v5547, %v5543
    %v6232 = vpack.c.b16 %v5548, %v5544
    %v6233 = vpack.c.b16 %v5553, %v5549
    %v6234 = vpack.c.b16 %v5554, %v5550
    %v6235 = vpack.c.b16 %v5555, %v5551
    %v6236 = vpack.c.b16 %v5556, %v5552
    %v6237 = vpack.c.b16 %v5561, %v5557
    %v6238 = vpack.c.b16 %v5562, %v5558
    %v6239 = vpack.c.b16 %v5563, %v5559
    %v6240 = vpack.c.b16 %v5564, %v5560
    %v6241 = vpack.c.b16 %v5569, %v5565
    %v6242 = vpack.c.b16 %v5570, %v5566
    %v6243 = vpack.c.b16 %v5571, %v5567
    %v6244 = vpack.c.b16 %v5572, %v5568
    %v6245 = vpack.c.b16 %v5577, %v5573
    %v6246 = vpack.c.b16 %v5578, %v5574
    %v6247 = vpack.c.b16 %v5579, %v5575
    %v6248 = vpack.c.b16 %v5580, %v5576
    %v6249 = vpack.c.b16 %v5585, %v5581
    %v6250 = vpack.c.b16 %v5586, %v5582
    %v6251 = vpack.c.b16 %v5587, %v5583
    %v6252 = vpack.c.b16 %v5588, %v5584
    %v6253 = vpack.c.b16 %v5593, %v5589
    %v6254 = vpack.c.b16 %v5594, %v5590
    %v6255 = vpack.c.b16 %v5595, %v5591
    %v6256 = vpack.c.b16 %v5596, %v5592
    %v6257 = vpack.c.b16 %v5601, %v5597
    %v6258 = vpack.c.b16 %v5602, %v5598
    %v6259 = vpack.c.b16 %v5603, %v5599
    %v6260 = vpack.c.b16 %v5604, %v5600
    %v6261 = vpack.c.b16 %v5609, %v5605
    %v6262 = vpack.c.b16 %v5610, %v5606
    %v6263 = vpack.c.b16 %v5611, %v5607
    %v6264 = vpack.c.b16 %v5612, %v5608
    %v6265 = vpack.c.b16 %v5617, %v5613
    %v6266 = vpack.c.b16 %v5618, %v5614
    %v6267 = vpack.c.b16 %v5619, %v5615
    %v6268 = vpack.c.b16 %v5620, %v5616
    %v6269 = vpack.c.b16 %v5625, %v5621
    %v6270 = vpack.c.b16 %v5626, %v5622
    %v6271 = vpack.c.b16 %v5627, %v5623
    %v6272 = vpack.c.b16 %v5628, %v5624
    %v6273 = vpack.c.b16 %v5633, %v5629
    %v6274 = vpack.c.b16 %v5634, %v5630
    %v6275 = vpack.c.b16 %v5635, %v5631
    %v6276 = vpack.c.b16 %v5636, %v5632
    %v6277 = vpack.c.b16 %v5641, %v5637
    %v6278 = vpack.c.b16 %v5642, %v5638
    %v6279 = vpack.c.b16 %v5643, %v5639
    %v6280 = vpack.c.b16 %v5644, %v5640
    %v6281 = vpack.c.b16 %v5649, %v5645
    %v6282 = vpack.c.b16 %v5650, %v5646
    %v6283 = vpack.c.b16 %v5651, %v5647
    %v6284 = vpack.c.b16 %v5652, %v5648
    %v6285 = vpack.c.b16 %v5657, %v5653
    %v6286 = vpack.c.b16 %v5658, %v5654
    %v6287 = vpack.c.b16 %v5659, %v5655
    %v6288 = vpack.c.b16 %v5660, %v5656
    %v6289 = vpack.c.b16 %v5665, %v5661
    %v6290 = vpack.c.b16 %v5666, %v5662
    %v6291 = vpack.c.b16 %v5667, %v5663
    %v6292 = vpack.c.b16 %v5668, %v5664
    %v6293 = vpack.c.b16 %v5673, %v5669
    %v6294 = vpack.c.b16 %v5674, %v5670
    %v6295 = vpack.c.b16 %v5675, %v5671
    %v6296 = vpack.c.b16 %v5676, %v5672
    %v6297 = vpack.c.b16 %v5681, %v5677
    %v6298 = vpack.c.b16 %v5682, %v5678
    %v6299 = vpack.c.b16 %v5683, %v5679
    %v6300 = vpack.c.b16 %v5684, %v5680
    %v6301 = vpack.c.b16 %v5689, %v5685
    %v6302 = vpack.c.b16 %v5690, %v5686
    %v6303 = vpack.c.b16 %v5691, %v5687
    %v6304 = vpack.c.b16 %v5692, %v5688
    %v6305 = vpack.c.b16 %v5697, %v5693
    %v6306 = vpack.c.b16 %v5698, %v5694
    %v6307 = vpack.c.b16 %v5699, %v5695
    %v6308 = vpack.c.b16 %v5700, %v5696
    %v6309 = vpack.c.b16 %v5705, %v5701
    %v6310 = vpack.c.b16 %v5706, %v5702
    %v6311 = vpack.c.b16 %v5707, %v5703
    %v6312 = vpack.c.b16 %v5708, %v5704
    %v6313 = vpack.c.b16 %v5713, %v5709
    %v6314 = vpack.c.b16 %v5714, %v5710
    %v6315 = vpack.c.b16 %v5715, %v5711
    %v6316 = vpack.c.b16 %v5716, %v5712
    %v6317 = vpack.c.b16 %v5721, %v5717
    %v6318 = vpack.c.b16 %v5722, %v5718
    %v6319 = vpack.c.b16 %v5723, %v5719
    %v6320 = vpack.c.b16 %v5724, %v5720
    %v6321 = vpack.c.b16 %v5729, %v5725
    %v6322 = vpack.c.b16 %v5730, %v5726
    %v6323 = vpack.c.b16 %v5731, %v5727
    %v6324 = vpack.c.b16 %v5732, %v5728
    %v6325 = vpack.c.b16 %v5737, %v5733
    %v6326 = vpack.c.b16 %v5738, %v5734
    %v6327 = vpack.c.b16 %v5739, %v5735
    %v6328 = vpack.c.b16 %v5740, %v5736
    %v6329 = vpack.c.b16 %v5745, %v5741
    %v6330 = vpack.c.b16 %v5746, %v5742
    %v6331 = vpack.c.b16 %v5747, %v5743
    %v6332 = vpack.c.b16 %v5748, %v5744
    %v6333 = vpack.c.b16 %v5753, %v5749
    %v6334 = vpack.c.b16 %v5754, %v5750
    %v6335 = vpack.c.b16 %v5755, %v5751
    %v6336 = vpack.c.b16 %v5756, %v5752
    %v6337 = vpack.c.b16 %v5761, %v5757
    %v6338 = vpack.c.b16 %v5762, %v5758
    %v6339 = vpack.c.b16 %v5763, %v5759
    %v6340 = vpack.c.b16 %v5764, %v5760
    %v6341 = vpack.c.b16 %v5769, %v5765
    %v6342 = vpack.c.b16 %v5770, %v5766
    %v6343 = vpack.c.b16 %v5771, %v5767
    %v6344 = vpack.c.b16 %v5772, %v5768
    %v6345 = vpack.c.b16 %v5777, %v5773
    %v6346 = vpack.c.b16 %v5778, %v5774
    %v6347 = vpack.c.b16 %v5779, %v5775
    %v6348 = vpack.c.b16 %v5780, %v5776
    %v6349 = vpack.c.b16 %v5785, %v5781
    %v6350 = vpack.c.b16 %v5786, %v5782
    %v6351 = vpack.c.b16 %v5787, %v5783
    %v6352 = vpack.c.b16 %v5788, %v5784
    %v6353 = vpack.c.b16 %v5793, %v5789
    %v6354 = vpack.c.b16 %v5794, %v5790
    %v6355 = vpack.c.b16 %v5795, %v5791
    %v6356 = vpack.c.b16 %v5796, %v5792
    %v6357 = vpack.c.b16 %v5801, %v5797
    %v6358 = vpack.c.b16 %v5802, %v5798
    %v6359 = vpack.c.b16 %v5803, %v5799
    %v6360 = vpack.c.b16 %v5804, %v5800
    %v6361 = vpack.c.b16 %v5809, %v5805
    %v6362 = vpack.c.b16 %v5810, %v5806
    %v6363 = vpack.c.b16 %v5811, %v5807
    %v6364 = vpack.c.b16 %v5812, %v5808
    %v6365 = vpack.c.b16 %v5817, %v5813
    %v6366 = vpack.c.b16 %v5818, %v5814
    %v6367 = vpack.c.b16 %v5819, %v5815
    %v6368 = vpack.c.b16 %v5820, %v5816
    %v6369 = vpack.c.b16 %v5825, %v5821
    %v6370 = vpack.c.b16 %v5826, %v5822
    %v6371 = vpack.c.b16 %v5827, %v5823
    %v6372 = vpack.c.b16 %v5828, %v5824
    %v6373 = vpack.c.b16 %v5833, %v5829
    %v6374 = vpack.c.b16 %v5834, %v5830
    %v6375 = vpack.c.b16 %v5835, %v5831
    %v6376 = vpack.c.b16 %v5836, %v5832
    %v6377 = vpack.c.b16 %v5841, %v5837
    %v6378 = vpack.c.b16 %v5842, %v5838
    %v6379 = vpack.c.b16 %v5843, %v5839
    %v6380 = vpack.c.b16 %v5844, %v5840
    %v6381 = vpack.c.b16 %v5849, %v5845
    %v6382 = vpack.c.b16 %v5850, %v5846
    %v6383 = vpack.c.b16 %v5851, %v5847
    %v6384 = vpack.c.b16 %v5852, %v5848
    %v6385 = vpack.c.b16 %v5857, %v5853
    %v6386 = vpack.c.b16 %v5858, %v5854
    %v6387 = vpack.c.b16 %v5859, %v5855
    %v6388 = vpack.c.b16 %v5860, %v5856
    %v6389 = vpack.c.b16 %v5865, %v5861
    %v6390 = vpack.c.b16 %v5866, %v5862
    %v6391 = vpack.c.b16 %v5867, %v5863
    %v6392 = vpack.c.b16 %v5868, %v5864
    %v6393 = vpack.c.b16 %v5873, %v5869
    %v6394 = vpack.c.b16 %v5874, %v5870
    %v6395 = vpack.c.b16 %v5875, %v5871
    %v6396 = vpack.c.b16 %v5876, %v5872
    %v6397 = vpack.c.b16 %v5881, %v5877
    %v6398 = vpack.c.b16 %v5882, %v5878
    %v6399 = vpack.c.b16 %v5883, %v5879
    %v6400 = vpack.c.b16 %v5884, %v5880
    %v6401 = vpack.c.b16 %v5889, %v5885
    %v6402 = vpack.c.b16 %v5890, %v5886
    %v6403 = vpack.c.b16 %v5891, %v5887
    %v6404 = vpack.c.b16 %v5892, %v5888
    %v6405 = vpack.c.b16 %v5897, %v5893
    %v6406 = vpack.c.b16 %v5898, %v5894
    %v6407 = vpack.c.b16 %v5899, %v5895
    %v6408 = vpack.c.b16 %v5900, %v5896
    %v6409 = vpack.c.b16 %v5905, %v5901
    %v6410 = vpack.c.b16 %v5906, %v5902
    %v6411 = vpack.c.b16 %v5907, %v5903
    %v6412 = vpack.c.b16 %v5908, %v5904
    %v6413 = vpack.c.b16 %v5913, %v5909
    %v6414 = vpack.c.b16 %v5914, %v5910
    %v6415 = vpack.c.b16 %v5915, %v5911
    %v6416 = vpack.c.b16 %v5916, %v5912
    %v6417 = vpack.c.b16 %v5921, %v5917
    %v6418 = vpack.c.b16 %v5922, %v5918
    %v6419 = vpack.c.b16 %v5923, %v5919
    %v6420 = vpack.c.b16 %v5924, %v5920
    %v6421 = vpack.c.b16 %v5929, %v5925
    %v6422 = vpack.c.b16 %v5930, %v5926
    %v6423 = vpack.c.b16 %v5931, %v5927
    %v6424 = vpack.c.b16 %v5932, %v5928
    %v6425 = vpack.c.b16 %v5937, %v5933
    %v6426 = vpack.c.b16 %v5938, %v5934
    %v6427 = vpack.c.b16 %v5939, %v5935
    %v6428 = vpack.c.b16 %v5940, %v5936
    %v6429 = vpack.c.b16 %v5945, %v5941
    %v6430 = vpack.c.b16 %v5946, %v5942
    %v6431 = vpack.c.b16 %v5947, %v5943
    %v6432 = vpack.c.b16 %v5948, %v5944
    %v6433 = vpack.c.b16 %v5953, %v5949
    %v6434 = vpack.c.b16 %v5954, %v5950
    %v6435 = vpack.c.b16 %v5955, %v5951
    %v6436 = vpack.c.b16 %v5956, %v5952
    %v6437 = vpack.c.b16 %v5961, %v5957
    %v6438 = vpack.c.b16 %v5962, %v5958
    %v6439 = vpack.c.b16 %v5963, %v5959
    %v6440 = vpack.c.b16 %v5964, %v5960
    %v6441 = vpack.c.b16 %v5969, %v5965
    %v6442 = vpack.c.b16 %v5970, %v5966
    %v6443 = vpack.c.b16 %v5971, %v5967
    %v6444 = vpack.c.b16 %v5972, %v5968
    %v6445 = vpack.c.b16 %v5977, %v5973
    %v6446 = vpack.c.b16 %v5978, %v5974
    %v6447 = vpack.c.b16 %v5979, %v5975
    %v6448 = vpack.c.b16 %v5980, %v5976
    %v6449 = vpack.c.b16 %v5985, %v5981
    %v6450 = vpack.c.b16 %v5986, %v5982
    %v6451 = vpack.c.b16 %v5987, %v5983
    %v6452 = vpack.c.b16 %v5988, %v5984
    %v6453 = vpack.c.b16 %v5993, %v5989
    %v6454 = vpack.c.b16 %v5994, %v5990
    %v6455 = vpack.c.b16 %v5995, %v5991
    %v6456 = vpack.c.b16 %v5996, %v5992
    %v6457 = vpack.c.b16 %v6001, %v5997
    %v6458 = vpack.c.b16 %v6002, %v5998
    %v6459 = vpack.c.b16 %v6003, %v5999
    %v6460 = vpack.c.b16 %v6004, %v6000
    %v6461 = vpack.c.b16 %v6009, %v6005
    %v6462 = vpack.c.b16 %v6010, %v6006
    %v6463 = vpack.c.b16 %v6011, %v6007
    %v6464 = vpack.c.b16 %v6012, %v6008
    %v6465 = vpack.c.b16 %v6017, %v6013
    %v6466 = vpack.c.b16 %v6018, %v6014
    %v6467 = vpack.c.b16 %v6019, %v6015
    %v6468 = vpack.c.b16 %v6020, %v6016
    %v6469 = vpack.c.b16 %v6025, %v6021
    %v6470 = vpack.c.b16 %v6026, %v6022
    %v6471 = vpack.c.b16 %v6027, %v6023
    %v6472 = vpack.c.b16 %v6028, %v6024
    %v6473 = vpack.c.b16 %v6033, %v6029
    %v6474 = vpack.c.b16 %v6034, %v6030
    %v6475 = vpack.c.b16 %v6035, %v6031
    %v6476 = vpack.c.b16 %v6036, %v6032
    %v6477 = vpack.c.b16 %v6041, %v6037
    %v6478 = vpack.c.b16 %v6042, %v6038
    %v6479 = vpack.c.b16 %v6043, %v6039
    %v6480 = vpack.c.b16 %v6044, %v6040
    %v6481 = vpack.c.b16 %v6049, %v6045
    %v6482 = vpack.c.b16 %v6050, %v6046
    %v6483 = vpack.c.b16 %v6051, %v6047
    %v6484 = vpack.c.b16 %v6052, %v6048
    %v6485 = vpack.c.b16 %v6057, %v6053
    %v6486 = vpack.c.b16 %v6058, %v6054
    %v6487 = vpack.c.b16 %v6059, %v6055
    %v6488 = vpack.c.b16 %v6060, %v6056
    %v6489 = vpack.c.b16 %v6065, %v6061
    %v6490 = vpack.c.b16 %v6066, %v6062
    %v6491 = vpack.c.b16 %v6067, %v6063
    %v6492 = vpack.c.b16 %v6068, %v6064
    %v6493 = vpack.c.b16 %v6073, %v6069
    %v6494 = vpack.c.b16 %v6074, %v6070
    %v6495 = vpack.c.b16 %v6075, %v6071
    %v6496 = vpack.c.b16 %v6076, %v6072
    %v6497 = vpack.c.b16 %v6081, %v6077
    %v6498 = vpack.c.b16 %v6082, %v6078
    %v6499 = vpack.c.b16 %v6083, %v6079
    %v6500 = vpack.c.b16 %v6084, %v6080
    %v6501 = vpack.c.b16 %v6089, %v6085
    %v6502 = vpack.c.b16 %v6090, %v6086
    %v6503 = vpack.c.b16 %v6091, %v6087
    %v6504 = vpack.c.b16 %v6092, %v6088
    %v6505 = vpack.c.b16 %v6097, %v6093
    %v6506 = vpack.c.b16 %v6098, %v6094
    %v6507 = vpack.c.b16 %v6099, %v6095
    %v6508 = vpack.c.b16 %v6100, %v6096
    %v6509 = vpack.c.b16 %v6105, %v6101
    %v6510 = vpack.c.b16 %v6106, %v6102
    %v6511 = vpack.c.b16 %v6107, %v6103
    %v6512 = vpack.c.b16 %v6108, %v6104
    %v6513 = vpack.c.b16 %v6113, %v6109
    %v6514 = vpack.c.b16 %v6114, %v6110
    %v6515 = vpack.c.b16 %v6115, %v6111
    %v6516 = vpack.c.b16 %v6116, %v6112
    %v6517 = vpack.c.b16 %v6121, %v6117
    %v6518 = vpack.c.b16 %v6122, %v6118
    %v6519 = vpack.c.b16 %v6123, %v6119
    %v6520 = vpack.c.b16 %v6124, %v6120
    %v6521 = vpack.c.b16 %v6129, %v6125
    %v6522 = vpack.c.b16 %v6130, %v6126
    %v6523 = vpack.c.b16 %v6131, %v6127
    %v6524 = vpack.c.b16 %v6132, %v6128
    %v6525 = vpack.c.b16 %v6137, %v6133
    %v6526 = vpack.c.b16 %v6138, %v6134
    %v6527 = vpack.c.b16 %v6139, %v6135
    %v6528 = vpack.c.b16 %v6140, %v6136
    %v6529 = vpack.c.b16 %v6145, %v6141
    %v6530 = vpack.c.b16 %v6146, %v6142
    %v6531 = vpack.c.b16 %v6147, %v6143
    %v6532 = vpack.c.b16 %v6148, %v6144
    %6917 = vmatpush.bf16.msra.mxu0 %v6177
    %6918 = vmatpush.bf16.msra.mxu0 %v6173
    %6919 = vmatpush.bf16.msra.mxu0 %v6169
    %6920 = vmatpush.bf16.msra.mxu0 %v6165
    %6921 = vmatpush.bf16.msra.mxu0 %v6161
    %6922 = vmatpush.bf16.msra.mxu0 %v6157
    %6923 = vmatpush.bf16.msra.mxu0 %v6153
    %6924 = vmatpush.bf16.msra.mxu0 %v6149
    %6925 = vmatmul.bf16.gmra.mxu0 %v4591
    %v6926 = vpop.f32.mrf.mxu0
    %v6927 = vadd.f32 %v4989, %v6926
    %v6928 = vpop.f32.mrf.mxu0
    %6929 = vdwg.mxu0
    %6930 = vmatpush.bf16.msra.mxu0 %v6209
    %6931 = vmatpush.bf16.msra.mxu0 %v6205
    %6932 = vmatpush.bf16.msra.mxu0 %v6201
    %6933 = vmatpush.bf16.msra.mxu0 %v6197
    %6934 = vmatpush.bf16.msra.mxu0 %v6193
    %6935 = vmatpush.bf16.msra.mxu0 %v6189
    %6936 = vmatpush.bf16.msra.mxu0 %v6185
    %6937 = vmatpush.bf16.msra.mxu0 %v6181
    %6938 = vmatmul.bf16.gmra.mxu0 %v4592
    %v6939 = vpop.f32.mrf.mxu0
    %v6940 = vadd.f32 %v6927, %v6939
    %v6941 = vpop.f32.mrf.mxu0
    %6942 = vdwg.mxu0
    %6943 = vmatpush.bf16.msra.mxu0 %v6241
    %6944 = vmatpush.bf16.msra.mxu0 %v6237
    %6945 = vmatpush.bf16.msra.mxu0 %v6233
    %6946 = vmatpush.bf16.msra.mxu0 %v6229
    %6947 = vmatpush.bf16.msra.mxu0 %v6225
    %6948 = vmatpush.bf16.msra.mxu0 %v6221
    %6949 = vmatpush.bf16.msra.mxu0 %v6217
    %6950 = vmatpush.bf16.msra.mxu0 %v6213
    %6951 = vmatmul.bf16.gmra.mxu0 %v4593
    %v6952 = vpop.f32.mrf.mxu0
    %v6953 = vadd.f32 %v6940, %v6952
    %v6954 = vpop.f32.mrf.mxu0
    %6955 = vdwg.mxu0
    %6956 = vmatpush.bf16.msra.mxu0 %v6273
    %6957 = vmatpush.bf16.msra.mxu0 %v6269
    %6958 = vmatpush.bf16.msra.mxu0 %v6265
    %6959 = vmatpush.bf16.msra.mxu0 %v6261
    %6960 = vmatpush.bf16.msra.mxu0 %v6257
    %6961 = vmatpush.bf16.msra.mxu0 %v6253
    %6962 = vmatpush.bf16.msra.mxu0 %v6249
    %6963 = vmatpush.bf16.msra.mxu0 %v6245
    %6964 = vmatmul.bf16.gmra.mxu0 %v4594
    %v6965 = vpop.f32.mrf.mxu0
    %v6966 = vadd.f32 %v6953, %v6965
    %v6967 = vpop.f32.mrf.mxu0
    %6968 = vdwg.mxu0
    %6969 = vmatpush.bf16.msra.mxu0 %v6305
    %6970 = vmatpush.bf16.msra.mxu0 %v6301
    %6971 = vmatpush.bf16.msra.mxu0 %v6297
    %6972 = vmatpush.bf16.msra.mxu0 %v6293
    %6973 = vmatpush.bf16.msra.mxu0 %v6289
    %6974 = vmatpush.bf16.msra.mxu0 %v6285
    %6975 = vmatpush.bf16.msra.mxu0 %v6281
    %6976 = vmatpush.bf16.msra.mxu0 %v6277
    %6977 = vmatmul.bf16.gmra.mxu0 %v4595
    %v6978 = vpop.f32.mrf.mxu0
    %v6979 = vadd.f32 %v6966, %v6978
    %v6980 = vpop.f32.mrf.mxu0
    %6981 = vdwg.mxu0
    %6982 = vmatpush.bf16.msra.mxu0 %v6337
    %6983 = vmatpush.bf16.msra.mxu0 %v6333
    %6984 = vmatpush.bf16.msra.mxu0 %v6329
    %6985 = vmatpush.bf16.msra.mxu0 %v6325
    %6986 = vmatpush.bf16.msra.mxu0 %v6321
    %6987 = vmatpush.bf16.msra.mxu0 %v6317
    %6988 = vmatpush.bf16.msra.mxu0 %v6313
    %6989 = vmatpush.bf16.msra.mxu0 %v6309
    %6990 = vmatmul.bf16.gmra.mxu0 %v4596
    %v6991 = vpop.f32.mrf.mxu0
    %v6992 = vadd.f32 %v6979, %v6991
    %v6993 = vpop.f32.mrf.mxu0
    %6994 = vdwg.mxu0
    %6995 = vmatpush.bf16.msra.mxu0 %v6369
    %6996 = vmatpush.bf16.msra.mxu0 %v6365
    %6997 = vmatpush.bf16.msra.mxu0 %v6361
    %6998 = vmatpush.bf16.msra.mxu0 %v6357
    %6999 = vmatpush.bf16.msra.mxu0 %v6353
    %7000 = vmatpush.bf16.msra.mxu0 %v6349
    %7001 = vmatpush.bf16.msra.mxu0 %v6345
    %7002 = vmatpush.bf16.msra.mxu0 %v6341
    %7003 = vmatmul.bf16.gmra.mxu0 %v4597
    %v7004 = vpop.f32.mrf.mxu0
    %v7005 = vadd.f32 %v6992, %v7004
    %v7006 = vpop.f32.mrf.mxu0
    %7007 = vdwg.mxu0
    %7008 = vmatpush.bf16.msra.mxu0 %v6401
    %7009 = vmatpush.bf16.msra.mxu0 %v6397
    %7010 = vmatpush.bf16.msra.mxu0 %v6393
    %7011 = vmatpush.bf16.msra.mxu0 %v6389
    %7012 = vmatpush.bf16.msra.mxu0 %v6385
    %7013 = vmatpush.bf16.msra.mxu0 %v6381
    %7014 = vmatpush.bf16.msra.mxu0 %v6377
    %7015 = vmatpush.bf16.msra.mxu0 %v6373
    %7016 = vmatmul.bf16.gmra.mxu0 %v4598
    %v7017 = vpop.f32.mrf.mxu0
    %v7018 = vadd.f32 %v7005, %v7017
    %v7019 = vpop.f32.mrf.mxu0
    %7020 = vdwg.mxu0
    %7021 = vmatpush.bf16.msra.mxu0 %v6433
    %7022 = vmatpush.bf16.msra.mxu0 %v6429
    %7023 = vmatpush.bf16.msra.mxu0 %v6425
    %7024 = vmatpush.bf16.msra.mxu0 %v6421
    %7025 = vmatpush.bf16.msra.mxu0 %v6417
    %7026 = vmatpush.bf16.msra.mxu0 %v6413
    %7027 = vmatpush.bf16.msra.mxu0 %v6409
    %7028 = vmatpush.bf16.msra.mxu0 %v6405
    %7029 = vmatmul.bf16.gmra.mxu0 %v4599
    %v7030 = vpop.f32.mrf.mxu0
    %v7031 = vadd.f32 %v7018, %v7030
    %v7032 = vpop.f32.mrf.mxu0
    %7033 = vdwg.mxu0
    %7034 = vmatpush.bf16.msra.mxu0 %v6465
    %7035 = vmatpush.bf16.msra.mxu0 %v6461
    %7036 = vmatpush.bf16.msra.mxu0 %v6457
    %7037 = vmatpush.bf16.msra.mxu0 %v6453
    %7038 = vmatpush.bf16.msra.mxu0 %v6449
    %7039 = vmatpush.bf16.msra.mxu0 %v6445
    %7040 = vmatpush.bf16.msra.mxu0 %v6441
    %7041 = vmatpush.bf16.msra.mxu0 %v6437
    %7042 = vmatmul.bf16.gmra.mxu0 %v4600
    %v7043 = vpop.f32.mrf.mxu0
    %v7044 = vadd.f32 %v7031, %v7043
    %v7045 = vpop.f32.mrf.mxu0
    %7046 = vdwg.mxu0
    %7047 = vmatpush.bf16.msra.mxu0 %v6497
    %7048 = vmatpush.bf16.msra.mxu0 %v6493
    %7049 = vmatpush.bf16.msra.mxu0 %v6489
    %7050 = vmatpush.bf16.msra.mxu0 %v6485
    %7051 = vmatpush.bf16.msra.mxu0 %v6481
    %7052 = vmatpush.bf16.msra.mxu0 %v6477
    %7053 = vmatpush.bf16.msra.mxu0 %v6473
    %7054 = vmatpush.bf16.msra.mxu0 %v6469
    %7055 = vmatmul.bf16.gmra.mxu0 %v4601
    %v7056 = vpop.f32.mrf.mxu0
    %v7057 = vadd.f32 %v7044, %v7056
    %v7058 = vpop.f32.mrf.mxu0
    %7059 = vdwg.mxu0
    %7060 = vmatpush.bf16.msra.mxu0 %v6529
    %7061 = vmatpush.bf16.msra.mxu0 %v6525
    %7062 = vmatpush.bf16.msra.mxu0 %v6521
    %7063 = vmatpush.bf16.msra.mxu0 %v6517
    %7064 = vmatpush.bf16.msra.mxu0 %v6513
    %7065 = vmatpush.bf16.msra.mxu0 %v6509
    %7066 = vmatpush.bf16.msra.mxu0 %v6505
    %7067 = vmatpush.bf16.msra.mxu0 %v6501
    %7068 = vmatmul.bf16.gmra.mxu0 %v4602
    %v7069 = vpop.f32.mrf.mxu0
    %v7070 = vadd.f32 %v7057, %v7069
    %v7071 = vpop.f32.mrf.mxu0
    %7072 = vdwg.mxu0
    %7073 = vmatpush.bf16.msra.mxu0 %v6178
    %7074 = vmatpush.bf16.msra.mxu0 %v6174
    %7075 = vmatpush.bf16.msra.mxu0 %v6170
    %7076 = vmatpush.bf16.msra.mxu0 %v6166
    %7077 = vmatpush.bf16.msra.mxu0 %v6162
    %7078 = vmatpush.bf16.msra.mxu0 %v6158
    %7079 = vmatpush.bf16.msra.mxu0 %v6154
    %7080 = vmatpush.bf16.msra.mxu0 %v6150
    %7081 = vmatmul.bf16.gmra.mxu0 %v4591
    %v7082 = vpop.f32.mrf.mxu0
    %v7083 = vadd.f32 %v4990, %v7082
    %v7084 = vpop.f32.mrf.mxu0
    %7085 = vdwg.mxu0
    %7086 = vmatpush.bf16.msra.mxu0 %v6210
    %7087 = vmatpush.bf16.msra.mxu0 %v6206
    %7088 = vmatpush.bf16.msra.mxu0 %v6202
    %7089 = vmatpush.bf16.msra.mxu0 %v6198
    %7090 = vmatpush.bf16.msra.mxu0 %v6194
    %7091 = vmatpush.bf16.msra.mxu0 %v6190
    %7092 = vmatpush.bf16.msra.mxu0 %v6186
    %7093 = vmatpush.bf16.msra.mxu0 %v6182
    %7094 = vmatmul.bf16.gmra.mxu0 %v4592
    %v7095 = vpop.f32.mrf.mxu0
    %v7096 = vadd.f32 %v7083, %v7095
    %v7097 = vpop.f32.mrf.mxu0
    %7098 = vdwg.mxu0
    %7099 = vmatpush.bf16.msra.mxu0 %v6242
    %7100 = vmatpush.bf16.msra.mxu0 %v6238
    %7101 = vmatpush.bf16.msra.mxu0 %v6234
    %7102 = vmatpush.bf16.msra.mxu0 %v6230
    %7103 = vmatpush.bf16.msra.mxu0 %v6226
    %7104 = vmatpush.bf16.msra.mxu0 %v6222
    %7105 = vmatpush.bf16.msra.mxu0 %v6218
    %7106 = vmatpush.bf16.msra.mxu0 %v6214
    %7107 = vmatmul.bf16.gmra.mxu0 %v4593
    %v7108 = vpop.f32.mrf.mxu0
    %v7109 = vadd.f32 %v7096, %v7108
    %v7110 = vpop.f32.mrf.mxu0
    %7111 = vdwg.mxu0
    %7112 = vmatpush.bf16.msra.mxu0 %v6274
    %7113 = vmatpush.bf16.msra.mxu0 %v6270
    %7114 = vmatpush.bf16.msra.mxu0 %v6266
    %7115 = vmatpush.bf16.msra.mxu0 %v6262
    %7116 = vmatpush.bf16.msra.mxu0 %v6258
    %7117 = vmatpush.bf16.msra.mxu0 %v6254
    %7118 = vmatpush.bf16.msra.mxu0 %v6250
    %7119 = vmatpush.bf16.msra.mxu0 %v6246
    %7120 = vmatmul.bf16.gmra.mxu0 %v4594
    %v7121 = vpop.f32.mrf.mxu0
    %v7122 = vadd.f32 %v7109, %v7121
    %v7123 = vpop.f32.mrf.mxu0
    %7124 = vdwg.mxu0
    %7125 = vmatpush.bf16.msra.mxu0 %v6306
    %7126 = vmatpush.bf16.msra.mxu0 %v6302
    %7127 = vmatpush.bf16.msra.mxu0 %v6298
    %7128 = vmatpush.bf16.msra.mxu0 %v6294
    %7129 = vmatpush.bf16.msra.mxu0 %v6290
    %7130 = vmatpush.bf16.msra.mxu0 %v6286
    %7131 = vmatpush.bf16.msra.mxu0 %v6282
    %7132 = vmatpush.bf16.msra.mxu0 %v6278
    %7133 = vmatmul.bf16.gmra.mxu0 %v4595
    %v7134 = vpop.f32.mrf.mxu0
    %v7135 = vadd.f32 %v7122, %v7134
    %v7136 = vpop.f32.mrf.mxu0
    %7137 = vdwg.mxu0
    %7138 = vmatpush.bf16.msra.mxu0 %v6338
    %7139 = vmatpush.bf16.msra.mxu0 %v6334
    %7140 = vmatpush.bf16.msra.mxu0 %v6330
    %7141 = vmatpush.bf16.msra.mxu0 %v6326
    %7142 = vmatpush.bf16.msra.mxu0 %v6322
    %7143 = vmatpush.bf16.msra.mxu0 %v6318
    %7144 = vmatpush.bf16.msra.mxu0 %v6314
    %7145 = vmatpush.bf16.msra.mxu0 %v6310
    %7146 = vmatmul.bf16.gmra.mxu0 %v4596
    %v7147 = vpop.f32.mrf.mxu0
    %v7148 = vadd.f32 %v7135, %v7147
    %v7149 = vpop.f32.mrf.mxu0
    %7150 = vdwg.mxu0
    %7151 = vmatpush.bf16.msra.mxu0 %v6370
    %7152 = vmatpush.bf16.msra.mxu0 %v6366
    %7153 = vmatpush.bf16.msra.mxu0 %v6362
    %7154 = vmatpush.bf16.msra.mxu0 %v6358
    %7155 = vmatpush.bf16.msra.mxu0 %v6354
    %7156 = vmatpush.bf16.msra.mxu0 %v6350
    %7157 = vmatpush.bf16.msra.mxu0 %v6346
    %7158 = vmatpush.bf16.msra.mxu0 %v6342
    %7159 = vmatmul.bf16.gmra.mxu0 %v4597
    %v7160 = vpop.f32.mrf.mxu0
    %v7161 = vadd.f32 %v7148, %v7160
    %v7162 = vpop.f32.mrf.mxu0
    %7163 = vdwg.mxu0
    %7164 = vmatpush.bf16.msra.mxu0 %v6402
    %7165 = vmatpush.bf16.msra.mxu0 %v6398
    %7166 = vmatpush.bf16.msra.mxu0 %v6394
    %7167 = vmatpush.bf16.msra.mxu0 %v6390
    %7168 = vmatpush.bf16.msra.mxu0 %v6386
    %7169 = vmatpush.bf16.msra.mxu0 %v6382
    %7170 = vmatpush.bf16.msra.mxu0 %v6378
    %7171 = vmatpush.bf16.msra.mxu0 %v6374
    %7172 = vmatmul.bf16.gmra.mxu0 %v4598
    %v7173 = vpop.f32.mrf.mxu0
    %v7174 = vadd.f32 %v7161, %v7173
    %v7175 = vpop.f32.mrf.mxu0
    %7176 = vdwg.mxu0
    %7177 = vmatpush.bf16.msra.mxu0 %v6434
    %7178 = vmatpush.bf16.msra.mxu0 %v6430
    %7179 = vmatpush.bf16.msra.mxu0 %v6426
    %7180 = vmatpush.bf16.msra.mxu0 %v6422
    %7181 = vmatpush.bf16.msra.mxu0 %v6418
    %7182 = vmatpush.bf16.msra.mxu0 %v6414
    %7183 = vmatpush.bf16.msra.mxu0 %v6410
    %7184 = vmatpush.bf16.msra.mxu0 %v6406
    %7185 = vmatmul.bf16.gmra.mxu0 %v4599
    %v7186 = vpop.f32.mrf.mxu0
    %v7187 = vadd.f32 %v7174, %v7186
    %v7188 = vpop.f32.mrf.mxu0
    %7189 = vdwg.mxu0
    %7190 = vmatpush.bf16.msra.mxu0 %v6466
    %7191 = vmatpush.bf16.msra.mxu0 %v6462
    %7192 = vmatpush.bf16.msra.mxu0 %v6458
    %7193 = vmatpush.bf16.msra.mxu0 %v6454
    %7194 = vmatpush.bf16.msra.mxu0 %v6450
    %7195 = vmatpush.bf16.msra.mxu0 %v6446
    %7196 = vmatpush.bf16.msra.mxu0 %v6442
    %7197 = vmatpush.bf16.msra.mxu0 %v6438
    %7198 = vmatmul.bf16.gmra.mxu0 %v4600
    %v7199 = vpop.f32.mrf.mxu0
    %v7200 = vadd.f32 %v7187, %v7199
    %v7201 = vpop.f32.mrf.mxu0
    %7202 = vdwg.mxu0
    %7203 = vmatpush.bf16.msra.mxu0 %v6498
    %7204 = vmatpush.bf16.msra.mxu0 %v6494
    %7205 = vmatpush.bf16.msra.mxu0 %v6490
    %7206 = vmatpush.bf16.msra.mxu0 %v6486
    %7207 = vmatpush.bf16.msra.mxu0 %v6482
    %7208 = vmatpush.bf16.msra.mxu0 %v6478
    %7209 = vmatpush.bf16.msra.mxu0 %v6474
    %7210 = vmatpush.bf16.msra.mxu0 %v6470
    %7211 = vmatmul.bf16.gmra.mxu0 %v4601
    %v7212 = vpop.f32.mrf.mxu0
    %v7213 = vadd.f32 %v7200, %v7212
    %v7214 = vpop.f32.mrf.mxu0
    %7215 = vdwg.mxu0
    %7216 = vmatpush.bf16.msra.mxu0 %v6530
    %7217 = vmatpush.bf16.msra.mxu0 %v6526
    %7218 = vmatpush.bf16.msra.mxu0 %v6522
    %7219 = vmatpush.bf16.msra.mxu0 %v6518
    %7220 = vmatpush.bf16.msra.mxu0 %v6514
    %7221 = vmatpush.bf16.msra.mxu0 %v6510
    %7222 = vmatpush.bf16.msra.mxu0 %v6506
    %7223 = vmatpush.bf16.msra.mxu0 %v6502
    %7224 = vmatmul.bf16.gmra.mxu0 %v4602
    %v7225 = vpop.f32.mrf.mxu0
    %v7226 = vadd.f32 %v7213, %v7225
    %v7227 = vpop.f32.mrf.mxu0
    %7228 = vdwg.mxu0
    %7229 = vmatpush.bf16.msra.mxu0 %v6179
    %7230 = vmatpush.bf16.msra.mxu0 %v6175
    %7231 = vmatpush.bf16.msra.mxu0 %v6171
    %7232 = vmatpush.bf16.msra.mxu0 %v6167
    %7233 = vmatpush.bf16.msra.mxu0 %v6163
    %7234 = vmatpush.bf16.msra.mxu0 %v6159
    %7235 = vmatpush.bf16.msra.mxu0 %v6155
    %7236 = vmatpush.bf16.msra.mxu0 %v6151
    %7237 = vmatmul.bf16.gmra.mxu0 %v4591
    %v7238 = vpop.f32.mrf.mxu0
    %v7239 = vadd.f32 %v4991, %v7238
    %v7240 = vpop.f32.mrf.mxu0
    %7241 = vdwg.mxu0
    %7242 = vmatpush.bf16.msra.mxu0 %v6211
    %7243 = vmatpush.bf16.msra.mxu0 %v6207
    %7244 = vmatpush.bf16.msra.mxu0 %v6203
    %7245 = vmatpush.bf16.msra.mxu0 %v6199
    %7246 = vmatpush.bf16.msra.mxu0 %v6195
    %7247 = vmatpush.bf16.msra.mxu0 %v6191
    %7248 = vmatpush.bf16.msra.mxu0 %v6187
    %7249 = vmatpush.bf16.msra.mxu0 %v6183
    %7250 = vmatmul.bf16.gmra.mxu0 %v4592
    %v7251 = vpop.f32.mrf.mxu0
    %v7252 = vadd.f32 %v7239, %v7251
    %v7253 = vpop.f32.mrf.mxu0
    %7254 = vdwg.mxu0
    %7255 = vmatpush.bf16.msra.mxu0 %v6243
    %7256 = vmatpush.bf16.msra.mxu0 %v6239
    %7257 = vmatpush.bf16.msra.mxu0 %v6235
    %7258 = vmatpush.bf16.msra.mxu0 %v6231
    %7259 = vmatpush.bf16.msra.mxu0 %v6227
    %7260 = vmatpush.bf16.msra.mxu0 %v6223
    %7261 = vmatpush.bf16.msra.mxu0 %v6219
    %7262 = vmatpush.bf16.msra.mxu0 %v6215
    %7263 = vmatmul.bf16.gmra.mxu0 %v4593
    %v7264 = vpop.f32.mrf.mxu0
    %v7265 = vadd.f32 %v7252, %v7264
    %v7266 = vpop.f32.mrf.mxu0
    %7267 = vdwg.mxu0
    %7268 = vmatpush.bf16.msra.mxu0 %v6275
    %7269 = vmatpush.bf16.msra.mxu0 %v6271
    %7270 = vmatpush.bf16.msra.mxu0 %v6267
    %7271 = vmatpush.bf16.msra.mxu0 %v6263
    %7272 = vmatpush.bf16.msra.mxu0 %v6259
    %7273 = vmatpush.bf16.msra.mxu0 %v6255
    %7274 = vmatpush.bf16.msra.mxu0 %v6251
    %7275 = vmatpush.bf16.msra.mxu0 %v6247
    %7276 = vmatmul.bf16.gmra.mxu0 %v4594
    %v7277 = vpop.f32.mrf.mxu0
    %v7278 = vadd.f32 %v7265, %v7277
    %v7279 = vpop.f32.mrf.mxu0
    %7280 = vdwg.mxu0
    %7281 = vmatpush.bf16.msra.mxu0 %v6307
    %7282 = vmatpush.bf16.msra.mxu0 %v6303
    %7283 = vmatpush.bf16.msra.mxu0 %v6299
    %7284 = vmatpush.bf16.msra.mxu0 %v6295
    %7285 = vmatpush.bf16.msra.mxu0 %v6291
    %7286 = vmatpush.bf16.msra.mxu0 %v6287
    %7287 = vmatpush.bf16.msra.mxu0 %v6283
    %7288 = vmatpush.bf16.msra.mxu0 %v6279
    %7289 = vmatmul.bf16.gmra.mxu0 %v4595
    %v7290 = vpop.f32.mrf.mxu0
    %v7291 = vadd.f32 %v7278, %v7290
    %v7292 = vpop.f32.mrf.mxu0
    %7293 = vdwg.mxu0
    %7294 = vmatpush.bf16.msra.mxu0 %v6339
    %7295 = vmatpush.bf16.msra.mxu0 %v6335
    %7296 = vmatpush.bf16.msra.mxu0 %v6331
    %7297 = vmatpush.bf16.msra.mxu0 %v6327
    %7298 = vmatpush.bf16.msra.mxu0 %v6323
    %7299 = vmatpush.bf16.msra.mxu0 %v6319
    %7300 = vmatpush.bf16.msra.mxu0 %v6315
    %7301 = vmatpush.bf16.msra.mxu0 %v6311
    %7302 = vmatmul.bf16.gmra.mxu0 %v4596
    %v7303 = vpop.f32.mrf.mxu0
    %v7304 = vadd.f32 %v7291, %v7303
    %v7305 = vpop.f32.mrf.mxu0
    %7306 = vdwg.mxu0
    %7307 = vmatpush.bf16.msra.mxu0 %v6371
    %7308 = vmatpush.bf16.msra.mxu0 %v6367
    %7309 = vmatpush.bf16.msra.mxu0 %v6363
    %7310 = vmatpush.bf16.msra.mxu0 %v6359
    %7311 = vmatpush.bf16.msra.mxu0 %v6355
    %7312 = vmatpush.bf16.msra.mxu0 %v6351
    %7313 = vmatpush.bf16.msra.mxu0 %v6347
    %7314 = vmatpush.bf16.msra.mxu0 %v6343
    %7315 = vmatmul.bf16.gmra.mxu0 %v4597
    %v7316 = vpop.f32.mrf.mxu0
    %v7317 = vadd.f32 %v7304, %v7316
    %v7318 = vpop.f32.mrf.mxu0
    %7319 = vdwg.mxu0
    %7320 = vmatpush.bf16.msra.mxu0 %v6403
    %7321 = vmatpush.bf16.msra.mxu0 %v6399
    %7322 = vmatpush.bf16.msra.mxu0 %v6395
    %7323 = vmatpush.bf16.msra.mxu0 %v6391
    %7324 = vmatpush.bf16.msra.mxu0 %v6387
    %7325 = vmatpush.bf16.msra.mxu0 %v6383
    %7326 = vmatpush.bf16.msra.mxu0 %v6379
    %7327 = vmatpush.bf16.msra.mxu0 %v6375
    %7328 = vmatmul.bf16.gmra.mxu0 %v4598
    %v7329 = vpop.f32.mrf.mxu0
    %v7330 = vadd.f32 %v7317, %v7329
    %v7331 = vpop.f32.mrf.mxu0
    %7332 = vdwg.mxu0
    %7333 = vmatpush.bf16.msra.mxu0 %v6435
    %7334 = vmatpush.bf16.msra.mxu0 %v6431
    %7335 = vmatpush.bf16.msra.mxu0 %v6427
    %7336 = vmatpush.bf16.msra.mxu0 %v6423
    %7337 = vmatpush.bf16.msra.mxu0 %v6419
    %7338 = vmatpush.bf16.msra.mxu0 %v6415
    %7339 = vmatpush.bf16.msra.mxu0 %v6411
    %7340 = vmatpush.bf16.msra.mxu0 %v6407
    %7341 = vmatmul.bf16.gmra.mxu0 %v4599
    %v7342 = vpop.f32.mrf.mxu0
    %v7343 = vadd.f32 %v7330, %v7342
    %v7344 = vpop.f32.mrf.mxu0
    %7345 = vdwg.mxu0
    %7346 = vmatpush.bf16.msra.mxu0 %v6467
    %7347 = vmatpush.bf16.msra.mxu0 %v6463
    %7348 = vmatpush.bf16.msra.mxu0 %v6459
    %7349 = vmatpush.bf16.msra.mxu0 %v6455
    %7350 = vmatpush.bf16.msra.mxu0 %v6451
    %7351 = vmatpush.bf16.msra.mxu0 %v6447
    %7352 = vmatpush.bf16.msra.mxu0 %v6443
    %7353 = vmatpush.bf16.msra.mxu0 %v6439
    %7354 = vmatmul.bf16.gmra.mxu0 %v4600
    %v7355 = vpop.f32.mrf.mxu0
    %v7356 = vadd.f32 %v7343, %v7355
    %v7357 = vpop.f32.mrf.mxu0
    %7358 = vdwg.mxu0
    %7359 = vmatpush.bf16.msra.mxu0 %v6499
    %7360 = vmatpush.bf16.msra.mxu0 %v6495
    %7361 = vmatpush.bf16.msra.mxu0 %v6491
    %7362 = vmatpush.bf16.msra.mxu0 %v6487
    %7363 = vmatpush.bf16.msra.mxu0 %v6483
    %7364 = vmatpush.bf16.msra.mxu0 %v6479
    %7365 = vmatpush.bf16.msra.mxu0 %v6475
    %7366 = vmatpush.bf16.msra.mxu0 %v6471
    %7367 = vmatmul.bf16.gmra.mxu0 %v4601
    %v7368 = vpop.f32.mrf.mxu0
    %v7369 = vadd.f32 %v7356, %v7368
    %v7370 = vpop.f32.mrf.mxu0
    %7371 = vdwg.mxu0
    %7372 = vmatpush.bf16.msra.mxu0 %v6531
    %7373 = vmatpush.bf16.msra.mxu0 %v6527
    %7374 = vmatpush.bf16.msra.mxu0 %v6523
    %7375 = vmatpush.bf16.msra.mxu0 %v6519
    %7376 = vmatpush.bf16.msra.mxu0 %v6515
    %7377 = vmatpush.bf16.msra.mxu0 %v6511
    %7378 = vmatpush.bf16.msra.mxu0 %v6507
    %7379 = vmatpush.bf16.msra.mxu0 %v6503
    %7380 = vmatmul.bf16.gmra.mxu0 %v4602
    %v7381 = vpop.f32.mrf.mxu0
    %v7382 = vadd.f32 %v7369, %v7381
    %v7383 = vpop.f32.mrf.mxu0
    %7384 = vdwg.mxu0
    %7385 = vmatpush.bf16.msra.mxu0 %v6180
    %7386 = vmatpush.bf16.msra.mxu0 %v6176
    %7387 = vmatpush.bf16.msra.mxu0 %v6172
    %7388 = vmatpush.bf16.msra.mxu0 %v6168
    %7389 = vmatpush.bf16.msra.mxu0 %v6164
    %7390 = vmatpush.bf16.msra.mxu0 %v6160
    %7391 = vmatpush.bf16.msra.mxu0 %v6156
    %7392 = vmatpush.bf16.msra.mxu0 %v6152
    %7393 = vmatmul.bf16.gmra.mxu0 %v4591
    %v7394 = vpop.f32.mrf.mxu0
    %v7395 = vadd.f32 %v4992, %v7394
    %v7396 = vpop.f32.mrf.mxu0
    %7397 = vdwg.mxu0
    %7398 = vmatpush.bf16.msra.mxu0 %v6212
    %7399 = vmatpush.bf16.msra.mxu0 %v6208
    %7400 = vmatpush.bf16.msra.mxu0 %v6204
    %7401 = vmatpush.bf16.msra.mxu0 %v6200
    %7402 = vmatpush.bf16.msra.mxu0 %v6196
    %7403 = vmatpush.bf16.msra.mxu0 %v6192
    %7404 = vmatpush.bf16.msra.mxu0 %v6188
    %7405 = vmatpush.bf16.msra.mxu0 %v6184
    %7406 = vmatmul.bf16.gmra.mxu0 %v4592
    %v7407 = vpop.f32.mrf.mxu0
    %v7408 = vadd.f32 %v7395, %v7407
    %v7409 = vpop.f32.mrf.mxu0
    %7410 = vdwg.mxu0
    %7411 = vmatpush.bf16.msra.mxu0 %v6244
    %7412 = vmatpush.bf16.msra.mxu0 %v6240
    %7413 = vmatpush.bf16.msra.mxu0 %v6236
    %7414 = vmatpush.bf16.msra.mxu0 %v6232
    %7415 = vmatpush.bf16.msra.mxu0 %v6228
    %7416 = vmatpush.bf16.msra.mxu0 %v6224
    %7417 = vmatpush.bf16.msra.mxu0 %v6220
    %7418 = vmatpush.bf16.msra.mxu0 %v6216
    %7419 = vmatmul.bf16.gmra.mxu0 %v4593
    %v7420 = vpop.f32.mrf.mxu0
    %v7421 = vadd.f32 %v7408, %v7420
    %v7422 = vpop.f32.mrf.mxu0
    %7423 = vdwg.mxu0
    %7424 = vmatpush.bf16.msra.mxu0 %v6276
    %7425 = vmatpush.bf16.msra.mxu0 %v6272
    %7426 = vmatpush.bf16.msra.mxu0 %v6268
    %7427 = vmatpush.bf16.msra.mxu0 %v6264
    %7428 = vmatpush.bf16.msra.mxu0 %v6260
    %7429 = vmatpush.bf16.msra.mxu0 %v6256
    %7430 = vmatpush.bf16.msra.mxu0 %v6252
    %7431 = vmatpush.bf16.msra.mxu0 %v6248
    %7432 = vmatmul.bf16.gmra.mxu0 %v4594
    %v7433 = vpop.f32.mrf.mxu0
    %v7434 = vadd.f32 %v7421, %v7433
    %v7435 = vpop.f32.mrf.mxu0
    %7436 = vdwg.mxu0
    %7437 = vmatpush.bf16.msra.mxu0 %v6308
    %7438 = vmatpush.bf16.msra.mxu0 %v6304
    %7439 = vmatpush.bf16.msra.mxu0 %v6300
    %7440 = vmatpush.bf16.msra.mxu0 %v6296
    %7441 = vmatpush.bf16.msra.mxu0 %v6292
    %7442 = vmatpush.bf16.msra.mxu0 %v6288
    %7443 = vmatpush.bf16.msra.mxu0 %v6284
    %7444 = vmatpush.bf16.msra.mxu0 %v6280
    %7445 = vmatmul.bf16.gmra.mxu0 %v4595
    %v7446 = vpop.f32.mrf.mxu0
    %v7447 = vadd.f32 %v7434, %v7446
    %v7448 = vpop.f32.mrf.mxu0
    %7449 = vdwg.mxu0
    %7450 = vmatpush.bf16.msra.mxu0 %v6340
    %7451 = vmatpush.bf16.msra.mxu0 %v6336
    %7452 = vmatpush.bf16.msra.mxu0 %v6332
    %7453 = vmatpush.bf16.msra.mxu0 %v6328
    %7454 = vmatpush.bf16.msra.mxu0 %v6324
    %7455 = vmatpush.bf16.msra.mxu0 %v6320
    %7456 = vmatpush.bf16.msra.mxu0 %v6316
    %7457 = vmatpush.bf16.msra.mxu0 %v6312
    %7458 = vmatmul.bf16.gmra.mxu0 %v4596
    %v7459 = vpop.f32.mrf.mxu0
    %v7460 = vadd.f32 %v7447, %v7459
    %v7461 = vpop.f32.mrf.mxu0
    %7462 = vdwg.mxu0
    %7463 = vmatpush.bf16.msra.mxu0 %v6372
    %7464 = vmatpush.bf16.msra.mxu0 %v6368
    %7465 = vmatpush.bf16.msra.mxu0 %v6364
    %7466 = vmatpush.bf16.msra.mxu0 %v6360
    %7467 = vmatpush.bf16.msra.mxu0 %v6356
    %7468 = vmatpush.bf16.msra.mxu0 %v6352
    %7469 = vmatpush.bf16.msra.mxu0 %v6348
    %7470 = vmatpush.bf16.msra.mxu0 %v6344
    %7471 = vmatmul.bf16.gmra.mxu0 %v4597
    %v7472 = vpop.f32.mrf.mxu0
    %v7473 = vadd.f32 %v7460, %v7472
    %v7474 = vpop.f32.mrf.mxu0
    %7475 = vdwg.mxu0
    %7476 = vmatpush.bf16.msra.mxu0 %v6404
    %7477 = vmatpush.bf16.msra.mxu0 %v6400
    %7478 = vmatpush.bf16.msra.mxu0 %v6396
    %7479 = vmatpush.bf16.msra.mxu0 %v6392
    %7480 = vmatpush.bf16.msra.mxu0 %v6388
    %7481 = vmatpush.bf16.msra.mxu0 %v6384
    %7482 = vmatpush.bf16.msra.mxu0 %v6380
    %7483 = vmatpush.bf16.msra.mxu0 %v6376
    %7484 = vmatmul.bf16.gmra.mxu0 %v4598
    %v7485 = vpop.f32.mrf.mxu0
    %v7486 = vadd.f32 %v7473, %v7485
    %v7487 = vpop.f32.mrf.mxu0
    %7488 = vdwg.mxu0
    %7489 = vmatpush.bf16.msra.mxu0 %v6436
    %7490 = vmatpush.bf16.msra.mxu0 %v6432
    %7491 = vmatpush.bf16.msra.mxu0 %v6428
    %7492 = vmatpush.bf16.msra.mxu0 %v6424
    %7493 = vmatpush.bf16.msra.mxu0 %v6420
    %7494 = vmatpush.bf16.msra.mxu0 %v6416
    %7495 = vmatpush.bf16.msra.mxu0 %v6412
    %7496 = vmatpush.bf16.msra.mxu0 %v6408
    %7497 = vmatmul.bf16.gmra.mxu0 %v4599
    %v7498 = vpop.f32.mrf.mxu0
    %v7499 = vadd.f32 %v7486, %v7498
    %v7500 = vpop.f32.mrf.mxu0
    %7501 = vdwg.mxu0
    %7502 = vmatpush.bf16.msra.mxu0 %v6468
    %7503 = vmatpush.bf16.msra.mxu0 %v6464
    %7504 = vmatpush.bf16.msra.mxu0 %v6460
    %7505 = vmatpush.bf16.msra.mxu0 %v6456
    %7506 = vmatpush.bf16.msra.mxu0 %v6452
    %7507 = vmatpush.bf16.msra.mxu0 %v6448
    %7508 = vmatpush.bf16.msra.mxu0 %v6444
    %7509 = vmatpush.bf16.msra.mxu0 %v6440
    %7510 = vmatmul.bf16.gmra.mxu0 %v4600
    %v7511 = vpop.f32.mrf.mxu0
    %v7512 = vadd.f32 %v7499, %v7511
    %v7513 = vpop.f32.mrf.mxu0
    %7514 = vdwg.mxu0
    %7515 = vmatpush.bf16.msra.mxu0 %v6500
    %7516 = vmatpush.bf16.msra.mxu0 %v6496
    %7517 = vmatpush.bf16.msra.mxu0 %v6492
    %7518 = vmatpush.bf16.msra.mxu0 %v6488
    %7519 = vmatpush.bf16.msra.mxu0 %v6484
    %7520 = vmatpush.bf16.msra.mxu0 %v6480
    %7521 = vmatpush.bf16.msra.mxu0 %v6476
    %7522 = vmatpush.bf16.msra.mxu0 %v6472
    %7523 = vmatmul.bf16.gmra.mxu0 %v4601
    %v7524 = vpop.f32.mrf.mxu0
    %v7525 = vadd.f32 %v7512, %v7524
    %v7526 = vpop.f32.mrf.mxu0
    %7527 = vdwg.mxu0
    %7528 = vmatpush.bf16.msra.mxu0 %v6532
    %7529 = vmatpush.bf16.msra.mxu0 %v6528
    %7530 = vmatpush.bf16.msra.mxu0 %v6524
    %7531 = vmatpush.bf16.msra.mxu0 %v6520
    %7532 = vmatpush.bf16.msra.mxu0 %v6516
    %7533 = vmatpush.bf16.msra.mxu0 %v6512
    %7534 = vmatpush.bf16.msra.mxu0 %v6508
    %7535 = vmatpush.bf16.msra.mxu0 %v6504
    %7536 = vmatmul.bf16.gmra.mxu0 %v4602
    %v7537 = vpop.f32.mrf.mxu0
    %v7538 = vadd.f32 %v7525, %v7537
    %v7539 = vpop.f32.mrf.mxu0
    %7540 = vdwg.mxu0
    %vm7541 = vcmp.gt.f32.partialorder %v7070, 0.0
    %vm7542 = vcmp.gt.f32.partialorder %v7226, 0.0
    %vm7543 = vcmp.gt.f32.partialorder %v7382, 0.0
    %vm7544 = vcmp.gt.f32.partialorder %v7538, 0.0
    %v7545 = vstv %s121
    %v7546 = vmul.f32 %v7545, %v7070
    %v7547 = vmul.f32 %v7545, %v7226
    %v7548 = vmul.f32 %v7545, %v7382
    %v7549 = vmul.f32 %v7545, %v7538
    %v7550 = vsel %vm7541, %v7070, %v7546
    %v7551 = vsel %vm7542, %v7226, %v7547
    %v7552 = vsel %vm7543, %v7382, %v7548
    %v7553 = vsel %vm7544, %v7538, %v7549
    %v7554 = vpack.c.bf16 %v7550, %v7550
    %v7555 = vpack.c.bf16 %v7551, %v7551
    %v7556 = vpack.c.bf16 %v7552, %v7552
    %v7557 = vpack.c.bf16 %v7553, %v7553
    %v7558 = vld [vmem:[%s7] sm:$0xf]
    %v7559 = vld [vmem:[%s7 + $0x4] sm:$0xf]
    %v7560 = vld [vmem:[%s7 + $0x8] sm:$0xf]
    %v7561 = vld [vmem:[%s7 + $0xc] sm:$0xf]
    %v7562 = vld [vmem:[%s7 + $0x10] sm:$0xf]
    %v7563 = vld [vmem:[%s7 + $0x14] sm:$0xf]
    %v7564 = vld [vmem:[%s7 + $0x18] sm:$0xf]
    %v7565 = vld [vmem:[%s7 + $0x1c] sm:$0xf]
    %v7566 = vld [vmem:[%s7 + $0x20] sm:$0xf]
    %v7567 = vld [vmem:[%s7 + $0x24] sm:$0xf]
    %v7568 = vld [vmem:[%s7 + $0x28] sm:$0xf]
    %v7569 = vld [vmem:[%s7 + $0x2c] sm:$0xf]
    %v7570 = vld [vmem:[%s7 + $0x30] sm:$0xf]
    %v7571 = vld [vmem:[%s7 + $0x34] sm:$0xf]
    %v7572 = vld [vmem:[%s7 + $0x38] sm:$0xf]
    %v7573 = vld [vmem:[%s7 + $0x3c] sm:$0xf]
    %v7574 = vld [vmem:[%s7 + $0x40] sm:$0xf]
    %v7575 = vld [vmem:[%s7 + $0x44] sm:$0xf]
    %v7576 = vld [vmem:[%s7 + $0x48] sm:$0xf]
    %v7577 = vld [vmem:[%s7 + $0x4c] sm:$0xf]
    %v7578 = vld [vmem:[%s7 + $0x50] sm:$0xf]
    %v7579 = vld [vmem:[%s7 + $0x54] sm:$0xf]
    %v7580 = vld [vmem:[%s7 + $0x58] sm:$0xf]
    %v7581 = vld [vmem:[%s7 + $0x5c] sm:$0xf]
    %v7582 = vld [vmem:[%s7 + $0x60] sm:$0xf]
    %v7583 = vld [vmem:[%s7 + $0x64] sm:$0xf]
    %v7584 = vld [vmem:[%s7 + $0x68] sm:$0xf]
    %v7585 = vld [vmem:[%s7 + $0x6c] sm:$0xf]
    %v7586 = vld [vmem:[%s7 + $0x70] sm:$0xf]
    %v7587 = vld [vmem:[%s7 + $0x74] sm:$0xf]
    %v7588 = vld [vmem:[%s7 + $0x78] sm:$0xf]
    %v7589 = vld [vmem:[%s7 + $0x7c] sm:$0xf]
    %v7590 = vld [vmem:[%s7 + $0x80] sm:$0xf]
    %v7591 = vld [vmem:[%s7 + $0x84] sm:$0xf]
    %v7592 = vld [vmem:[%s7 + $0x88] sm:$0xf]
    %v7593 = vld [vmem:[%s7 + $0x8c] sm:$0xf]
    %v7594 = vld [vmem:[%s7 + $0x90] sm:$0xf]
    %v7595 = vld [vmem:[%s7 + $0x94] sm:$0xf]
    %v7596 = vld [vmem:[%s7 + $0x98] sm:$0xf]
    %v7597 = vld [vmem:[%s7 + $0x9c] sm:$0xf]
    %v7598 = vld [vmem:[%s7 + $0xa0] sm:$0xf]
    %v7599 = vld [vmem:[%s7 + $0xa4] sm:$0xf]
    %v7600 = vld [vmem:[%s7 + $0xa8] sm:$0xf]
    %v7601 = vld [vmem:[%s7 + $0xac] sm:$0xf]
    %v7602 = vld [vmem:[%s7 + $0xb0] sm:$0xf]
    %v7603 = vld [vmem:[%s7 + $0xb4] sm:$0xf]
    %v7604 = vld [vmem:[%s7 + $0xb8] sm:$0xf]
    %v7605 = vld [vmem:[%s7 + $0xbc] sm:$0xf]
    %v7606 = vld [vmem:[%s7 + $0xc0] sm:$0xf]
    %v7607 = vld [vmem:[%s7 + $0xc4] sm:$0xf]
    %v7608 = vld [vmem:[%s7 + $0xc8] sm:$0xf]
    %v7609 = vld [vmem:[%s7 + $0xcc] sm:$0xf]
    %v7610 = vld [vmem:[%s7 + $0xd0] sm:$0xf]
    %v7611 = vld [vmem:[%s7 + $0xd4] sm:$0xf]
    %v7612 = vld [vmem:[%s7 + $0xd8] sm:$0xf]
    %v7613 = vld [vmem:[%s7 + $0xdc] sm:$0xf]
    %v7614 = vld [vmem:[%s7 + $0xe0] sm:$0xf]
    %v7615 = vld [vmem:[%s7 + $0xe4] sm:$0xf]
    %v7616 = vld [vmem:[%s7 + $0xe8] sm:$0xf]
    %v7617 = vld [vmem:[%s7 + $0xec] sm:$0xf]
    %v7618 = vld [vmem:[%s7 + $0xf0] sm:$0xf]
    %v7619 = vld [vmem:[%s7 + $0xf4] sm:$0xf]
    %v7620 = vld [vmem:[%s7 + $0xf8] sm:$0xf]
    %v7621 = vld [vmem:[%s7 + $0xfc] sm:$0xf]
    %v7622 = vld [vmem:[#allocation12] sm:$0x1]
    %v7624 = vperm.slane %v7622, 0
    %v7690 = vunpack.c.l.b16 %v7558
    %v7691 = vunpack.c.l.b16 %v7559
    %v7692 = vunpack.c.l.b16 %v7560
    %v7693 = vunpack.c.l.b16 %v7561
    %v7694 = vunpack.c.l.b16 %v7562
    %v7695 = vunpack.c.l.b16 %v7563
    %v7696 = vunpack.c.l.b16 %v7564
    %v7697 = vunpack.c.l.b16 %v7565
    %v7698 = vunpack.c.l.b16 %v7566
    %v7699 = vunpack.c.l.b16 %v7567
    %v7700 = vunpack.c.l.b16 %v7568
    %v7701 = vunpack.c.l.b16 %v7569
    %v7702 = vunpack.c.l.b16 %v7570
    %v7703 = vunpack.c.l.b16 %v7571
    %v7704 = vunpack.c.l.b16 %v7572
    %v7705 = vunpack.c.l.b16 %v7573
    %v7706 = vunpack.c.l.b16 %v7574
    %v7707 = vunpack.c.l.b16 %v7575
    %v7708 = vunpack.c.l.b16 %v7576
    %v7709 = vunpack.c.l.b16 %v7577
    %v7710 = vunpack.c.l.b16 %v7578
    %v7711 = vunpack.c.l.b16 %v7579
    %v7712 = vunpack.c.l.b16 %v7580
    %v7713 = vunpack.c.l.b16 %v7581
    %v7714 = vunpack.c.l.b16 %v7582
    %v7715 = vunpack.c.l.b16 %v7583
    %v7716 = vunpack.c.l.b16 %v7584
    %v7717 = vunpack.c.l.b16 %v7585
    %v7718 = vunpack.c.l.b16 %v7586
    %v7719 = vunpack.c.l.b16 %v7587
    %v7720 = vunpack.c.l.b16 %v7588
    %v7721 = vunpack.c.l.b16 %v7589
    %v7722 = vunpack.c.l.b16 %v7590
    %v7723 = vunpack.c.l.b16 %v7591
    %v7724 = vunpack.c.l.b16 %v7592
    %v7725 = vunpack.c.l.b16 %v7593
    %v7726 = vunpack.c.l.b16 %v7594
    %v7727 = vunpack.c.l.b16 %v7595
    %v7728 = vunpack.c.l.b16 %v7596
    %v7729 = vunpack.c.l.b16 %v7597
    %v7730 = vunpack.c.l.b16 %v7598
    %v7731 = vunpack.c.l.b16 %v7599
    %v7732 = vunpack.c.l.b16 %v7600
    %v7733 = vunpack.c.l.b16 %v7601
    %v7734 = vunpack.c.l.b16 %v7602
    %v7735 = vunpack.c.l.b16 %v7603
    %v7736 = vunpack.c.l.b16 %v7604
    %v7737 = vunpack.c.l.b16 %v7605
    %v7738 = vunpack.c.l.b16 %v7606
    %v7739 = vunpack.c.l.b16 %v7607
    %v7740 = vunpack.c.l.b16 %v7608
    %v7741 = vunpack.c.l.b16 %v7609
    %v7742 = vunpack.c.l.b16 %v7610
    %v7743 = vunpack.c.l.b16 %v7611
    %v7744 = vunpack.c.l.b16 %v7612
    %v7745 = vunpack.c.l.b16 %v7613
    %v7746 = vunpack.c.l.b16 %v7614
    %v7747 = vunpack.c.l.b16 %v7615
    %v7748 = vunpack.c.l.b16 %v7616
    %v7749 = vunpack.c.l.b16 %v7617
    %v7750 = vunpack.c.l.b16 %v7618
    %v7751 = vunpack.c.l.b16 %v7619
    %v7752 = vunpack.c.l.b16 %v7620
    %v7753 = vunpack.c.l.b16 %v7621
    %v7754 = vpack.c.b16 %v7691, %v7690
    %v7755 = vpack.c.b16 %v7693, %v7692
    %v7756 = vpack.c.b16 %v7695, %v7694
    %v7757 = vpack.c.b16 %v7697, %v7696
    %v7758 = vpack.c.b16 %v7699, %v7698
    %v7759 = vpack.c.b16 %v7701, %v7700
    %v7760 = vpack.c.b16 %v7703, %v7702
    %v7761 = vpack.c.b16 %v7705, %v7704
    %v7762 = vpack.c.b16 %v7707, %v7706
    %v7763 = vpack.c.b16 %v7709, %v7708
    %v7764 = vpack.c.b16 %v7711, %v7710
    %v7765 = vpack.c.b16 %v7713, %v7712
    %v7766 = vpack.c.b16 %v7715, %v7714
    %v7767 = vpack.c.b16 %v7717, %v7716
    %v7768 = vpack.c.b16 %v7719, %v7718
    %v7769 = vpack.c.b16 %v7721, %v7720
    %v7770 = vpack.c.b16 %v7723, %v7722
    %v7771 = vpack.c.b16 %v7725, %v7724
    %v7772 = vpack.c.b16 %v7727, %v7726
    %v7773 = vpack.c.b16 %v7729, %v7728
    %v7774 = vpack.c.b16 %v7731, %v7730
    %v7775 = vpack.c.b16 %v7733, %v7732
    %v7776 = vpack.c.b16 %v7735, %v7734
    %v7777 = vpack.c.b16 %v7737, %v7736
    %v7778 = vpack.c.b16 %v7739, %v7738
    %v7779 = vpack.c.b16 %v7741, %v7740
    %v7780 = vpack.c.b16 %v7743, %v7742
    %v7781 = vpack.c.b16 %v7745, %v7744
    %v7782 = vpack.c.b16 %v7747, %v7746
    %v7783 = vpack.c.b16 %v7749, %v7748
    %v7784 = vpack.c.b16 %v7751, %v7750
    %v7785 = vpack.c.b16 %v7753, %v7752
    %7818 = vmatpush.bf16.msra.mxu0 %v7761
    %7819 = vmatpush.bf16.msra.mxu0 %v7760
    %7820 = vmatpush.bf16.msra.mxu0 %v7759
    %7821 = vmatpush.bf16.msra.mxu0 %v7758
    %7822 = vmatpush.bf16.msra.mxu0 %v7757
    %7823 = vmatpush.bf16.msra.mxu0 %v7756
    %7824 = vmatpush.bf16.msra.mxu0 %v7755
    %7825 = vmatpush.bf16.msra.mxu0 %v7754
    %7826 = vmatmul.bf16.gmra.mxu0 %v7554
    %v7827 = vpop.f32.mrf.mxu0
    %v7828 = vadd.f32 %v7624, %v7827
    %v7829 = vpop.f32.mrf.mxu0
    %7830 = vdwg.mxu0
    %7831 = vmatpush.bf16.msra.mxu0 %v7769
    %7832 = vmatpush.bf16.msra.mxu0 %v7768
    %7833 = vmatpush.bf16.msra.mxu0 %v7767
    %7834 = vmatpush.bf16.msra.mxu0 %v7766
    %7835 = vmatpush.bf16.msra.mxu0 %v7765
    %7836 = vmatpush.bf16.msra.mxu0 %v7764
    %7837 = vmatpush.bf16.msra.mxu0 %v7763
    %7838 = vmatpush.bf16.msra.mxu0 %v7762
    %7839 = vmatmul.bf16.gmra.mxu0 %v7555
    %v7840 = vpop.f32.mrf.mxu0
    %v7841 = vadd.f32 %v7828, %v7840
    %v7842 = vpop.f32.mrf.mxu0
    %7843 = vdwg.mxu0
    %7844 = vmatpush.bf16.msra.mxu0 %v7777
    %7845 = vmatpush.bf16.msra.mxu0 %v7776
    %7846 = vmatpush.bf16.msra.mxu0 %v7775
    %7847 = vmatpush.bf16.msra.mxu0 %v7774
    %7848 = vmatpush.bf16.msra.mxu0 %v7773
    %7849 = vmatpush.bf16.msra.mxu0 %v7772
    %7850 = vmatpush.bf16.msra.mxu0 %v7771
    %7851 = vmatpush.bf16.msra.mxu0 %v7770
    %7852 = vmatmul.bf16.gmra.mxu0 %v7556
    %v7853 = vpop.f32.mrf.mxu0
    %v7854 = vadd.f32 %v7841, %v7853
    %v7855 = vpop.f32.mrf.mxu0
    %7856 = vdwg.mxu0
    %7857 = vmatpush.bf16.msra.mxu0 %v7785
    %7858 = vmatpush.bf16.msra.mxu0 %v7784
    %7859 = vmatpush.bf16.msra.mxu0 %v7783
    %7860 = vmatpush.bf16.msra.mxu0 %v7782
    %7861 = vmatpush.bf16.msra.mxu0 %v7781
    %7862 = vmatpush.bf16.msra.mxu0 %v7780
    %7863 = vmatpush.bf16.msra.mxu0 %v7779
    %7864 = vmatpush.bf16.msra.mxu0 %v7778
    %7865 = vmatmul.bf16.gmra.mxu0 %v7557
    %v7866 = vpop.f32.mrf.mxu0
    %v7867 = vadd.f32 %v7854, %v7866
    %v7868 = vpop.f32.mrf.mxu0
    %7869 = vdwg.mxu0
    %vm7870 = vcmask 15360
    %7871 = vst.msk [vmem:[%s9] sm:$0xff] %vm7870, %v7867
    // Predicated region
    $region62: #{tpu_custom_call.1} parent=1 // pred_check
      _
    $region63: #{tpu_custom_call.1} parent=1 // pred_check_branch
      %7873 = sbr.rel (0) target = $region65
    $region64: #{tpu_custom_call.1} parent=1 // pred_region
      _
    $region65: #{tpu_custom_call.1} parent=1 // pred_fallthru
      _
    // Predicated region
    $region66: #{tpu_custom_call.1} parent=1 // pred_check
      _
    $region67: #{tpu_custom_call.1} parent=1 // pred_check_branch
      %7875 = sbr.rel (0) target = $region69
    $region68: #{tpu_custom_call.1} parent=1 // pred_region
      _
    $region69: #{tpu_custom_call.1} parent=1 // pred_fallthru
      _
    %7876 = vsyncpa [#allocation5], 1
    %7877 = vsyncpa [#allocation7], 1
    %7878 = vsyncpa [#allocation10], 1
    %7879 = vsyncpa [#allocation13], 1

</llo_original>
